<compile_context>
chip_gen: v7x
topology: tpu7x:2x2x1
jax: 0.10.0
libtpu: 0.0.40
codegen_flags: <defaults>
</compile_context>

<pallas_src>
import functools

import jax
import jax.numpy as jnp
import numpy as np
from jax.experimental import pallas as pl
from jax.experimental.pallas import tpu as pltpu


# ----------------------------------------------------------------------------
# Fused Pallas kernel: conv3x3+bn1+relu -> conv3x3+bn2+residual+relu
# ----------------------------------------------------------------------------
def _basic_block_kernel(x_ref, w1_ref, w2_ref, affine_ref, out_ref, slab_ref,
                        *, H, W, Cp):
    """One batch image per grid step.

    x_ref:      (1, H, W, Cp)        bf16 input block
    w1_ref/w2_ref: (3, 3*Cp, Cp)     bf16 weights, dx folded into the K axis
    affine_ref: (4, Cp)              f32  [scale1, bias1, scale2, bias2]
    out_ref:    (1, H, W, Cp)        bf16 output block
    slab_ref:   (H+2, W, 3*Cp)       bf16 scratch: width-im2col slab with a
                                     1-row zero halo (reused by both convs)
    """
    cdt = slab_ref.dtype
    K = 3 * Cp

    # Zero the 1-row top/bottom halo every step (cheap full-width stores; safe
    # under megacore sharding of the "parallel" batch axis -- scratch is
    # per-core, so no program_id==0 guard).
    slab_ref[0:1, :, :] = jnp.zeros((1, W, K), cdt)
    slab_ref[H + 1:H + 2, :, :] = jnp.zeros((1, W, K), cdt)

    zero_col = jnp.zeros((H, 1, Cp), cdt)

    def build_slab(src):
        # src: (H, W, Cp).  slab[r, x, dx*Cp + c] = src[r-1, x+dx-1, c]
        # (zero outside the image), so each dy contraction reads a contiguous
        # window of rows.  Built ONCE per conv (3 stores + 2 column zeros).
        slab_ref[1:H + 1, 1:W, 0 * Cp:1 * Cp] = src[:, 0:W - 1, :]   # dx = -1
        slab_ref[1:H + 1, 0:1, 0 * Cp:1 * Cp] = zero_col
        slab_ref[1:H + 1, :, 1 * Cp:2 * Cp] = src                    # dx =  0
        slab_ref[1:H + 1, 0:W - 1, 2 * Cp:3 * Cp] = src[:, 1:W, :]   # dx = +1
        slab_ref[1:H + 1, W - 1:W, 2 * Cp:3 * Cp] = zero_col

    def conv3x3(w_ref):
        # 3x3 "same" conv as 3 MXU matmuls (the 3 dx taps folded into one
        # K = 3*Cp contraction per dy).  The partials accumulate as a JAX
        # value -> no scratch read-modify-write through the vld/vst slots.
        acc = None
        for dy in range(3):
            rows = slab_ref[dy:dy + H, :, :]                 # (H, W, 3*Cp)
            c = jnp.dot(rows.reshape(H * W, K), w_ref[dy],
                        preferred_element_type=jnp.float32)  # (H*W, Cp) f32
            acc = c if acc is None else acc + c
        return acc

    xv = x_ref[0]                                            # (H, W, Cp) bf16

    # conv1 + bn1 + relu  (intermediate never leaves VMEM)
    build_slab(xv)
    y1 = conv3x3(w1_ref) * affine_ref[0:1, :] + affine_ref[1:2, :]
    mid = jnp.maximum(y1, 0.0).reshape(H, W, Cp).astype(cdt)

    # conv2 + bn2 + residual + relu
    build_slab(mid)
    y2 = conv3x3(w2_ref) * affine_ref[2:3, :] + affine_ref[3:4, :]
    y2 = y2 + xv.astype(jnp.float32).reshape(H * W, Cp)
    out_ref[...] = jnp.maximum(y2, 0.0).astype(out_ref.dtype).reshape(1, H, W, Cp)


# ----------------------------------------------------------------------------
# Parameter helpers
# ----------------------------------------------------------------------------
def _fold_bn(bn, eps=1e-5):
    scale = bn["gamma"] / jnp.sqrt(bn["var"] + eps)
    bias = bn["beta"] - bn["mean"] * scale
    return scale, bias


def _pad_last(a, target):
    pad = target - a.shape[-1]
    if pad == 0:
        return a
    widths = [(0, 0)] * (a.ndim - 1) + [(0, pad)]
    return jnp.pad(a, widths)


def _physical_vmem_bytes():
    try:
        info = pltpu.get_tpu_info()
        v = getattr(info, "vmem_capacity_bytes", None)
        if v:
            return int(v)
    except Exception:
        pass
    return 64 * 1024 * 1024   # conservative default (v7x per-TC VMEM)


def init_basic_block_params(key, inplanes, planes):
    ks = jax.random.split(key, 10)
    w1 = 0.1 * jax.random.normal(ks[0], (3, 3, inplanes, planes), jnp.float32)  # HWIO
    w2 = 0.1 * jax.random.normal(ks[1], (3, 3, planes, planes), jnp.float32)
    bn1 = dict(
        gamma=1.0 + 0.1 * jax.random.normal(ks[2], (planes,), jnp.float32),
        beta=0.1 * jax.random.normal(ks[3], (planes,), jnp.float32),
        mean=0.1 * jax.random.normal(ks[4], (planes,), jnp.float32),
        var=1.0 + 0.1 * jax.random.uniform(ks[5], (planes,), jnp.float32),
    )
    bn2 = dict(
        gamma=1.0 + 0.1 * jax.random.normal(ks[6], (planes,), jnp.float32),
        beta=0.1 * jax.random.normal(ks[7], (planes,), jnp.float32),
        mean=0.1 * jax.random.normal(ks[8], (planes,), jnp.float32),
        var=1.0 + 0.1 * jax.random.uniform(ks[9], (planes,), jnp.float32),
    )
    return dict(w1=w1, w2=w2, bn1=bn1, bn2=bn2)


# ----------------------------------------------------------------------------
# BasicBlock forward (public API, NCHW in / NCHW out)
# ----------------------------------------------------------------------------
def basic_block_forward(params, x_nchw, *, stride=1, compute_dtype=jnp.bfloat16):
    # TODO(synk): stride>1 / downsample branch not implemented.
    assert stride == 1, "only the stride=1 / downsample=None path is implemented"
    N, C, H, W = x_nchw.shape
    w1, w2 = params["w1"], params["w2"]
    assert w1.shape[2] == C and w1.shape[3] == C and w2.shape[2] == C \
        and w2.shape[3] == C, "identity residual requires inplanes == planes"

    # Pad channels to a lane-dense multiple of 128 (padded channels are zero
    # everywhere and are sliced off at the end -> semantics unchanged).
    Cp = max(128, ((C + 127) // 128) * 128)

    x = jnp.transpose(x_nchw, (0, 2, 3, 1))                      # NCHW -> NHWC
    x_p = _pad_last(x, Cp).astype(compute_dtype)                 # (N, H, W, Cp)

    def prep_w(w):
        wp = jnp.pad(w, ((0, 0), (0, 0), (0, Cp - C), (0, Cp - C)))
        # (3, 3, Cp, Cp) -> (3, 3*Cp, Cp): dx folded into K (matches the
        # in-kernel slab channel layout dx*Cp + cin).
        return wp.astype(compute_dtype).reshape(3, 3 * Cp, Cp)

    w1r, w2r = prep_w(w1), prep_w(w2)

    s1, b1 = _fold_bn(params["bn1"])
    s2, b2 = _fold_bn(params["bn2"])
    affine = jnp.stack([_pad_last(s1, Cp), _pad_last(b1, Cp),
                        _pad_last(s2, Cp), _pad_last(b2, Cp)]).astype(jnp.float32)

    kern = functools.partial(_basic_block_kernel, H=H, W=W, Cp=Cp)

    # VMEM budget: sized from actual usage, capped at 75% of physical VMEM
    # (leaves headroom for Mosaic internal scratch; 48 MiB on v7x, 96 on v5e/v6e).
    cdt_bytes = jnp.dtype(compute_dtype).itemsize
    io_bytes = 2 * 2 * H * W * Cp * cdt_bytes                    # x+out, 2 bufs
    w_bytes = 2 * (2 * 3 * 3 * Cp * Cp * cdt_bytes)              # worst case 2 bufs
    slab_bytes = (H + 2) * W * 3 * Cp * cdt_bytes
    f32_plane = H * W * Cp * 4
    est = io_bytes + w_bytes + slab_bytes + 6 * f32_plane + 4 * Cp * 4
    cap = (_physical_vmem_bytes() * 3) // 4
    vmem_limit = int(min(max(2 * est, 16 * 1024 * 1024), cap))

    flops = 2 * (2 * N * H * W * 9 * Cp * Cp)                    # two 3x3 convs
    bytes_acc = (x_p.size + N * H * W * Cp) * cdt_bytes \
        + (w1r.size + w2r.size) * cdt_bytes + affine.size * 4

    def build_call(single_buffer_consts):
        const_kw = dict(pipeline_mode=pl.Buffered(1)) if single_buffer_consts else {}
        in_specs = [
            pl.BlockSpec((1, H, W, Cp), lambda n: (n, 0, 0, 0)),              # x
            pl.BlockSpec((3, 3 * Cp, Cp), lambda n: (0, 0, 0), **const_kw),   # w1
            pl.BlockSpec((3, 3 * Cp, Cp), lambda n: (0, 0, 0), **const_kw),   # w2
            pl.BlockSpec((4, Cp), lambda n: (0, 0), **const_kw),              # BN
        ]
        return pl.pallas_call(
            kern,
            out_shape=jax.ShapeDtypeStruct((N, H, W, Cp), compute_dtype),
            grid_spec=pltpu.PrefetchScalarGridSpec(
                num_scalar_prefetch=0,
                grid=(N,),
                in_specs=in_specs,
                out_specs=pl.BlockSpec((1, H, W, Cp), lambda n: (n, 0, 0, 0)),
                scratch_shapes=[
                    pltpu.VMEM((H + 2, W, 3 * Cp), compute_dtype),   # im2col slab
                ],
            ),
            compiler_params=pltpu.CompilerParams(
                dimension_semantics=("parallel",),
                vmem_limit_bytes=vmem_limit,
            ),
            cost_estimate=pl.CostEstimate(flops=flops, transcendentals=0,
                                          bytes_accessed=bytes_acc),
        )

    try:
        out = build_call(True)(x_p, w1r, w2r, affine)
    except Exception:
        # Fallback: this jax build does not support pl.Buffered(1) on these
        # grid-invariant operands -- use default double buffering.
        out = build_call(False)(x_p, w1r, w2r, affine)

    out = out[..., :C].astype(x_nchw.dtype)
    return jnp.transpose(out, (0, 3, 1, 2))                      # NHWC -> NCHW


# ----------------------------------------------------------------------------
# Pure-JAX reference with matching bf16 numerics (for correctness check)
# ----------------------------------------------------------------------------
def _reference_forward(params, x_nchw, compute_dtype=jnp.bfloat16):
    x = jnp.transpose(x_nchw, (0, 2, 3, 1))
    dn = ("NHWC", "HWIO", "NHWC")
    s1, b1 = _fold_bn(params["bn1"])
    s2, b2 = _fold_bn(params["bn2"])
    xc = x.astype(compute_dtype)
    w1 = params["w1"].astype(compute_dtype)
    w2 = params["w2"].astype(compute_dtype)

    def conv(inp, w):
        return jax.lax.conv_general_dilated(
            inp, w, (1, 1), "SAME", dimension_numbers=dn,
            preferred_element_type=jnp.float32)

    h = jnp.maximum(conv(xc, w1) * s1 + b1, 0.0).astype(compute_dtype)
    o = jnp.maximum(conv(h, w2) * s2 + b2 + xc.astype(jnp.float32), 0.0)
    return jnp.transpose(o, (0, 3, 1, 2)).astype(x_nchw.dtype)


if __name__ == "__main__":
    key = jax.random.PRNGKey(0)
    k_param, k_x = jax.random.split(key)

    N, C, H, W = 2, 8, 16, 16          # inplanes = planes = 8, stride = 1
    params = init_basic_block_params(k_param, C, C)
    x = jax.random.normal(k_x, (N, C, H, W), jnp.float32)

    out = jax.block_until_ready(basic_block_forward(params, x))
    ref = jax.block_until_ready(_reference_forward(params, x))

    assert out.shape == (N, C, H, W)
    np.testing.assert_allclose(np.asarray(out), np.asarray(ref),
                               rtol=1e-2, atol=1e-2)
    print("KERNEL_OK")
</pallas_src>

<mosaic_0001>
module attributes {stable_mosaic.version = 11 : i64} {
  func.func @_basic_block_kernel(%arg0: i32, %arg1: memref<1x16x16x128xbf16, #tpu.memory_space<vmem>>, %arg2: memref<3x384x128xbf16, #tpu.memory_space<vmem>>, %arg3: memref<3x384x128xbf16, #tpu.memory_space<vmem>>, %arg4: memref<4x128xf32, #tpu.memory_space<vmem>>, %arg5: memref<1x16x16x128xbf16, #tpu.memory_space<vmem>>, %arg6: memref<18x16x384xbf16, #tpu.memory_space<vmem>>) attributes {dimension_semantics = [#tpu.dimension_semantics<parallel>], iteration_bounds = array<i64: 2>, scalar_prefetch = 0 : i64, scratch_operands = 1 : i64, tpu.core_type = #tpu.core_type<tc>, window_params = [{transform_indices = @transform_0, window_bounds = array<i64: 1, 16, 16, 128>}, {pipeline_mode = #tpu.pipeline_mode<synchronous>, transform_indices = @transform_1, window_bounds = array<i64: 3, 384, 128>}, {pipeline_mode = #tpu.pipeline_mode<synchronous>, transform_indices = @transform_2, window_bounds = array<i64: 3, 384, 128>}, {pipeline_mode = #tpu.pipeline_mode<synchronous>, transform_indices = @transform_3, window_bounds = array<i64: 4, 128>}, {transform_indices = @transform_4, window_bounds = array<i64: 1, 16, 16, 128>}]} {
    %cst = arith.constant 0.000000e+00 : bf16
    %0 = vector.broadcast %cst : bf16 to vector<1x16x384xbf16>
    %c0 = arith.constant 0 : index
    %c0_0 = arith.constant 0 : index
    %c0_1 = arith.constant 0 : index
    %1 = vector.load %arg6[%c0, %c0_0, %c0_1] : memref<18x16x384xbf16, #tpu.memory_space<vmem>>, vector<1x16x384xbf16>
    tpu.vector_store %arg6[%c0, %c0_0, %c0_1], %0 {strides = array<i32>} : memref<18x16x384xbf16, #tpu.memory_space<vmem>>, vector<1x16x384xbf16>,
    %cst_2 = arith.constant 0.000000e+00 : bf16
    %2 = vector.broadcast %cst_2 : bf16 to vector<1x16x384xbf16>
    %c17 = arith.constant 17 : index
    %c0_3 = arith.constant 0 : index
    %c0_4 = arith.constant 0 : index
    %3 = vector.load %arg6[%c17, %c0_3, %c0_4] : memref<18x16x384xbf16, #tpu.memory_space<vmem>>, vector<1x16x384xbf16>
    tpu.vector_store %arg6[%c17, %c0_3, %c0_4], %2 {strides = array<i32>} : memref<18x16x384xbf16, #tpu.memory_space<vmem>>, vector<1x16x384xbf16>,
    %cst_5 = arith.constant 0.000000e+00 : bf16
    %4 = vector.broadcast %cst_5 : bf16 to vector<16x1x128xbf16>
    %c0_6 = arith.constant 0 : index
    %c0_7 = arith.constant 0 : index
    %c0_8 = arith.constant 0 : index
    %c0_9 = arith.constant 0 : index
    %5 = vector.load %arg1[%c0_6, %c0_7, %c0_8, %c0_9] : memref<1x16x16x128xbf16, #tpu.memory_space<vmem>>, vector<1x16x16x128xbf16>
    %6 = vector.shape_cast %5 : vector<1x16x16x128xbf16> to vector<16x16x128xbf16>
    %7 = vector.extract_strided_slice %6 {offsets = [0, 0, 0], sizes = [16, 15, 128], strides = [1, 1, 1]} : vector<16x16x128xbf16> to vector<16x15x128xbf16>
    %c1 = arith.constant 1 : index
    %c1_10 = arith.constant 1 : index
    %c0_11 = arith.constant 0 : index
    %8 = vector.load %arg6[%c1, %c1_10, %c0_11] : memref<18x16x384xbf16, #tpu.memory_space<vmem>>, vector<16x15x128xbf16>
    tpu.vector_store %arg6[%c1, %c1_10, %c0_11], %7 {strides = array<i32>} : memref<18x16x384xbf16, #tpu.memory_space<vmem>>, vector<16x15x128xbf16>,
    %c1_12 = arith.constant 1 : index
    %c0_13 = arith.constant 0 : index
    %c0_14 = arith.constant 0 : index
    %9 = vector.load %arg6[%c1_12, %c0_13, %c0_14] : memref<18x16x384xbf16, #tpu.memory_space<vmem>>, vector<16x1x128xbf16>
    tpu.vector_store %arg6[%c1_12, %c0_13, %c0_14], %4 {strides = array<i32>} : memref<18x16x384xbf16, #tpu.memory_space<vmem>>, vector<16x1x128xbf16>,
    %c1_15 = arith.constant 1 : index
    %c0_16 = arith.constant 0 : index
    %c128 = arith.constant 128 : index
    %10 = vector.load %arg6[%c1_15, %c0_16, %c128] : memref<18x16x384xbf16, #tpu.memory_space<vmem>>, vector<16x16x128xbf16>
    tpu.vector_store %arg6[%c1_15, %c0_16, %c128], %6 {strides = array<i32>} : memref<18x16x384xbf16, #tpu.memory_space<vmem>>, vector<16x16x128xbf16>,
    %11 = vector.extract_strided_slice %6 {offsets = [0, 1, 0], sizes = [16, 15, 128], strides = [1, 1, 1]} : vector<16x16x128xbf16> to vector<16x15x128xbf16>
    %c1_17 = arith.constant 1 : index
    %c0_18 = arith.constant 0 : index
    %c256 = arith.constant 256 : index
    %12 = vector.load %arg6[%c1_17, %c0_18, %c256] : memref<18x16x384xbf16, #tpu.memory_space<vmem>>, vector<16x15x128xbf16>
    tpu.vector_store %arg6[%c1_17, %c0_18, %c256], %11 {strides = array<i32>} : memref<18x16x384xbf16, #tpu.memory_space<vmem>>, vector<16x15x128xbf16>,
    %c1_19 = arith.constant 1 : index
    %c15 = arith.constant 15 : index
    %c256_20 = arith.constant 256 : index
    %13 = vector.load %arg6[%c1_19, %c15, %c256_20] : memref<18x16x384xbf16, #tpu.memory_space<vmem>>, vector<16x1x128xbf16>
    tpu.vector_store %arg6[%c1_19, %c15, %c256_20], %4 {strides = array<i32>} : memref<18x16x384xbf16, #tpu.memory_space<vmem>>, vector<16x1x128xbf16>,
    %c0_21 = arith.constant 0 : index
    %c0_22 = arith.constant 0 : index
    %c0_23 = arith.constant 0 : index
    %14 = vector.load %arg6[%c0_21, %c0_22, %c0_23] : memref<18x16x384xbf16, #tpu.memory_space<vmem>>, vector<16x16x384xbf16>
    %15 = vector.shape_cast %14 : vector<16x16x384xbf16> to vector<256x384xbf16>
    %c0_24 = arith.constant 0 : index
    %c0_25 = arith.constant 0 : index
    %c0_26 = arith.constant 0 : index
    %16 = vector.load %arg2[%c0_24, %c0_25, %c0_26] : memref<3x384x128xbf16, #tpu.memory_space<vmem>>, vector<1x384x128xbf16>
    %17 = vector.shape_cast %16 : vector<1x384x128xbf16> to vector<384x128xbf16>
    %cst_27 = arith.constant dense<0.000000e+00> : vector<256x128xf32>
    %18 = tpu.matmul %15, %17, %cst_27 {dimension_numbers = #tpu.dot_dimension_numbers<[1], [0], [0], [1], [0, 0, 1, 1], [], []>} : vector<256x384xbf16>, vector<384x128xbf16>, vector<256x128xf32> -> vector<256x128xf32>
    %c1_28 = arith.constant 1 : index
    %c0_29 = arith.constant 0 : index
    %c0_30 = arith.constant 0 : index
    %19 = vector.load %arg6[%c1_28, %c0_29, %c0_30] : memref<18x16x384xbf16, #tpu.memory_space<vmem>>, vector<16x16x384xbf16>
    %20 = vector.shape_cast %19 : vector<16x16x384xbf16> to vector<256x384xbf16>
    %c1_31 = arith.constant 1 : index
    %c0_32 = arith.constant 0 : index
    %c0_33 = arith.constant 0 : index
    %21 = vector.load %arg2[%c1_31, %c0_32, %c0_33] : memref<3x384x128xbf16, #tpu.memory_space<vmem>>, vector<1x384x128xbf16>
    %22 = vector.shape_cast %21 : vector<1x384x128xbf16> to vector<384x128xbf16>
    %cst_34 = arith.constant dense<0.000000e+00> : vector<256x128xf32>
    %23 = tpu.matmul %20, %22, %cst_34 {dimension_numbers = #tpu.dot_dimension_numbers<[1], [0], [0], [1], [0, 0, 1, 1], [], []>} : vector<256x384xbf16>, vector<384x128xbf16>, vector<256x128xf32> -> vector<256x128xf32>
    %24 = arith.addf %18, %23 : vector<256x128xf32>
    %c2 = arith.constant 2 : index
    %c0_35 = arith.constant 0 : index
    %c0_36 = arith.constant 0 : index
    %25 = vector.load %arg6[%c2, %c0_35, %c0_36] : memref<18x16x384xbf16, #tpu.memory_space<vmem>>, vector<16x16x384xbf16>
    %26 = vector.shape_cast %25 : vector<16x16x384xbf16> to vector<256x384xbf16>
    %c2_37 = arith.constant 2 : index
    %c0_38 = arith.constant 0 : index
    %c0_39 = arith.constant 0 : index
    %27 = vector.load %arg2[%c2_37, %c0_38, %c0_39] : memref<3x384x128xbf16, #tpu.memory_space<vmem>>, vector<1x384x128xbf16>
    %28 = vector.shape_cast %27 : vector<1x384x128xbf16> to vector<384x128xbf16>
    %cst_40 = arith.constant dense<0.000000e+00> : vector<256x128xf32>
    %29 = tpu.matmul %26, %28, %cst_40 {dimension_numbers = #tpu.dot_dimension_numbers<[1], [0], [0], [1], [0, 0, 1, 1], [], []>} : vector<256x384xbf16>, vector<384x128xbf16>, vector<256x128xf32> -> vector<256x128xf32>
    %30 = arith.addf %24, %29 : vector<256x128xf32>
    %c0_41 = arith.constant 0 : index
    %c0_42 = arith.constant 0 : index
    %31 = vector.load %arg4[%c0_41, %c0_42] : memref<4x128xf32, #tpu.memory_space<vmem>>, vector<1x128xf32>
    %32 = vector.broadcast %31 : vector<1x128xf32> to vector<256x128xf32>
    %33 = arith.mulf %30, %32 : vector<256x128xf32>
    %c1_43 = arith.constant 1 : index
    %c0_44 = arith.constant 0 : index
    %34 = vector.load %arg4[%c1_43, %c0_44] : memref<4x128xf32, #tpu.memory_space<vmem>>, vector<1x128xf32>
    %35 = vector.broadcast %34 : vector<1x128xf32> to vector<256x128xf32>
    %36 = arith.addf %33, %35 : vector<256x128xf32>
    %cst_45 = arith.constant 0.000000e+00 : f32
    %37 = vector.broadcast %cst_45 : f32 to vector<256x128xf32>
    %38 = arith.maximumf %36, %37 : vector<256x128xf32>
    %39 = vector.shape_cast %38 : vector<256x128xf32> to vector<16x16x128xf32>
    %40 = arith.truncf %39 : vector<16x16x128xf32> to vector<16x16x128xbf16>
    %41 = vector.extract_strided_slice %40 {offsets = [0, 0, 0], sizes = [16, 15, 128], strides = [1, 1, 1]} : vector<16x16x128xbf16> to vector<16x15x128xbf16>
    %c1_46 = arith.constant 1 : index
    %c1_47 = arith.constant 1 : index
    %c0_48 = arith.constant 0 : index
    %42 = vector.load %arg6[%c1_46, %c1_47, %c0_48] : memref<18x16x384xbf16, #tpu.memory_space<vmem>>, vector<16x15x128xbf16>
    tpu.vector_store %arg6[%c1_46, %c1_47, %c0_48], %41 {strides = array<i32>} : memref<18x16x384xbf16, #tpu.memory_space<vmem>>, vector<16x15x128xbf16>,
    %c1_49 = arith.constant 1 : index
    %c0_50 = arith.constant 0 : index
    %c0_51 = arith.constant 0 : index
    %43 = vector.load %arg6[%c1_49, %c0_50, %c0_51] : memref<18x16x384xbf16, #tpu.memory_space<vmem>>, vector<16x1x128xbf16>
    tpu.vector_store %arg6[%c1_49, %c0_50, %c0_51], %4 {strides = array<i32>} : memref<18x16x384xbf16, #tpu.memory_space<vmem>>, vector<16x1x128xbf16>,
    %c1_52 = arith.constant 1 : index
    %c0_53 = arith.constant 0 : index
    %c128_54 = arith.constant 128 : index
    %44 = vector.load %arg6[%c1_52, %c0_53, %c128_54] : memref<18x16x384xbf16, #tpu.memory_space<vmem>>, vector<16x16x128xbf16>
    tpu.vector_store %arg6[%c1_52, %c0_53, %c128_54], %40 {strides = array<i32>} : memref<18x16x384xbf16, #tpu.memory_space<vmem>>, vector<16x16x128xbf16>,
    %45 = vector.extract_strided_slice %40 {offsets = [0, 1, 0], sizes = [16, 15, 128], strides = [1, 1, 1]} : vector<16x16x128xbf16> to vector<16x15x128xbf16>
    %c1_55 = arith.constant 1 : index
    %c0_56 = arith.constant 0 : index
    %c256_57 = arith.constant 256 : index
    %46 = vector.load %arg6[%c1_55, %c0_56, %c256_57] : memref<18x16x384xbf16, #tpu.memory_space<vmem>>, vector<16x15x128xbf16>
    tpu.vector_store %arg6[%c1_55, %c0_56, %c256_57], %45 {strides = array<i32>} : memref<18x16x384xbf16, #tpu.memory_space<vmem>>, vector<16x15x128xbf16>,
    %c1_58 = arith.constant 1 : index
    %c15_59 = arith.constant 15 : index
    %c256_60 = arith.constant 256 : index
    %47 = vector.load %arg6[%c1_58, %c15_59, %c256_60] : memref<18x16x384xbf16, #tpu.memory_space<vmem>>, vector<16x1x128xbf16>
    tpu.vector_store %arg6[%c1_58, %c15_59, %c256_60], %4 {strides = array<i32>} : memref<18x16x384xbf16, #tpu.memory_space<vmem>>, vector<16x1x128xbf16>,
    %c0_61 = arith.constant 0 : index
    %c0_62 = arith.constant 0 : index
    %c0_63 = arith.constant 0 : index
    %48 = vector.load %arg6[%c0_61, %c0_62, %c0_63] : memref<18x16x384xbf16, #tpu.memory_space<vmem>>, vector<16x16x384xbf16>
    %49 = vector.shape_cast %48 : vector<16x16x384xbf16> to vector<256x384xbf16>
    %c0_64 = arith.constant 0 : index
    %c0_65 = arith.constant 0 : index
    %c0_66 = arith.constant 0 : index
    %50 = vector.load %arg3[%c0_64, %c0_65, %c0_66] : memref<3x384x128xbf16, #tpu.memory_space<vmem>>, vector<1x384x128xbf16>
    %51 = vector.shape_cast %50 : vector<1x384x128xbf16> to vector<384x128xbf16>
    %cst_67 = arith.constant dense<0.000000e+00> : vector<256x128xf32>
    %52 = tpu.matmul %49, %51, %cst_67 {dimension_numbers = #tpu.dot_dimension_numbers<[1], [0], [0], [1], [0, 0, 1, 1], [], []>} : vector<256x384xbf16>, vector<384x128xbf16>, vector<256x128xf32> -> vector<256x128xf32>
    %c1_68 = arith.constant 1 : index
    %c0_69 = arith.constant 0 : index
    %c0_70 = arith.constant 0 : index
    %53 = vector.load %arg6[%c1_68, %c0_69, %c0_70] : memref<18x16x384xbf16, #tpu.memory_space<vmem>>, vector<16x16x384xbf16>
    %54 = vector.shape_cast %53 : vector<16x16x384xbf16> to vector<256x384xbf16>
    %c1_71 = arith.constant 1 : index
    %c0_72 = arith.constant 0 : index
    %c0_73 = arith.constant 0 : index
    %55 = vector.load %arg3[%c1_71, %c0_72, %c0_73] : memref<3x384x128xbf16, #tpu.memory_space<vmem>>, vector<1x384x128xbf16>
    %56 = vector.shape_cast %55 : vector<1x384x128xbf16> to vector<384x128xbf16>
    %cst_74 = arith.constant dense<0.000000e+00> : vector<256x128xf32>
    %57 = tpu.matmul %54, %56, %cst_74 {dimension_numbers = #tpu.dot_dimension_numbers<[1], [0], [0], [1], [0, 0, 1, 1], [], []>} : vector<256x384xbf16>, vector<384x128xbf16>, vector<256x128xf32> -> vector<256x128xf32>
    %58 = arith.addf %52, %57 : vector<256x128xf32>
    %c2_75 = arith.constant 2 : index
    %c0_76 = arith.constant 0 : index
    %c0_77 = arith.constant 0 : index
    %59 = vector.load %arg6[%c2_75, %c0_76, %c0_77] : memref<18x16x384xbf16, #tpu.memory_space<vmem>>, vector<16x16x384xbf16>
    %60 = vector.shape_cast %59 : vector<16x16x384xbf16> to vector<256x384xbf16>
    %c2_78 = arith.constant 2 : index
    %c0_79 = arith.constant 0 : index
    %c0_80 = arith.constant 0 : index
    %61 = vector.load %arg3[%c2_78, %c0_79, %c0_80] : memref<3x384x128xbf16, #tpu.memory_space<vmem>>, vector<1x384x128xbf16>
    %62 = vector.shape_cast %61 : vector<1x384x128xbf16> to vector<384x128xbf16>
    %cst_81 = arith.constant dense<0.000000e+00> : vector<256x128xf32>
    %63 = tpu.matmul %60, %62, %cst_81 {dimension_numbers = #tpu.dot_dimension_numbers<[1], [0], [0], [1], [0, 0, 1, 1], [], []>} : vector<256x384xbf16>, vector<384x128xbf16>, vector<256x128xf32> -> vector<256x128xf32>
    %64 = arith.addf %58, %63 : vector<256x128xf32>
    %c2_82 = arith.constant 2 : index
    %c0_83 = arith.constant 0 : index
    %65 = vector.load %arg4[%c2_82, %c0_83] : memref<4x128xf32, #tpu.memory_space<vmem>>, vector<1x128xf32>
    %66 = vector.broadcast %65 : vector<1x128xf32> to vector<256x128xf32>
    %67 = arith.mulf %64, %66 : vector<256x128xf32>
    %c3 = arith.constant 3 : index
    %c0_84 = arith.constant 0 : index
    %68 = vector.load %arg4[%c3, %c0_84] : memref<4x128xf32, #tpu.memory_space<vmem>>, vector<1x128xf32>
    %69 = vector.broadcast %68 : vector<1x128xf32> to vector<256x128xf32>
    %70 = arith.addf %67, %69 : vector<256x128xf32>
    %71 = arith.extf %6 : vector<16x16x128xbf16> to vector<16x16x128xf32>
    %72 = vector.shape_cast %71 : vector<16x16x128xf32> to vector<256x128xf32>
    %73 = arith.addf %70, %72 : vector<256x128xf32>
    %cst_85 = arith.constant 0.000000e+00 : f32
    %74 = vector.broadcast %cst_85 : f32 to vector<256x128xf32>
    %75 = arith.maximumf %73, %74 : vector<256x128xf32>
    %76 = arith.truncf %75 : vector<256x128xf32> to vector<256x128xbf16>
    %77 = vector.shape_cast %76 : vector<256x128xbf16> to vector<1x16x16x128xbf16>
    %c0_86 = arith.constant 0 : index
    %c0_87 = arith.constant 0 : index
    %c0_88 = arith.constant 0 : index
    %c0_89 = arith.constant 0 : index
    %78 = vector.load %arg5[%c0_86, %c0_87, %c0_88, %c0_89] : memref<1x16x16x128xbf16, #tpu.memory_space<vmem>>, vector<1x16x16x128xbf16>
    tpu.vector_store %arg5[%c0_86, %c0_87, %c0_88, %c0_89], %77 {strides = array<i32>} : memref<1x16x16x128xbf16, #tpu.memory_space<vmem>>, vector<1x16x16x128xbf16>,
    return
  }
  func.func @transform_0(%arg0: i32) -> (i32, i32, i32, i32) {
    %c0_i32 = arith.constant 0 : i32
    %c0_i32_0 = arith.constant 0 : i32
    %c0_i32_1 = arith.constant 0 : i32
    %c0_i32_2 = arith.constant 0 : i32
    return %arg0, %c0_i32, %c0_i32_0, %c0_i32_1 : i32, i32, i32, i32
  }
  func.func @transform_1(%arg0: i32) -> (i32, i32, i32) {
    %c0_i32 = arith.constant 0 : i32
    %c0_i32_0 = arith.constant 0 : i32
    %c0_i32_1 = arith.constant 0 : i32
    %c0_i32_2 = arith.constant 0 : i32
    return %c0_i32, %c0_i32_0, %c0_i32_1 : i32, i32, i32
  }
  func.func @transform_2(%arg0: i32) -> (i32, i32, i32) {
    %c0_i32 = arith.constant 0 : i32
    %c0_i32_0 = arith.constant 0 : i32
    %c0_i32_1 = arith.constant 0 : i32
    %c0_i32_2 = arith.constant 0 : i32
    return %c0_i32, %c0_i32_0, %c0_i32_1 : i32, i32, i32
  }
  func.func @transform_3(%arg0: i32) -> (i32, i32) {
    %c0_i32 = arith.constant 0 : i32
    %c0_i32_0 = arith.constant 0 : i32
    %c0_i32_1 = arith.constant 0 : i32
    return %c0_i32, %c0_i32_0 : i32, i32
  }
  func.func @transform_4(%arg0: i32) -> (i32, i32, i32, i32) {
    %c0_i32 = arith.constant 0 : i32
    %c0_i32_0 = arith.constant 0 : i32
    %c0_i32_1 = arith.constant 0 : i32
    %c0_i32_2 = arith.constant 0 : i32
    return %arg0, %c0_i32, %c0_i32_0, %c0_i32_1 : i32, i32, i32, i32
  }
}

module attributes {stable_mosaic.version = 11 : i64} {
  func.func @_basic_block_kernel(%arg0: i32, %arg1: memref<1x16x16x128xbf16, #tpu.memory_space<vmem>>, %arg2: memref<3x384x128xbf16, #tpu.memory_space<vmem>>, %arg3: memref<3x384x128xbf16, #tpu.memory_space<vmem>>, %arg4: memref<4x128xf32, #tpu.memory_space<vmem>>, %arg5: memref<1x16x16x128xbf16, #tpu.memory_space<vmem>>, %arg6: memref<18x16x384xbf16, #tpu.memory_space<vmem>>) attributes {dimension_semantics = [#tpu.dimension_semantics<parallel>], iteration_bounds = array<i64: 2>, scalar_prefetch = 0 : i64, scratch_operands = 1 : i64, tpu.core_type = #tpu.core_type<tc>, window_params = [{transform_indices = @transform_0, window_bounds = array<i64: 1, 16, 16, 128>}, {pipeline_mode = #tpu.pipeline_mode<synchronous>, transform_indices = @transform_1, window_bounds = array<i64: 3, 384, 128>}, {pipeline_mode = #tpu.pipeline_mode<synchronous>, transform_indices = @transform_2, window_bounds = array<i64: 3, 384, 128>}, {pipeline_mode = #tpu.pipeline_mode<synchronous>, transform_indices = @transform_3, window_bounds = array<i64: 4, 128>}, {transform_indices = @transform_4, window_bounds = array<i64: 1, 16, 16, 128>}]} {
    %cst = arith.constant 0.000000e+00 : bf16
    %0 = vector.broadcast %cst : bf16 to vector<1x16x384xbf16>
    %c0 = arith.constant 0 : index
    %c0_0 = arith.constant 0 : index
    %c0_1 = arith.constant 0 : index
    %1 = vector.load %arg6[%c0, %c0_0, %c0_1] : memref<18x16x384xbf16, #tpu.memory_space<vmem>>, vector<1x16x384xbf16>
    tpu.vector_store %arg6[%c0, %c0_0, %c0_1], %0 {strides = array<i32>} : memref<18x16x384xbf16, #tpu.memory_space<vmem>>, vector<1x16x384xbf16>,
    %cst_2 = arith.constant 0.000000e+00 : bf16
    %2 = vector.broadcast %cst_2 : bf16 to vector<1x16x384xbf16>
    %c17 = arith.constant 17 : index
    %c0_3 = arith.constant 0 : index
    %c0_4 = arith.constant 0 : index
    %3 = vector.load %arg6[%c17, %c0_3, %c0_4] : memref<18x16x384xbf16, #tpu.memory_space<vmem>>, vector<1x16x384xbf16>
    tpu.vector_store %arg6[%c17, %c0_3, %c0_4], %2 {strides = array<i32>} : memref<18x16x384xbf16, #tpu.memory_space<vmem>>, vector<1x16x384xbf16>,
    %cst_5 = arith.constant 0.000000e+00 : bf16
    %4 = vector.broadcast %cst_5 : bf16 to vector<16x1x128xbf16>
    %c0_6 = arith.constant 0 : index
    %c0_7 = arith.constant 0 : index
    %c0_8 = arith.constant 0 : index
    %c0_9 = arith.constant 0 : index
    %5 = vector.load %arg1[%c0_6, %c0_7, %c0_8, %c0_9] : memref<1x16x16x128xbf16, #tpu.memory_space<vmem>>, vector<1x16x16x128xbf16>
    %6 = vector.shape_cast %5 : vector<1x16x16x128xbf16> to vector<16x16x128xbf16>
    %7 = vector.extract_strided_slice %6 {offsets = [0, 0, 0], sizes = [16, 15, 128], strides = [1, 1, 1]} : vector<16x16x128xbf16> to vector<16x15x128xbf16>
    %c1 = arith.constant 1 : index
    %c1_10 = arith.constant 1 : index
    %c0_11 = arith.constant 0 : index
    %8 = vector.load %arg6[%c1, %c1_10, %c0_11] : memref<18x16x384xbf16, #tpu.memory_space<vmem>>, vector<16x15x128xbf16>
    tpu.vector_store %arg6[%c1, %c1_10, %c0_11], %7 {strides = array<i32>} : memref<18x16x384xbf16, #tpu.memory_space<vmem>>, vector<16x15x128xbf16>,
    %c1_12 = arith.constant 1 : index
    %c0_13 = arith.constant 0 : index
    %c0_14 = arith.constant 0 : index
    %9 = vector.load %arg6[%c1_12, %c0_13, %c0_14] : memref<18x16x384xbf16, #tpu.memory_space<vmem>>, vector<16x1x128xbf16>
    tpu.vector_store %arg6[%c1_12, %c0_13, %c0_14], %4 {strides = array<i32>} : memref<18x16x384xbf16, #tpu.memory_space<vmem>>, vector<16x1x128xbf16>,
    %c1_15 = arith.constant 1 : index
    %c0_16 = arith.constant 0 : index
    %c128 = arith.constant 128 : index
    %10 = vector.load %arg6[%c1_15, %c0_16, %c128] : memref<18x16x384xbf16, #tpu.memory_space<vmem>>, vector<16x16x128xbf16>
    tpu.vector_store %arg6[%c1_15, %c0_16, %c128], %6 {strides = array<i32>} : memref<18x16x384xbf16, #tpu.memory_space<vmem>>, vector<16x16x128xbf16>,
    %11 = vector.extract_strided_slice %6 {offsets = [0, 1, 0], sizes = [16, 15, 128], strides = [1, 1, 1]} : vector<16x16x128xbf16> to vector<16x15x128xbf16>
    %c1_17 = arith.constant 1 : index
    %c0_18 = arith.constant 0 : index
    %c256 = arith.constant 256 : index
    %12 = vector.load %arg6[%c1_17, %c0_18, %c256] : memref<18x16x384xbf16, #tpu.memory_space<vmem>>, vector<16x15x128xbf16>
    tpu.vector_store %arg6[%c1_17, %c0_18, %c256], %11 {strides = array<i32>} : memref<18x16x384xbf16, #tpu.memory_space<vmem>>, vector<16x15x128xbf16>,
    %c1_19 = arith.constant 1 : index
    %c15 = arith.constant 15 : index
    %c256_20 = arith.constant 256 : index
    %13 = vector.load %arg6[%c1_19, %c15, %c256_20] : memref<18x16x384xbf16, #tpu.memory_space<vmem>>, vector<16x1x128xbf16>
    tpu.vector_store %arg6[%c1_19, %c15, %c256_20], %4 {strides = array<i32>} : memref<18x16x384xbf16, #tpu.memory_space<vmem>>, vector<16x1x128xbf16>,
    %c0_21 = arith.constant 0 : index
    %c0_22 = arith.constant 0 : index
    %c0_23 = arith.constant 0 : index
    %14 = vector.load %arg6[%c0_21, %c0_22, %c0_23] : memref<18x16x384xbf16, #tpu.memory_space<vmem>>, vector<16x16x384xbf16>
    %15 = vector.shape_cast %14 : vector<16x16x384xbf16> to vector<256x384xbf16>
    %c0_24 = arith.constant 0 : index
    %c0_25 = arith.constant 0 : index
    %c0_26 = arith.constant 0 : index
    %16 = vector.load %arg2[%c0_24, %c0_25, %c0_26] : memref<3x384x128xbf16, #tpu.memory_space<vmem>>, vector<1x384x128xbf16>
    %17 = vector.shape_cast %16 : vector<1x384x128xbf16> to vector<384x128xbf16>
    %cst_27 = arith.constant dense<0.000000e+00> : vector<256x128xf32>
    %18 = tpu.matmul %15, %17, %cst_27 {dimension_numbers = #tpu.dot_dimension_numbers<[1], [0], [0], [1], [0, 0, 1, 1], [], []>} : vector<256x384xbf16>, vector<384x128xbf16>, vector<256x128xf32> -> vector<256x128xf32>
    %c1_28 = arith.constant 1 : index
    %c0_29 = arith.constant 0 : index
    %c0_30 = arith.constant 0 : index
    %19 = vector.load %arg6[%c1_28, %c0_29, %c0_30] : memref<18x16x384xbf16, #tpu.memory_space<vmem>>, vector<16x16x384xbf16>
    %20 = vector.shape_cast %19 : vector<16x16x384xbf16> to vector<256x384xbf16>
    %c1_31 = arith.constant 1 : index
    %c0_32 = arith.constant 0 : index
    %c0_33 = arith.constant 0 : index
    %21 = vector.load %arg2[%c1_31, %c0_32, %c0_33] : memref<3x384x128xbf16, #tpu.memory_space<vmem>>, vector<1x384x128xbf16>
    %22 = vector.shape_cast %21 : vector<1x384x128xbf16> to vector<384x128xbf16>
    %cst_34 = arith.constant dense<0.000000e+00> : vector<256x128xf32>
    %23 = tpu.matmul %20, %22, %cst_34 {dimension_numbers = #tpu.dot_dimension_numbers<[1], [0], [0], [1], [0, 0, 1, 1], [], []>} : vector<256x384xbf16>, vector<384x128xbf16>, vector<256x128xf32> -> vector<256x128xf32>
    %24 = arith.addf %18, %23 : vector<256x128xf32>
    %c2 = arith.constant 2 : index
    %c0_35 = arith.constant 0 : index
    %c0_36 = arith.constant 0 : index
    %25 = vector.load %arg6[%c2, %c0_35, %c0_36] : memref<18x16x384xbf16, #tpu.memory_space<vmem>>, vector<16x16x384xbf16>
    %26 = vector.shape_cast %25 : vector<16x16x384xbf16> to vector<256x384xbf16>
    %c2_37 = arith.constant 2 : index
    %c0_38 = arith.constant 0 : index
    %c0_39 = arith.constant 0 : index
    %27 = vector.load %arg2[%c2_37, %c0_38, %c0_39] : memref<3x384x128xbf16, #tpu.memory_space<vmem>>, vector<1x384x128xbf16>
    %28 = vector.shape_cast %27 : vector<1x384x128xbf16> to vector<384x128xbf16>
    %cst_40 = arith.constant dense<0.000000e+00> : vector<256x128xf32>
    %29 = tpu.matmul %26, %28, %cst_40 {dimension_numbers = #tpu.dot_dimension_numbers<[1], [0], [0], [1], [0, 0, 1, 1], [], []>} : vector<256x384xbf16>, vector<384x128xbf16>, vector<256x128xf32> -> vector<256x128xf32>
    %30 = arith.addf %24, %29 : vector<256x128xf32>
    %c0_41 = arith.constant 0 : index
    %c0_42 = arith.constant 0 : index
    %31 = vector.load %arg4[%c0_41, %c0_42] : memref<4x128xf32, #tpu.memory_space<vmem>>, vector<1x128xf32>
    %32 = vector.broadcast %31 : vector<1x128xf32> to vector<256x128xf32>
    %33 = arith.mulf %30, %32 : vector<256x128xf32>
    %c1_43 = arith.constant 1 : index
    %c0_44 = arith.constant 0 : index
    %34 = vector.load %arg4[%c1_43, %c0_44] : memref<4x128xf32, #tpu.memory_space<vmem>>, vector<1x128xf32>
    %35 = vector.broadcast %34 : vector<1x128xf32> to vector<256x128xf32>
    %36 = arith.addf %33, %35 : vector<256x128xf32>
    %cst_45 = arith.constant 0.000000e+00 : f32
    %37 = vector.broadcast %cst_45 : f32 to vector<256x128xf32>
    %38 = arith.maximumf %36, %37 : vector<256x128xf32>
    %39 = vector.shape_cast %38 : vector<256x128xf32> to vector<16x16x128xf32>
    %40 = arith.truncf %39 : vector<16x16x128xf32> to vector<16x16x128xbf16>
    %41 = vector.extract_strided_slice %40 {offsets = [0, 0, 0], sizes = [16, 15, 128], strides = [1, 1, 1]} : vector<16x16x128xbf16> to vector<16x15x128xbf16>
    %c1_46 = arith.constant 1 : index
    %c1_47 = arith.constant 1 : index
    %c0_48 = arith.constant 0 : index
    %42 = vector.load %arg6[%c1_46, %c1_47, %c0_48] : memref<18x16x384xbf16, #tpu.memory_space<vmem>>, vector<16x15x128xbf16>
    tpu.vector_store %arg6[%c1_46, %c1_47, %c0_48], %41 {strides = array<i32>} : memref<18x16x384xbf16, #tpu.memory_space<vmem>>, vector<16x15x128xbf16>,
    %c1_49 = arith.constant 1 : index
    %c0_50 = arith.constant 0 : index
    %c0_51 = arith.constant 0 : index
    %43 = vector.load %arg6[%c1_49, %c0_50, %c0_51] : memref<18x16x384xbf16, #tpu.memory_space<vmem>>, vector<16x1x128xbf16>
    tpu.vector_store %arg6[%c1_49, %c0_50, %c0_51], %4 {strides = array<i32>} : memref<18x16x384xbf16, #tpu.memory_space<vmem>>, vector<16x1x128xbf16>,
    %c1_52 = arith.constant 1 : index
    %c0_53 = arith.constant 0 : index
    %c128_54 = arith.constant 128 : index
    %44 = vector.load %arg6[%c1_52, %c0_53, %c128_54] : memref<18x16x384xbf16, #tpu.memory_space<vmem>>, vector<16x16x128xbf16>
    tpu.vector_store %arg6[%c1_52, %c0_53, %c128_54], %40 {strides = array<i32>} : memref<18x16x384xbf16, #tpu.memory_space<vmem>>, vector<16x16x128xbf16>,
    %45 = vector.extract_strided_slice %40 {offsets = [0, 1, 0], sizes = [16, 15, 128], strides = [1, 1, 1]} : vector<16x16x128xbf16> to vector<16x15x128xbf16>
    %c1_55 = arith.constant 1 : index
    %c0_56 = arith.constant 0 : index
    %c256_57 = arith.constant 256 : index
    %46 = vector.load %arg6[%c1_55, %c0_56, %c256_57] : memref<18x16x384xbf16, #tpu.memory_space<vmem>>, vector<16x15x128xbf16>
    tpu.vector_store %arg6[%c1_55, %c0_56, %c256_57], %45 {strides = array<i32>} : memref<18x16x384xbf16, #tpu.memory_space<vmem>>, vector<16x15x128xbf16>,
    %c1_58 = arith.constant 1 : index
    %c15_59 = arith.constant 15 : index
    %c256_60 = arith.constant 256 : index
    %47 = vector.load %arg6[%c1_58, %c15_59, %c256_60] : memref<18x16x384xbf16, #tpu.memory_space<vmem>>, vector<16x1x128xbf16>
    tpu.vector_store %arg6[%c1_58, %c15_59, %c256_60], %4 {strides = array<i32>} : memref<18x16x384xbf16, #tpu.memory_space<vmem>>, vector<16x1x128xbf16>,
    %c0_61 = arith.constant 0 : index
    %c0_62 = arith.constant 0 : index
    %c0_63 = arith.constant 0 : index
    %48 = vector.load %arg6[%c0_61, %c0_62, %c0_63] : memref<18x16x384xbf16, #tpu.memory_space<vmem>>, vector<16x16x384xbf16>
    %49 = vector.shape_cast %48 : vector<16x16x384xbf16> to vector<256x384xbf16>
    %c0_64 = arith.constant 0 : index
    %c0_65 = arith.constant 0 : index
    %c0_66 = arith.constant 0 : index
    %50 = vector.load %arg3[%c0_64, %c0_65, %c0_66] : memref<3x384x128xbf16, #tpu.memory_space<vmem>>, vector<1x384x128xbf16>
    %51 = vector.shape_cast %50 : vector<1x384x128xbf16> to vector<384x128xbf16>
    %cst_67 = arith.constant dense<0.000000e+00> : vector<256x128xf32>
    %52 = tpu.matmul %49, %51, %cst_67 {dimension_numbers = #tpu.dot_dimension_numbers<[1], [0], [0], [1], [0, 0, 1, 1], [], []>} : vector<256x384xbf16>, vector<384x128xbf16>, vector<256x128xf32> -> vector<256x128xf32>
    %c1_68 = arith.constant 1 : index
    %c0_69 = arith.constant 0 : index
    %c0_70 = arith.constant 0 : index
    %53 = vector.load %arg6[%c1_68, %c0_69, %c0_70] : memref<18x16x384xbf16, #tpu.memory_space<vmem>>, vector<16x16x384xbf16>
    %54 = vector.shape_cast %53 : vector<16x16x384xbf16> to vector<256x384xbf16>
    %c1_71 = arith.constant 1 : index
    %c0_72 = arith.constant 0 : index
    %c0_73 = arith.constant 0 : index
    %55 = vector.load %arg3[%c1_71, %c0_72, %c0_73] : memref<3x384x128xbf16, #tpu.memory_space<vmem>>, vector<1x384x128xbf16>
    %56 = vector.shape_cast %55 : vector<1x384x128xbf16> to vector<384x128xbf16>
    %cst_74 = arith.constant dense<0.000000e+00> : vector<256x128xf32>
    %57 = tpu.matmul %54, %56, %cst_74 {dimension_numbers = #tpu.dot_dimension_numbers<[1], [0], [0], [1], [0, 0, 1, 1], [], []>} : vector<256x384xbf16>, vector<384x128xbf16>, vector<256x128xf32> -> vector<256x128xf32>
    %58 = arith.addf %52, %57 : vector<256x128xf32>
    %c2_75 = arith.constant 2 : index
    %c0_76 = arith.constant 0 : index
    %c0_77 = arith.constant 0 : index
    %59 = vector.load %arg6[%c2_75, %c0_76, %c0_77] : memref<18x16x384xbf16, #tpu.memory_space<vmem>>, vector<16x16x384xbf16>
    %60 = vector.shape_cast %59 : vector<16x16x384xbf16> to vector<256x384xbf16>
    %c2_78 = arith.constant 2 : index
    %c0_79 = arith.constant 0 : index
    %c0_80 = arith.constant 0 : index
    %61 = vector.load %arg3[%c2_78, %c0_79, %c0_80] : memref<3x384x128xbf16, #tpu.memory_space<vmem>>, vector<1x384x128xbf16>
    %62 = vector.shape_cast %61 : vector<1x384x128xbf16> to vector<384x128xbf16>
    %cst_81 = arith.constant dense<0.000000e+00> : vector<256x128xf32>
    %63 = tpu.matmul %60, %62, %cst_81 {dimension_numbers = #tpu.dot_dimension_numbers<[1], [0], [0], [1], [0, 0, 1, 1], [], []>} : vector<256x384xbf16>, vector<384x128xbf16>, vector<256x128xf32> -> vector<256x128xf32>
    %64 = arith.addf %58, %63 : vector<256x128xf32>
    %c2_82 = arith.constant 2 : index
    %c0_83 = arith.constant 0 : index
    %65 = vector.load %arg4[%c2_82, %c0_83] : memref<4x128xf32, #tpu.memory_space<vmem>>, vector<1x128xf32>
    %66 = vector.broadcast %65 : vector<1x128xf32> to vector<256x128xf32>
    %67 = arith.mulf %64, %66 : vector<256x128xf32>
    %c3 = arith.constant 3 : index
    %c0_84 = arith.constant 0 : index
    %68 = vector.load %arg4[%c3, %c0_84] : memref<4x128xf32, #tpu.memory_space<vmem>>, vector<1x128xf32>
    %69 = vector.broadcast %68 : vector<1x128xf32> to vector<256x128xf32>
    %70 = arith.addf %67, %69 : vector<256x128xf32>
    %71 = arith.extf %6 : vector<16x16x128xbf16> to vector<16x16x128xf32>
    %72 = vector.shape_cast %71 : vector<16x16x128xf32> to vector<256x128xf32>
    %73 = arith.addf %70, %72 : vector<256x128xf32>
    %cst_85 = arith.constant 0.000000e+00 : f32
    %74 = vector.broadcast %cst_85 : f32 to vector<256x128xf32>
    %75 = arith.maximumf %73, %74 : vector<256x128xf32>
    %76 = arith.truncf %75 : vector<256x128xf32> to vector<256x128xbf16>
    %77 = vector.shape_cast %76 : vector<256x128xbf16> to vector<1x16x16x128xbf16>
    %c0_86 = arith.constant 0 : index
    %c0_87 = arith.constant 0 : index
    %c0_88 = arith.constant 0 : index
    %c0_89 = arith.constant 0 : index
    %78 = vector.load %arg5[%c0_86, %c0_87, %c0_88, %c0_89] : memref<1x16x16x128xbf16, #tpu.memory_space<vmem>>, vector<1x16x16x128xbf16>
    tpu.vector_store %arg5[%c0_86, %c0_87, %c0_88, %c0_89], %77 {strides = array<i32>} : memref<1x16x16x128xbf16, #tpu.memory_space<vmem>>, vector<1x16x16x128xbf16>,
    return
  }
  func.func @transform_0(%arg0: i32) -> (i32, i32, i32, i32) {
    %c0_i32 = arith.constant 0 : i32
    %c0_i32_0 = arith.constant 0 : i32
    %c0_i32_1 = arith.constant 0 : i32
    %c0_i32_2 = arith.constant 0 : i32
    return %arg0, %c0_i32, %c0_i32_0, %c0_i32_1 : i32, i32, i32, i32
  }
  func.func @transform_1(%arg0: i32) -> (i32, i32, i32) {
    %c0_i32 = arith.constant 0 : i32
    %c0_i32_0 = arith.constant 0 : i32
    %c0_i32_1 = arith.constant 0 : i32
    %c0_i32_2 = arith.constant 0 : i32
    return %c0_i32, %c0_i32_0, %c0_i32_1 : i32, i32, i32
  }
  func.func @transform_2(%arg0: i32) -> (i32, i32, i32) {
    %c0_i32 = arith.constant 0 : i32
    %c0_i32_0 = arith.constant 0 : i32
    %c0_i32_1 = arith.constant 0 : i32
    %c0_i32_2 = arith.constant 0 : i32
    return %c0_i32, %c0_i32_0, %c0_i32_1 : i32, i32, i32
  }
  func.func @transform_3(%arg0: i32) -> (i32, i32) {
    %c0_i32 = arith.constant 0 : i32
    %c0_i32_0 = arith.constant 0 : i32
    %c0_i32_1 = arith.constant 0 : i32
    return %c0_i32, %c0_i32_0 : i32, i32
  }
  func.func @transform_4(%arg0: i32) -> (i32, i32, i32, i32) {
    %c0_i32 = arith.constant 0 : i32
    %c0_i32_0 = arith.constant 0 : i32
    %c0_i32_1 = arith.constant 0 : i32
    %c0_i32_2 = arith.constant 0 : i32
    return %arg0, %c0_i32, %c0_i32_0, %c0_i32_1 : i32, i32, i32, i32
  }
}

</mosaic_0001>

<llo_original>
// kernel: tpu_custom_call.1
$region0: #{tpu_custom_call.1}
  #allocation0 [shape = 'u32[]', space=smem, size = 0x4, offset = 0x4, fixed_abs, tag = 'smem constant byte address 0x4 - core index']
  #allocation1 [shape = 'u32[144,128]{1,0:T(1,128)}', space=vmem, size = 0x12000, scoped, tag = 'internal scratch']
  #allocation2 [shape = 'bf16[18,16,384]{2,1,0:T(16,128)(2,1)}', space=vmem, size = 0x36000, scoped, tag = 'scratch operand']
  %s0 = inlined_call_operand.hbm [shape: bf16[2,16,16,128], index: 0, kind: input, shape index: {}]
  %s1 = inlined_call_operand.hbm [shape: bf16[3,384,128], index: 1, kind: input, shape index: {}]
  %s2 = inlined_call_operand.hbm [shape: bf16[3,384,128], index: 2, kind: input, shape index: {}]
  %s3 = inlined_call_operand.vmem [shape: f32[4,128], index: 3, kind: input, shape index: {}]
  %s4 = inlined_call_operand.hbm [shape: bf16[2,16,16,128], index: 4, kind: output, shape index: {}]
  %s5 = sld [smem:[#allocation0]]
  $region61: #{tpu_custom_call.1} parent=0
    _
  %s7 = ssub.s32 1, %s5
  %s8 = scalar_select 0, %s7, %s5
  $region1: #{tpu_custom_call.1} parent=0
    #allocation3 [shape = 'u8[131072]{0}', space=vmem, size = 0x20000, scoped, tag = 'input window, operand 0']
    #allocation4 [shape = 's32[2]{0}', space=sflag, size = 0x8, scoped, tag = 'scoped memory for tpu_custom_call.1']
    #allocation5 [shape = 's32[2]{0}', space=sflag, size = 0x8, scoped, tag = 'scoped memory for tpu_custom_call.1']
    #allocation6 [shape = 'u8[294912]{0}', space=vmem, size = 0x48000, scoped, tag = 'input window, operand 1, single buffered']
    #allocation7 [shape = 's32[1]{0}', space=sflag, size = 0x4, scoped, tag = 'scoped memory for tpu_custom_call.1']
    #allocation8 [shape = 'u8[294912]{0}', space=vmem, size = 0x48000, scoped, tag = 'input window, operand 2, single buffered']
    #allocation9 [shape = 'u8[131072]{0}', space=vmem, size = 0x20000, scoped, tag = 'output window, operand 0']
    %9 = vsyncpa [#allocation4], 0
    %s10 = scalar_lea.sflag [#allocation4], 1
    %11 = vsyncpa %s10, 0
    %12 = vsyncpa [#allocation7], 0
    %13 = vsyncpa [#allocation5], 0
    %s14 = scalar_lea.sflag [#allocation5], 1
    %15 = vsyncpa %s14, 0
    loop: start=0, step=1, limit=4
    $region2: #{tpu_custom_call.1} parent=1 // loop_pre_header
      _
    $region3: #{tpu_custom_call.1} parent=1 // loop_header
      %s17 = sphi 0, %s21
      %p18 = scmp.ge.s32.totalorder %s17, 4
      %s27 = sphi 0, %s29
      %s30 = sphi 0, %s27
      %s31 = sphi 0, %s30
      %s47 = sphi 0, %s31
      %s51 = sphi 0, %s51
      %s53 = sphi 0, %s51
      %s54 = sphi 0, %s53
      %s68 = sphi 0, %s54
      %s72 = sphi 0, %s72
      %s74 = sphi 0, %s72
      %s75 = sphi 0, %s74
      %s89 = sphi 0, %s75
      %s93 = sphi 0, %s93
      %s95 = sphi 0, %s93
      %s96 = sphi 0, %s95
      %s110 = sphi 0, %s96
      %s116 = sphi 0, %s118
      %s119 = sphi 0, %s116
      %s120 = sphi 0, %s119
      %s136 = sphi 0, %s120
    $region4: #{tpu_custom_call.1} parent=1 // loop_header_branch
      %20 = sbr.rel (%p18) target = $region8
    $region5: #{tpu_custom_call.1} parent=1 // loop_body
      %s22 = ssub.s32 %s17, 1
      %s23 = ssub.s32 %s17, 2
      %s24 = sadd.s32 %s17, 1
      %s25 = ssub.s32 %s17, %s24
      %p26 = scmp.eq.s32.totalorder %s25, 0
      %s28 = sadd.s32 %s27, 1
      %s29 = scalar_select %p26, %s27, %s28
      %p32 = pneg %p26
      %p33 = scmp.eq.s32.totalorder %s17, 1
      %p34 = por %p32, %p33
      %p35 = scmp.ne.s32.totalorder %s27, %s30
      %p36 = scmp.eq.s32.totalorder %s17, 0
      %p37 = por %p35, %p36
      %p38 = scmp.ne.s32.totalorder %s27, %s30
      %p39 = scmp.eq.s32.totalorder %s22, 1
      %p40 = por %p38, %p39
      %p41 = scmp.ne.s32.totalorder %s30, %s31
      %p42 = scmp.eq.s32.totalorder %s22, 0
      %p43 = por %p41, %p42
      %p44 = scmp.ne.s32.totalorder %s30, %s31
      %p45 = scmp.eq.s32.totalorder %s23, 1
      %p46 = por %p44, %p45
      %p48 = scmp.ne.s32.totalorder %s31, %s47
      %p49 = scmp.eq.s32.totalorder %s23, 0
      %p50 = por %p48, %p49
      %s52 = sadd.s32 %s51, 1
      %p55 = scmp.eq.s32.totalorder %s17, 1
      %p56 = scmp.ne.s32.totalorder %s51, %s53
      %p57 = scmp.eq.s32.totalorder %s17, 0
      %p58 = por %p56, %p57
      %p59 = scmp.ne.s32.totalorder %s51, %s53
      %p60 = scmp.eq.s32.totalorder %s22, 1
      %p61 = por %p59, %p60
      %p62 = scmp.ne.s32.totalorder %s53, %s54
      %p63 = scmp.eq.s32.totalorder %s22, 0
      %p64 = por %p62, %p63
      %p65 = scmp.ne.s32.totalorder %s53, %s54
      %p66 = scmp.eq.s32.totalorder %s23, 1
      %p67 = por %p65, %p66
      %p69 = scmp.ne.s32.totalorder %s54, %s68
      %p70 = scmp.eq.s32.totalorder %s23, 0
      %p71 = por %p69, %p70
      %s73 = sadd.s32 %s72, 1
      %p76 = scmp.eq.s32.totalorder %s17, 1
      %p77 = scmp.ne.s32.totalorder %s72, %s74
      %p78 = scmp.eq.s32.totalorder %s17, 0
      %p79 = por %p77, %p78
      %p80 = scmp.ne.s32.totalorder %s72, %s74
      %p81 = scmp.eq.s32.totalorder %s22, 1
      %p82 = por %p80, %p81
      %p83 = scmp.ne.s32.totalorder %s74, %s75
      %p84 = scmp.eq.s32.totalorder %s22, 0
      %p85 = por %p83, %p84
      %p86 = scmp.ne.s32.totalorder %s74, %s75
      %p87 = scmp.eq.s32.totalorder %s23, 1
      %p88 = por %p86, %p87
      %p90 = scmp.ne.s32.totalorder %s75, %s89
      %p91 = scmp.eq.s32.totalorder %s23, 0
      %p92 = por %p90, %p91
      %s94 = sadd.s32 %s93, 1
      %p97 = scmp.eq.s32.totalorder %s17, 1
      %p98 = scmp.ne.s32.totalorder %s93, %s95
      %p99 = scmp.eq.s32.totalorder %s17, 0
      %p100 = por %p98, %p99
      %p101 = scmp.ne.s32.totalorder %s93, %s95
      %p102 = scmp.eq.s32.totalorder %s22, 1
      %p103 = por %p101, %p102
      %p104 = scmp.ne.s32.totalorder %s95, %s96
      %p105 = scmp.eq.s32.totalorder %s22, 0
      %p106 = por %p104, %p105
      %p107 = scmp.ne.s32.totalorder %s95, %s96
      %p108 = scmp.eq.s32.totalorder %s23, 1
      %p109 = por %p107, %p108
      %p111 = scmp.ne.s32.totalorder %s96, %s110
      %p112 = scmp.eq.s32.totalorder %s23, 0
      %p113 = por %p111, %p112
      %s114 = ssub.s32 %s17, %s24
      %p115 = scmp.eq.s32.totalorder %s114, 0
      %s117 = sadd.s32 %s116, 1
      %s118 = scalar_select %p115, %s116, %s117
      %p121 = pneg %p115
      %p122 = scmp.eq.s32.totalorder %s17, 1
      %p123 = por %p121, %p122
      %p124 = scmp.ne.s32.totalorder %s116, %s119
      %p125 = scmp.eq.s32.totalorder %s17, 0
      %p126 = por %p124, %p125
      %p127 = scmp.ne.s32.totalorder %s116, %s119
      %p128 = scmp.eq.s32.totalorder %s22, 1
      %p129 = por %p127, %p128
      %p130 = scmp.ne.s32.totalorder %s119, %s120
      %p131 = scmp.eq.s32.totalorder %s22, 0
      %p132 = por %p130, %p131
      %p133 = scmp.ne.s32.totalorder %s119, %s120
      %p134 = scmp.eq.s32.totalorder %s23, 1
      %p135 = por %p133, %p134
      %p137 = scmp.ne.s32.totalorder %s120, %s136
      %p138 = scmp.eq.s32.totalorder %s23, 0
      %p139 = por %p137, %p138
      %p140 = scmp.le.s32.totalorder 1, %s17
      %p141 = scmp.lt.s32.totalorder %s17, 3
      %p142 = pnand %p140, %p141
      %p143 = pneg %p142
      // Predicated region
      $region9: #{tpu_custom_call.1} parent=5 // pred_check
        _
      $region10: #{tpu_custom_call.1} parent=5 // pred_check_branch
        %145 = sbr.rel (%p142) target = $region12
      $region11: #{tpu_custom_call.1} parent=5 // pred_region
        %s146 = ssub.s32 %s17, 1
        // Predicated region
        $region13: #{tpu_custom_call.1} parent=11 // pred_check
          %p147 = pneg %p64
        $region14: #{tpu_custom_call.1} parent=11 // pred_check_branch
          %149 = sbr.rel (%p147) target = $region16
        $region15: #{tpu_custom_call.1} parent=11 // pred_region
          %s151 = ssub.s32 9216, 9216
          %152 = vsyncadd [#allocation7], %s151
          %s153 = sshll.u32 [#allocation6], 4
          %s154 = int_to_ptr.vmem [resolvable:$true] %s153
          %159 = dma.hbm_to_vmem [thread:$0]  %s1, 9216, %s154, [#allocation7], 64, 64, 4
        $region16: #{tpu_custom_call.1} parent=11 // pred_fallthru
          _
        // Predicated region
        $region17: #{tpu_custom_call.1} parent=11 // pred_check
          %p160 = pneg %p85
        $region18: #{tpu_custom_call.1} parent=11 // pred_check_branch
          %162 = sbr.rel (%p160) target = $region20
        $region19: #{tpu_custom_call.1} parent=11 // pred_region
          %s164 = ssub.s32 9216, 9216
          %165 = vsyncadd [#allocation7], %s164
          %s166 = sshll.u32 [#allocation8], 4
          %s167 = int_to_ptr.vmem [resolvable:$true] %s166
          %172 = dma.hbm_to_vmem [thread:$0]  %s2, 9216, %s167, [#allocation7], 64, 64, 4
        $region20: #{tpu_custom_call.1} parent=11 // pred_fallthru
          _
        // Predicated region
        $region21: #{tpu_custom_call.1} parent=11 // pred_check
          %p173 = pneg %p106
        $region22: #{tpu_custom_call.1} parent=11 // pred_check_branch
          %175 = sbr.rel (%p173) target = $region24
        $region23: #{tpu_custom_call.1} parent=11 // pred_region
          _
        $region24: #{tpu_custom_call.1} parent=11 // pred_fallthru
          _
      $region12: #{tpu_custom_call.1} parent=5 // pred_fallthru
        _
      %p176 = scmp.lt.s32.totalorder %s17, 2
      // Predicated region
      $region25: #{tpu_custom_call.1} parent=5 // pred_check
        %p177 = pneg %p176
      $region26: #{tpu_custom_call.1} parent=5 // pred_check_branch
        %179 = sbr.rel (%p177) target = $region28
      $region27: #{tpu_custom_call.1} parent=5 // pred_region
        // Predicated region
        $region29: #{tpu_custom_call.1} parent=27 // pred_check
          %p180 = pneg %p37
        $region30: #{tpu_custom_call.1} parent=27 // pred_check_branch
          %182 = sbr.rel (%p180) target = $region32
        $region31: #{tpu_custom_call.1} parent=27 // pred_region
          %s183 = sand.u32 %s27, 1
          %s184 = scalar_lea.sflag [#allocation4], %s183
          %s185 = sand.u32 %s27, 1
          %s186 = smul.addr %s185, 128
          %s187 = scalar_lea.vmem [#allocation3], %s186
          %s189 = ssub.s32 2048, 2048
          %190 = vsyncadd %s184, %s189
          %s191 = smul.addr %s17, 32
          %s192 = smul.addr %s191, 64
          %s193 = scalar_lea.hbm %s0, %s192
          %s194 = sshll.u32 %s187, 4
          %s195 = int_to_ptr.vmem [resolvable:$true] %s194
          %200 = dma.hbm_to_vmem [thread:$0]  %s193, 2048, %s195, %s184, 64, 64, 4
        $region32: #{tpu_custom_call.1} parent=27 // pred_fallthru
          _
      $region28: #{tpu_custom_call.1} parent=5 // pred_fallthru
        _
      %p201 = scmp.le.s32.totalorder 1, %s17
      %p202 = scmp.lt.s32.totalorder %s17, 3
      %p203 = pnand %p201, %p202
      %p204 = pneg %p203
      // Predicated region
      $region33: #{tpu_custom_call.1} parent=5 // pred_check
        _
      $region34: #{tpu_custom_call.1} parent=5 // pred_check_branch
        %206 = sbr.rel (%p203) target = $region36
      $region35: #{tpu_custom_call.1} parent=5 // pred_region
        %s207 = ssub.s32 %s17, 1
        %s208 = sand.u32 %s30, 1
        %s209 = scalar_lea.sflag [#allocation4], %s208
        %s210 = sand.u32 %s30, 1
        %s211 = smul.addr %s210, 128
        %s212 = scalar_lea.vmem [#allocation3], %s211
        // Predicated region
        $region37: #{tpu_custom_call.1} parent=35 // pred_check
          %p213 = pneg %p43
        $region38: #{tpu_custom_call.1} parent=35 // pred_check_branch
          %215 = sbr.rel (%p213) target = $region40
        $region39: #{tpu_custom_call.1} parent=35 // pred_region
          %216 = dma.done %s209, 2048
        $region40: #{tpu_custom_call.1} parent=35 // pred_fallthru
          _
        // Predicated region
        $region41: #{tpu_custom_call.1} parent=35 // pred_check
          %p217 = pneg %p64
        $region42: #{tpu_custom_call.1} parent=35 // pred_check_branch
          %219 = sbr.rel (%p217) target = $region44
        $region43: #{tpu_custom_call.1} parent=35 // pred_region
          %220 = dma.done [#allocation7], 9216
        $region44: #{tpu_custom_call.1} parent=35 // pred_fallthru
          _
        // Predicated region
        $region45: #{tpu_custom_call.1} parent=35 // pred_check
          %p221 = pneg %p85
        $region46: #{tpu_custom_call.1} parent=35 // pred_check_branch
          %223 = sbr.rel (%p221) target = $region48
        $region47: #{tpu_custom_call.1} parent=35 // pred_region
          %224 = dma.done [#allocation7], 9216
        $region48: #{tpu_custom_call.1} parent=35 // pred_fallthru
          _
        %s225 = sand.u32 %s30, 1
        %s226 = scalar_lea.sflag [#allocation4], %s225
        %s227 = sand.u32 %s30, 1
        %s228 = smul.addr %s227, 128
        %s229 = scalar_lea.vmem [#allocation3], %s228
        %p230 = pneg %p43
        %p231 = pneg %p40
        %p232 = pneg %p64
        %p233 = pneg %p61
        %p234 = pneg %p85
        %p235 = pneg %p82
        %p236 = pneg %p106
        %p237 = pneg %p103
        %p238 = pneg %p132
        %p239 = pneg %p129
        %s240 = sand.u32 %s119, 1
        %s241 = scalar_lea.sflag [#allocation5], %s240
        %s242 = sand.u32 %s119, 1
        %s243 = smul.addr %s242, 128
        %s244 = scalar_lea.vmem [#allocation9], %s243
        %246 = vst [vmem:[#allocation2] sm:$0xff] 0
        %247 = vst [vmem:[#allocation2 + $0x8] sm:$0xff] 0
        %248 = vst [vmem:[#allocation2 + $0x10] sm:$0xff] 0
        %s249 = scalar_lea.vmem [#allocation2], 408
        %250 = vst [vmem:[%s249] sm:$0xff] 0
        %251 = vst [vmem:[%s249 + $0x8] sm:$0xff] 0
        %252 = vst [vmem:[%s249 + $0x10] sm:$0xff] 0
        %v253 = vld [vmem:[%s212] sm:$0xf]
        %v254 = vld [vmem:[%s212 + $0x4] sm:$0xf]
        %v255 = vld [vmem:[%s212 + $0x8] sm:$0xf]
        %v256 = vld [vmem:[%s212 + $0xc] sm:$0xf]
        %v257 = vld [vmem:[%s212 + $0x10] sm:$0xf]
        %v258 = vld [vmem:[%s212 + $0x14] sm:$0xf]
        %v259 = vld [vmem:[%s212 + $0x18] sm:$0xf]
        %v260 = vld [vmem:[%s212 + $0x1c] sm:$0xf]
        %v261 = vld [vmem:[%s212 + $0x20] sm:$0xf]
        %v262 = vld [vmem:[%s212 + $0x24] sm:$0xf]
        %v263 = vld [vmem:[%s212 + $0x28] sm:$0xf]
        %v264 = vld [vmem:[%s212 + $0x2c] sm:$0xf]
        %v265 = vld [vmem:[%s212 + $0x30] sm:$0xf]
        %v266 = vld [vmem:[%s212 + $0x34] sm:$0xf]
        %v267 = vld [vmem:[%s212 + $0x38] sm:$0xf]
        %v268 = vld [vmem:[%s212 + $0x3c] sm:$0xf]
        %v269 = vld [vmem:[%s212 + $0x40] sm:$0xf]
        %v270 = vld [vmem:[%s212 + $0x44] sm:$0xf]
        %v271 = vld [vmem:[%s212 + $0x48] sm:$0xf]
        %v272 = vld [vmem:[%s212 + $0x4c] sm:$0xf]
        %v273 = vld [vmem:[%s212 + $0x50] sm:$0xf]
        %v274 = vld [vmem:[%s212 + $0x54] sm:$0xf]
        %v275 = vld [vmem:[%s212 + $0x58] sm:$0xf]
        %v276 = vld [vmem:[%s212 + $0x5c] sm:$0xf]
        %v277 = vld [vmem:[%s212 + $0x60] sm:$0xf]
        %v278 = vld [vmem:[%s212 + $0x64] sm:$0xf]
        %v279 = vld [vmem:[%s212 + $0x68] sm:$0xf]
        %v280 = vld [vmem:[%s212 + $0x6c] sm:$0xf]
        %v281 = vld [vmem:[%s212 + $0x70] sm:$0xf]
        %v282 = vld [vmem:[%s212 + $0x74] sm:$0xf]
        %v283 = vld [vmem:[%s212 + $0x78] sm:$0xf]
        %v284 = vld [vmem:[%s212 + $0x7c] sm:$0xf]
        %v317 = vunpack.c.l.b16 %v253
        %v318 = vunpack.c.l.b16 %v254
        %v319 = vunpack.c.l.b16 %v255
        %v320 = vunpack.c.l.b16 %v256
        %v321 = vunpack.c.l.b16 %v257
        %v322 = vunpack.c.l.b16 %v258
        %v323 = vunpack.c.l.b16 %v259
        %v324 = vunpack.c.l.b16 %v260
        %v325 = vunpack.c.l.b16 %v261
        %v326 = vunpack.c.l.b16 %v262
        %v327 = vunpack.c.l.b16 %v263
        %v328 = vunpack.c.l.b16 %v264
        %v329 = vunpack.c.l.b16 %v265
        %v330 = vunpack.c.l.b16 %v266
        %v331 = vunpack.c.l.b16 %v267
        %v332 = vunpack.c.l.b16 %v268
        %v333 = vunpack.c.l.b16 %v269
        %v334 = vunpack.c.l.b16 %v270
        %v335 = vunpack.c.l.b16 %v271
        %v336 = vunpack.c.l.b16 %v272
        %v337 = vunpack.c.l.b16 %v273
        %v338 = vunpack.c.l.b16 %v274
        %v339 = vunpack.c.l.b16 %v275
        %v340 = vunpack.c.l.b16 %v276
        %v341 = vunpack.c.l.b16 %v277
        %v342 = vunpack.c.l.b16 %v278
        %v343 = vunpack.c.l.b16 %v279
        %v344 = vunpack.c.l.b16 %v280
        %v345 = vunpack.c.l.b16 %v281
        %v346 = vunpack.c.l.b16 %v282
        %v347 = vunpack.c.l.b16 %v283
        %v348 = vunpack.c.l.b16 %v284
        %v349 = vpack.c.b16 %v318, %v317
        %v350 = vpack.c.b16 %v320, %v319
        %v351 = vpack.c.b16 %v322, %v321
        %v352 = vpack.c.b16 %v324, %v323
        %v353 = vpack.c.b16 %v326, %v325
        %v354 = vpack.c.b16 %v328, %v327
        %v355 = vpack.c.b16 %v330, %v329
        %v356 = vpack.c.b16 %v332, %v331
        %v357 = vpack.c.b16 %v334, %v333
        %v358 = vpack.c.b16 %v336, %v335
        %v359 = vpack.c.b16 %v338, %v337
        %v360 = vpack.c.b16 %v340, %v339
        %v361 = vpack.c.b16 %v342, %v341
        %v362 = vpack.c.b16 %v344, %v343
        %v363 = vpack.c.b16 %v346, %v345
        %v364 = vpack.c.b16 %v348, %v347
        %v366 = vshrl.u32 %v349, 16
        %v368 = vrot.slane %v366, 7
        %v369 = vshll.u32 %v349, 16
        %v371 = vor.u32 %v368, %v369
        %v373 = vshrl.u32 %v350, 16
        %v375 = vrot.slane %v373, 7
        %v376 = vshll.u32 %v350, 16
        %v378 = vor.u32 %v375, %v376
        %v380 = vshrl.u32 %v351, 16
        %v382 = vrot.slane %v380, 7
        %v383 = vshll.u32 %v351, 16
        %v385 = vor.u32 %v382, %v383
        %v387 = vshrl.u32 %v352, 16
        %v389 = vrot.slane %v387, 7
        %v390 = vshll.u32 %v352, 16
        %v392 = vor.u32 %v389, %v390
        %v394 = vshrl.u32 %v353, 16
        %v396 = vrot.slane %v394, 7
        %v397 = vshll.u32 %v353, 16
        %v399 = vor.u32 %v396, %v397
        %v401 = vshrl.u32 %v354, 16
        %v403 = vrot.slane %v401, 7
        %v404 = vshll.u32 %v354, 16
        %v406 = vor.u32 %v403, %v404
        %v408 = vshrl.u32 %v355, 16
        %v410 = vrot.slane %v408, 7
        %v411 = vshll.u32 %v355, 16
        %v413 = vor.u32 %v410, %v411
        %v415 = vshrl.u32 %v356, 16
        %v417 = vrot.slane %v415, 7
        %v418 = vshll.u32 %v356, 16
        %v420 = vor.u32 %v417, %v418
        %v422 = vshrl.u32 %v357, 16
        %v424 = vrot.slane %v422, 7
        %v425 = vshll.u32 %v357, 16
        %v427 = vor.u32 %v424, %v425
        %v429 = vshrl.u32 %v358, 16
        %v431 = vrot.slane %v429, 7
        %v432 = vshll.u32 %v358, 16
        %v434 = vor.u32 %v431, %v432
        %v436 = vshrl.u32 %v359, 16
        %v438 = vrot.slane %v436, 7
        %v439 = vshll.u32 %v359, 16
        %v441 = vor.u32 %v438, %v439
        %v443 = vshrl.u32 %v360, 16
        %v445 = vrot.slane %v443, 7
        %v446 = vshll.u32 %v360, 16
        %v448 = vor.u32 %v445, %v446
        %v450 = vshrl.u32 %v361, 16
        %v452 = vrot.slane %v450, 7
        %v453 = vshll.u32 %v361, 16
        %v455 = vor.u32 %v452, %v453
        %v457 = vshrl.u32 %v362, 16
        %v459 = vrot.slane %v457, 7
        %v460 = vshll.u32 %v362, 16
        %v462 = vor.u32 %v459, %v460
        %v464 = vshrl.u32 %v363, 16
        %v466 = vrot.slane %v464, 7
        %v467 = vshll.u32 %v363, 16
        %v469 = vor.u32 %v466, %v467
        %v471 = vshrl.u32 %v364, 16
        %v473 = vrot.slane %v471, 7
        %v474 = vshll.u32 %v364, 16
        %v476 = vor.u32 %v473, %v474
        %s493 = scalar_lea.vmem [#allocation2], 24
        %vm494 = vcmask 1047552
        %vm495 = vsmask.f32 7938
        %vm496 = vmand %vm494, %vm495
        %v497 = vld [vmem:[%s493] sm:$0xff]
        %v498 = vsel %vm496, %v371, %v497
        %499 = vst [vmem:[%s493] sm:$0xff] %v498
        %v500 = vld [vmem:[%s493 + $0x18] sm:$0xff]
        %v501 = vsel %vm496, %v378, %v500
        %502 = vst [vmem:[%s493 + $0x18] sm:$0xff] %v501
        %v503 = vld [vmem:[%s493 + $0x30] sm:$0xff]
        %v504 = vsel %vm496, %v385, %v503
        %505 = vst [vmem:[%s493 + $0x30] sm:$0xff] %v504
        %v506 = vld [vmem:[%s493 + $0x48] sm:$0xff]
        %v507 = vsel %vm496, %v392, %v506
        %508 = vst [vmem:[%s493 + $0x48] sm:$0xff] %v507
        %v509 = vld [vmem:[%s493 + $0x60] sm:$0xff]
        %v510 = vsel %vm496, %v399, %v509
        %511 = vst [vmem:[%s493 + $0x60] sm:$0xff] %v510
        %v512 = vld [vmem:[%s493 + $0x78] sm:$0xff]
        %v513 = vsel %vm496, %v406, %v512
        %514 = vst [vmem:[%s493 + $0x78] sm:$0xff] %v513
        %v515 = vld [vmem:[%s493 + $0x90] sm:$0xff]
        %v516 = vsel %vm496, %v413, %v515
        %517 = vst [vmem:[%s493 + $0x90] sm:$0xff] %v516
        %v518 = vld [vmem:[%s493 + $0xa8] sm:$0xff]
        %v519 = vsel %vm496, %v420, %v518
        %520 = vst [vmem:[%s493 + $0xa8] sm:$0xff] %v519
        %v521 = vld [vmem:[%s493 + $0xc0] sm:$0xff]
        %v522 = vsel %vm496, %v427, %v521
        %523 = vst [vmem:[%s493 + $0xc0] sm:$0xff] %v522
        %v524 = vld [vmem:[%s493 + $0xd8] sm:$0xff]
        %v525 = vsel %vm496, %v434, %v524
        %526 = vst [vmem:[%s493 + $0xd8] sm:$0xff] %v525
        %v527 = vld [vmem:[%s493 + $0xf0] sm:$0xff]
        %v528 = vsel %vm496, %v441, %v527
        %529 = vst [vmem:[%s493 + $0xf0] sm:$0xff] %v528
        %v530 = vld [vmem:[%s493 + $0x108] sm:$0xff]
        %v531 = vsel %vm496, %v448, %v530
        %532 = vst [vmem:[%s493 + $0x108] sm:$0xff] %v531
        %v533 = vld [vmem:[%s493 + $0x120] sm:$0xff]
        %v534 = vsel %vm496, %v455, %v533
        %535 = vst [vmem:[%s493 + $0x120] sm:$0xff] %v534
        %v536 = vld [vmem:[%s493 + $0x138] sm:$0xff]
        %v537 = vsel %vm496, %v462, %v536
        %538 = vst [vmem:[%s493 + $0x138] sm:$0xff] %v537
        %v539 = vld [vmem:[%s493 + $0x150] sm:$0xff]
        %v540 = vsel %vm496, %v469, %v539
        %541 = vst [vmem:[%s493 + $0x150] sm:$0xff] %v540
        %v542 = vld [vmem:[%s493 + $0x168] sm:$0xff]
        %v543 = vsel %vm496, %v476, %v542
        %544 = vst [vmem:[%s493 + $0x168] sm:$0xff] %v543
        %vm545 = vcmask 1040384
        %vm546 = vsmask.f32 256
        %vm547 = vmand %vm545, %vm546
        %v548 = vld [vmem:[%s493] sm:$0x1]
        %v549 = vsel %vm547, 0, %v548
        %550 = vst [vmem:[%s493] sm:$0x1] %v549
        %v551 = vld [vmem:[%s493 + $0x18] sm:$0x1]
        %v552 = vsel %vm547, 0, %v551
        %553 = vst [vmem:[%s493 + $0x18] sm:$0x1] %v552
        %v554 = vld [vmem:[%s493 + $0x30] sm:$0x1]
        %v555 = vsel %vm547, 0, %v554
        %556 = vst [vmem:[%s493 + $0x30] sm:$0x1] %v555
        %v557 = vld [vmem:[%s493 + $0x48] sm:$0x1]
        %v558 = vsel %vm547, 0, %v557
        %559 = vst [vmem:[%s493 + $0x48] sm:$0x1] %v558
        %v560 = vld [vmem:[%s493 + $0x60] sm:$0x1]
        %v561 = vsel %vm547, 0, %v560
        %562 = vst [vmem:[%s493 + $0x60] sm:$0x1] %v561
        %v563 = vld [vmem:[%s493 + $0x78] sm:$0x1]
        %v564 = vsel %vm547, 0, %v563
        %565 = vst [vmem:[%s493 + $0x78] sm:$0x1] %v564
        %v566 = vld [vmem:[%s493 + $0x90] sm:$0x1]
        %v567 = vsel %vm547, 0, %v566
        %568 = vst [vmem:[%s493 + $0x90] sm:$0x1] %v567
        %v569 = vld [vmem:[%s493 + $0xa8] sm:$0x1]
        %v570 = vsel %vm547, 0, %v569
        %571 = vst [vmem:[%s493 + $0xa8] sm:$0x1] %v570
        %v572 = vld [vmem:[%s493 + $0xc0] sm:$0x1]
        %v573 = vsel %vm547, 0, %v572
        %574 = vst [vmem:[%s493 + $0xc0] sm:$0x1] %v573
        %v575 = vld [vmem:[%s493 + $0xd8] sm:$0x1]
        %v576 = vsel %vm547, 0, %v575
        %577 = vst [vmem:[%s493 + $0xd8] sm:$0x1] %v576
        %v578 = vld [vmem:[%s493 + $0xf0] sm:$0x1]
        %v579 = vsel %vm547, 0, %v578
        %580 = vst [vmem:[%s493 + $0xf0] sm:$0x1] %v579
        %v581 = vld [vmem:[%s493 + $0x108] sm:$0x1]
        %v582 = vsel %vm547, 0, %v581
        %583 = vst [vmem:[%s493 + $0x108] sm:$0x1] %v582
        %v584 = vld [vmem:[%s493 + $0x120] sm:$0x1]
        %v585 = vsel %vm547, 0, %v584
        %586 = vst [vmem:[%s493 + $0x120] sm:$0x1] %v585
        %v587 = vld [vmem:[%s493 + $0x138] sm:$0x1]
        %v588 = vsel %vm547, 0, %v587
        %589 = vst [vmem:[%s493 + $0x138] sm:$0x1] %v588
        %v590 = vld [vmem:[%s493 + $0x150] sm:$0x1]
        %v591 = vsel %vm547, 0, %v590
        %592 = vst [vmem:[%s493 + $0x150] sm:$0x1] %v591
        %v593 = vld [vmem:[%s493 + $0x168] sm:$0x1]
        %v594 = vsel %vm547, 0, %v593
        %595 = vst [vmem:[%s493 + $0x168] sm:$0x1] %v594
        %612 = vst [vmem:[%s493 + $0x8] sm:$0xff] %v349
        %613 = vst [vmem:[%s493 + $0x20] sm:$0xff] %v350
        %614 = vst [vmem:[%s493 + $0x38] sm:$0xff] %v351
        %615 = vst [vmem:[%s493 + $0x50] sm:$0xff] %v352
        %616 = vst [vmem:[%s493 + $0x68] sm:$0xff] %v353
        %617 = vst [vmem:[%s493 + $0x80] sm:$0xff] %v354
        %618 = vst [vmem:[%s493 + $0x98] sm:$0xff] %v355
        %619 = vst [vmem:[%s493 + $0xb0] sm:$0xff] %v356
        %620 = vst [vmem:[%s493 + $0xc8] sm:$0xff] %v357
        %621 = vst [vmem:[%s493 + $0xe0] sm:$0xff] %v358
        %622 = vst [vmem:[%s493 + $0xf8] sm:$0xff] %v359
        %623 = vst [vmem:[%s493 + $0x110] sm:$0xff] %v360
        %624 = vst [vmem:[%s493 + $0x128] sm:$0xff] %v361
        %625 = vst [vmem:[%s493 + $0x140] sm:$0xff] %v362
        %626 = vst [vmem:[%s493 + $0x158] sm:$0xff] %v363
        %627 = vst [vmem:[%s493 + $0x170] sm:$0xff] %v364
        %v628 = vrot.slane %v369, 1
        %v629 = vor.u32 %v366, %v628
        %v630 = vrot.slane %v376, 1
        %v631 = vor.u32 %v373, %v630
        %v632 = vrot.slane %v383, 1
        %v633 = vor.u32 %v380, %v632
        %v634 = vrot.slane %v390, 1
        %v635 = vor.u32 %v387, %v634
        %v636 = vrot.slane %v397, 1
        %v637 = vor.u32 %v394, %v636
        %v638 = vrot.slane %v404, 1
        %v639 = vor.u32 %v401, %v638
        %v640 = vrot.slane %v411, 1
        %v641 = vor.u32 %v408, %v640
        %v642 = vrot.slane %v418, 1
        %v643 = vor.u32 %v415, %v642
        %v644 = vrot.slane %v425, 1
        %v645 = vor.u32 %v422, %v644
        %v646 = vrot.slane %v432, 1
        %v647 = vor.u32 %v429, %v646
        %v648 = vrot.slane %v439, 1
        %v649 = vor.u32 %v436, %v648
        %v650 = vrot.slane %v446, 1
        %v651 = vor.u32 %v443, %v650
        %v652 = vrot.slane %v453, 1
        %v653 = vor.u32 %v450, %v652
        %v654 = vrot.slane %v460, 1
        %v655 = vor.u32 %v457, %v654
        %v656 = vrot.slane %v467, 1
        %v657 = vor.u32 %v464, %v656
        %v658 = vrot.slane %v474, 1
        %v659 = vor.u32 %v471, %v658
        %vm676 = vsmask.f32 7424
        %vm677 = vmand %vm494, %vm676
        %v678 = vld [vmem:[%s493 + $0x10] sm:$0xff]
        %v679 = vsel %vm677, %v629, %v678
        %680 = vst [vmem:[%s493 + $0x10] sm:$0xff] %v679
        %v681 = vld [vmem:[%s493 + $0x28] sm:$0xff]
        %v682 = vsel %vm677, %v631, %v681
        %683 = vst [vmem:[%s493 + $0x28] sm:$0xff] %v682
        %v684 = vld [vmem:[%s493 + $0x40] sm:$0xff]
        %v685 = vsel %vm677, %v633, %v684
        %686 = vst [vmem:[%s493 + $0x40] sm:$0xff] %v685
        %v687 = vld [vmem:[%s493 + $0x58] sm:$0xff]
        %v688 = vsel %vm677, %v635, %v687
        %689 = vst [vmem:[%s493 + $0x58] sm:$0xff] %v688
        %v690 = vld [vmem:[%s493 + $0x70] sm:$0xff]
        %v691 = vsel %vm677, %v637, %v690
        %692 = vst [vmem:[%s493 + $0x70] sm:$0xff] %v691
        %v693 = vld [vmem:[%s493 + $0x88] sm:$0xff]
        %v694 = vsel %vm677, %v639, %v693
        %695 = vst [vmem:[%s493 + $0x88] sm:$0xff] %v694
        %v696 = vld [vmem:[%s493 + $0xa0] sm:$0xff]
        %v697 = vsel %vm677, %v641, %v696
        %698 = vst [vmem:[%s493 + $0xa0] sm:$0xff] %v697
        %v699 = vld [vmem:[%s493 + $0xb8] sm:$0xff]
        %v700 = vsel %vm677, %v643, %v699
        %701 = vst [vmem:[%s493 + $0xb8] sm:$0xff] %v700
        %v702 = vld [vmem:[%s493 + $0xd0] sm:$0xff]
        %v703 = vsel %vm677, %v645, %v702
        %704 = vst [vmem:[%s493 + $0xd0] sm:$0xff] %v703
        %v705 = vld [vmem:[%s493 + $0xe8] sm:$0xff]
        %v706 = vsel %vm677, %v647, %v705
        %707 = vst [vmem:[%s493 + $0xe8] sm:$0xff] %v706
        %v708 = vld [vmem:[%s493 + $0x100] sm:$0xff]
        %v709 = vsel %vm677, %v649, %v708
        %710 = vst [vmem:[%s493 + $0x100] sm:$0xff] %v709
        %v711 = vld [vmem:[%s493 + $0x118] sm:$0xff]
        %v712 = vsel %vm677, %v651, %v711
        %713 = vst [vmem:[%s493 + $0x118] sm:$0xff] %v712
        %v714 = vld [vmem:[%s493 + $0x130] sm:$0xff]
        %v715 = vsel %vm677, %v653, %v714
        %716 = vst [vmem:[%s493 + $0x130] sm:$0xff] %v715
        %v717 = vld [vmem:[%s493 + $0x148] sm:$0xff]
        %v718 = vsel %vm677, %v655, %v717
        %719 = vst [vmem:[%s493 + $0x148] sm:$0xff] %v718
        %v720 = vld [vmem:[%s493 + $0x160] sm:$0xff]
        %v721 = vsel %vm677, %v657, %v720
        %722 = vst [vmem:[%s493 + $0x160] sm:$0xff] %v721
        %v723 = vld [vmem:[%s493 + $0x178] sm:$0xff]
        %v724 = vsel %vm677, %v659, %v723
        %725 = vst [vmem:[%s493 + $0x178] sm:$0xff] %v724
        %vm726 = vcmask 1047559
        %vm727 = vsmask.f32 7966
        %vm728 = vmand %vm726, %vm727
        %v729 = vld [vmem:[%s493 + $0x10] sm:$0x80]
        %v730 = vsel %vm728, 0, %v729
        %731 = vst [vmem:[%s493 + $0x10] sm:$0x80] %v730
        %v732 = vld [vmem:[%s493 + $0x28] sm:$0x80]
        %v733 = vsel %vm728, 0, %v732
        %734 = vst [vmem:[%s493 + $0x28] sm:$0x80] %v733
        %v735 = vld [vmem:[%s493 + $0x40] sm:$0x80]
        %v736 = vsel %vm728, 0, %v735
        %737 = vst [vmem:[%s493 + $0x40] sm:$0x80] %v736
        %v738 = vld [vmem:[%s493 + $0x58] sm:$0x80]
        %v739 = vsel %vm728, 0, %v738
        %740 = vst [vmem:[%s493 + $0x58] sm:$0x80] %v739
        %v741 = vld [vmem:[%s493 + $0x70] sm:$0x80]
        %v742 = vsel %vm728, 0, %v741
        %743 = vst [vmem:[%s493 + $0x70] sm:$0x80] %v742
        %v744 = vld [vmem:[%s493 + $0x88] sm:$0x80]
        %v745 = vsel %vm728, 0, %v744
        %746 = vst [vmem:[%s493 + $0x88] sm:$0x80] %v745
        %v747 = vld [vmem:[%s493 + $0xa0] sm:$0x80]
        %v748 = vsel %vm728, 0, %v747
        %749 = vst [vmem:[%s493 + $0xa0] sm:$0x80] %v748
        %v750 = vld [vmem:[%s493 + $0xb8] sm:$0x80]
        %v751 = vsel %vm728, 0, %v750
        %752 = vst [vmem:[%s493 + $0xb8] sm:$0x80] %v751
        %v753 = vld [vmem:[%s493 + $0xd0] sm:$0x80]
        %v754 = vsel %vm728, 0, %v753
        %755 = vst [vmem:[%s493 + $0xd0] sm:$0x80] %v754
        %v756 = vld [vmem:[%s493 + $0xe8] sm:$0x80]
        %v757 = vsel %vm728, 0, %v756
        %758 = vst [vmem:[%s493 + $0xe8] sm:$0x80] %v757
        %v759 = vld [vmem:[%s493 + $0x100] sm:$0x80]
        %v760 = vsel %vm728, 0, %v759
        %761 = vst [vmem:[%s493 + $0x100] sm:$0x80] %v760
        %v762 = vld [vmem:[%s493 + $0x118] sm:$0x80]
        %v763 = vsel %vm728, 0, %v762
        %764 = vst [vmem:[%s493 + $0x118] sm:$0x80] %v763
        %v765 = vld [vmem:[%s493 + $0x130] sm:$0x80]
        %v766 = vsel %vm728, 0, %v765
        %767 = vst [vmem:[%s493 + $0x130] sm:$0x80] %v766
        %v768 = vld [vmem:[%s493 + $0x148] sm:$0x80]
        %v769 = vsel %vm728, 0, %v768
        %770 = vst [vmem:[%s493 + $0x148] sm:$0x80] %v769
        %v771 = vld [vmem:[%s493 + $0x160] sm:$0x80]
        %v772 = vsel %vm728, 0, %v771
        %773 = vst [vmem:[%s493 + $0x160] sm:$0x80] %v772
        %v774 = vld [vmem:[%s493 + $0x178] sm:$0x80]
        %v775 = vsel %vm728, 0, %v774
        %776 = vst [vmem:[%s493 + $0x178] sm:$0x80] %v775
        %v777 = vld [vmem:[#allocation2] sm:$0xff]
        %v778 = vld [vmem:[#allocation2 + $0x8] sm:$0xff]
        %v779 = vld [vmem:[#allocation2 + $0x10] sm:$0xff]
        %v780 = vld [vmem:[#allocation2 + $0x18] sm:$0xff]
        %v781 = vld [vmem:[#allocation2 + $0x20] sm:$0xff]
        %v782 = vld [vmem:[#allocation2 + $0x28] sm:$0xff]
        %v783 = vld [vmem:[#allocation2 + $0x30] sm:$0xff]
        %v784 = vld [vmem:[#allocation2 + $0x38] sm:$0xff]
        %v785 = vld [vmem:[#allocation2 + $0x40] sm:$0xff]
        %v786 = vld [vmem:[#allocation2 + $0x48] sm:$0xff]
        %v787 = vld [vmem:[#allocation2 + $0x50] sm:$0xff]
        %v788 = vld [vmem:[#allocation2 + $0x58] sm:$0xff]
        %v789 = vld [vmem:[#allocation2 + $0x60] sm:$0xff]
        %v790 = vld [vmem:[#allocation2 + $0x68] sm:$0xff]
        %v791 = vld [vmem:[#allocation2 + $0x70] sm:$0xff]
        %v792 = vld [vmem:[#allocation2 + $0x78] sm:$0xff]
        %v793 = vld [vmem:[#allocation2 + $0x80] sm:$0xff]
        %v794 = vld [vmem:[#allocation2 + $0x88] sm:$0xff]
        %v795 = vld [vmem:[#allocation2 + $0x90] sm:$0xff]
        %v796 = vld [vmem:[#allocation2 + $0x98] sm:$0xff]
        %v797 = vld [vmem:[#allocation2 + $0xa0] sm:$0xff]
        %v798 = vld [vmem:[#allocation2 + $0xa8] sm:$0xff]
        %v799 = vld [vmem:[#allocation2 + $0xb0] sm:$0xff]
        %v800 = vld [vmem:[#allocation2 + $0xb8] sm:$0xff]
        %v801 = vld [vmem:[#allocation2 + $0xc0] sm:$0xff]
        %v802 = vld [vmem:[#allocation2 + $0xc8] sm:$0xff]
        %v803 = vld [vmem:[#allocation2 + $0xd0] sm:$0xff]
        %v804 = vld [vmem:[#allocation2 + $0xd8] sm:$0xff]
        %v805 = vld [vmem:[#allocation2 + $0xe0] sm:$0xff]
        %v806 = vld [vmem:[#allocation2 + $0xe8] sm:$0xff]
        %v807 = vld [vmem:[#allocation2 + $0xf0] sm:$0xff]
        %v808 = vld [vmem:[#allocation2 + $0xf8] sm:$0xff]
        %v809 = vld [vmem:[#allocation2 + $0x100] sm:$0xff]
        %v810 = vld [vmem:[#allocation2 + $0x108] sm:$0xff]
        %v811 = vld [vmem:[#allocation2 + $0x110] sm:$0xff]
        %v812 = vld [vmem:[#allocation2 + $0x118] sm:$0xff]
        %v813 = vld [vmem:[#allocation2 + $0x120] sm:$0xff]
        %v814 = vld [vmem:[#allocation2 + $0x128] sm:$0xff]
        %v815 = vld [vmem:[#allocation2 + $0x130] sm:$0xff]
        %v816 = vld [vmem:[#allocation2 + $0x138] sm:$0xff]
        %v817 = vld [vmem:[#allocation2 + $0x140] sm:$0xff]
        %v818 = vld [vmem:[#allocation2 + $0x148] sm:$0xff]
        %v819 = vld [vmem:[#allocation2 + $0x150] sm:$0xff]
        %v820 = vld [vmem:[#allocation2 + $0x158] sm:$0xff]
        %v821 = vld [vmem:[#allocation2 + $0x160] sm:$0xff]
        %v822 = vld [vmem:[#allocation2 + $0x168] sm:$0xff]
        %v823 = vld [vmem:[#allocation2 + $0x170] sm:$0xff]
        %v824 = vld [vmem:[#allocation2 + $0x178] sm:$0xff]
        %v825 = vld [vmem:[#allocation6] sm:$0xf]
        %v826 = vld [vmem:[#allocation6 + $0x4] sm:$0xf]
        %v827 = vld [vmem:[#allocation6 + $0x8] sm:$0xf]
        %v828 = vld [vmem:[#allocation6 + $0xc] sm:$0xf]
        %v829 = vld [vmem:[#allocation6 + $0x10] sm:$0xf]
        %v830 = vld [vmem:[#allocation6 + $0x14] sm:$0xf]
        %v831 = vld [vmem:[#allocation6 + $0x18] sm:$0xf]
        %v832 = vld [vmem:[#allocation6 + $0x1c] sm:$0xf]
        %v833 = vld [vmem:[#allocation6 + $0x20] sm:$0xf]
        %v834 = vld [vmem:[#allocation6 + $0x24] sm:$0xf]
        %v835 = vld [vmem:[#allocation6 + $0x28] sm:$0xf]
        %v836 = vld [vmem:[#allocation6 + $0x2c] sm:$0xf]
        %v837 = vld [vmem:[#allocation6 + $0x30] sm:$0xf]
        %v838 = vld [vmem:[#allocation6 + $0x34] sm:$0xf]
        %v839 = vld [vmem:[#allocation6 + $0x38] sm:$0xf]
        %v840 = vld [vmem:[#allocation6 + $0x3c] sm:$0xf]
        %v841 = vld [vmem:[#allocation6 + $0x40] sm:$0xf]
        %v842 = vld [vmem:[#allocation6 + $0x44] sm:$0xf]
        %v843 = vld [vmem:[#allocation6 + $0x48] sm:$0xf]
        %v844 = vld [vmem:[#allocation6 + $0x4c] sm:$0xf]
        %v845 = vld [vmem:[#allocation6 + $0x50] sm:$0xf]
        %v846 = vld [vmem:[#allocation6 + $0x54] sm:$0xf]
        %v847 = vld [vmem:[#allocation6 + $0x58] sm:$0xf]
        %v848 = vld [vmem:[#allocation6 + $0x5c] sm:$0xf]
        %v849 = vld [vmem:[#allocation6 + $0x60] sm:$0xf]
        %v850 = vld [vmem:[#allocation6 + $0x64] sm:$0xf]
        %v851 = vld [vmem:[#allocation6 + $0x68] sm:$0xf]
        %v852 = vld [vmem:[#allocation6 + $0x6c] sm:$0xf]
        %v853 = vld [vmem:[#allocation6 + $0x70] sm:$0xf]
        %v854 = vld [vmem:[#allocation6 + $0x74] sm:$0xf]
        %v855 = vld [vmem:[#allocation6 + $0x78] sm:$0xf]
        %v856 = vld [vmem:[#allocation6 + $0x7c] sm:$0xf]
        %v857 = vld [vmem:[#allocation6 + $0x80] sm:$0xf]
        %v858 = vld [vmem:[#allocation6 + $0x84] sm:$0xf]
        %v859 = vld [vmem:[#allocation6 + $0x88] sm:$0xf]
        %v860 = vld [vmem:[#allocation6 + $0x8c] sm:$0xf]
        %v861 = vld [vmem:[#allocation6 + $0x90] sm:$0xf]
        %v862 = vld [vmem:[#allocation6 + $0x94] sm:$0xf]
        %v863 = vld [vmem:[#allocation6 + $0x98] sm:$0xf]
        %v864 = vld [vmem:[#allocation6 + $0x9c] sm:$0xf]
        %v865 = vld [vmem:[#allocation6 + $0xa0] sm:$0xf]
        %v866 = vld [vmem:[#allocation6 + $0xa4] sm:$0xf]
        %v867 = vld [vmem:[#allocation6 + $0xa8] sm:$0xf]
        %v868 = vld [vmem:[#allocation6 + $0xac] sm:$0xf]
        %v869 = vld [vmem:[#allocation6 + $0xb0] sm:$0xf]
        %v870 = vld [vmem:[#allocation6 + $0xb4] sm:$0xf]
        %v871 = vld [vmem:[#allocation6 + $0xb8] sm:$0xf]
        %v872 = vld [vmem:[#allocation6 + $0xbc] sm:$0xf]
        %v873 = vld [vmem:[%s493] sm:$0xff]
        %v874 = vld [vmem:[%s493 + $0x8] sm:$0xff]
        %v875 = vld [vmem:[%s493 + $0x10] sm:$0xff]
        %v876 = vld [vmem:[%s493 + $0x18] sm:$0xff]
        %v877 = vld [vmem:[%s493 + $0x20] sm:$0xff]
        %v878 = vld [vmem:[%s493 + $0x28] sm:$0xff]
        %v879 = vld [vmem:[%s493 + $0x30] sm:$0xff]
        %v880 = vld [vmem:[%s493 + $0x38] sm:$0xff]
        %v881 = vld [vmem:[%s493 + $0x40] sm:$0xff]
        %v882 = vld [vmem:[%s493 + $0x48] sm:$0xff]
        %v883 = vld [vmem:[%s493 + $0x50] sm:$0xff]
        %v884 = vld [vmem:[%s493 + $0x58] sm:$0xff]
        %v885 = vld [vmem:[%s493 + $0x60] sm:$0xff]
        %v886 = vld [vmem:[%s493 + $0x68] sm:$0xff]
        %v887 = vld [vmem:[%s493 + $0x70] sm:$0xff]
        %v888 = vld [vmem:[%s493 + $0x78] sm:$0xff]
        %v889 = vld [vmem:[%s493 + $0x80] sm:$0xff]
        %v890 = vld [vmem:[%s493 + $0x88] sm:$0xff]
        %v891 = vld [vmem:[%s493 + $0x90] sm:$0xff]
        %v892 = vld [vmem:[%s493 + $0x98] sm:$0xff]
        %v893 = vld [vmem:[%s493 + $0xa0] sm:$0xff]
        %v894 = vld [vmem:[%s493 + $0xa8] sm:$0xff]
        %v895 = vld [vmem:[%s493 + $0xb0] sm:$0xff]
        %v896 = vld [vmem:[%s493 + $0xb8] sm:$0xff]
        %v897 = vld [vmem:[%s493 + $0xc0] sm:$0xff]
        %v898 = vld [vmem:[%s493 + $0xc8] sm:$0xff]
        %v899 = vld [vmem:[%s493 + $0xd0] sm:$0xff]
        %v900 = vld [vmem:[%s493 + $0xd8] sm:$0xff]
        %v901 = vld [vmem:[%s493 + $0xe0] sm:$0xff]
        %v902 = vld [vmem:[%s493 + $0xe8] sm:$0xff]
        %v903 = vld [vmem:[%s493 + $0xf0] sm:$0xff]
        %v904 = vld [vmem:[%s493 + $0xf8] sm:$0xff]
        %v905 = vld [vmem:[%s493 + $0x100] sm:$0xff]
        %v906 = vld [vmem:[%s493 + $0x108] sm:$0xff]
        %v907 = vld [vmem:[%s493 + $0x110] sm:$0xff]
        %v908 = vld [vmem:[%s493 + $0x118] sm:$0xff]
        %v909 = vld [vmem:[%s493 + $0x120] sm:$0xff]
        %v910 = vld [vmem:[%s493 + $0x128] sm:$0xff]
        %v911 = vld [vmem:[%s493 + $0x130] sm:$0xff]
        %v912 = vld [vmem:[%s493 + $0x138] sm:$0xff]
        %v913 = vld [vmem:[%s493 + $0x140] sm:$0xff]
        %v914 = vld [vmem:[%s493 + $0x148] sm:$0xff]
        %v915 = vld [vmem:[%s493 + $0x150] sm:$0xff]
        %v916 = vld [vmem:[%s493 + $0x158] sm:$0xff]
        %v917 = vld [vmem:[%s493 + $0x160] sm:$0xff]
        %v918 = vld [vmem:[%s493 + $0x168] sm:$0xff]
        %v919 = vld [vmem:[%s493 + $0x170] sm:$0xff]
        %v920 = vld [vmem:[%s493 + $0x178] sm:$0xff]
        %s921 = scalar_lea.vmem [#allocation6], 192
        %v922 = vld [vmem:[%s921] sm:$0xf]
        %v923 = vld [vmem:[%s921 + $0x4] sm:$0xf]
        %v924 = vld [vmem:[%s921 + $0x8] sm:$0xf]
        %v925 = vld [vmem:[%s921 + $0xc] sm:$0xf]
        %v926 = vld [vmem:[%s921 + $0x10] sm:$0xf]
        %v927 = vld [vmem:[%s921 + $0x14] sm:$0xf]
        %v928 = vld [vmem:[%s921 + $0x18] sm:$0xf]
        %v929 = vld [vmem:[%s921 + $0x1c] sm:$0xf]
        %v930 = vld [vmem:[%s921 + $0x20] sm:$0xf]
        %v931 = vld [vmem:[%s921 + $0x24] sm:$0xf]
        %v932 = vld [vmem:[%s921 + $0x28] sm:$0xf]
        %v933 = vld [vmem:[%s921 + $0x2c] sm:$0xf]
        %v934 = vld [vmem:[%s921 + $0x30] sm:$0xf]
        %v935 = vld [vmem:[%s921 + $0x34] sm:$0xf]
        %v936 = vld [vmem:[%s921 + $0x38] sm:$0xf]
        %v937 = vld [vmem:[%s921 + $0x3c] sm:$0xf]
        %v938 = vld [vmem:[%s921 + $0x40] sm:$0xf]
        %v939 = vld [vmem:[%s921 + $0x44] sm:$0xf]
        %v940 = vld [vmem:[%s921 + $0x48] sm:$0xf]
        %v941 = vld [vmem:[%s921 + $0x4c] sm:$0xf]
        %v942 = vld [vmem:[%s921 + $0x50] sm:$0xf]
        %v943 = vld [vmem:[%s921 + $0x54] sm:$0xf]
        %v944 = vld [vmem:[%s921 + $0x58] sm:$0xf]
        %v945 = vld [vmem:[%s921 + $0x5c] sm:$0xf]
        %v946 = vld [vmem:[%s921 + $0x60] sm:$0xf]
        %v947 = vld [vmem:[%s921 + $0x64] sm:$0xf]
        %v948 = vld [vmem:[%s921 + $0x68] sm:$0xf]
        %v949 = vld [vmem:[%s921 + $0x6c] sm:$0xf]
        %v950 = vld [vmem:[%s921 + $0x70] sm:$0xf]
        %v951 = vld [vmem:[%s921 + $0x74] sm:$0xf]
        %v952 = vld [vmem:[%s921 + $0x78] sm:$0xf]
        %v953 = vld [vmem:[%s921 + $0x7c] sm:$0xf]
        %v954 = vld [vmem:[%s921 + $0x80] sm:$0xf]
        %v955 = vld [vmem:[%s921 + $0x84] sm:$0xf]
        %v956 = vld [vmem:[%s921 + $0x88] sm:$0xf]
        %v957 = vld [vmem:[%s921 + $0x8c] sm:$0xf]
        %v958 = vld [vmem:[%s921 + $0x90] sm:$0xf]
        %v959 = vld [vmem:[%s921 + $0x94] sm:$0xf]
        %v960 = vld [vmem:[%s921 + $0x98] sm:$0xf]
        %v961 = vld [vmem:[%s921 + $0x9c] sm:$0xf]
        %v962 = vld [vmem:[%s921 + $0xa0] sm:$0xf]
        %v963 = vld [vmem:[%s921 + $0xa4] sm:$0xf]
        %v964 = vld [vmem:[%s921 + $0xa8] sm:$0xf]
        %v965 = vld [vmem:[%s921 + $0xac] sm:$0xf]
        %v966 = vld [vmem:[%s921 + $0xb0] sm:$0xf]
        %v967 = vld [vmem:[%s921 + $0xb4] sm:$0xf]
        %v968 = vld [vmem:[%s921 + $0xb8] sm:$0xf]
        %v969 = vld [vmem:[%s921 + $0xbc] sm:$0xf]
        %v1018 = vunpack.c.l.b16 %v922
        %v1019 = vunpack.c.l.b16 %v923
        %v1020 = vunpack.c.l.b16 %v924
        %v1021 = vunpack.c.l.b16 %v925
        %v1022 = vunpack.c.l.b16 %v926
        %v1023 = vunpack.c.l.b16 %v927
        %v1024 = vunpack.c.l.b16 %v928
        %v1025 = vunpack.c.l.b16 %v929
        %v1026 = vunpack.c.l.b16 %v930
        %v1027 = vunpack.c.l.b16 %v931
        %v1028 = vunpack.c.l.b16 %v932
        %v1029 = vunpack.c.l.b16 %v933
        %v1030 = vunpack.c.l.b16 %v934
        %v1031 = vunpack.c.l.b16 %v935
        %v1032 = vunpack.c.l.b16 %v936
        %v1033 = vunpack.c.l.b16 %v937
        %v1034 = vunpack.c.l.b16 %v938
        %v1035 = vunpack.c.l.b16 %v939
        %v1036 = vunpack.c.l.b16 %v940
        %v1037 = vunpack.c.l.b16 %v941
        %v1038 = vunpack.c.l.b16 %v942
        %v1039 = vunpack.c.l.b16 %v943
        %v1040 = vunpack.c.l.b16 %v944
        %v1041 = vunpack.c.l.b16 %v945
        %v1042 = vunpack.c.l.b16 %v946
        %v1043 = vunpack.c.l.b16 %v947
        %v1044 = vunpack.c.l.b16 %v948
        %v1045 = vunpack.c.l.b16 %v949
        %v1046 = vunpack.c.l.b16 %v950
        %v1047 = vunpack.c.l.b16 %v951
        %v1048 = vunpack.c.l.b16 %v952
        %v1049 = vunpack.c.l.b16 %v953
        %v1050 = vunpack.c.l.b16 %v954
        %v1051 = vunpack.c.l.b16 %v955
        %v1052 = vunpack.c.l.b16 %v956
        %v1053 = vunpack.c.l.b16 %v957
        %v1054 = vunpack.c.l.b16 %v958
        %v1055 = vunpack.c.l.b16 %v959
        %v1056 = vunpack.c.l.b16 %v960
        %v1057 = vunpack.c.l.b16 %v961
        %v1058 = vunpack.c.l.b16 %v962
        %v1059 = vunpack.c.l.b16 %v963
        %v1060 = vunpack.c.l.b16 %v964
        %v1061 = vunpack.c.l.b16 %v965
        %v1062 = vunpack.c.l.b16 %v966
        %v1063 = vunpack.c.l.b16 %v967
        %v1064 = vunpack.c.l.b16 %v968
        %v1065 = vunpack.c.l.b16 %v969
        %v1066 = vpack.c.b16 %v1019, %v1018
        %v1067 = vpack.c.b16 %v1021, %v1020
        %v1068 = vpack.c.b16 %v1023, %v1022
        %v1069 = vpack.c.b16 %v1025, %v1024
        %v1070 = vpack.c.b16 %v1027, %v1026
        %v1071 = vpack.c.b16 %v1029, %v1028
        %v1072 = vpack.c.b16 %v1031, %v1030
        %v1073 = vpack.c.b16 %v1033, %v1032
        %v1074 = vpack.c.b16 %v1035, %v1034
        %v1075 = vpack.c.b16 %v1037, %v1036
        %v1076 = vpack.c.b16 %v1039, %v1038
        %v1077 = vpack.c.b16 %v1041, %v1040
        %v1078 = vpack.c.b16 %v1043, %v1042
        %v1079 = vpack.c.b16 %v1045, %v1044
        %v1080 = vpack.c.b16 %v1047, %v1046
        %v1081 = vpack.c.b16 %v1049, %v1048
        %v1082 = vpack.c.b16 %v1051, %v1050
        %v1083 = vpack.c.b16 %v1053, %v1052
        %v1084 = vpack.c.b16 %v1055, %v1054
        %v1085 = vpack.c.b16 %v1057, %v1056
        %v1086 = vpack.c.b16 %v1059, %v1058
        %v1087 = vpack.c.b16 %v1061, %v1060
        %v1088 = vpack.c.b16 %v1063, %v1062
        %v1089 = vpack.c.b16 %v1065, %v1064
        %1114 = vmatprep.subr.bf16.mxu0 0
        %1115 = vmatpush1.bf16.msra.mxu0 %v1066
        %1116 = vmatprep.subr.bf16.mxu0 0
        %1117 = vmatpush1.bf16.msra.mxu0 %v1067
        %1118 = vmatprep.subr.bf16.mxu0 0
        %1119 = vmatpush1.bf16.msra.mxu0 %v1068
        %1120 = vmatprep.subr.bf16.mxu0 0
        %1121 = vmatpush1.bf16.msra.mxu0 %v1069
        %1122 = vmatprep.subr.bf16.mxu0 0
        %1123 = vmatpush1.bf16.msra.mxu0 %v1070
        %1124 = vmatprep.subr.bf16.mxu0 0
        %1125 = vmatpush1.bf16.msra.mxu0 %v1071
        %1126 = vmatprep.subr.bf16.mxu0 0
        %1127 = vmatpush1.bf16.msra.mxu0 %v1072
        %1128 = vmatprep.subr.bf16.mxu0 0
        %1129 = vmatpush1.bf16.msra.mxu0 %v1073
        %1130 = vmatprep.subr.bf16.mxu0 0
        %1131 = vmatpush1.bf16.msra.mxu0 %v1074
        %1132 = vmatprep.subr.bf16.mxu0 0
        %1133 = vmatpush1.bf16.msra.mxu0 %v1075
        %1134 = vmatprep.subr.bf16.mxu0 0
        %1135 = vmatpush1.bf16.msra.mxu0 %v1076
        %1136 = vmatprep.subr.bf16.mxu0 0
        %1137 = vmatpush1.bf16.msra.mxu0 %v1077
        %1138 = vmatprep.subr.bf16.mxu0 0
        %1139 = vmatpush1.bf16.msra.mxu0 %v1078
        %1140 = vmatprep.subr.bf16.mxu0 0
        %1141 = vmatpush1.bf16.msra.mxu0 %v1079
        %1142 = vmatprep.subr.bf16.mxu0 0
        %1143 = vmatpush1.bf16.msra.mxu0 %v1080
        %1144 = vmatprep.subr.bf16.mxu0 0
        %1145 = vmatpush1.bf16.msra.mxu0 %v1081
        %1146 = vmatprep.mubr.bf16.mxu0 %v874
        %1147 = vmatmul.mubr.bf16.gmra.mrb[0].mxu0 %v873
        %v1148 = vpop.f32.mrb[0].mxu0
        %v1149 = vadd.f32 0.0, %v1148
        %v1150 = vpop.f32.mrb[0].mxu0
        %v1151 = vpop.f32.mrb[0].mxu0
        %v1152 = vadd.f32 0.0, %v1151
        %v1153 = vpop.f32.mrb[0].mxu0
        %1154 = vmatprep.mubr.bf16.mxu0 %v877
        %1155 = vmatmul.mubr.bf16.gmra.mrb[0].mxu0 %v876
        %v1156 = vpop.f32.mrb[0].mxu0
        %v1157 = vadd.f32 0.0, %v1156
        %v1158 = vpop.f32.mrb[0].mxu0
        %v1159 = vpop.f32.mrb[0].mxu0
        %v1160 = vadd.f32 0.0, %v1159
        %v1161 = vpop.f32.mrb[0].mxu0
        %1162 = vmatprep.mubr.bf16.mxu0 %v880
        %1163 = vmatmul.mubr.bf16.gmra.mrb[0].mxu0 %v879
        %v1164 = vpop.f32.mrb[0].mxu0
        %v1165 = vadd.f32 0.0, %v1164
        %v1166 = vpop.f32.mrb[0].mxu0
        %v1167 = vpop.f32.mrb[0].mxu0
        %v1168 = vadd.f32 0.0, %v1167
        %v1169 = vpop.f32.mrb[0].mxu0
        %1170 = vmatprep.mubr.bf16.mxu0 %v883
        %1171 = vmatmul.mubr.bf16.gmra.mrb[0].mxu0 %v882
        %v1172 = vpop.f32.mrb[0].mxu0
        %v1173 = vadd.f32 0.0, %v1172
        %v1174 = vpop.f32.mrb[0].mxu0
        %v1175 = vpop.f32.mrb[0].mxu0
        %v1176 = vadd.f32 0.0, %v1175
        %v1177 = vpop.f32.mrb[0].mxu0
        %1178 = vmatprep.mubr.bf16.mxu0 %v886
        %1179 = vmatmul.mubr.bf16.gmra.mrb[0].mxu0 %v885
        %v1180 = vpop.f32.mrb[0].mxu0
        %v1181 = vadd.f32 0.0, %v1180
        %v1182 = vpop.f32.mrb[0].mxu0
        %v1183 = vpop.f32.mrb[0].mxu0
        %v1184 = vadd.f32 0.0, %v1183
        %v1185 = vpop.f32.mrb[0].mxu0
        %1186 = vmatprep.mubr.bf16.mxu0 %v889
        %1187 = vmatmul.mubr.bf16.gmra.mrb[0].mxu0 %v888
        %v1188 = vpop.f32.mrb[0].mxu0
        %v1189 = vadd.f32 0.0, %v1188
        %v1190 = vpop.f32.mrb[0].mxu0
        %v1191 = vpop.f32.mrb[0].mxu0
        %v1192 = vadd.f32 0.0, %v1191
        %v1193 = vpop.f32.mrb[0].mxu0
        %1194 = vmatprep.mubr.bf16.mxu0 %v892
        %1195 = vmatmul.mubr.bf16.gmra.mrb[0].mxu0 %v891
        %v1196 = vpop.f32.mrb[0].mxu0
        %v1197 = vadd.f32 0.0, %v1196
        %v1198 = vpop.f32.mrb[0].mxu0
        %v1199 = vpop.f32.mrb[0].mxu0
        %v1200 = vadd.f32 0.0, %v1199
        %v1201 = vpop.f32.mrb[0].mxu0
        %1202 = vmatprep.mubr.bf16.mxu0 %v895
        %1203 = vmatmul.mubr.bf16.gmra.mrb[0].mxu0 %v894
        %v1204 = vpop.f32.mrb[0].mxu0
        %v1205 = vadd.f32 0.0, %v1204
        %v1206 = vpop.f32.mrb[0].mxu0
        %v1207 = vpop.f32.mrb[0].mxu0
        %v1208 = vadd.f32 0.0, %v1207
        %v1209 = vpop.f32.mrb[0].mxu0
        %1210 = vmatprep.mubr.bf16.mxu0 %v898
        %1211 = vmatmul.mubr.bf16.gmra.mrb[0].mxu0 %v897
        %v1212 = vpop.f32.mrb[0].mxu0
        %v1213 = vadd.f32 0.0, %v1212
        %v1214 = vpop.f32.mrb[0].mxu0
        %v1215 = vpop.f32.mrb[0].mxu0
        %v1216 = vadd.f32 0.0, %v1215
        %v1217 = vpop.f32.mrb[0].mxu0
        %1218 = vmatprep.mubr.bf16.mxu0 %v901
        %1219 = vmatmul.mubr.bf16.gmra.mrb[0].mxu0 %v900
        %v1220 = vpop.f32.mrb[0].mxu0
        %v1221 = vadd.f32 0.0, %v1220
        %v1222 = vpop.f32.mrb[0].mxu0
        %v1223 = vpop.f32.mrb[0].mxu0
        %v1224 = vadd.f32 0.0, %v1223
        %v1225 = vpop.f32.mrb[0].mxu0
        %1226 = vmatprep.mubr.bf16.mxu0 %v904
        %1227 = vmatmul.mubr.bf16.gmra.mrb[0].mxu0 %v903
        %v1228 = vpop.f32.mrb[0].mxu0
        %v1229 = vadd.f32 0.0, %v1228
        %v1230 = vpop.f32.mrb[0].mxu0
        %v1231 = vpop.f32.mrb[0].mxu0
        %v1232 = vadd.f32 0.0, %v1231
        %v1233 = vpop.f32.mrb[0].mxu0
        %1234 = vmatprep.mubr.bf16.mxu0 %v907
        %1235 = vmatmul.mubr.bf16.gmra.mrb[0].mxu0 %v906
        %v1236 = vpop.f32.mrb[0].mxu0
        %v1237 = vadd.f32 0.0, %v1236
        %v1238 = vpop.f32.mrb[0].mxu0
        %v1239 = vpop.f32.mrb[0].mxu0
        %v1240 = vadd.f32 0.0, %v1239
        %v1241 = vpop.f32.mrb[0].mxu0
        %1242 = vmatprep.mubr.bf16.mxu0 %v910
        %1243 = vmatmul.mubr.bf16.gmra.mrb[0].mxu0 %v909
        %v1244 = vpop.f32.mrb[0].mxu0
        %v1245 = vadd.f32 0.0, %v1244
        %v1246 = vpop.f32.mrb[0].mxu0
        %v1247 = vpop.f32.mrb[0].mxu0
        %v1248 = vadd.f32 0.0, %v1247
        %v1249 = vpop.f32.mrb[0].mxu0
        %1250 = vmatprep.mubr.bf16.mxu0 %v913
        %1251 = vmatmul.mubr.bf16.gmra.mrb[0].mxu0 %v912
        %v1252 = vpop.f32.mrb[0].mxu0
        %v1253 = vadd.f32 0.0, %v1252
        %v1254 = vpop.f32.mrb[0].mxu0
        %v1255 = vpop.f32.mrb[0].mxu0
        %v1256 = vadd.f32 0.0, %v1255
        %v1257 = vpop.f32.mrb[0].mxu0
        %1258 = vmatprep.mubr.bf16.mxu0 %v916
        %1259 = vmatmul.mubr.bf16.gmra.mrb[0].mxu0 %v915
        %v1260 = vpop.f32.mrb[0].mxu0
        %v1261 = vadd.f32 0.0, %v1260
        %v1262 = vpop.f32.mrb[0].mxu0
        %v1263 = vpop.f32.mrb[0].mxu0
        %v1264 = vadd.f32 0.0, %v1263
        %v1265 = vpop.f32.mrb[0].mxu0
        %1266 = vmatprep.mubr.bf16.mxu0 %v919
        %1267 = vmatmul.mubr.bf16.gmra.mrb[0].mxu0 %v918
        %v1268 = vpop.f32.mrb[0].mxu0
        %v1269 = vadd.f32 0.0, %v1268
        %v1270 = vpop.f32.mrb[0].mxu0
        %v1271 = vpop.f32.mrb[0].mxu0
        %v1272 = vadd.f32 0.0, %v1271
        %v1273 = vpop.f32.mrb[0].mxu0
        %1274 = vdwg.mxu0
        %1275 = vmatprep.subr.bf16.mxu0 0
        %1276 = vmatpush1.bf16.msra.mxu0 %v1082
        %1277 = vmatprep.subr.bf16.mxu0 0
        %1278 = vmatpush1.bf16.msra.mxu0 %v1083
        %1279 = vmatprep.subr.bf16.mxu0 0
        %1280 = vmatpush1.bf16.msra.mxu0 %v1084
        %1281 = vmatprep.subr.bf16.mxu0 0
        %1282 = vmatpush1.bf16.msra.mxu0 %v1085
        %1283 = vmatprep.subr.bf16.mxu0 0
        %1284 = vmatpush1.bf16.msra.mxu0 %v1086
        %1285 = vmatprep.subr.bf16.mxu0 0
        %1286 = vmatpush1.bf16.msra.mxu0 %v1087
        %1287 = vmatprep.subr.bf16.mxu0 0
        %1288 = vmatpush1.bf16.msra.mxu0 %v1088
        %1289 = vmatprep.subr.bf16.mxu0 0
        %1290 = vmatpush1.bf16.msra.mxu0 %v1089
        %1291 = vmatprep.subr.bf16.mxu0 0
        %1292 = vmatpush1.bf16.msra.mxu0 0
        %1293 = vmatprep.subr.bf16.mxu0 0
        %1294 = vmatpush1.bf16.msra.mxu0 0
        %1295 = vmatprep.subr.bf16.mxu0 0
        %1296 = vmatpush1.bf16.msra.mxu0 0
        %1297 = vmatprep.subr.bf16.mxu0 0
        %1298 = vmatpush1.bf16.msra.mxu0 0
        %1299 = vmatprep.subr.bf16.mxu0 0
        %1300 = vmatpush1.bf16.msra.mxu0 0
        %1301 = vmatprep.subr.bf16.mxu0 0
        %1302 = vmatpush1.bf16.msra.mxu0 0
        %1303 = vmatprep.subr.bf16.mxu0 0
        %1304 = vmatpush1.bf16.msra.mxu0 0
        %1305 = vmatprep.subr.bf16.mxu0 0
        %1306 = vmatpush1.bf16.msra.mxu0 0
        %1307 = vmatprep.mubr.bf16.mxu0 0
        %1308 = vmatmul.mubr.bf16.gmra.mrb[0].mxu0 %v875
        %v1309 = vpop.f32.mrb[0].mxu0
        %v1310 = vadd.f32 %v1149, %v1309
        %v1311 = vpop.f32.mrb[0].mxu0
        %v1312 = vpop.f32.mrb[0].mxu0
        %v1313 = vadd.f32 %v1152, %v1312
        %v1314 = vpop.f32.mrb[0].mxu0
        %1315 = vmatprep.mubr.bf16.mxu0 0
        %1316 = vmatmul.mubr.bf16.gmra.mrb[0].mxu0 %v878
        %v1317 = vpop.f32.mrb[0].mxu0
        %v1318 = vadd.f32 %v1157, %v1317
        %v1319 = vpop.f32.mrb[0].mxu0
        %v1320 = vpop.f32.mrb[0].mxu0
        %v1321 = vadd.f32 %v1160, %v1320
        %v1322 = vpop.f32.mrb[0].mxu0
        %1323 = vmatprep.mubr.bf16.mxu0 0
        %1324 = vmatmul.mubr.bf16.gmra.mrb[0].mxu0 %v881
        %v1325 = vpop.f32.mrb[0].mxu0
        %v1326 = vadd.f32 %v1165, %v1325
        %v1327 = vpop.f32.mrb[0].mxu0
        %v1328 = vpop.f32.mrb[0].mxu0
        %v1329 = vadd.f32 %v1168, %v1328
        %v1330 = vpop.f32.mrb[0].mxu0
        %1331 = vmatprep.mubr.bf16.mxu0 0
        %1332 = vmatmul.mubr.bf16.gmra.mrb[0].mxu0 %v884
        %v1333 = vpop.f32.mrb[0].mxu0
        %v1334 = vadd.f32 %v1173, %v1333
        %v1335 = vpop.f32.mrb[0].mxu0
        %v1336 = vpop.f32.mrb[0].mxu0
        %v1337 = vadd.f32 %v1176, %v1336
        %v1338 = vpop.f32.mrb[0].mxu0
        %1339 = vmatprep.mubr.bf16.mxu0 0
        %1340 = vmatmul.mubr.bf16.gmra.mrb[0].mxu0 %v887
        %v1341 = vpop.f32.mrb[0].mxu0
        %v1342 = vadd.f32 %v1181, %v1341
        %v1343 = vpop.f32.mrb[0].mxu0
        %v1344 = vpop.f32.mrb[0].mxu0
        %v1345 = vadd.f32 %v1184, %v1344
        %v1346 = vpop.f32.mrb[0].mxu0
        %1347 = vmatprep.mubr.bf16.mxu0 0
        %1348 = vmatmul.mubr.bf16.gmra.mrb[0].mxu0 %v890
        %v1349 = vpop.f32.mrb[0].mxu0
        %v1350 = vadd.f32 %v1189, %v1349
        %v1351 = vpop.f32.mrb[0].mxu0
        %v1352 = vpop.f32.mrb[0].mxu0
        %v1353 = vadd.f32 %v1192, %v1352
        %v1354 = vpop.f32.mrb[0].mxu0
        %1355 = vmatprep.mubr.bf16.mxu0 0
        %1356 = vmatmul.mubr.bf16.gmra.mrb[0].mxu0 %v893
        %v1357 = vpop.f32.mrb[0].mxu0
        %v1358 = vadd.f32 %v1197, %v1357
        %v1359 = vpop.f32.mrb[0].mxu0
        %v1360 = vpop.f32.mrb[0].mxu0
        %v1361 = vadd.f32 %v1200, %v1360
        %v1362 = vpop.f32.mrb[0].mxu0
        %1363 = vmatprep.mubr.bf16.mxu0 0
        %1364 = vmatmul.mubr.bf16.gmra.mrb[0].mxu0 %v896
        %v1365 = vpop.f32.mrb[0].mxu0
        %v1366 = vadd.f32 %v1205, %v1365
        %v1367 = vpop.f32.mrb[0].mxu0
        %v1368 = vpop.f32.mrb[0].mxu0
        %v1369 = vadd.f32 %v1208, %v1368
        %v1370 = vpop.f32.mrb[0].mxu0
        %1371 = vmatprep.mubr.bf16.mxu0 0
        %1372 = vmatmul.mubr.bf16.gmra.mrb[0].mxu0 %v899
        %v1373 = vpop.f32.mrb[0].mxu0
        %v1374 = vadd.f32 %v1213, %v1373
        %v1375 = vpop.f32.mrb[0].mxu0
        %v1376 = vpop.f32.mrb[0].mxu0
        %v1377 = vadd.f32 %v1216, %v1376
        %v1378 = vpop.f32.mrb[0].mxu0
        %1379 = vmatprep.mubr.bf16.mxu0 0
        %1380 = vmatmul.mubr.bf16.gmra.mrb[0].mxu0 %v902
        %v1381 = vpop.f32.mrb[0].mxu0
        %v1382 = vadd.f32 %v1221, %v1381
        %v1383 = vpop.f32.mrb[0].mxu0
        %v1384 = vpop.f32.mrb[0].mxu0
        %v1385 = vadd.f32 %v1224, %v1384
        %v1386 = vpop.f32.mrb[0].mxu0
        %1387 = vmatprep.mubr.bf16.mxu0 0
        %1388 = vmatmul.mubr.bf16.gmra.mrb[0].mxu0 %v905
        %v1389 = vpop.f32.mrb[0].mxu0
        %v1390 = vadd.f32 %v1229, %v1389
        %v1391 = vpop.f32.mrb[0].mxu0
        %v1392 = vpop.f32.mrb[0].mxu0
        %v1393 = vadd.f32 %v1232, %v1392
        %v1394 = vpop.f32.mrb[0].mxu0
        %1395 = vmatprep.mubr.bf16.mxu0 0
        %1396 = vmatmul.mubr.bf16.gmra.mrb[0].mxu0 %v908
        %v1397 = vpop.f32.mrb[0].mxu0
        %v1398 = vadd.f32 %v1237, %v1397
        %v1399 = vpop.f32.mrb[0].mxu0
        %v1400 = vpop.f32.mrb[0].mxu0
        %v1401 = vadd.f32 %v1240, %v1400
        %v1402 = vpop.f32.mrb[0].mxu0
        %1403 = vmatprep.mubr.bf16.mxu0 0
        %1404 = vmatmul.mubr.bf16.gmra.mrb[0].mxu0 %v911
        %v1405 = vpop.f32.mrb[0].mxu0
        %v1406 = vadd.f32 %v1245, %v1405
        %v1407 = vpop.f32.mrb[0].mxu0
        %v1408 = vpop.f32.mrb[0].mxu0
        %v1409 = vadd.f32 %v1248, %v1408
        %v1410 = vpop.f32.mrb[0].mxu0
        %1411 = vmatprep.mubr.bf16.mxu0 0
        %1412 = vmatmul.mubr.bf16.gmra.mrb[0].mxu0 %v914
        %v1413 = vpop.f32.mrb[0].mxu0
        %v1414 = vadd.f32 %v1253, %v1413
        %v1415 = vpop.f32.mrb[0].mxu0
        %v1416 = vpop.f32.mrb[0].mxu0
        %v1417 = vadd.f32 %v1256, %v1416
        %v1418 = vpop.f32.mrb[0].mxu0
        %1419 = vmatprep.mubr.bf16.mxu0 0
        %1420 = vmatmul.mubr.bf16.gmra.mrb[0].mxu0 %v917
        %v1421 = vpop.f32.mrb[0].mxu0
        %v1422 = vadd.f32 %v1261, %v1421
        %v1423 = vpop.f32.mrb[0].mxu0
        %v1424 = vpop.f32.mrb[0].mxu0
        %v1425 = vadd.f32 %v1264, %v1424
        %v1426 = vpop.f32.mrb[0].mxu0
        %1427 = vmatprep.mubr.bf16.mxu0 0
        %1428 = vmatmul.mubr.bf16.gmra.mrb[0].mxu0 %v920
        %v1429 = vpop.f32.mrb[0].mxu0
        %v1430 = vadd.f32 %v1269, %v1429
        %v1431 = vpop.f32.mrb[0].mxu0
        %v1432 = vpop.f32.mrb[0].mxu0
        %v1433 = vadd.f32 %v1272, %v1432
        %v1434 = vpop.f32.mrb[0].mxu0
        %1435 = vdwg.mxu0
        %v1484 = vunpack.c.l.b16 %v825
        %v1485 = vunpack.c.l.b16 %v826
        %v1486 = vunpack.c.l.b16 %v827
        %v1487 = vunpack.c.l.b16 %v828
        %v1488 = vunpack.c.l.b16 %v829
        %v1489 = vunpack.c.l.b16 %v830
        %v1490 = vunpack.c.l.b16 %v831
        %v1491 = vunpack.c.l.b16 %v832
        %v1492 = vunpack.c.l.b16 %v833
        %v1493 = vunpack.c.l.b16 %v834
        %v1494 = vunpack.c.l.b16 %v835
        %v1495 = vunpack.c.l.b16 %v836
        %v1496 = vunpack.c.l.b16 %v837
        %v1497 = vunpack.c.l.b16 %v838
        %v1498 = vunpack.c.l.b16 %v839
        %v1499 = vunpack.c.l.b16 %v840
        %v1500 = vunpack.c.l.b16 %v841
        %v1501 = vunpack.c.l.b16 %v842
        %v1502 = vunpack.c.l.b16 %v843
        %v1503 = vunpack.c.l.b16 %v844
        %v1504 = vunpack.c.l.b16 %v845
        %v1505 = vunpack.c.l.b16 %v846
        %v1506 = vunpack.c.l.b16 %v847
        %v1507 = vunpack.c.l.b16 %v848
        %v1508 = vunpack.c.l.b16 %v849
        %v1509 = vunpack.c.l.b16 %v850
        %v1510 = vunpack.c.l.b16 %v851
        %v1511 = vunpack.c.l.b16 %v852
        %v1512 = vunpack.c.l.b16 %v853
        %v1513 = vunpack.c.l.b16 %v854
        %v1514 = vunpack.c.l.b16 %v855
        %v1515 = vunpack.c.l.b16 %v856
        %v1516 = vunpack.c.l.b16 %v857
        %v1517 = vunpack.c.l.b16 %v858
        %v1518 = vunpack.c.l.b16 %v859
        %v1519 = vunpack.c.l.b16 %v860
        %v1520 = vunpack.c.l.b16 %v861
        %v1521 = vunpack.c.l.b16 %v862
        %v1522 = vunpack.c.l.b16 %v863
        %v1523 = vunpack.c.l.b16 %v864
        %v1524 = vunpack.c.l.b16 %v865
        %v1525 = vunpack.c.l.b16 %v866
        %v1526 = vunpack.c.l.b16 %v867
        %v1527 = vunpack.c.l.b16 %v868
        %v1528 = vunpack.c.l.b16 %v869
        %v1529 = vunpack.c.l.b16 %v870
        %v1530 = vunpack.c.l.b16 %v871
        %v1531 = vunpack.c.l.b16 %v872
        %v1532 = vpack.c.b16 %v1485, %v1484
        %v1533 = vpack.c.b16 %v1487, %v1486
        %v1534 = vpack.c.b16 %v1489, %v1488
        %v1535 = vpack.c.b16 %v1491, %v1490
        %v1536 = vpack.c.b16 %v1493, %v1492
        %v1537 = vpack.c.b16 %v1495, %v1494
        %v1538 = vpack.c.b16 %v1497, %v1496
        %v1539 = vpack.c.b16 %v1499, %v1498
        %v1540 = vpack.c.b16 %v1501, %v1500
        %v1541 = vpack.c.b16 %v1503, %v1502
        %v1542 = vpack.c.b16 %v1505, %v1504
        %v1543 = vpack.c.b16 %v1507, %v1506
        %v1544 = vpack.c.b16 %v1509, %v1508
        %v1545 = vpack.c.b16 %v1511, %v1510
        %v1546 = vpack.c.b16 %v1513, %v1512
        %v1547 = vpack.c.b16 %v1515, %v1514
        %v1548 = vpack.c.b16 %v1517, %v1516
        %v1549 = vpack.c.b16 %v1519, %v1518
        %v1550 = vpack.c.b16 %v1521, %v1520
        %v1551 = vpack.c.b16 %v1523, %v1522
        %v1552 = vpack.c.b16 %v1525, %v1524
        %v1553 = vpack.c.b16 %v1527, %v1526
        %v1554 = vpack.c.b16 %v1529, %v1528
        %v1555 = vpack.c.b16 %v1531, %v1530
        %1580 = vmatprep.subr.bf16.mxu0 0
        %1581 = vmatpush1.bf16.msra.mxu0 %v1532
        %1582 = vmatprep.subr.bf16.mxu0 0
        %1583 = vmatpush1.bf16.msra.mxu0 %v1533
        %1584 = vmatprep.subr.bf16.mxu0 0
        %1585 = vmatpush1.bf16.msra.mxu0 %v1534
        %1586 = vmatprep.subr.bf16.mxu0 0
        %1587 = vmatpush1.bf16.msra.mxu0 %v1535
        %1588 = vmatprep.subr.bf16.mxu0 0
        %1589 = vmatpush1.bf16.msra.mxu0 %v1536
        %1590 = vmatprep.subr.bf16.mxu0 0
        %1591 = vmatpush1.bf16.msra.mxu0 %v1537
        %1592 = vmatprep.subr.bf16.mxu0 0
        %1593 = vmatpush1.bf16.msra.mxu0 %v1538
        %1594 = vmatprep.subr.bf16.mxu0 0
        %1595 = vmatpush1.bf16.msra.mxu0 %v1539
        %1596 = vmatprep.subr.bf16.mxu0 0
        %1597 = vmatpush1.bf16.msra.mxu0 %v1540
        %1598 = vmatprep.subr.bf16.mxu0 0
        %1599 = vmatpush1.bf16.msra.mxu0 %v1541
        %1600 = vmatprep.subr.bf16.mxu0 0
        %1601 = vmatpush1.bf16.msra.mxu0 %v1542
        %1602 = vmatprep.subr.bf16.mxu0 0
        %1603 = vmatpush1.bf16.msra.mxu0 %v1543
        %1604 = vmatprep.subr.bf16.mxu0 0
        %1605 = vmatpush1.bf16.msra.mxu0 %v1544
        %1606 = vmatprep.subr.bf16.mxu0 0
        %1607 = vmatpush1.bf16.msra.mxu0 %v1545
        %1608 = vmatprep.subr.bf16.mxu0 0
        %1609 = vmatpush1.bf16.msra.mxu0 %v1546
        %1610 = vmatprep.subr.bf16.mxu0 0
        %1611 = vmatpush1.bf16.msra.mxu0 %v1547
        %1612 = vmatprep.mubr.bf16.mxu0 %v778
        %1613 = vmatmul.mubr.bf16.gmra.mrb[0].mxu0 %v777
        %v1614 = vpop.f32.mrb[0].mxu0
        %v1615 = vadd.f32 %v1310, %v1614
        %v1616 = vpop.f32.mrb[0].mxu0
        %v1617 = vpop.f32.mrb[0].mxu0
        %v1618 = vadd.f32 %v1313, %v1617
        %v1619 = vpop.f32.mrb[0].mxu0
        %1620 = vmatprep.mubr.bf16.mxu0 %v781
        %1621 = vmatmul.mubr.bf16.gmra.mrb[0].mxu0 %v780
        %v1622 = vpop.f32.mrb[0].mxu0
        %v1623 = vadd.f32 %v1318, %v1622
        %v1624 = vpop.f32.mrb[0].mxu0
        %v1625 = vpop.f32.mrb[0].mxu0
        %v1626 = vadd.f32 %v1321, %v1625
        %v1627 = vpop.f32.mrb[0].mxu0
        %1628 = vmatprep.mubr.bf16.mxu0 %v784
        %1629 = vmatmul.mubr.bf16.gmra.mrb[0].mxu0 %v783
        %v1630 = vpop.f32.mrb[0].mxu0
        %v1631 = vadd.f32 %v1326, %v1630
        %v1632 = vpop.f32.mrb[0].mxu0
        %v1633 = vpop.f32.mrb[0].mxu0
        %v1634 = vadd.f32 %v1329, %v1633
        %v1635 = vpop.f32.mrb[0].mxu0
        %1636 = vmatprep.mubr.bf16.mxu0 %v787
        %1637 = vmatmul.mubr.bf16.gmra.mrb[0].mxu0 %v786
        %v1638 = vpop.f32.mrb[0].mxu0
        %v1639 = vadd.f32 %v1334, %v1638
        %v1640 = vpop.f32.mrb[0].mxu0
        %v1641 = vpop.f32.mrb[0].mxu0
        %v1642 = vadd.f32 %v1337, %v1641
        %v1643 = vpop.f32.mrb[0].mxu0
        %1644 = vmatprep.mubr.bf16.mxu0 %v790
        %1645 = vmatmul.mubr.bf16.gmra.mrb[0].mxu0 %v789
        %v1646 = vpop.f32.mrb[0].mxu0
        %v1647 = vadd.f32 %v1342, %v1646
        %v1648 = vpop.f32.mrb[0].mxu0
        %v1649 = vpop.f32.mrb[0].mxu0
        %v1650 = vadd.f32 %v1345, %v1649
        %v1651 = vpop.f32.mrb[0].mxu0
        %1652 = vmatprep.mubr.bf16.mxu0 %v793
        %1653 = vmatmul.mubr.bf16.gmra.mrb[0].mxu0 %v792
        %v1654 = vpop.f32.mrb[0].mxu0
        %v1655 = vadd.f32 %v1350, %v1654
        %v1656 = vpop.f32.mrb[0].mxu0
        %v1657 = vpop.f32.mrb[0].mxu0
        %v1658 = vadd.f32 %v1353, %v1657
        %v1659 = vpop.f32.mrb[0].mxu0
        %1660 = vmatprep.mubr.bf16.mxu0 %v796
        %1661 = vmatmul.mubr.bf16.gmra.mrb[0].mxu0 %v795
        %v1662 = vpop.f32.mrb[0].mxu0
        %v1663 = vadd.f32 %v1358, %v1662
        %v1664 = vpop.f32.mrb[0].mxu0
        %v1665 = vpop.f32.mrb[0].mxu0
        %v1666 = vadd.f32 %v1361, %v1665
        %v1667 = vpop.f32.mrb[0].mxu0
        %1668 = vmatprep.mubr.bf16.mxu0 %v799
        %1669 = vmatmul.mubr.bf16.gmra.mrb[0].mxu0 %v798
        %v1670 = vpop.f32.mrb[0].mxu0
        %v1671 = vadd.f32 %v1366, %v1670
        %v1672 = vpop.f32.mrb[0].mxu0
        %v1673 = vpop.f32.mrb[0].mxu0
        %v1674 = vadd.f32 %v1369, %v1673
        %v1675 = vpop.f32.mrb[0].mxu0
        %1676 = vmatprep.mubr.bf16.mxu0 %v802
        %1677 = vmatmul.mubr.bf16.gmra.mrb[0].mxu0 %v801
        %v1678 = vpop.f32.mrb[0].mxu0
        %v1679 = vadd.f32 %v1374, %v1678
        %v1680 = vpop.f32.mrb[0].mxu0
        %v1681 = vpop.f32.mrb[0].mxu0
        %v1682 = vadd.f32 %v1377, %v1681
        %v1683 = vpop.f32.mrb[0].mxu0
        %1684 = vmatprep.mubr.bf16.mxu0 %v805
        %1685 = vmatmul.mubr.bf16.gmra.mrb[0].mxu0 %v804
        %v1686 = vpop.f32.mrb[0].mxu0
        %v1687 = vadd.f32 %v1382, %v1686
        %v1688 = vpop.f32.mrb[0].mxu0
        %v1689 = vpop.f32.mrb[0].mxu0
        %v1690 = vadd.f32 %v1385, %v1689
        %v1691 = vpop.f32.mrb[0].mxu0
        %1692 = vmatprep.mubr.bf16.mxu0 %v808
        %1693 = vmatmul.mubr.bf16.gmra.mrb[0].mxu0 %v807
        %v1694 = vpop.f32.mrb[0].mxu0
        %v1695 = vadd.f32 %v1390, %v1694
        %v1696 = vpop.f32.mrb[0].mxu0
        %v1697 = vpop.f32.mrb[0].mxu0
        %v1698 = vadd.f32 %v1393, %v1697
        %v1699 = vpop.f32.mrb[0].mxu0
        %1700 = vmatprep.mubr.bf16.mxu0 %v811
        %1701 = vmatmul.mubr.bf16.gmra.mrb[0].mxu0 %v810
        %v1702 = vpop.f32.mrb[0].mxu0
        %v1703 = vadd.f32 %v1398, %v1702
        %v1704 = vpop.f32.mrb[0].mxu0
        %v1705 = vpop.f32.mrb[0].mxu0
        %v1706 = vadd.f32 %v1401, %v1705
        %v1707 = vpop.f32.mrb[0].mxu0
        %1708 = vmatprep.mubr.bf16.mxu0 %v814
        %1709 = vmatmul.mubr.bf16.gmra.mrb[0].mxu0 %v813
        %v1710 = vpop.f32.mrb[0].mxu0
        %v1711 = vadd.f32 %v1406, %v1710
        %v1712 = vpop.f32.mrb[0].mxu0
        %v1713 = vpop.f32.mrb[0].mxu0
        %v1714 = vadd.f32 %v1409, %v1713
        %v1715 = vpop.f32.mrb[0].mxu0
        %1716 = vmatprep.mubr.bf16.mxu0 %v817
        %1717 = vmatmul.mubr.bf16.gmra.mrb[0].mxu0 %v816
        %v1718 = vpop.f32.mrb[0].mxu0
        %v1719 = vadd.f32 %v1414, %v1718
        %v1720 = vpop.f32.mrb[0].mxu0
        %v1721 = vpop.f32.mrb[0].mxu0
        %v1722 = vadd.f32 %v1417, %v1721
        %v1723 = vpop.f32.mrb[0].mxu0
        %1724 = vmatprep.mubr.bf16.mxu0 %v820
        %1725 = vmatmul.mubr.bf16.gmra.mrb[0].mxu0 %v819
        %v1726 = vpop.f32.mrb[0].mxu0
        %v1727 = vadd.f32 %v1422, %v1726
        %v1728 = vpop.f32.mrb[0].mxu0
        %v1729 = vpop.f32.mrb[0].mxu0
        %v1730 = vadd.f32 %v1425, %v1729
        %v1731 = vpop.f32.mrb[0].mxu0
        %1732 = vmatprep.mubr.bf16.mxu0 %v823
        %1733 = vmatmul.mubr.bf16.gmra.mrb[0].mxu0 %v822
        %v1734 = vpop.f32.mrb[0].mxu0
        %v1735 = vadd.f32 %v1430, %v1734
        %v1736 = vpop.f32.mrb[0].mxu0
        %v1737 = vpop.f32.mrb[0].mxu0
        %v1738 = vadd.f32 %v1433, %v1737
        %v1739 = vpop.f32.mrb[0].mxu0
        %1740 = vdwg.mxu0
        %1741 = vmatprep.subr.bf16.mxu0 0
        %1742 = vmatpush1.bf16.msra.mxu0 %v1548
        %1743 = vmatprep.subr.bf16.mxu0 0
        %1744 = vmatpush1.bf16.msra.mxu0 %v1549
        %1745 = vmatprep.subr.bf16.mxu0 0
        %1746 = vmatpush1.bf16.msra.mxu0 %v1550
        %1747 = vmatprep.subr.bf16.mxu0 0
        %1748 = vmatpush1.bf16.msra.mxu0 %v1551
        %1749 = vmatprep.subr.bf16.mxu0 0
        %1750 = vmatpush1.bf16.msra.mxu0 %v1552
        %1751 = vmatprep.subr.bf16.mxu0 0
        %1752 = vmatpush1.bf16.msra.mxu0 %v1553
        %1753 = vmatprep.subr.bf16.mxu0 0
        %1754 = vmatpush1.bf16.msra.mxu0 %v1554
        %1755 = vmatprep.subr.bf16.mxu0 0
        %1756 = vmatpush1.bf16.msra.mxu0 %v1555
        %1757 = vmatprep.subr.bf16.mxu0 0
        %1758 = vmatpush1.bf16.msra.mxu0 0
        %1759 = vmatprep.subr.bf16.mxu0 0
        %1760 = vmatpush1.bf16.msra.mxu0 0
        %1761 = vmatprep.subr.bf16.mxu0 0
        %1762 = vmatpush1.bf16.msra.mxu0 0
        %1763 = vmatprep.subr.bf16.mxu0 0
        %1764 = vmatpush1.bf16.msra.mxu0 0
        %1765 = vmatprep.subr.bf16.mxu0 0
        %1766 = vmatpush1.bf16.msra.mxu0 0
        %1767 = vmatprep.subr.bf16.mxu0 0
        %1768 = vmatpush1.bf16.msra.mxu0 0
        %1769 = vmatprep.subr.bf16.mxu0 0
        %1770 = vmatpush1.bf16.msra.mxu0 0
        %1771 = vmatprep.subr.bf16.mxu0 0
        %1772 = vmatpush1.bf16.msra.mxu0 0
        %1773 = vmatprep.mubr.bf16.mxu0 0
        %1774 = vmatmul.mubr.bf16.gmra.mrb[0].mxu0 %v779
        %v1775 = vpop.f32.mrb[0].mxu0
        %v1776 = vadd.f32 %v1615, %v1775
        %v1777 = vpop.f32.mrb[0].mxu0
        %v1778 = vpop.f32.mrb[0].mxu0
        %v1779 = vadd.f32 %v1618, %v1778
        %v1780 = vpop.f32.mrb[0].mxu0
        %1781 = vmatprep.mubr.bf16.mxu0 0
        %1782 = vmatmul.mubr.bf16.gmra.mrb[0].mxu0 %v782
        %v1783 = vpop.f32.mrb[0].mxu0
        %v1784 = vadd.f32 %v1623, %v1783
        %v1785 = vpop.f32.mrb[0].mxu0
        %v1786 = vpop.f32.mrb[0].mxu0
        %v1787 = vadd.f32 %v1626, %v1786
        %v1788 = vpop.f32.mrb[0].mxu0
        %1789 = vmatprep.mubr.bf16.mxu0 0
        %1790 = vmatmul.mubr.bf16.gmra.mrb[0].mxu0 %v785
        %v1791 = vpop.f32.mrb[0].mxu0
        %v1792 = vadd.f32 %v1631, %v1791
        %v1793 = vpop.f32.mrb[0].mxu0
        %v1794 = vpop.f32.mrb[0].mxu0
        %v1795 = vadd.f32 %v1634, %v1794
        %v1796 = vpop.f32.mrb[0].mxu0
        %1797 = vmatprep.mubr.bf16.mxu0 0
        %1798 = vmatmul.mubr.bf16.gmra.mrb[0].mxu0 %v788
        %v1799 = vpop.f32.mrb[0].mxu0
        %v1800 = vadd.f32 %v1639, %v1799
        %v1801 = vpop.f32.mrb[0].mxu0
        %v1802 = vpop.f32.mrb[0].mxu0
        %v1803 = vadd.f32 %v1642, %v1802
        %v1804 = vpop.f32.mrb[0].mxu0
        %1805 = vmatprep.mubr.bf16.mxu0 0
        %1806 = vmatmul.mubr.bf16.gmra.mrb[0].mxu0 %v791
        %v1807 = vpop.f32.mrb[0].mxu0
        %v1808 = vadd.f32 %v1647, %v1807
        %v1809 = vpop.f32.mrb[0].mxu0
        %v1810 = vpop.f32.mrb[0].mxu0
        %v1811 = vadd.f32 %v1650, %v1810
        %v1812 = vpop.f32.mrb[0].mxu0
        %1813 = vmatprep.mubr.bf16.mxu0 0
        %1814 = vmatmul.mubr.bf16.gmra.mrb[0].mxu0 %v794
        %v1815 = vpop.f32.mrb[0].mxu0
        %v1816 = vadd.f32 %v1655, %v1815
        %v1817 = vpop.f32.mrb[0].mxu0
        %v1818 = vpop.f32.mrb[0].mxu0
        %v1819 = vadd.f32 %v1658, %v1818
        %v1820 = vpop.f32.mrb[0].mxu0
        %1821 = vmatprep.mubr.bf16.mxu0 0
        %1822 = vmatmul.mubr.bf16.gmra.mrb[0].mxu0 %v797
        %v1823 = vpop.f32.mrb[0].mxu0
        %v1824 = vadd.f32 %v1663, %v1823
        %v1825 = vpop.f32.mrb[0].mxu0
        %v1826 = vpop.f32.mrb[0].mxu0
        %v1827 = vadd.f32 %v1666, %v1826
        %v1828 = vpop.f32.mrb[0].mxu0
        %1829 = vmatprep.mubr.bf16.mxu0 0
        %1830 = vmatmul.mubr.bf16.gmra.mrb[0].mxu0 %v800
        %v1831 = vpop.f32.mrb[0].mxu0
        %v1832 = vadd.f32 %v1671, %v1831
        %v1833 = vpop.f32.mrb[0].mxu0
        %v1834 = vpop.f32.mrb[0].mxu0
        %v1835 = vadd.f32 %v1674, %v1834
        %v1836 = vpop.f32.mrb[0].mxu0
        %1837 = vmatprep.mubr.bf16.mxu0 0
        %1838 = vmatmul.mubr.bf16.gmra.mrb[0].mxu0 %v803
        %v1839 = vpop.f32.mrb[0].mxu0
        %v1840 = vadd.f32 %v1679, %v1839
        %v1841 = vpop.f32.mrb[0].mxu0
        %v1842 = vpop.f32.mrb[0].mxu0
        %v1843 = vadd.f32 %v1682, %v1842
        %v1844 = vpop.f32.mrb[0].mxu0
        %1845 = vmatprep.mubr.bf16.mxu0 0
        %1846 = vmatmul.mubr.bf16.gmra.mrb[0].mxu0 %v806
        %v1847 = vpop.f32.mrb[0].mxu0
        %v1848 = vadd.f32 %v1687, %v1847
        %v1849 = vpop.f32.mrb[0].mxu0
        %v1850 = vpop.f32.mrb[0].mxu0
        %v1851 = vadd.f32 %v1690, %v1850
        %v1852 = vpop.f32.mrb[0].mxu0
        %1853 = vmatprep.mubr.bf16.mxu0 0
        %1854 = vmatmul.mubr.bf16.gmra.mrb[0].mxu0 %v809
        %v1855 = vpop.f32.mrb[0].mxu0
        %v1856 = vadd.f32 %v1695, %v1855
        %v1857 = vpop.f32.mrb[0].mxu0
        %v1858 = vpop.f32.mrb[0].mxu0
        %v1859 = vadd.f32 %v1698, %v1858
        %v1860 = vpop.f32.mrb[0].mxu0
        %1861 = vmatprep.mubr.bf16.mxu0 0
        %1862 = vmatmul.mubr.bf16.gmra.mrb[0].mxu0 %v812
        %v1863 = vpop.f32.mrb[0].mxu0
        %v1864 = vadd.f32 %v1703, %v1863
        %v1865 = vpop.f32.mrb[0].mxu0
        %v1866 = vpop.f32.mrb[0].mxu0
        %v1867 = vadd.f32 %v1706, %v1866
        %v1868 = vpop.f32.mrb[0].mxu0
        %1869 = vmatprep.mubr.bf16.mxu0 0
        %1870 = vmatmul.mubr.bf16.gmra.mrb[0].mxu0 %v815
        %v1871 = vpop.f32.mrb[0].mxu0
        %v1872 = vadd.f32 %v1711, %v1871
        %v1873 = vpop.f32.mrb[0].mxu0
        %v1874 = vpop.f32.mrb[0].mxu0
        %v1875 = vadd.f32 %v1714, %v1874
        %v1876 = vpop.f32.mrb[0].mxu0
        %1877 = vmatprep.mubr.bf16.mxu0 0
        %1878 = vmatmul.mubr.bf16.gmra.mrb[0].mxu0 %v818
        %v1879 = vpop.f32.mrb[0].mxu0
        %v1880 = vadd.f32 %v1719, %v1879
        %v1881 = vpop.f32.mrb[0].mxu0
        %v1882 = vpop.f32.mrb[0].mxu0
        %v1883 = vadd.f32 %v1722, %v1882
        %v1884 = vpop.f32.mrb[0].mxu0
        %1885 = vmatprep.mubr.bf16.mxu0 0
        %1886 = vmatmul.mubr.bf16.gmra.mrb[0].mxu0 %v821
        %v1887 = vpop.f32.mrb[0].mxu0
        %v1888 = vadd.f32 %v1727, %v1887
        %v1889 = vpop.f32.mrb[0].mxu0
        %v1890 = vpop.f32.mrb[0].mxu0
        %v1891 = vadd.f32 %v1730, %v1890
        %v1892 = vpop.f32.mrb[0].mxu0
        %1893 = vmatprep.mubr.bf16.mxu0 0
        %1894 = vmatmul.mubr.bf16.gmra.mrb[0].mxu0 %v824
        %v1895 = vpop.f32.mrb[0].mxu0
        %v1896 = vadd.f32 %v1735, %v1895
        %v1897 = vpop.f32.mrb[0].mxu0
        %v1898 = vpop.f32.mrb[0].mxu0
        %v1899 = vadd.f32 %v1738, %v1898
        %v1900 = vpop.f32.mrb[0].mxu0
        %1901 = vdwg.mxu0
        %s1902 = scalar_lea.vmem [#allocation2], 48
        %v1903 = vld [vmem:[%s1902] sm:$0xff]
        %v1904 = vld [vmem:[%s1902 + $0x8] sm:$0xff]
        %v1905 = vld [vmem:[%s1902 + $0x10] sm:$0xff]
        %v1906 = vld [vmem:[%s1902 + $0x18] sm:$0xff]
        %v1907 = vld [vmem:[%s1902 + $0x20] sm:$0xff]
        %v1908 = vld [vmem:[%s1902 + $0x28] sm:$0xff]
        %v1909 = vld [vmem:[%s1902 + $0x30] sm:$0xff]
        %v1910 = vld [vmem:[%s1902 + $0x38] sm:$0xff]
        %v1911 = vld [vmem:[%s1902 + $0x40] sm:$0xff]
        %v1912 = vld [vmem:[%s1902 + $0x48] sm:$0xff]
        %v1913 = vld [vmem:[%s1902 + $0x50] sm:$0xff]
        %v1914 = vld [vmem:[%s1902 + $0x58] sm:$0xff]
        %v1915 = vld [vmem:[%s1902 + $0x60] sm:$0xff]
        %v1916 = vld [vmem:[%s1902 + $0x68] sm:$0xff]
        %v1917 = vld [vmem:[%s1902 + $0x70] sm:$0xff]
        %v1918 = vld [vmem:[%s1902 + $0x78] sm:$0xff]
        %v1919 = vld [vmem:[%s1902 + $0x80] sm:$0xff]
        %v1920 = vld [vmem:[%s1902 + $0x88] sm:$0xff]
        %v1921 = vld [vmem:[%s1902 + $0x90] sm:$0xff]
        %v1922 = vld [vmem:[%s1902 + $0x98] sm:$0xff]
        %v1923 = vld [vmem:[%s1902 + $0xa0] sm:$0xff]
        %v1924 = vld [vmem:[%s1902 + $0xa8] sm:$0xff]
        %v1925 = vld [vmem:[%s1902 + $0xb0] sm:$0xff]
        %v1926 = vld [vmem:[%s1902 + $0xb8] sm:$0xff]
        %v1927 = vld [vmem:[%s1902 + $0xc0] sm:$0xff]
        %v1928 = vld [vmem:[%s1902 + $0xc8] sm:$0xff]
        %v1929 = vld [vmem:[%s1902 + $0xd0] sm:$0xff]
        %v1930 = vld [vmem:[%s1902 + $0xd8] sm:$0xff]
        %v1931 = vld [vmem:[%s1902 + $0xe0] sm:$0xff]
        %v1932 = vld [vmem:[%s1902 + $0xe8] sm:$0xff]
        %v1933 = vld [vmem:[%s1902 + $0xf0] sm:$0xff]
        %v1934 = vld [vmem:[%s1902 + $0xf8] sm:$0xff]
        %v1935 = vld [vmem:[%s1902 + $0x100] sm:$0xff]
        %v1936 = vld [vmem:[%s1902 + $0x108] sm:$0xff]
        %v1937 = vld [vmem:[%s1902 + $0x110] sm:$0xff]
        %v1938 = vld [vmem:[%s1902 + $0x118] sm:$0xff]
        %v1939 = vld [vmem:[%s1902 + $0x120] sm:$0xff]
        %v1940 = vld [vmem:[%s1902 + $0x128] sm:$0xff]
        %v1941 = vld [vmem:[%s1902 + $0x130] sm:$0xff]
        %v1942 = vld [vmem:[%s1902 + $0x138] sm:$0xff]
        %v1943 = vld [vmem:[%s1902 + $0x140] sm:$0xff]
        %v1944 = vld [vmem:[%s1902 + $0x148] sm:$0xff]
        %v1945 = vld [vmem:[%s1902 + $0x150] sm:$0xff]
        %v1946 = vld [vmem:[%s1902 + $0x158] sm:$0xff]
        %v1947 = vld [vmem:[%s1902 + $0x160] sm:$0xff]
        %v1948 = vld [vmem:[%s1902 + $0x168] sm:$0xff]
        %v1949 = vld [vmem:[%s1902 + $0x170] sm:$0xff]
        %v1950 = vld [vmem:[%s1902 + $0x178] sm:$0xff]
        %s1951 = scalar_lea.vmem [#allocation6], 384
        %v1952 = vld [vmem:[%s1951] sm:$0xf]
        %v1953 = vld [vmem:[%s1951 + $0x4] sm:$0xf]
        %v1954 = vld [vmem:[%s1951 + $0x8] sm:$0xf]
        %v1955 = vld [vmem:[%s1951 + $0xc] sm:$0xf]
        %v1956 = vld [vmem:[%s1951 + $0x10] sm:$0xf]
        %v1957 = vld [vmem:[%s1951 + $0x14] sm:$0xf]
        %v1958 = vld [vmem:[%s1951 + $0x18] sm:$0xf]
        %v1959 = vld [vmem:[%s1951 + $0x1c] sm:$0xf]
        %v1960 = vld [vmem:[%s1951 + $0x20] sm:$0xf]
        %v1961 = vld [vmem:[%s1951 + $0x24] sm:$0xf]
        %v1962 = vld [vmem:[%s1951 + $0x28] sm:$0xf]
        %v1963 = vld [vmem:[%s1951 + $0x2c] sm:$0xf]
        %v1964 = vld [vmem:[%s1951 + $0x30] sm:$0xf]
        %v1965 = vld [vmem:[%s1951 + $0x34] sm:$0xf]
        %v1966 = vld [vmem:[%s1951 + $0x38] sm:$0xf]
        %v1967 = vld [vmem:[%s1951 + $0x3c] sm:$0xf]
        %v1968 = vld [vmem:[%s1951 + $0x40] sm:$0xf]
        %v1969 = vld [vmem:[%s1951 + $0x44] sm:$0xf]
        %v1970 = vld [vmem:[%s1951 + $0x48] sm:$0xf]
        %v1971 = vld [vmem:[%s1951 + $0x4c] sm:$0xf]
        %v1972 = vld [vmem:[%s1951 + $0x50] sm:$0xf]
        %v1973 = vld [vmem:[%s1951 + $0x54] sm:$0xf]
        %v1974 = vld [vmem:[%s1951 + $0x58] sm:$0xf]
        %v1975 = vld [vmem:[%s1951 + $0x5c] sm:$0xf]
        %v1976 = vld [vmem:[%s1951 + $0x60] sm:$0xf]
        %v1977 = vld [vmem:[%s1951 + $0x64] sm:$0xf]
        %v1978 = vld [vmem:[%s1951 + $0x68] sm:$0xf]
        %v1979 = vld [vmem:[%s1951 + $0x6c] sm:$0xf]
        %v1980 = vld [vmem:[%s1951 + $0x70] sm:$0xf]
        %v1981 = vld [vmem:[%s1951 + $0x74] sm:$0xf]
        %v1982 = vld [vmem:[%s1951 + $0x78] sm:$0xf]
        %v1983 = vld [vmem:[%s1951 + $0x7c] sm:$0xf]
        %v1984 = vld [vmem:[%s1951 + $0x80] sm:$0xf]
        %v1985 = vld [vmem:[%s1951 + $0x84] sm:$0xf]
        %v1986 = vld [vmem:[%s1951 + $0x88] sm:$0xf]
        %v1987 = vld [vmem:[%s1951 + $0x8c] sm:$0xf]
        %v1988 = vld [vmem:[%s1951 + $0x90] sm:$0xf]
        %v1989 = vld [vmem:[%s1951 + $0x94] sm:$0xf]
        %v1990 = vld [vmem:[%s1951 + $0x98] sm:$0xf]
        %v1991 = vld [vmem:[%s1951 + $0x9c] sm:$0xf]
        %v1992 = vld [vmem:[%s1951 + $0xa0] sm:$0xf]
        %v1993 = vld [vmem:[%s1951 + $0xa4] sm:$0xf]
        %v1994 = vld [vmem:[%s1951 + $0xa8] sm:$0xf]
        %v1995 = vld [vmem:[%s1951 + $0xac] sm:$0xf]
        %v1996 = vld [vmem:[%s1951 + $0xb0] sm:$0xf]
        %v1997 = vld [vmem:[%s1951 + $0xb4] sm:$0xf]
        %v1998 = vld [vmem:[%s1951 + $0xb8] sm:$0xf]
        %v1999 = vld [vmem:[%s1951 + $0xbc] sm:$0xf]
        %v2048 = vunpack.c.l.b16 %v1952
        %v2049 = vunpack.c.l.b16 %v1953
        %v2050 = vunpack.c.l.b16 %v1954
        %v2051 = vunpack.c.l.b16 %v1955
        %v2052 = vunpack.c.l.b16 %v1956
        %v2053 = vunpack.c.l.b16 %v1957
        %v2054 = vunpack.c.l.b16 %v1958
        %v2055 = vunpack.c.l.b16 %v1959
        %v2056 = vunpack.c.l.b16 %v1960
        %v2057 = vunpack.c.l.b16 %v1961
        %v2058 = vunpack.c.l.b16 %v1962
        %v2059 = vunpack.c.l.b16 %v1963
        %v2060 = vunpack.c.l.b16 %v1964
        %v2061 = vunpack.c.l.b16 %v1965
        %v2062 = vunpack.c.l.b16 %v1966
        %v2063 = vunpack.c.l.b16 %v1967
        %v2064 = vunpack.c.l.b16 %v1968
        %v2065 = vunpack.c.l.b16 %v1969
        %v2066 = vunpack.c.l.b16 %v1970
        %v2067 = vunpack.c.l.b16 %v1971
        %v2068 = vunpack.c.l.b16 %v1972
        %v2069 = vunpack.c.l.b16 %v1973
        %v2070 = vunpack.c.l.b16 %v1974
        %v2071 = vunpack.c.l.b16 %v1975
        %v2072 = vunpack.c.l.b16 %v1976
        %v2073 = vunpack.c.l.b16 %v1977
        %v2074 = vunpack.c.l.b16 %v1978
        %v2075 = vunpack.c.l.b16 %v1979
        %v2076 = vunpack.c.l.b16 %v1980
        %v2077 = vunpack.c.l.b16 %v1981
        %v2078 = vunpack.c.l.b16 %v1982
        %v2079 = vunpack.c.l.b16 %v1983
        %v2080 = vunpack.c.l.b16 %v1984
        %v2081 = vunpack.c.l.b16 %v1985
        %v2082 = vunpack.c.l.b16 %v1986
        %v2083 = vunpack.c.l.b16 %v1987
        %v2084 = vunpack.c.l.b16 %v1988
        %v2085 = vunpack.c.l.b16 %v1989
        %v2086 = vunpack.c.l.b16 %v1990
        %v2087 = vunpack.c.l.b16 %v1991
        %v2088 = vunpack.c.l.b16 %v1992
        %v2089 = vunpack.c.l.b16 %v1993
        %v2090 = vunpack.c.l.b16 %v1994
        %v2091 = vunpack.c.l.b16 %v1995
        %v2092 = vunpack.c.l.b16 %v1996
        %v2093 = vunpack.c.l.b16 %v1997
        %v2094 = vunpack.c.l.b16 %v1998
        %v2095 = vunpack.c.l.b16 %v1999
        %v2096 = vpack.c.b16 %v2049, %v2048
        %v2097 = vpack.c.b16 %v2051, %v2050
        %v2098 = vpack.c.b16 %v2053, %v2052
        %v2099 = vpack.c.b16 %v2055, %v2054
        %v2100 = vpack.c.b16 %v2057, %v2056
        %v2101 = vpack.c.b16 %v2059, %v2058
        %v2102 = vpack.c.b16 %v2061, %v2060
        %v2103 = vpack.c.b16 %v2063, %v2062
        %v2104 = vpack.c.b16 %v2065, %v2064
        %v2105 = vpack.c.b16 %v2067, %v2066
        %v2106 = vpack.c.b16 %v2069, %v2068
        %v2107 = vpack.c.b16 %v2071, %v2070
        %v2108 = vpack.c.b16 %v2073, %v2072
        %v2109 = vpack.c.b16 %v2075, %v2074
        %v2110 = vpack.c.b16 %v2077, %v2076
        %v2111 = vpack.c.b16 %v2079, %v2078
        %v2112 = vpack.c.b16 %v2081, %v2080
        %v2113 = vpack.c.b16 %v2083, %v2082
        %v2114 = vpack.c.b16 %v2085, %v2084
        %v2115 = vpack.c.b16 %v2087, %v2086
        %v2116 = vpack.c.b16 %v2089, %v2088
        %v2117 = vpack.c.b16 %v2091, %v2090
        %v2118 = vpack.c.b16 %v2093, %v2092
        %v2119 = vpack.c.b16 %v2095, %v2094
        %2144 = vmatprep.subr.bf16.mxu0 0
        %2145 = vmatpush1.bf16.msra.mxu0 %v2096
        %2146 = vmatprep.subr.bf16.mxu0 0
        %2147 = vmatpush1.bf16.msra.mxu0 %v2097
        %2148 = vmatprep.subr.bf16.mxu0 0
        %2149 = vmatpush1.bf16.msra.mxu0 %v2098
        %2150 = vmatprep.subr.bf16.mxu0 0
        %2151 = vmatpush1.bf16.msra.mxu0 %v2099
        %2152 = vmatprep.subr.bf16.mxu0 0
        %2153 = vmatpush1.bf16.msra.mxu0 %v2100
        %2154 = vmatprep.subr.bf16.mxu0 0
        %2155 = vmatpush1.bf16.msra.mxu0 %v2101
        %2156 = vmatprep.subr.bf16.mxu0 0
        %2157 = vmatpush1.bf16.msra.mxu0 %v2102
        %2158 = vmatprep.subr.bf16.mxu0 0
        %2159 = vmatpush1.bf16.msra.mxu0 %v2103
        %2160 = vmatprep.subr.bf16.mxu0 0
        %2161 = vmatpush1.bf16.msra.mxu0 %v2104
        %2162 = vmatprep.subr.bf16.mxu0 0
        %2163 = vmatpush1.bf16.msra.mxu0 %v2105
        %2164 = vmatprep.subr.bf16.mxu0 0
        %2165 = vmatpush1.bf16.msra.mxu0 %v2106
        %2166 = vmatprep.subr.bf16.mxu0 0
        %2167 = vmatpush1.bf16.msra.mxu0 %v2107
        %2168 = vmatprep.subr.bf16.mxu0 0
        %2169 = vmatpush1.bf16.msra.mxu0 %v2108
        %2170 = vmatprep.subr.bf16.mxu0 0
        %2171 = vmatpush1.bf16.msra.mxu0 %v2109
        %2172 = vmatprep.subr.bf16.mxu0 0
        %2173 = vmatpush1.bf16.msra.mxu0 %v2110
        %2174 = vmatprep.subr.bf16.mxu0 0
        %2175 = vmatpush1.bf16.msra.mxu0 %v2111
        %2176 = vmatprep.mubr.bf16.mxu0 %v1904
        %2177 = vmatmul.mubr.bf16.gmra.mrb[0].mxu0 %v1903
        %v2178 = vpop.f32.mrb[0].mxu0
        %v2179 = vadd.f32 0.0, %v2178
        %v2180 = vpop.f32.mrb[0].mxu0
        %v2181 = vpop.f32.mrb[0].mxu0
        %v2182 = vadd.f32 0.0, %v2181
        %v2183 = vpop.f32.mrb[0].mxu0
        %2184 = vmatprep.mubr.bf16.mxu0 %v1907
        %2185 = vmatmul.mubr.bf16.gmra.mrb[0].mxu0 %v1906
        %v2186 = vpop.f32.mrb[0].mxu0
        %v2187 = vadd.f32 0.0, %v2186
        %v2188 = vpop.f32.mrb[0].mxu0
        %v2189 = vpop.f32.mrb[0].mxu0
        %v2190 = vadd.f32 0.0, %v2189
        %v2191 = vpop.f32.mrb[0].mxu0
        %2192 = vmatprep.mubr.bf16.mxu0 %v1910
        %2193 = vmatmul.mubr.bf16.gmra.mrb[0].mxu0 %v1909
        %v2194 = vpop.f32.mrb[0].mxu0
        %v2195 = vadd.f32 0.0, %v2194
        %v2196 = vpop.f32.mrb[0].mxu0
        %v2197 = vpop.f32.mrb[0].mxu0
        %v2198 = vadd.f32 0.0, %v2197
        %v2199 = vpop.f32.mrb[0].mxu0
        %2200 = vmatprep.mubr.bf16.mxu0 %v1913
        %2201 = vmatmul.mubr.bf16.gmra.mrb[0].mxu0 %v1912
        %v2202 = vpop.f32.mrb[0].mxu0
        %v2203 = vadd.f32 0.0, %v2202
        %v2204 = vpop.f32.mrb[0].mxu0
        %v2205 = vpop.f32.mrb[0].mxu0
        %v2206 = vadd.f32 0.0, %v2205
        %v2207 = vpop.f32.mrb[0].mxu0
        %2208 = vmatprep.mubr.bf16.mxu0 %v1916
        %2209 = vmatmul.mubr.bf16.gmra.mrb[0].mxu0 %v1915
        %v2210 = vpop.f32.mrb[0].mxu0
        %v2211 = vadd.f32 0.0, %v2210
        %v2212 = vpop.f32.mrb[0].mxu0
        %v2213 = vpop.f32.mrb[0].mxu0
        %v2214 = vadd.f32 0.0, %v2213
        %v2215 = vpop.f32.mrb[0].mxu0
        %2216 = vmatprep.mubr.bf16.mxu0 %v1919
        %2217 = vmatmul.mubr.bf16.gmra.mrb[0].mxu0 %v1918
        %v2218 = vpop.f32.mrb[0].mxu0
        %v2219 = vadd.f32 0.0, %v2218
        %v2220 = vpop.f32.mrb[0].mxu0
        %v2221 = vpop.f32.mrb[0].mxu0
        %v2222 = vadd.f32 0.0, %v2221
        %v2223 = vpop.f32.mrb[0].mxu0
        %2224 = vmatprep.mubr.bf16.mxu0 %v1922
        %2225 = vmatmul.mubr.bf16.gmra.mrb[0].mxu0 %v1921
        %v2226 = vpop.f32.mrb[0].mxu0
        %v2227 = vadd.f32 0.0, %v2226
        %v2228 = vpop.f32.mrb[0].mxu0
        %v2229 = vpop.f32.mrb[0].mxu0
        %v2230 = vadd.f32 0.0, %v2229
        %v2231 = vpop.f32.mrb[0].mxu0
        %2232 = vmatprep.mubr.bf16.mxu0 %v1925
        %2233 = vmatmul.mubr.bf16.gmra.mrb[0].mxu0 %v1924
        %v2234 = vpop.f32.mrb[0].mxu0
        %v2235 = vadd.f32 0.0, %v2234
        %v2236 = vpop.f32.mrb[0].mxu0
        %v2237 = vpop.f32.mrb[0].mxu0
        %v2238 = vadd.f32 0.0, %v2237
        %v2239 = vpop.f32.mrb[0].mxu0
        %2240 = vmatprep.mubr.bf16.mxu0 %v1928
        %2241 = vmatmul.mubr.bf16.gmra.mrb[0].mxu0 %v1927
        %v2242 = vpop.f32.mrb[0].mxu0
        %v2243 = vadd.f32 0.0, %v2242
        %v2244 = vpop.f32.mrb[0].mxu0
        %v2245 = vpop.f32.mrb[0].mxu0
        %v2246 = vadd.f32 0.0, %v2245
        %v2247 = vpop.f32.mrb[0].mxu0
        %2248 = vmatprep.mubr.bf16.mxu0 %v1931
        %2249 = vmatmul.mubr.bf16.gmra.mrb[0].mxu0 %v1930
        %v2250 = vpop.f32.mrb[0].mxu0
        %v2251 = vadd.f32 0.0, %v2250
        %v2252 = vpop.f32.mrb[0].mxu0
        %v2253 = vpop.f32.mrb[0].mxu0
        %v2254 = vadd.f32 0.0, %v2253
        %v2255 = vpop.f32.mrb[0].mxu0
        %2256 = vmatprep.mubr.bf16.mxu0 %v1934
        %2257 = vmatmul.mubr.bf16.gmra.mrb[0].mxu0 %v1933
        %v2258 = vpop.f32.mrb[0].mxu0
        %v2259 = vadd.f32 0.0, %v2258
        %v2260 = vpop.f32.mrb[0].mxu0
        %v2261 = vpop.f32.mrb[0].mxu0
        %v2262 = vadd.f32 0.0, %v2261
        %v2263 = vpop.f32.mrb[0].mxu0
        %2264 = vmatprep.mubr.bf16.mxu0 %v1937
        %2265 = vmatmul.mubr.bf16.gmra.mrb[0].mxu0 %v1936
        %v2266 = vpop.f32.mrb[0].mxu0
        %v2267 = vadd.f32 0.0, %v2266
        %v2268 = vpop.f32.mrb[0].mxu0
        %v2269 = vpop.f32.mrb[0].mxu0
        %v2270 = vadd.f32 0.0, %v2269
        %v2271 = vpop.f32.mrb[0].mxu0
        %2272 = vmatprep.mubr.bf16.mxu0 %v1940
        %2273 = vmatmul.mubr.bf16.gmra.mrb[0].mxu0 %v1939
        %v2274 = vpop.f32.mrb[0].mxu0
        %v2275 = vadd.f32 0.0, %v2274
        %v2276 = vpop.f32.mrb[0].mxu0
        %v2277 = vpop.f32.mrb[0].mxu0
        %v2278 = vadd.f32 0.0, %v2277
        %v2279 = vpop.f32.mrb[0].mxu0
        %2280 = vmatprep.mubr.bf16.mxu0 %v1943
        %2281 = vmatmul.mubr.bf16.gmra.mrb[0].mxu0 %v1942
        %v2282 = vpop.f32.mrb[0].mxu0
        %v2283 = vadd.f32 0.0, %v2282
        %v2284 = vpop.f32.mrb[0].mxu0
        %v2285 = vpop.f32.mrb[0].mxu0
        %v2286 = vadd.f32 0.0, %v2285
        %v2287 = vpop.f32.mrb[0].mxu0
        %2288 = vmatprep.mubr.bf16.mxu0 %v1946
        %2289 = vmatmul.mubr.bf16.gmra.mrb[0].mxu0 %v1945
        %v2290 = vpop.f32.mrb[0].mxu0
        %v2291 = vadd.f32 0.0, %v2290
        %v2292 = vpop.f32.mrb[0].mxu0
        %v2293 = vpop.f32.mrb[0].mxu0
        %v2294 = vadd.f32 0.0, %v2293
        %v2295 = vpop.f32.mrb[0].mxu0
        %2296 = vmatprep.mubr.bf16.mxu0 %v1949
        %2297 = vmatmul.mubr.bf16.gmra.mrb[0].mxu0 %v1948
        %v2298 = vpop.f32.mrb[0].mxu0
        %v2299 = vadd.f32 0.0, %v2298
        %v2300 = vpop.f32.mrb[0].mxu0
        %v2301 = vpop.f32.mrb[0].mxu0
        %v2302 = vadd.f32 0.0, %v2301
        %v2303 = vpop.f32.mrb[0].mxu0
        %2304 = vdwg.mxu0
        %2305 = vmatprep.subr.bf16.mxu0 0
        %2306 = vmatpush1.bf16.msra.mxu0 %v2112
        %2307 = vmatprep.subr.bf16.mxu0 0
        %2308 = vmatpush1.bf16.msra.mxu0 %v2113
        %2309 = vmatprep.subr.bf16.mxu0 0
        %2310 = vmatpush1.bf16.msra.mxu0 %v2114
        %2311 = vmatprep.subr.bf16.mxu0 0
        %2312 = vmatpush1.bf16.msra.mxu0 %v2115
        %2313 = vmatprep.subr.bf16.mxu0 0
        %2314 = vmatpush1.bf16.msra.mxu0 %v2116
        %2315 = vmatprep.subr.bf16.mxu0 0
        %2316 = vmatpush1.bf16.msra.mxu0 %v2117
        %2317 = vmatprep.subr.bf16.mxu0 0
        %2318 = vmatpush1.bf16.msra.mxu0 %v2118
        %2319 = vmatprep.subr.bf16.mxu0 0
        %2320 = vmatpush1.bf16.msra.mxu0 %v2119
        %2321 = vmatprep.subr.bf16.mxu0 0
        %2322 = vmatpush1.bf16.msra.mxu0 0
        %2323 = vmatprep.subr.bf16.mxu0 0
        %2324 = vmatpush1.bf16.msra.mxu0 0
        %2325 = vmatprep.subr.bf16.mxu0 0
        %2326 = vmatpush1.bf16.msra.mxu0 0
        %2327 = vmatprep.subr.bf16.mxu0 0
        %2328 = vmatpush1.bf16.msra.mxu0 0
        %2329 = vmatprep.subr.bf16.mxu0 0
        %2330 = vmatpush1.bf16.msra.mxu0 0
        %2331 = vmatprep.subr.bf16.mxu0 0
        %2332 = vmatpush1.bf16.msra.mxu0 0
        %2333 = vmatprep.subr.bf16.mxu0 0
        %2334 = vmatpush1.bf16.msra.mxu0 0
        %2335 = vmatprep.subr.bf16.mxu0 0
        %2336 = vmatpush1.bf16.msra.mxu0 0
        %2337 = vmatprep.mubr.bf16.mxu0 0
        %2338 = vmatmul.mubr.bf16.gmra.mrb[0].mxu0 %v1905
        %v2339 = vpop.f32.mrb[0].mxu0
        %v2340 = vadd.f32 %v2179, %v2339
        %v2341 = vpop.f32.mrb[0].mxu0
        %v2342 = vpop.f32.mrb[0].mxu0
        %v2343 = vadd.f32 %v2182, %v2342
        %v2344 = vpop.f32.mrb[0].mxu0
        %2345 = vmatprep.mubr.bf16.mxu0 0
        %2346 = vmatmul.mubr.bf16.gmra.mrb[0].mxu0 %v1908
        %v2347 = vpop.f32.mrb[0].mxu0
        %v2348 = vadd.f32 %v2187, %v2347
        %v2349 = vpop.f32.mrb[0].mxu0
        %v2350 = vpop.f32.mrb[0].mxu0
        %v2351 = vadd.f32 %v2190, %v2350
        %v2352 = vpop.f32.mrb[0].mxu0
        %2353 = vmatprep.mubr.bf16.mxu0 0
        %2354 = vmatmul.mubr.bf16.gmra.mrb[0].mxu0 %v1911
        %v2355 = vpop.f32.mrb[0].mxu0
        %v2356 = vadd.f32 %v2195, %v2355
        %v2357 = vpop.f32.mrb[0].mxu0
        %v2358 = vpop.f32.mrb[0].mxu0
        %v2359 = vadd.f32 %v2198, %v2358
        %v2360 = vpop.f32.mrb[0].mxu0
        %2361 = vmatprep.mubr.bf16.mxu0 0
        %2362 = vmatmul.mubr.bf16.gmra.mrb[0].mxu0 %v1914
        %v2363 = vpop.f32.mrb[0].mxu0
        %v2364 = vadd.f32 %v2203, %v2363
        %v2365 = vpop.f32.mrb[0].mxu0
        %v2366 = vpop.f32.mrb[0].mxu0
        %v2367 = vadd.f32 %v2206, %v2366
        %v2368 = vpop.f32.mrb[0].mxu0
        %2369 = vmatprep.mubr.bf16.mxu0 0
        %2370 = vmatmul.mubr.bf16.gmra.mrb[0].mxu0 %v1917
        %v2371 = vpop.f32.mrb[0].mxu0
        %v2372 = vadd.f32 %v2211, %v2371
        %v2373 = vpop.f32.mrb[0].mxu0
        %v2374 = vpop.f32.mrb[0].mxu0
        %v2375 = vadd.f32 %v2214, %v2374
        %v2376 = vpop.f32.mrb[0].mxu0
        %2377 = vmatprep.mubr.bf16.mxu0 0
        %2378 = vmatmul.mubr.bf16.gmra.mrb[0].mxu0 %v1920
        %v2379 = vpop.f32.mrb[0].mxu0
        %v2380 = vadd.f32 %v2219, %v2379
        %v2381 = vpop.f32.mrb[0].mxu0
        %v2382 = vpop.f32.mrb[0].mxu0
        %v2383 = vadd.f32 %v2222, %v2382
        %v2384 = vpop.f32.mrb[0].mxu0
        %2385 = vmatprep.mubr.bf16.mxu0 0
        %2386 = vmatmul.mubr.bf16.gmra.mrb[0].mxu0 %v1923
        %v2387 = vpop.f32.mrb[0].mxu0
        %v2388 = vadd.f32 %v2227, %v2387
        %v2389 = vpop.f32.mrb[0].mxu0
        %v2390 = vpop.f32.mrb[0].mxu0
        %v2391 = vadd.f32 %v2230, %v2390
        %v2392 = vpop.f32.mrb[0].mxu0
        %2393 = vmatprep.mubr.bf16.mxu0 0
        %2394 = vmatmul.mubr.bf16.gmra.mrb[0].mxu0 %v1926
        %v2395 = vpop.f32.mrb[0].mxu0
        %v2396 = vadd.f32 %v2235, %v2395
        %v2397 = vpop.f32.mrb[0].mxu0
        %v2398 = vpop.f32.mrb[0].mxu0
        %v2399 = vadd.f32 %v2238, %v2398
        %v2400 = vpop.f32.mrb[0].mxu0
        %2401 = vmatprep.mubr.bf16.mxu0 0
        %2402 = vmatmul.mubr.bf16.gmra.mrb[0].mxu0 %v1929
        %v2403 = vpop.f32.mrb[0].mxu0
        %v2404 = vadd.f32 %v2243, %v2403
        %v2405 = vpop.f32.mrb[0].mxu0
        %v2406 = vpop.f32.mrb[0].mxu0
        %v2407 = vadd.f32 %v2246, %v2406
        %v2408 = vpop.f32.mrb[0].mxu0
        %2409 = vmatprep.mubr.bf16.mxu0 0
        %2410 = vmatmul.mubr.bf16.gmra.mrb[0].mxu0 %v1932
        %v2411 = vpop.f32.mrb[0].mxu0
        %v2412 = vadd.f32 %v2251, %v2411
        %v2413 = vpop.f32.mrb[0].mxu0
        %v2414 = vpop.f32.mrb[0].mxu0
        %v2415 = vadd.f32 %v2254, %v2414
        %v2416 = vpop.f32.mrb[0].mxu0
        %2417 = vmatprep.mubr.bf16.mxu0 0
        %2418 = vmatmul.mubr.bf16.gmra.mrb[0].mxu0 %v1935
        %v2419 = vpop.f32.mrb[0].mxu0
        %v2420 = vadd.f32 %v2259, %v2419
        %v2421 = vpop.f32.mrb[0].mxu0
        %v2422 = vpop.f32.mrb[0].mxu0
        %v2423 = vadd.f32 %v2262, %v2422
        %v2424 = vpop.f32.mrb[0].mxu0
        %2425 = vmatprep.mubr.bf16.mxu0 0
        %2426 = vmatmul.mubr.bf16.gmra.mrb[0].mxu0 %v1938
        %v2427 = vpop.f32.mrb[0].mxu0
        %v2428 = vadd.f32 %v2267, %v2427
        %v2429 = vpop.f32.mrb[0].mxu0
        %v2430 = vpop.f32.mrb[0].mxu0
        %v2431 = vadd.f32 %v2270, %v2430
        %v2432 = vpop.f32.mrb[0].mxu0
        %2433 = vmatprep.mubr.bf16.mxu0 0
        %2434 = vmatmul.mubr.bf16.gmra.mrb[0].mxu0 %v1941
        %v2435 = vpop.f32.mrb[0].mxu0
        %v2436 = vadd.f32 %v2275, %v2435
        %v2437 = vpop.f32.mrb[0].mxu0
        %v2438 = vpop.f32.mrb[0].mxu0
        %v2439 = vadd.f32 %v2278, %v2438
        %v2440 = vpop.f32.mrb[0].mxu0
        %2441 = vmatprep.mubr.bf16.mxu0 0
        %2442 = vmatmul.mubr.bf16.gmra.mrb[0].mxu0 %v1944
        %v2443 = vpop.f32.mrb[0].mxu0
        %v2444 = vadd.f32 %v2283, %v2443
        %v2445 = vpop.f32.mrb[0].mxu0
        %v2446 = vpop.f32.mrb[0].mxu0
        %v2447 = vadd.f32 %v2286, %v2446
        %v2448 = vpop.f32.mrb[0].mxu0
        %2449 = vmatprep.mubr.bf16.mxu0 0
        %2450 = vmatmul.mubr.bf16.gmra.mrb[0].mxu0 %v1947
        %v2451 = vpop.f32.mrb[0].mxu0
        %v2452 = vadd.f32 %v2291, %v2451
        %v2453 = vpop.f32.mrb[0].mxu0
        %v2454 = vpop.f32.mrb[0].mxu0
        %v2455 = vadd.f32 %v2294, %v2454
        %v2456 = vpop.f32.mrb[0].mxu0
        %2457 = vmatprep.mubr.bf16.mxu0 0
        %2458 = vmatmul.mubr.bf16.gmra.mrb[0].mxu0 %v1950
        %v2459 = vpop.f32.mrb[0].mxu0
        %v2460 = vadd.f32 %v2299, %v2459
        %v2461 = vpop.f32.mrb[0].mxu0
        %v2462 = vpop.f32.mrb[0].mxu0
        %v2463 = vadd.f32 %v2302, %v2462
        %v2464 = vpop.f32.mrb[0].mxu0
        %2465 = vdwg.mxu0
        %v2466 = vadd.f32 %v1776, %v2340
        %v2467 = vadd.f32 %v1779, %v2343
        %v2468 = vadd.f32 %v1784, %v2348
        %v2469 = vadd.f32 %v1787, %v2351
        %v2470 = vadd.f32 %v1792, %v2356
        %v2471 = vadd.f32 %v1795, %v2359
        %v2472 = vadd.f32 %v1800, %v2364
        %v2473 = vadd.f32 %v1803, %v2367
        %v2474 = vadd.f32 %v1808, %v2372
        %v2475 = vadd.f32 %v1811, %v2375
        %v2476 = vadd.f32 %v1816, %v2380
        %v2477 = vadd.f32 %v1819, %v2383
        %v2478 = vadd.f32 %v1824, %v2388
        %v2479 = vadd.f32 %v1827, %v2391
        %v2480 = vadd.f32 %v1832, %v2396
        %v2481 = vadd.f32 %v1835, %v2399
        %v2482 = vadd.f32 %v1840, %v2404
        %v2483 = vadd.f32 %v1843, %v2407
        %v2484 = vadd.f32 %v1848, %v2412
        %v2485 = vadd.f32 %v1851, %v2415
        %v2486 = vadd.f32 %v1856, %v2420
        %v2487 = vadd.f32 %v1859, %v2423
        %v2488 = vadd.f32 %v1864, %v2428
        %v2489 = vadd.f32 %v1867, %v2431
        %v2490 = vadd.f32 %v1872, %v2436
        %v2491 = vadd.f32 %v1875, %v2439
        %v2492 = vadd.f32 %v1880, %v2444
        %v2493 = vadd.f32 %v1883, %v2447
        %v2494 = vadd.f32 %v1888, %v2452
        %v2495 = vadd.f32 %v1891, %v2455
        %v2496 = vadd.f32 %v1896, %v2460
        %v2497 = vadd.f32 %v1899, %v2463
        %v2498 = vld [vmem:[%s3] sm:$0x1]
        %v2499 = vlaneseq
        %v2500 = vshrl.u32 %v2499, 7
        %v2501 = vsub.s32 0, %v2500
        %v2502 = vrot.slane %v2498, %v2501
        %v2503 = vmul.f32 %v2466, %v2502
        %v2504 = vmul.f32 %v2467, %v2502
        %v2505 = vmul.f32 %v2468, %v2502
        %v2506 = vmul.f32 %v2469, %v2502
        %v2507 = vmul.f32 %v2470, %v2502
        %v2508 = vmul.f32 %v2471, %v2502
        %v2509 = vmul.f32 %v2472, %v2502
        %v2510 = vmul.f32 %v2473, %v2502
        %v2511 = vmul.f32 %v2474, %v2502
        %v2512 = vmul.f32 %v2475, %v2502
        %v2513 = vmul.f32 %v2476, %v2502
        %v2514 = vmul.f32 %v2477, %v2502
        %v2515 = vmul.f32 %v2478, %v2502
        %v2516 = vmul.f32 %v2479, %v2502
        %v2517 = vmul.f32 %v2480, %v2502
        %v2518 = vmul.f32 %v2481, %v2502
        %v2519 = vmul.f32 %v2482, %v2502
        %v2520 = vmul.f32 %v2483, %v2502
        %v2521 = vmul.f32 %v2484, %v2502
        %v2522 = vmul.f32 %v2485, %v2502
        %v2523 = vmul.f32 %v2486, %v2502
        %v2524 = vmul.f32 %v2487, %v2502
        %v2525 = vmul.f32 %v2488, %v2502
        %v2526 = vmul.f32 %v2489, %v2502
        %v2527 = vmul.f32 %v2490, %v2502
        %v2528 = vmul.f32 %v2491, %v2502
        %v2529 = vmul.f32 %v2492, %v2502
        %v2530 = vmul.f32 %v2493, %v2502
        %v2531 = vmul.f32 %v2494, %v2502
        %v2532 = vmul.f32 %v2495, %v2502
        %v2533 = vmul.f32 %v2496, %v2502
        %v2534 = vmul.f32 %v2497, %v2502
        %v2535 = vld [vmem:[%s3 + $0x1] sm:$0x1]
        %v2536 = vlaneseq
        %v2537 = vshrl.u32 %v2536, 7
        %v2538 = vsub.s32 0, %v2537
        %v2539 = vrot.slane %v2535, %v2538
        %v2540 = vadd.f32 %v2503, %v2539
        %v2541 = vadd.f32 %v2504, %v2539
        %v2542 = vadd.f32 %v2505, %v2539
        %v2543 = vadd.f32 %v2506, %v2539
        %v2544 = vadd.f32 %v2507, %v2539
        %v2545 = vadd.f32 %v2508, %v2539
        %v2546 = vadd.f32 %v2509, %v2539
        %v2547 = vadd.f32 %v2510, %v2539
        %v2548 = vadd.f32 %v2511, %v2539
        %v2549 = vadd.f32 %v2512, %v2539
        %v2550 = vadd.f32 %v2513, %v2539
        %v2551 = vadd.f32 %v2514, %v2539
        %v2552 = vadd.f32 %v2515, %v2539
        %v2553 = vadd.f32 %v2516, %v2539
        %v2554 = vadd.f32 %v2517, %v2539
        %v2555 = vadd.f32 %v2518, %v2539
        %v2556 = vadd.f32 %v2519, %v2539
        %v2557 = vadd.f32 %v2520, %v2539
        %v2558 = vadd.f32 %v2521, %v2539
        %v2559 = vadd.f32 %v2522, %v2539
        %v2560 = vadd.f32 %v2523, %v2539
        %v2561 = vadd.f32 %v2524, %v2539
        %v2562 = vadd.f32 %v2525, %v2539
        %v2563 = vadd.f32 %v2526, %v2539
        %v2564 = vadd.f32 %v2527, %v2539
        %v2565 = vadd.f32 %v2528, %v2539
        %v2566 = vadd.f32 %v2529, %v2539
        %v2567 = vadd.f32 %v2530, %v2539
        %v2568 = vadd.f32 %v2531, %v2539
        %v2569 = vadd.f32 %v2532, %v2539
        %v2570 = vadd.f32 %v2533, %v2539
        %v2571 = vadd.f32 %v2534, %v2539
        %v2572 = vmax.f32 %v2540, 0.0
        %v2573 = vmax.f32 %v2541, 0.0
        %v2574 = vmax.f32 %v2542, 0.0
        %v2575 = vmax.f32 %v2543, 0.0
        %v2576 = vmax.f32 %v2544, 0.0
        %v2577 = vmax.f32 %v2545, 0.0
        %v2578 = vmax.f32 %v2546, 0.0
        %v2579 = vmax.f32 %v2547, 0.0
        %v2580 = vmax.f32 %v2548, 0.0
        %v2581 = vmax.f32 %v2549, 0.0
        %v2582 = vmax.f32 %v2550, 0.0
        %v2583 = vmax.f32 %v2551, 0.0
        %v2584 = vmax.f32 %v2552, 0.0
        %v2585 = vmax.f32 %v2553, 0.0
        %v2586 = vmax.f32 %v2554, 0.0
        %v2587 = vmax.f32 %v2555, 0.0
        %v2588 = vmax.f32 %v2556, 0.0
        %v2589 = vmax.f32 %v2557, 0.0
        %v2590 = vmax.f32 %v2558, 0.0
        %v2591 = vmax.f32 %v2559, 0.0
        %v2592 = vmax.f32 %v2560, 0.0
        %v2593 = vmax.f32 %v2561, 0.0
        %v2594 = vmax.f32 %v2562, 0.0
        %v2595 = vmax.f32 %v2563, 0.0
        %v2596 = vmax.f32 %v2564, 0.0
        %v2597 = vmax.f32 %v2565, 0.0
        %v2598 = vmax.f32 %v2566, 0.0
        %v2599 = vmax.f32 %v2567, 0.0
        %v2600 = vmax.f32 %v2568, 0.0
        %v2601 = vmax.f32 %v2569, 0.0
        %v2602 = vmax.f32 %v2570, 0.0
        %v2603 = vmax.f32 %v2571, 0.0
        %v2604 = vpack.c.bf16 %v2573, %v2572
        %v2605 = vpack.c.bf16 %v2575, %v2574
        %v2606 = vpack.c.bf16 %v2577, %v2576
        %v2607 = vpack.c.bf16 %v2579, %v2578
        %v2608 = vpack.c.bf16 %v2581, %v2580
        %v2609 = vpack.c.bf16 %v2583, %v2582
        %v2610 = vpack.c.bf16 %v2585, %v2584
        %v2611 = vpack.c.bf16 %v2587, %v2586
        %v2612 = vpack.c.bf16 %v2589, %v2588
        %v2613 = vpack.c.bf16 %v2591, %v2590
        %v2614 = vpack.c.bf16 %v2593, %v2592
        %v2615 = vpack.c.bf16 %v2595, %v2594
        %v2616 = vpack.c.bf16 %v2597, %v2596
        %v2617 = vpack.c.bf16 %v2599, %v2598
        %v2618 = vpack.c.bf16 %v2601, %v2600
        %v2619 = vpack.c.bf16 %v2603, %v2602
        %v2621 = vshrl.u32 %v2604, 16
        %v2623 = vrot.slane %v2621, 7
        %v2624 = vshll.u32 %v2604, 16
        %v2626 = vor.u32 %v2623, %v2624
        %v2628 = vshrl.u32 %v2605, 16
        %v2630 = vrot.slane %v2628, 7
        %v2631 = vshll.u32 %v2605, 16
        %v2633 = vor.u32 %v2630, %v2631
        %v2635 = vshrl.u32 %v2606, 16
        %v2637 = vrot.slane %v2635, 7
        %v2638 = vshll.u32 %v2606, 16
        %v2640 = vor.u32 %v2637, %v2638
        %v2642 = vshrl.u32 %v2607, 16
        %v2644 = vrot.slane %v2642, 7
        %v2645 = vshll.u32 %v2607, 16
        %v2647 = vor.u32 %v2644, %v2645
        %v2649 = vshrl.u32 %v2608, 16
        %v2651 = vrot.slane %v2649, 7
        %v2652 = vshll.u32 %v2608, 16
        %v2654 = vor.u32 %v2651, %v2652
        %v2656 = vshrl.u32 %v2609, 16
        %v2658 = vrot.slane %v2656, 7
        %v2659 = vshll.u32 %v2609, 16
        %v2661 = vor.u32 %v2658, %v2659
        %v2663 = vshrl.u32 %v2610, 16
        %v2665 = vrot.slane %v2663, 7
        %v2666 = vshll.u32 %v2610, 16
        %v2668 = vor.u32 %v2665, %v2666
        %v2670 = vshrl.u32 %v2611, 16
        %v2672 = vrot.slane %v2670, 7
        %v2673 = vshll.u32 %v2611, 16
        %v2675 = vor.u32 %v2672, %v2673
        %v2677 = vshrl.u32 %v2612, 16
        %v2679 = vrot.slane %v2677, 7
        %v2680 = vshll.u32 %v2612, 16
        %v2682 = vor.u32 %v2679, %v2680
        %v2684 = vshrl.u32 %v2613, 16
        %v2686 = vrot.slane %v2684, 7
        %v2687 = vshll.u32 %v2613, 16
        %v2689 = vor.u32 %v2686, %v2687
        %v2691 = vshrl.u32 %v2614, 16
        %v2693 = vrot.slane %v2691, 7
        %v2694 = vshll.u32 %v2614, 16
        %v2696 = vor.u32 %v2693, %v2694
        %v2698 = vshrl.u32 %v2615, 16
        %v2700 = vrot.slane %v2698, 7
        %v2701 = vshll.u32 %v2615, 16
        %v2703 = vor.u32 %v2700, %v2701
        %v2705 = vshrl.u32 %v2616, 16
        %v2707 = vrot.slane %v2705, 7
        %v2708 = vshll.u32 %v2616, 16
        %v2710 = vor.u32 %v2707, %v2708
        %v2712 = vshrl.u32 %v2617, 16
        %v2714 = vrot.slane %v2712, 7
        %v2715 = vshll.u32 %v2617, 16
        %v2717 = vor.u32 %v2714, %v2715
        %v2719 = vshrl.u32 %v2618, 16
        %v2721 = vrot.slane %v2719, 7
        %v2722 = vshll.u32 %v2618, 16
        %v2724 = vor.u32 %v2721, %v2722
        %v2726 = vshrl.u32 %v2619, 16
        %v2728 = vrot.slane %v2726, 7
        %v2729 = vshll.u32 %v2619, 16
        %v2731 = vor.u32 %v2728, %v2729
        %v2748 = vld [vmem:[%s493] sm:$0xff]
        %v2749 = vsel %vm496, %v2626, %v2748
        %2750 = vst [vmem:[%s493] sm:$0xff] %v2749
        %v2751 = vld [vmem:[%s493 + $0x18] sm:$0xff]
        %v2752 = vsel %vm496, %v2633, %v2751
        %2753 = vst [vmem:[%s493 + $0x18] sm:$0xff] %v2752
        %v2754 = vld [vmem:[%s493 + $0x30] sm:$0xff]
        %v2755 = vsel %vm496, %v2640, %v2754
        %2756 = vst [vmem:[%s493 + $0x30] sm:$0xff] %v2755
        %v2757 = vld [vmem:[%s493 + $0x48] sm:$0xff]
        %v2758 = vsel %vm496, %v2647, %v2757
        %2759 = vst [vmem:[%s493 + $0x48] sm:$0xff] %v2758
        %v2760 = vld [vmem:[%s493 + $0x60] sm:$0xff]
        %v2761 = vsel %vm496, %v2654, %v2760
        %2762 = vst [vmem:[%s493 + $0x60] sm:$0xff] %v2761
        %v2763 = vld [vmem:[%s493 + $0x78] sm:$0xff]
        %v2764 = vsel %vm496, %v2661, %v2763
        %2765 = vst [vmem:[%s493 + $0x78] sm:$0xff] %v2764
        %v2766 = vld [vmem:[%s493 + $0x90] sm:$0xff]
        %v2767 = vsel %vm496, %v2668, %v2766
        %2768 = vst [vmem:[%s493 + $0x90] sm:$0xff] %v2767
        %v2769 = vld [vmem:[%s493 + $0xa8] sm:$0xff]
        %v2770 = vsel %vm496, %v2675, %v2769
        %2771 = vst [vmem:[%s493 + $0xa8] sm:$0xff] %v2770
        %v2772 = vld [vmem:[%s493 + $0xc0] sm:$0xff]
        %v2773 = vsel %vm496, %v2682, %v2772
        %2774 = vst [vmem:[%s493 + $0xc0] sm:$0xff] %v2773
        %v2775 = vld [vmem:[%s493 + $0xd8] sm:$0xff]
        %v2776 = vsel %vm496, %v2689, %v2775
        %2777 = vst [vmem:[%s493 + $0xd8] sm:$0xff] %v2776
        %v2778 = vld [vmem:[%s493 + $0xf0] sm:$0xff]
        %v2779 = vsel %vm496, %v2696, %v2778
        %2780 = vst [vmem:[%s493 + $0xf0] sm:$0xff] %v2779
        %v2781 = vld [vmem:[%s493 + $0x108] sm:$0xff]
        %v2782 = vsel %vm496, %v2703, %v2781
        %2783 = vst [vmem:[%s493 + $0x108] sm:$0xff] %v2782
        %v2784 = vld [vmem:[%s493 + $0x120] sm:$0xff]
        %v2785 = vsel %vm496, %v2710, %v2784
        %2786 = vst [vmem:[%s493 + $0x120] sm:$0xff] %v2785
        %v2787 = vld [vmem:[%s493 + $0x138] sm:$0xff]
        %v2788 = vsel %vm496, %v2717, %v2787
        %2789 = vst [vmem:[%s493 + $0x138] sm:$0xff] %v2788
        %v2790 = vld [vmem:[%s493 + $0x150] sm:$0xff]
        %v2791 = vsel %vm496, %v2724, %v2790
        %2792 = vst [vmem:[%s493 + $0x150] sm:$0xff] %v2791
        %v2793 = vld [vmem:[%s493 + $0x168] sm:$0xff]
        %v2794 = vsel %vm496, %v2731, %v2793
        %2795 = vst [vmem:[%s493 + $0x168] sm:$0xff] %v2794
        %v2796 = vld [vmem:[%s493] sm:$0x1]
        %v2797 = vsel %vm547, 0, %v2796
        %2798 = vst [vmem:[%s493] sm:$0x1] %v2797
        %v2799 = vld [vmem:[%s493 + $0x18] sm:$0x1]
        %v2800 = vsel %vm547, 0, %v2799
        %2801 = vst [vmem:[%s493 + $0x18] sm:$0x1] %v2800
        %v2802 = vld [vmem:[%s493 + $0x30] sm:$0x1]
        %v2803 = vsel %vm547, 0, %v2802
        %2804 = vst [vmem:[%s493 + $0x30] sm:$0x1] %v2803
        %v2805 = vld [vmem:[%s493 + $0x48] sm:$0x1]
        %v2806 = vsel %vm547, 0, %v2805
        %2807 = vst [vmem:[%s493 + $0x48] sm:$0x1] %v2806
        %v2808 = vld [vmem:[%s493 + $0x60] sm:$0x1]
        %v2809 = vsel %vm547, 0, %v2808
        %2810 = vst [vmem:[%s493 + $0x60] sm:$0x1] %v2809
        %v2811 = vld [vmem:[%s493 + $0x78] sm:$0x1]
        %v2812 = vsel %vm547, 0, %v2811
        %2813 = vst [vmem:[%s493 + $0x78] sm:$0x1] %v2812
        %v2814 = vld [vmem:[%s493 + $0x90] sm:$0x1]
        %v2815 = vsel %vm547, 0, %v2814
        %2816 = vst [vmem:[%s493 + $0x90] sm:$0x1] %v2815
        %v2817 = vld [vmem:[%s493 + $0xa8] sm:$0x1]
        %v2818 = vsel %vm547, 0, %v2817
        %2819 = vst [vmem:[%s493 + $0xa8] sm:$0x1] %v2818
        %v2820 = vld [vmem:[%s493 + $0xc0] sm:$0x1]
        %v2821 = vsel %vm547, 0, %v2820
        %2822 = vst [vmem:[%s493 + $0xc0] sm:$0x1] %v2821
        %v2823 = vld [vmem:[%s493 + $0xd8] sm:$0x1]
        %v2824 = vsel %vm547, 0, %v2823
        %2825 = vst [vmem:[%s493 + $0xd8] sm:$0x1] %v2824
        %v2826 = vld [vmem:[%s493 + $0xf0] sm:$0x1]
        %v2827 = vsel %vm547, 0, %v2826
        %2828 = vst [vmem:[%s493 + $0xf0] sm:$0x1] %v2827
        %v2829 = vld [vmem:[%s493 + $0x108] sm:$0x1]
        %v2830 = vsel %vm547, 0, %v2829
        %2831 = vst [vmem:[%s493 + $0x108] sm:$0x1] %v2830
        %v2832 = vld [vmem:[%s493 + $0x120] sm:$0x1]
        %v2833 = vsel %vm547, 0, %v2832
        %2834 = vst [vmem:[%s493 + $0x120] sm:$0x1] %v2833
        %v2835 = vld [vmem:[%s493 + $0x138] sm:$0x1]
        %v2836 = vsel %vm547, 0, %v2835
        %2837 = vst [vmem:[%s493 + $0x138] sm:$0x1] %v2836
        %v2838 = vld [vmem:[%s493 + $0x150] sm:$0x1]
        %v2839 = vsel %vm547, 0, %v2838
        %2840 = vst [vmem:[%s493 + $0x150] sm:$0x1] %v2839
        %v2841 = vld [vmem:[%s493 + $0x168] sm:$0x1]
        %v2842 = vsel %vm547, 0, %v2841
        %2843 = vst [vmem:[%s493 + $0x168] sm:$0x1] %v2842
        %2844 = vst [vmem:[%s493 + $0x8] sm:$0xff] %v2604
        %2845 = vst [vmem:[%s493 + $0x20] sm:$0xff] %v2605
        %2846 = vst [vmem:[%s493 + $0x38] sm:$0xff] %v2606
        %2847 = vst [vmem:[%s493 + $0x50] sm:$0xff] %v2607
        %2848 = vst [vmem:[%s493 + $0x68] sm:$0xff] %v2608
        %2849 = vst [vmem:[%s493 + $0x80] sm:$0xff] %v2609
        %2850 = vst [vmem:[%s493 + $0x98] sm:$0xff] %v2610
        %2851 = vst [vmem:[%s493 + $0xb0] sm:$0xff] %v2611
        %2852 = vst [vmem:[%s493 + $0xc8] sm:$0xff] %v2612
        %2853 = vst [vmem:[%s493 + $0xe0] sm:$0xff] %v2613
        %2854 = vst [vmem:[%s493 + $0xf8] sm:$0xff] %v2614
        %2855 = vst [vmem:[%s493 + $0x110] sm:$0xff] %v2615
        %2856 = vst [vmem:[%s493 + $0x128] sm:$0xff] %v2616
        %2857 = vst [vmem:[%s493 + $0x140] sm:$0xff] %v2617
        %2858 = vst [vmem:[%s493 + $0x158] sm:$0xff] %v2618
        %2859 = vst [vmem:[%s493 + $0x170] sm:$0xff] %v2619
        %v2860 = vrot.slane %v2624, 1
        %v2861 = vor.u32 %v2621, %v2860
        %v2862 = vrot.slane %v2631, 1
        %v2863 = vor.u32 %v2628, %v2862
        %v2864 = vrot.slane %v2638, 1
        %v2865 = vor.u32 %v2635, %v2864
        %v2866 = vrot.slane %v2645, 1
        %v2867 = vor.u32 %v2642, %v2866
        %v2868 = vrot.slane %v2652, 1
        %v2869 = vor.u32 %v2649, %v2868
        %v2870 = vrot.slane %v2659, 1
        %v2871 = vor.u32 %v2656, %v2870
        %v2872 = vrot.slane %v2666, 1
        %v2873 = vor.u32 %v2663, %v2872
        %v2874 = vrot.slane %v2673, 1
        %v2875 = vor.u32 %v2670, %v2874
        %v2876 = vrot.slane %v2680, 1
        %v2877 = vor.u32 %v2677, %v2876
        %v2878 = vrot.slane %v2687, 1
        %v2879 = vor.u32 %v2684, %v2878
        %v2880 = vrot.slane %v2694, 1
        %v2881 = vor.u32 %v2691, %v2880
        %v2882 = vrot.slane %v2701, 1
        %v2883 = vor.u32 %v2698, %v2882
        %v2884 = vrot.slane %v2708, 1
        %v2885 = vor.u32 %v2705, %v2884
        %v2886 = vrot.slane %v2715, 1
        %v2887 = vor.u32 %v2712, %v2886
        %v2888 = vrot.slane %v2722, 1
        %v2889 = vor.u32 %v2719, %v2888
        %v2890 = vrot.slane %v2729, 1
        %v2891 = vor.u32 %v2726, %v2890
        %v2908 = vld [vmem:[%s493 + $0x10] sm:$0xff]
        %v2909 = vsel %vm677, %v2861, %v2908
        %2910 = vst [vmem:[%s493 + $0x10] sm:$0xff] %v2909
        %v2911 = vld [vmem:[%s493 + $0x28] sm:$0xff]
        %v2912 = vsel %vm677, %v2863, %v2911
        %2913 = vst [vmem:[%s493 + $0x28] sm:$0xff] %v2912
        %v2914 = vld [vmem:[%s493 + $0x40] sm:$0xff]
        %v2915 = vsel %vm677, %v2865, %v2914
        %2916 = vst [vmem:[%s493 + $0x40] sm:$0xff] %v2915
        %v2917 = vld [vmem:[%s493 + $0x58] sm:$0xff]
        %v2918 = vsel %vm677, %v2867, %v2917
        %2919 = vst [vmem:[%s493 + $0x58] sm:$0xff] %v2918
        %v2920 = vld [vmem:[%s493 + $0x70] sm:$0xff]
        %v2921 = vsel %vm677, %v2869, %v2920
        %2922 = vst [vmem:[%s493 + $0x70] sm:$0xff] %v2921
        %v2923 = vld [vmem:[%s493 + $0x88] sm:$0xff]
        %v2924 = vsel %vm677, %v2871, %v2923
        %2925 = vst [vmem:[%s493 + $0x88] sm:$0xff] %v2924
        %v2926 = vld [vmem:[%s493 + $0xa0] sm:$0xff]
        %v2927 = vsel %vm677, %v2873, %v2926
        %2928 = vst [vmem:[%s493 + $0xa0] sm:$0xff] %v2927
        %v2929 = vld [vmem:[%s493 + $0xb8] sm:$0xff]
        %v2930 = vsel %vm677, %v2875, %v2929
        %2931 = vst [vmem:[%s493 + $0xb8] sm:$0xff] %v2930
        %v2932 = vld [vmem:[%s493 + $0xd0] sm:$0xff]
        %v2933 = vsel %vm677, %v2877, %v2932
        %2934 = vst [vmem:[%s493 + $0xd0] sm:$0xff] %v2933
        %v2935 = vld [vmem:[%s493 + $0xe8] sm:$0xff]
        %v2936 = vsel %vm677, %v2879, %v2935
        %2937 = vst [vmem:[%s493 + $0xe8] sm:$0xff] %v2936
        %v2938 = vld [vmem:[%s493 + $0x100] sm:$0xff]
        %v2939 = vsel %vm677, %v2881, %v2938
        %2940 = vst [vmem:[%s493 + $0x100] sm:$0xff] %v2939
        %v2941 = vld [vmem:[%s493 + $0x118] sm:$0xff]
        %v2942 = vsel %vm677, %v2883, %v2941
        %2943 = vst [vmem:[%s493 + $0x118] sm:$0xff] %v2942
        %v2944 = vld [vmem:[%s493 + $0x130] sm:$0xff]
        %v2945 = vsel %vm677, %v2885, %v2944
        %2946 = vst [vmem:[%s493 + $0x130] sm:$0xff] %v2945
        %v2947 = vld [vmem:[%s493 + $0x148] sm:$0xff]
        %v2948 = vsel %vm677, %v2887, %v2947
        %2949 = vst [vmem:[%s493 + $0x148] sm:$0xff] %v2948
        %v2950 = vld [vmem:[%s493 + $0x160] sm:$0xff]
        %v2951 = vsel %vm677, %v2889, %v2950
        %2952 = vst [vmem:[%s493 + $0x160] sm:$0xff] %v2951
        %v2953 = vld [vmem:[%s493 + $0x178] sm:$0xff]
        %v2954 = vsel %vm677, %v2891, %v2953
        %2955 = vst [vmem:[%s493 + $0x178] sm:$0xff] %v2954
        %v2956 = vld [vmem:[%s493 + $0x10] sm:$0x80]
        %v2957 = vsel %vm728, 0, %v2956
        %2958 = vst [vmem:[%s493 + $0x10] sm:$0x80] %v2957
        %v2959 = vld [vmem:[%s493 + $0x28] sm:$0x80]
        %v2960 = vsel %vm728, 0, %v2959
        %2961 = vst [vmem:[%s493 + $0x28] sm:$0x80] %v2960
        %v2962 = vld [vmem:[%s493 + $0x40] sm:$0x80]
        %v2963 = vsel %vm728, 0, %v2962
        %2964 = vst [vmem:[%s493 + $0x40] sm:$0x80] %v2963
        %v2965 = vld [vmem:[%s493 + $0x58] sm:$0x80]
        %v2966 = vsel %vm728, 0, %v2965
        %2967 = vst [vmem:[%s493 + $0x58] sm:$0x80] %v2966
        %v2968 = vld [vmem:[%s493 + $0x70] sm:$0x80]
        %v2969 = vsel %vm728, 0, %v2968
        %2970 = vst [vmem:[%s493 + $0x70] sm:$0x80] %v2969
        %v2971 = vld [vmem:[%s493 + $0x88] sm:$0x80]
        %v2972 = vsel %vm728, 0, %v2971
        %2973 = vst [vmem:[%s493 + $0x88] sm:$0x80] %v2972
        %v2974 = vld [vmem:[%s493 + $0xa0] sm:$0x80]
        %v2975 = vsel %vm728, 0, %v2974
        %2976 = vst [vmem:[%s493 + $0xa0] sm:$0x80] %v2975
        %v2977 = vld [vmem:[%s493 + $0xb8] sm:$0x80]
        %v2978 = vsel %vm728, 0, %v2977
        %2979 = vst [vmem:[%s493 + $0xb8] sm:$0x80] %v2978
        %v2980 = vld [vmem:[%s493 + $0xd0] sm:$0x80]
        %v2981 = vsel %vm728, 0, %v2980
        %2982 = vst [vmem:[%s493 + $0xd0] sm:$0x80] %v2981
        %v2983 = vld [vmem:[%s493 + $0xe8] sm:$0x80]
        %v2984 = vsel %vm728, 0, %v2983
        %2985 = vst [vmem:[%s493 + $0xe8] sm:$0x80] %v2984
        %v2986 = vld [vmem:[%s493 + $0x100] sm:$0x80]
        %v2987 = vsel %vm728, 0, %v2986
        %2988 = vst [vmem:[%s493 + $0x100] sm:$0x80] %v2987
        %v2989 = vld [vmem:[%s493 + $0x118] sm:$0x80]
        %v2990 = vsel %vm728, 0, %v2989
        %2991 = vst [vmem:[%s493 + $0x118] sm:$0x80] %v2990
        %v2992 = vld [vmem:[%s493 + $0x130] sm:$0x80]
        %v2993 = vsel %vm728, 0, %v2992
        %2994 = vst [vmem:[%s493 + $0x130] sm:$0x80] %v2993
        %v2995 = vld [vmem:[%s493 + $0x148] sm:$0x80]
        %v2996 = vsel %vm728, 0, %v2995
        %2997 = vst [vmem:[%s493 + $0x148] sm:$0x80] %v2996
        %v2998 = vld [vmem:[%s493 + $0x160] sm:$0x80]
        %v2999 = vsel %vm728, 0, %v2998
        %3000 = vst [vmem:[%s493 + $0x160] sm:$0x80] %v2999
        %v3001 = vld [vmem:[%s493 + $0x178] sm:$0x80]
        %v3002 = vsel %vm728, 0, %v3001
        %3003 = vst [vmem:[%s493 + $0x178] sm:$0x80] %v3002
        %v3004 = vld [vmem:[#allocation2] sm:$0xff]
        %v3005 = vld [vmem:[#allocation2 + $0x8] sm:$0xff]
        %v3006 = vld [vmem:[#allocation2 + $0x10] sm:$0xff]
        %v3007 = vld [vmem:[#allocation2 + $0x18] sm:$0xff]
        %v3008 = vld [vmem:[#allocation2 + $0x20] sm:$0xff]
        %v3009 = vld [vmem:[#allocation2 + $0x28] sm:$0xff]
        %v3010 = vld [vmem:[#allocation2 + $0x30] sm:$0xff]
        %v3011 = vld [vmem:[#allocation2 + $0x38] sm:$0xff]
        %v3012 = vld [vmem:[#allocation2 + $0x40] sm:$0xff]
        %v3013 = vld [vmem:[#allocation2 + $0x48] sm:$0xff]
        %v3014 = vld [vmem:[#allocation2 + $0x50] sm:$0xff]
        %v3015 = vld [vmem:[#allocation2 + $0x58] sm:$0xff]
        %v3016 = vld [vmem:[#allocation2 + $0x60] sm:$0xff]
        %v3017 = vld [vmem:[#allocation2 + $0x68] sm:$0xff]
        %v3018 = vld [vmem:[#allocation2 + $0x70] sm:$0xff]
        %v3019 = vld [vmem:[#allocation2 + $0x78] sm:$0xff]
        %v3020 = vld [vmem:[#allocation2 + $0x80] sm:$0xff]
        %v3021 = vld [vmem:[#allocation2 + $0x88] sm:$0xff]
        %v3022 = vld [vmem:[#allocation2 + $0x90] sm:$0xff]
        %v3023 = vld [vmem:[#allocation2 + $0x98] sm:$0xff]
        %v3024 = vld [vmem:[#allocation2 + $0xa0] sm:$0xff]
        %v3025 = vld [vmem:[#allocation2 + $0xa8] sm:$0xff]
        %v3026 = vld [vmem:[#allocation2 + $0xb0] sm:$0xff]
        %v3027 = vld [vmem:[#allocation2 + $0xb8] sm:$0xff]
        %v3028 = vld [vmem:[#allocation2 + $0xc0] sm:$0xff]
        %v3029 = vld [vmem:[#allocation2 + $0xc8] sm:$0xff]
        %v3030 = vld [vmem:[#allocation2 + $0xd0] sm:$0xff]
        %v3031 = vld [vmem:[#allocation2 + $0xd8] sm:$0xff]
        %v3032 = vld [vmem:[#allocation2 + $0xe0] sm:$0xff]
        %v3033 = vld [vmem:[#allocation2 + $0xe8] sm:$0xff]
        %v3034 = vld [vmem:[#allocation2 + $0xf0] sm:$0xff]
        %v3035 = vld [vmem:[#allocation2 + $0xf8] sm:$0xff]
        %v3036 = vld [vmem:[#allocation2 + $0x100] sm:$0xff]
        %v3037 = vld [vmem:[#allocation2 + $0x108] sm:$0xff]
        %v3038 = vld [vmem:[#allocation2 + $0x110] sm:$0xff]
        %v3039 = vld [vmem:[#allocation2 + $0x118] sm:$0xff]
        %v3040 = vld [vmem:[#allocation2 + $0x120] sm:$0xff]
        %v3041 = vld [vmem:[#allocation2 + $0x128] sm:$0xff]
        %v3042 = vld [vmem:[#allocation2 + $0x130] sm:$0xff]
        %v3043 = vld [vmem:[#allocation2 + $0x138] sm:$0xff]
        %v3044 = vld [vmem:[#allocation2 + $0x140] sm:$0xff]
        %v3045 = vld [vmem:[#allocation2 + $0x148] sm:$0xff]
        %v3046 = vld [vmem:[#allocation2 + $0x150] sm:$0xff]
        %v3047 = vld [vmem:[#allocation2 + $0x158] sm:$0xff]
        %v3048 = vld [vmem:[#allocation2 + $0x160] sm:$0xff]
        %v3049 = vld [vmem:[#allocation2 + $0x168] sm:$0xff]
        %v3050 = vld [vmem:[#allocation2 + $0x170] sm:$0xff]
        %v3051 = vld [vmem:[#allocation2 + $0x178] sm:$0xff]
        %v3052 = vld [vmem:[#allocation8] sm:$0xf]
        %v3053 = vld [vmem:[#allocation8 + $0x4] sm:$0xf]
        %v3054 = vld [vmem:[#allocation8 + $0x8] sm:$0xf]
        %v3055 = vld [vmem:[#allocation8 + $0xc] sm:$0xf]
        %v3056 = vld [vmem:[#allocation8 + $0x10] sm:$0xf]
        %v3057 = vld [vmem:[#allocation8 + $0x14] sm:$0xf]
        %v3058 = vld [vmem:[#allocation8 + $0x18] sm:$0xf]
        %v3059 = vld [vmem:[#allocation8 + $0x1c] sm:$0xf]
        %v3060 = vld [vmem:[#allocation8 + $0x20] sm:$0xf]
        %v3061 = vld [vmem:[#allocation8 + $0x24] sm:$0xf]
        %v3062 = vld [vmem:[#allocation8 + $0x28] sm:$0xf]
        %v3063 = vld [vmem:[#allocation8 + $0x2c] sm:$0xf]
        %v3064 = vld [vmem:[#allocation8 + $0x30] sm:$0xf]
        %v3065 = vld [vmem:[#allocation8 + $0x34] sm:$0xf]
        %v3066 = vld [vmem:[#allocation8 + $0x38] sm:$0xf]
        %v3067 = vld [vmem:[#allocation8 + $0x3c] sm:$0xf]
        %v3068 = vld [vmem:[#allocation8 + $0x40] sm:$0xf]
        %v3069 = vld [vmem:[#allocation8 + $0x44] sm:$0xf]
        %v3070 = vld [vmem:[#allocation8 + $0x48] sm:$0xf]
        %v3071 = vld [vmem:[#allocation8 + $0x4c] sm:$0xf]
        %v3072 = vld [vmem:[#allocation8 + $0x50] sm:$0xf]
        %v3073 = vld [vmem:[#allocation8 + $0x54] sm:$0xf]
        %v3074 = vld [vmem:[#allocation8 + $0x58] sm:$0xf]
        %v3075 = vld [vmem:[#allocation8 + $0x5c] sm:$0xf]
        %v3076 = vld [vmem:[#allocation8 + $0x60] sm:$0xf]
        %v3077 = vld [vmem:[#allocation8 + $0x64] sm:$0xf]
        %v3078 = vld [vmem:[#allocation8 + $0x68] sm:$0xf]
        %v3079 = vld [vmem:[#allocation8 + $0x6c] sm:$0xf]
        %v3080 = vld [vmem:[#allocation8 + $0x70] sm:$0xf]
        %v3081 = vld [vmem:[#allocation8 + $0x74] sm:$0xf]
        %v3082 = vld [vmem:[#allocation8 + $0x78] sm:$0xf]
        %v3083 = vld [vmem:[#allocation8 + $0x7c] sm:$0xf]
        %v3084 = vld [vmem:[#allocation8 + $0x80] sm:$0xf]
        %v3085 = vld [vmem:[#allocation8 + $0x84] sm:$0xf]
        %v3086 = vld [vmem:[#allocation8 + $0x88] sm:$0xf]
        %v3087 = vld [vmem:[#allocation8 + $0x8c] sm:$0xf]
        %v3088 = vld [vmem:[#allocation8 + $0x90] sm:$0xf]
        %v3089 = vld [vmem:[#allocation8 + $0x94] sm:$0xf]
        %v3090 = vld [vmem:[#allocation8 + $0x98] sm:$0xf]
        %v3091 = vld [vmem:[#allocation8 + $0x9c] sm:$0xf]
        %v3092 = vld [vmem:[#allocation8 + $0xa0] sm:$0xf]
        %v3093 = vld [vmem:[#allocation8 + $0xa4] sm:$0xf]
        %v3094 = vld [vmem:[#allocation8 + $0xa8] sm:$0xf]
        %v3095 = vld [vmem:[#allocation8 + $0xac] sm:$0xf]
        %v3096 = vld [vmem:[#allocation8 + $0xb0] sm:$0xf]
        %v3097 = vld [vmem:[#allocation8 + $0xb4] sm:$0xf]
        %v3098 = vld [vmem:[#allocation8 + $0xb8] sm:$0xf]
        %v3099 = vld [vmem:[#allocation8 + $0xbc] sm:$0xf]
        %v3100 = vld [vmem:[%s493] sm:$0xff]
        %v3101 = vld [vmem:[%s493 + $0x8] sm:$0xff]
        %v3102 = vld [vmem:[%s493 + $0x10] sm:$0xff]
        %v3103 = vld [vmem:[%s493 + $0x18] sm:$0xff]
        %v3104 = vld [vmem:[%s493 + $0x20] sm:$0xff]
        %v3105 = vld [vmem:[%s493 + $0x28] sm:$0xff]
        %v3106 = vld [vmem:[%s493 + $0x30] sm:$0xff]
        %v3107 = vld [vmem:[%s493 + $0x38] sm:$0xff]
        %v3108 = vld [vmem:[%s493 + $0x40] sm:$0xff]
        %v3109 = vld [vmem:[%s493 + $0x48] sm:$0xff]
        %v3110 = vld [vmem:[%s493 + $0x50] sm:$0xff]
        %v3111 = vld [vmem:[%s493 + $0x58] sm:$0xff]
        %v3112 = vld [vmem:[%s493 + $0x60] sm:$0xff]
        %v3113 = vld [vmem:[%s493 + $0x68] sm:$0xff]
        %v3114 = vld [vmem:[%s493 + $0x70] sm:$0xff]
        %v3115 = vld [vmem:[%s493 + $0x78] sm:$0xff]
        %v3116 = vld [vmem:[%s493 + $0x80] sm:$0xff]
        %v3117 = vld [vmem:[%s493 + $0x88] sm:$0xff]
        %v3118 = vld [vmem:[%s493 + $0x90] sm:$0xff]
        %v3119 = vld [vmem:[%s493 + $0x98] sm:$0xff]
        %v3120 = vld [vmem:[%s493 + $0xa0] sm:$0xff]
        %v3121 = vld [vmem:[%s493 + $0xa8] sm:$0xff]
        %v3122 = vld [vmem:[%s493 + $0xb0] sm:$0xff]
        %v3123 = vld [vmem:[%s493 + $0xb8] sm:$0xff]
        %v3124 = vld [vmem:[%s493 + $0xc0] sm:$0xff]
        %v3125 = vld [vmem:[%s493 + $0xc8] sm:$0xff]
        %v3126 = vld [vmem:[%s493 + $0xd0] sm:$0xff]
        %v3127 = vld [vmem:[%s493 + $0xd8] sm:$0xff]
        %v3128 = vld [vmem:[%s493 + $0xe0] sm:$0xff]
        %v3129 = vld [vmem:[%s493 + $0xe8] sm:$0xff]
        %v3130 = vld [vmem:[%s493 + $0xf0] sm:$0xff]
        %v3131 = vld [vmem:[%s493 + $0xf8] sm:$0xff]
        %v3132 = vld [vmem:[%s493 + $0x100] sm:$0xff]
        %v3133 = vld [vmem:[%s493 + $0x108] sm:$0xff]
        %v3134 = vld [vmem:[%s493 + $0x110] sm:$0xff]
        %v3135 = vld [vmem:[%s493 + $0x118] sm:$0xff]
        %v3136 = vld [vmem:[%s493 + $0x120] sm:$0xff]
        %v3137 = vld [vmem:[%s493 + $0x128] sm:$0xff]
        %v3138 = vld [vmem:[%s493 + $0x130] sm:$0xff]
        %v3139 = vld [vmem:[%s493 + $0x138] sm:$0xff]
        %v3140 = vld [vmem:[%s493 + $0x140] sm:$0xff]
        %v3141 = vld [vmem:[%s493 + $0x148] sm:$0xff]
        %v3142 = vld [vmem:[%s493 + $0x150] sm:$0xff]
        %v3143 = vld [vmem:[%s493 + $0x158] sm:$0xff]
        %v3144 = vld [vmem:[%s493 + $0x160] sm:$0xff]
        %v3145 = vld [vmem:[%s493 + $0x168] sm:$0xff]
        %v3146 = vld [vmem:[%s493 + $0x170] sm:$0xff]
        %v3147 = vld [vmem:[%s493 + $0x178] sm:$0xff]
        %s3148 = scalar_lea.vmem [#allocation8], 192
        %v3149 = vld [vmem:[%s3148] sm:$0xf]
        %v3150 = vld [vmem:[%s3148 + $0x4] sm:$0xf]
        %v3151 = vld [vmem:[%s3148 + $0x8] sm:$0xf]
        %v3152 = vld [vmem:[%s3148 + $0xc] sm:$0xf]
        %v3153 = vld [vmem:[%s3148 + $0x10] sm:$0xf]
        %v3154 = vld [vmem:[%s3148 + $0x14] sm:$0xf]
        %v3155 = vld [vmem:[%s3148 + $0x18] sm:$0xf]
        %v3156 = vld [vmem:[%s3148 + $0x1c] sm:$0xf]
        %v3157 = vld [vmem:[%s3148 + $0x20] sm:$0xf]
        %v3158 = vld [vmem:[%s3148 + $0x24] sm:$0xf]
        %v3159 = vld [vmem:[%s3148 + $0x28] sm:$0xf]
        %v3160 = vld [vmem:[%s3148 + $0x2c] sm:$0xf]
        %v3161 = vld [vmem:[%s3148 + $0x30] sm:$0xf]
        %v3162 = vld [vmem:[%s3148 + $0x34] sm:$0xf]
        %v3163 = vld [vmem:[%s3148 + $0x38] sm:$0xf]
        %v3164 = vld [vmem:[%s3148 + $0x3c] sm:$0xf]
        %v3165 = vld [vmem:[%s3148 + $0x40] sm:$0xf]
        %v3166 = vld [vmem:[%s3148 + $0x44] sm:$0xf]
        %v3167 = vld [vmem:[%s3148 + $0x48] sm:$0xf]
        %v3168 = vld [vmem:[%s3148 + $0x4c] sm:$0xf]
        %v3169 = vld [vmem:[%s3148 + $0x50] sm:$0xf]
        %v3170 = vld [vmem:[%s3148 + $0x54] sm:$0xf]
        %v3171 = vld [vmem:[%s3148 + $0x58] sm:$0xf]
        %v3172 = vld [vmem:[%s3148 + $0x5c] sm:$0xf]
        %v3173 = vld [vmem:[%s3148 + $0x60] sm:$0xf]
        %v3174 = vld [vmem:[%s3148 + $0x64] sm:$0xf]
        %v3175 = vld [vmem:[%s3148 + $0x68] sm:$0xf]
        %v3176 = vld [vmem:[%s3148 + $0x6c] sm:$0xf]
        %v3177 = vld [vmem:[%s3148 + $0x70] sm:$0xf]
        %v3178 = vld [vmem:[%s3148 + $0x74] sm:$0xf]
        %v3179 = vld [vmem:[%s3148 + $0x78] sm:$0xf]
        %v3180 = vld [vmem:[%s3148 + $0x7c] sm:$0xf]
        %v3181 = vld [vmem:[%s3148 + $0x80] sm:$0xf]
        %v3182 = vld [vmem:[%s3148 + $0x84] sm:$0xf]
        %v3183 = vld [vmem:[%s3148 + $0x88] sm:$0xf]
        %v3184 = vld [vmem:[%s3148 + $0x8c] sm:$0xf]
        %v3185 = vld [vmem:[%s3148 + $0x90] sm:$0xf]
        %v3186 = vld [vmem:[%s3148 + $0x94] sm:$0xf]
        %v3187 = vld [vmem:[%s3148 + $0x98] sm:$0xf]
        %v3188 = vld [vmem:[%s3148 + $0x9c] sm:$0xf]
        %v3189 = vld [vmem:[%s3148 + $0xa0] sm:$0xf]
        %v3190 = vld [vmem:[%s3148 + $0xa4] sm:$0xf]
        %v3191 = vld [vmem:[%s3148 + $0xa8] sm:$0xf]
        %v3192 = vld [vmem:[%s3148 + $0xac] sm:$0xf]
        %v3193 = vld [vmem:[%s3148 + $0xb0] sm:$0xf]
        %v3194 = vld [vmem:[%s3148 + $0xb4] sm:$0xf]
        %v3195 = vld [vmem:[%s3148 + $0xb8] sm:$0xf]
        %v3196 = vld [vmem:[%s3148 + $0xbc] sm:$0xf]
        %v3245 = vunpack.c.l.b16 %v3149
        %v3246 = vunpack.c.l.b16 %v3150
        %v3247 = vunpack.c.l.b16 %v3151
        %v3248 = vunpack.c.l.b16 %v3152
        %v3249 = vunpack.c.l.b16 %v3153
        %v3250 = vunpack.c.l.b16 %v3154
        %v3251 = vunpack.c.l.b16 %v3155
        %v3252 = vunpack.c.l.b16 %v3156
        %v3253 = vunpack.c.l.b16 %v3157
        %v3254 = vunpack.c.l.b16 %v3158
        %v3255 = vunpack.c.l.b16 %v3159
        %v3256 = vunpack.c.l.b16 %v3160
        %v3257 = vunpack.c.l.b16 %v3161
        %v3258 = vunpack.c.l.b16 %v3162
        %v3259 = vunpack.c.l.b16 %v3163
        %v3260 = vunpack.c.l.b16 %v3164
        %v3261 = vunpack.c.l.b16 %v3165
        %v3262 = vunpack.c.l.b16 %v3166
        %v3263 = vunpack.c.l.b16 %v3167
        %v3264 = vunpack.c.l.b16 %v3168
        %v3265 = vunpack.c.l.b16 %v3169
        %v3266 = vunpack.c.l.b16 %v3170
        %v3267 = vunpack.c.l.b16 %v3171
        %v3268 = vunpack.c.l.b16 %v3172
        %v3269 = vunpack.c.l.b16 %v3173
        %v3270 = vunpack.c.l.b16 %v3174
        %v3271 = vunpack.c.l.b16 %v3175
        %v3272 = vunpack.c.l.b16 %v3176
        %v3273 = vunpack.c.l.b16 %v3177
        %v3274 = vunpack.c.l.b16 %v3178
        %v3275 = vunpack.c.l.b16 %v3179
        %v3276 = vunpack.c.l.b16 %v3180
        %v3277 = vunpack.c.l.b16 %v3181
        %v3278 = vunpack.c.l.b16 %v3182
        %v3279 = vunpack.c.l.b16 %v3183
        %v3280 = vunpack.c.l.b16 %v3184
        %v3281 = vunpack.c.l.b16 %v3185
        %v3282 = vunpack.c.l.b16 %v3186
        %v3283 = vunpack.c.l.b16 %v3187
        %v3284 = vunpack.c.l.b16 %v3188
        %v3285 = vunpack.c.l.b16 %v3189
        %v3286 = vunpack.c.l.b16 %v3190
        %v3287 = vunpack.c.l.b16 %v3191
        %v3288 = vunpack.c.l.b16 %v3192
        %v3289 = vunpack.c.l.b16 %v3193
        %v3290 = vunpack.c.l.b16 %v3194
        %v3291 = vunpack.c.l.b16 %v3195
        %v3292 = vunpack.c.l.b16 %v3196
        %v3293 = vpack.c.b16 %v3246, %v3245
        %v3294 = vpack.c.b16 %v3248, %v3247
        %v3295 = vpack.c.b16 %v3250, %v3249
        %v3296 = vpack.c.b16 %v3252, %v3251
        %v3297 = vpack.c.b16 %v3254, %v3253
        %v3298 = vpack.c.b16 %v3256, %v3255
        %v3299 = vpack.c.b16 %v3258, %v3257
        %v3300 = vpack.c.b16 %v3260, %v3259
        %v3301 = vpack.c.b16 %v3262, %v3261
        %v3302 = vpack.c.b16 %v3264, %v3263
        %v3303 = vpack.c.b16 %v3266, %v3265
        %v3304 = vpack.c.b16 %v3268, %v3267
        %v3305 = vpack.c.b16 %v3270, %v3269
        %v3306 = vpack.c.b16 %v3272, %v3271
        %v3307 = vpack.c.b16 %v3274, %v3273
        %v3308 = vpack.c.b16 %v3276, %v3275
        %v3309 = vpack.c.b16 %v3278, %v3277
        %v3310 = vpack.c.b16 %v3280, %v3279
        %v3311 = vpack.c.b16 %v3282, %v3281
        %v3312 = vpack.c.b16 %v3284, %v3283
        %v3313 = vpack.c.b16 %v3286, %v3285
        %v3314 = vpack.c.b16 %v3288, %v3287
        %v3315 = vpack.c.b16 %v3290, %v3289
        %v3316 = vpack.c.b16 %v3292, %v3291
        %3341 = vmatprep.subr.bf16.mxu0 0
        %3342 = vmatpush1.bf16.msra.mxu0 %v3293
        %3343 = vmatprep.subr.bf16.mxu0 0
        %3344 = vmatpush1.bf16.msra.mxu0 %v3294
        %3345 = vmatprep.subr.bf16.mxu0 0
        %3346 = vmatpush1.bf16.msra.mxu0 %v3295
        %3347 = vmatprep.subr.bf16.mxu0 0
        %3348 = vmatpush1.bf16.msra.mxu0 %v3296
        %3349 = vmatprep.subr.bf16.mxu0 0
        %3350 = vmatpush1.bf16.msra.mxu0 %v3297
        %3351 = vmatprep.subr.bf16.mxu0 0
        %3352 = vmatpush1.bf16.msra.mxu0 %v3298
        %3353 = vmatprep.subr.bf16.mxu0 0
        %3354 = vmatpush1.bf16.msra.mxu0 %v3299
        %3355 = vmatprep.subr.bf16.mxu0 0
        %3356 = vmatpush1.bf16.msra.mxu0 %v3300
        %3357 = vmatprep.subr.bf16.mxu0 0
        %3358 = vmatpush1.bf16.msra.mxu0 %v3301
        %3359 = vmatprep.subr.bf16.mxu0 0
        %3360 = vmatpush1.bf16.msra.mxu0 %v3302
        %3361 = vmatprep.subr.bf16.mxu0 0
        %3362 = vmatpush1.bf16.msra.mxu0 %v3303
        %3363 = vmatprep.subr.bf16.mxu0 0
        %3364 = vmatpush1.bf16.msra.mxu0 %v3304
        %3365 = vmatprep.subr.bf16.mxu0 0
        %3366 = vmatpush1.bf16.msra.mxu0 %v3305
        %3367 = vmatprep.subr.bf16.mxu0 0
        %3368 = vmatpush1.bf16.msra.mxu0 %v3306
        %3369 = vmatprep.subr.bf16.mxu0 0
        %3370 = vmatpush1.bf16.msra.mxu0 %v3307
        %3371 = vmatprep.subr.bf16.mxu0 0
        %3372 = vmatpush1.bf16.msra.mxu0 %v3308
        %3373 = vmatprep.mubr.bf16.mxu0 %v3101
        %3374 = vmatmul.mubr.bf16.gmra.mrb[0].mxu0 %v3100
        %v3375 = vpop.f32.mrb[0].mxu0
        %v3376 = vadd.f32 0.0, %v3375
        %v3377 = vpop.f32.mrb[0].mxu0
        %v3378 = vpop.f32.mrb[0].mxu0
        %v3379 = vadd.f32 0.0, %v3378
        %v3380 = vpop.f32.mrb[0].mxu0
        %3381 = vmatprep.mubr.bf16.mxu0 %v3104
        %3382 = vmatmul.mubr.bf16.gmra.mrb[0].mxu0 %v3103
        %v3383 = vpop.f32.mrb[0].mxu0
        %v3384 = vadd.f32 0.0, %v3383
        %v3385 = vpop.f32.mrb[0].mxu0
        %v3386 = vpop.f32.mrb[0].mxu0
        %v3387 = vadd.f32 0.0, %v3386
        %v3388 = vpop.f32.mrb[0].mxu0
        %3389 = vmatprep.mubr.bf16.mxu0 %v3107
        %3390 = vmatmul.mubr.bf16.gmra.mrb[0].mxu0 %v3106
        %v3391 = vpop.f32.mrb[0].mxu0
        %v3392 = vadd.f32 0.0, %v3391
        %v3393 = vpop.f32.mrb[0].mxu0
        %v3394 = vpop.f32.mrb[0].mxu0
        %v3395 = vadd.f32 0.0, %v3394
        %v3396 = vpop.f32.mrb[0].mxu0
        %3397 = vmatprep.mubr.bf16.mxu0 %v3110
        %3398 = vmatmul.mubr.bf16.gmra.mrb[0].mxu0 %v3109
        %v3399 = vpop.f32.mrb[0].mxu0
        %v3400 = vadd.f32 0.0, %v3399
        %v3401 = vpop.f32.mrb[0].mxu0
        %v3402 = vpop.f32.mrb[0].mxu0
        %v3403 = vadd.f32 0.0, %v3402
        %v3404 = vpop.f32.mrb[0].mxu0
        %3405 = vmatprep.mubr.bf16.mxu0 %v3113
        %3406 = vmatmul.mubr.bf16.gmra.mrb[0].mxu0 %v3112
        %v3407 = vpop.f32.mrb[0].mxu0
        %v3408 = vadd.f32 0.0, %v3407
        %v3409 = vpop.f32.mrb[0].mxu0
        %v3410 = vpop.f32.mrb[0].mxu0
        %v3411 = vadd.f32 0.0, %v3410
        %v3412 = vpop.f32.mrb[0].mxu0
        %3413 = vmatprep.mubr.bf16.mxu0 %v3116
        %3414 = vmatmul.mubr.bf16.gmra.mrb[0].mxu0 %v3115
        %v3415 = vpop.f32.mrb[0].mxu0
        %v3416 = vadd.f32 0.0, %v3415
        %v3417 = vpop.f32.mrb[0].mxu0
        %v3418 = vpop.f32.mrb[0].mxu0
        %v3419 = vadd.f32 0.0, %v3418
        %v3420 = vpop.f32.mrb[0].mxu0
        %3421 = vmatprep.mubr.bf16.mxu0 %v3119
        %3422 = vmatmul.mubr.bf16.gmra.mrb[0].mxu0 %v3118
        %v3423 = vpop.f32.mrb[0].mxu0
        %v3424 = vadd.f32 0.0, %v3423
        %v3425 = vpop.f32.mrb[0].mxu0
        %v3426 = vpop.f32.mrb[0].mxu0
        %v3427 = vadd.f32 0.0, %v3426
        %v3428 = vpop.f32.mrb[0].mxu0
        %3429 = vmatprep.mubr.bf16.mxu0 %v3122
        %3430 = vmatmul.mubr.bf16.gmra.mrb[0].mxu0 %v3121
        %v3431 = vpop.f32.mrb[0].mxu0
        %v3432 = vadd.f32 0.0, %v3431
        %v3433 = vpop.f32.mrb[0].mxu0
        %v3434 = vpop.f32.mrb[0].mxu0
        %v3435 = vadd.f32 0.0, %v3434
        %v3436 = vpop.f32.mrb[0].mxu0
        %3437 = vmatprep.mubr.bf16.mxu0 %v3125
        %3438 = vmatmul.mubr.bf16.gmra.mrb[0].mxu0 %v3124
        %v3439 = vpop.f32.mrb[0].mxu0
        %v3440 = vadd.f32 0.0, %v3439
        %v3441 = vpop.f32.mrb[0].mxu0
        %v3442 = vpop.f32.mrb[0].mxu0
        %v3443 = vadd.f32 0.0, %v3442
        %v3444 = vpop.f32.mrb[0].mxu0
        %3445 = vmatprep.mubr.bf16.mxu0 %v3128
        %3446 = vmatmul.mubr.bf16.gmra.mrb[0].mxu0 %v3127
        %v3447 = vpop.f32.mrb[0].mxu0
        %v3448 = vadd.f32 0.0, %v3447
        %v3449 = vpop.f32.mrb[0].mxu0
        %v3450 = vpop.f32.mrb[0].mxu0
        %v3451 = vadd.f32 0.0, %v3450
        %v3452 = vpop.f32.mrb[0].mxu0
        %3453 = vmatprep.mubr.bf16.mxu0 %v3131
        %3454 = vmatmul.mubr.bf16.gmra.mrb[0].mxu0 %v3130
        %v3455 = vpop.f32.mrb[0].mxu0
        %v3456 = vadd.f32 0.0, %v3455
        %v3457 = vpop.f32.mrb[0].mxu0
        %v3458 = vpop.f32.mrb[0].mxu0
        %v3459 = vadd.f32 0.0, %v3458
        %v3460 = vpop.f32.mrb[0].mxu0
        %3461 = vmatprep.mubr.bf16.mxu0 %v3134
        %3462 = vmatmul.mubr.bf16.gmra.mrb[0].mxu0 %v3133
        %v3463 = vpop.f32.mrb[0].mxu0
        %v3464 = vadd.f32 0.0, %v3463
        %v3465 = vpop.f32.mrb[0].mxu0
        %v3466 = vpop.f32.mrb[0].mxu0
        %v3467 = vadd.f32 0.0, %v3466
        %v3468 = vpop.f32.mrb[0].mxu0
        %3469 = vmatprep.mubr.bf16.mxu0 %v3137
        %3470 = vmatmul.mubr.bf16.gmra.mrb[0].mxu0 %v3136
        %v3471 = vpop.f32.mrb[0].mxu0
        %v3472 = vadd.f32 0.0, %v3471
        %v3473 = vpop.f32.mrb[0].mxu0
        %v3474 = vpop.f32.mrb[0].mxu0
        %v3475 = vadd.f32 0.0, %v3474
        %v3476 = vpop.f32.mrb[0].mxu0
        %3477 = vmatprep.mubr.bf16.mxu0 %v3140
        %3478 = vmatmul.mubr.bf16.gmra.mrb[0].mxu0 %v3139
        %v3479 = vpop.f32.mrb[0].mxu0
        %v3480 = vadd.f32 0.0, %v3479
        %v3481 = vpop.f32.mrb[0].mxu0
        %v3482 = vpop.f32.mrb[0].mxu0
        %v3483 = vadd.f32 0.0, %v3482
        %v3484 = vpop.f32.mrb[0].mxu0
        %3485 = vmatprep.mubr.bf16.mxu0 %v3143
        %3486 = vmatmul.mubr.bf16.gmra.mrb[0].mxu0 %v3142
        %v3487 = vpop.f32.mrb[0].mxu0
        %v3488 = vadd.f32 0.0, %v3487
        %v3489 = vpop.f32.mrb[0].mxu0
        %v3490 = vpop.f32.mrb[0].mxu0
        %v3491 = vadd.f32 0.0, %v3490
        %v3492 = vpop.f32.mrb[0].mxu0
        %3493 = vmatprep.mubr.bf16.mxu0 %v3146
        %3494 = vmatmul.mubr.bf16.gmra.mrb[0].mxu0 %v3145
        %v3495 = vpop.f32.mrb[0].mxu0
        %v3496 = vadd.f32 0.0, %v3495
        %v3497 = vpop.f32.mrb[0].mxu0
        %v3498 = vpop.f32.mrb[0].mxu0
        %v3499 = vadd.f32 0.0, %v3498
        %v3500 = vpop.f32.mrb[0].mxu0
        %3501 = vdwg.mxu0
        %3502 = vmatprep.subr.bf16.mxu0 0
        %3503 = vmatpush1.bf16.msra.mxu0 %v3309
        %3504 = vmatprep.subr.bf16.mxu0 0
        %3505 = vmatpush1.bf16.msra.mxu0 %v3310
        %3506 = vmatprep.subr.bf16.mxu0 0
        %3507 = vmatpush1.bf16.msra.mxu0 %v3311
        %3508 = vmatprep.subr.bf16.mxu0 0
        %3509 = vmatpush1.bf16.msra.mxu0 %v3312
        %3510 = vmatprep.subr.bf16.mxu0 0
        %3511 = vmatpush1.bf16.msra.mxu0 %v3313
        %3512 = vmatprep.subr.bf16.mxu0 0
        %3513 = vmatpush1.bf16.msra.mxu0 %v3314
        %3514 = vmatprep.subr.bf16.mxu0 0
        %3515 = vmatpush1.bf16.msra.mxu0 %v3315
        %3516 = vmatprep.subr.bf16.mxu0 0
        %3517 = vmatpush1.bf16.msra.mxu0 %v3316
        %3518 = vmatprep.subr.bf16.mxu0 0
        %3519 = vmatpush1.bf16.msra.mxu0 0
        %3520 = vmatprep.subr.bf16.mxu0 0
        %3521 = vmatpush1.bf16.msra.mxu0 0
        %3522 = vmatprep.subr.bf16.mxu0 0
        %3523 = vmatpush1.bf16.msra.mxu0 0
        %3524 = vmatprep.subr.bf16.mxu0 0
        %3525 = vmatpush1.bf16.msra.mxu0 0
        %3526 = vmatprep.subr.bf16.mxu0 0
        %3527 = vmatpush1.bf16.msra.mxu0 0
        %3528 = vmatprep.subr.bf16.mxu0 0
        %3529 = vmatpush1.bf16.msra.mxu0 0
        %3530 = vmatprep.subr.bf16.mxu0 0
        %3531 = vmatpush1.bf16.msra.mxu0 0
        %3532 = vmatprep.subr.bf16.mxu0 0
        %3533 = vmatpush1.bf16.msra.mxu0 0
        %3534 = vmatprep.mubr.bf16.mxu0 0
        %3535 = vmatmul.mubr.bf16.gmra.mrb[0].mxu0 %v3102
        %v3536 = vpop.f32.mrb[0].mxu0
        %v3537 = vadd.f32 %v3376, %v3536
        %v3538 = vpop.f32.mrb[0].mxu0
        %v3539 = vpop.f32.mrb[0].mxu0
        %v3540 = vadd.f32 %v3379, %v3539
        %v3541 = vpop.f32.mrb[0].mxu0
        %3542 = vmatprep.mubr.bf16.mxu0 0
        %3543 = vmatmul.mubr.bf16.gmra.mrb[0].mxu0 %v3105
        %v3544 = vpop.f32.mrb[0].mxu0
        %v3545 = vadd.f32 %v3384, %v3544
        %v3546 = vpop.f32.mrb[0].mxu0
        %v3547 = vpop.f32.mrb[0].mxu0
        %v3548 = vadd.f32 %v3387, %v3547
        %v3549 = vpop.f32.mrb[0].mxu0
        %3550 = vmatprep.mubr.bf16.mxu0 0
        %3551 = vmatmul.mubr.bf16.gmra.mrb[0].mxu0 %v3108
        %v3552 = vpop.f32.mrb[0].mxu0
        %v3553 = vadd.f32 %v3392, %v3552
        %v3554 = vpop.f32.mrb[0].mxu0
        %v3555 = vpop.f32.mrb[0].mxu0
        %v3556 = vadd.f32 %v3395, %v3555
        %v3557 = vpop.f32.mrb[0].mxu0
        %3558 = vmatprep.mubr.bf16.mxu0 0
        %3559 = vmatmul.mubr.bf16.gmra.mrb[0].mxu0 %v3111
        %v3560 = vpop.f32.mrb[0].mxu0
        %v3561 = vadd.f32 %v3400, %v3560
        %v3562 = vpop.f32.mrb[0].mxu0
        %v3563 = vpop.f32.mrb[0].mxu0
        %v3564 = vadd.f32 %v3403, %v3563
        %v3565 = vpop.f32.mrb[0].mxu0
        %3566 = vmatprep.mubr.bf16.mxu0 0
        %3567 = vmatmul.mubr.bf16.gmra.mrb[0].mxu0 %v3114
        %v3568 = vpop.f32.mrb[0].mxu0
        %v3569 = vadd.f32 %v3408, %v3568
        %v3570 = vpop.f32.mrb[0].mxu0
        %v3571 = vpop.f32.mrb[0].mxu0
        %v3572 = vadd.f32 %v3411, %v3571
        %v3573 = vpop.f32.mrb[0].mxu0
        %3574 = vmatprep.mubr.bf16.mxu0 0
        %3575 = vmatmul.mubr.bf16.gmra.mrb[0].mxu0 %v3117
        %v3576 = vpop.f32.mrb[0].mxu0
        %v3577 = vadd.f32 %v3416, %v3576
        %v3578 = vpop.f32.mrb[0].mxu0
        %v3579 = vpop.f32.mrb[0].mxu0
        %v3580 = vadd.f32 %v3419, %v3579
        %v3581 = vpop.f32.mrb[0].mxu0
        %3582 = vmatprep.mubr.bf16.mxu0 0
        %3583 = vmatmul.mubr.bf16.gmra.mrb[0].mxu0 %v3120
        %v3584 = vpop.f32.mrb[0].mxu0
        %v3585 = vadd.f32 %v3424, %v3584
        %v3586 = vpop.f32.mrb[0].mxu0
        %v3587 = vpop.f32.mrb[0].mxu0
        %v3588 = vadd.f32 %v3427, %v3587
        %v3589 = vpop.f32.mrb[0].mxu0
        %3590 = vmatprep.mubr.bf16.mxu0 0
        %3591 = vmatmul.mubr.bf16.gmra.mrb[0].mxu0 %v3123
        %v3592 = vpop.f32.mrb[0].mxu0
        %v3593 = vadd.f32 %v3432, %v3592
        %v3594 = vpop.f32.mrb[0].mxu0
        %v3595 = vpop.f32.mrb[0].mxu0
        %v3596 = vadd.f32 %v3435, %v3595
        %v3597 = vpop.f32.mrb[0].mxu0
        %3598 = vmatprep.mubr.bf16.mxu0 0
        %3599 = vmatmul.mubr.bf16.gmra.mrb[0].mxu0 %v3126
        %v3600 = vpop.f32.mrb[0].mxu0
        %v3601 = vadd.f32 %v3440, %v3600
        %v3602 = vpop.f32.mrb[0].mxu0
        %v3603 = vpop.f32.mrb[0].mxu0
        %v3604 = vadd.f32 %v3443, %v3603
        %v3605 = vpop.f32.mrb[0].mxu0
        %3606 = vmatprep.mubr.bf16.mxu0 0
        %3607 = vmatmul.mubr.bf16.gmra.mrb[0].mxu0 %v3129
        %v3608 = vpop.f32.mrb[0].mxu0
        %v3609 = vadd.f32 %v3448, %v3608
        %v3610 = vpop.f32.mrb[0].mxu0
        %v3611 = vpop.f32.mrb[0].mxu0
        %v3612 = vadd.f32 %v3451, %v3611
        %v3613 = vpop.f32.mrb[0].mxu0
        %3614 = vmatprep.mubr.bf16.mxu0 0
        %3615 = vmatmul.mubr.bf16.gmra.mrb[0].mxu0 %v3132
        %v3616 = vpop.f32.mrb[0].mxu0
        %v3617 = vadd.f32 %v3456, %v3616
        %v3618 = vpop.f32.mrb[0].mxu0
        %v3619 = vpop.f32.mrb[0].mxu0
        %v3620 = vadd.f32 %v3459, %v3619
        %v3621 = vpop.f32.mrb[0].mxu0
        %3622 = vmatprep.mubr.bf16.mxu0 0
        %3623 = vmatmul.mubr.bf16.gmra.mrb[0].mxu0 %v3135
        %v3624 = vpop.f32.mrb[0].mxu0
        %v3625 = vadd.f32 %v3464, %v3624
        %v3626 = vpop.f32.mrb[0].mxu0
        %v3627 = vpop.f32.mrb[0].mxu0
        %v3628 = vadd.f32 %v3467, %v3627
        %v3629 = vpop.f32.mrb[0].mxu0
        %3630 = vmatprep.mubr.bf16.mxu0 0
        %3631 = vmatmul.mubr.bf16.gmra.mrb[0].mxu0 %v3138
        %v3632 = vpop.f32.mrb[0].mxu0
        %v3633 = vadd.f32 %v3472, %v3632
        %v3634 = vpop.f32.mrb[0].mxu0
        %v3635 = vpop.f32.mrb[0].mxu0
        %v3636 = vadd.f32 %v3475, %v3635
        %v3637 = vpop.f32.mrb[0].mxu0
        %3638 = vmatprep.mubr.bf16.mxu0 0
        %3639 = vmatmul.mubr.bf16.gmra.mrb[0].mxu0 %v3141
        %v3640 = vpop.f32.mrb[0].mxu0
        %v3641 = vadd.f32 %v3480, %v3640
        %v3642 = vpop.f32.mrb[0].mxu0
        %v3643 = vpop.f32.mrb[0].mxu0
        %v3644 = vadd.f32 %v3483, %v3643
        %v3645 = vpop.f32.mrb[0].mxu0
        %3646 = vmatprep.mubr.bf16.mxu0 0
        %3647 = vmatmul.mubr.bf16.gmra.mrb[0].mxu0 %v3144
        %v3648 = vpop.f32.mrb[0].mxu0
        %v3649 = vadd.f32 %v3488, %v3648
        %v3650 = vpop.f32.mrb[0].mxu0
        %v3651 = vpop.f32.mrb[0].mxu0
        %v3652 = vadd.f32 %v3491, %v3651
        %v3653 = vpop.f32.mrb[0].mxu0
        %3654 = vmatprep.mubr.bf16.mxu0 0
        %3655 = vmatmul.mubr.bf16.gmra.mrb[0].mxu0 %v3147
        %v3656 = vpop.f32.mrb[0].mxu0
        %v3657 = vadd.f32 %v3496, %v3656
        %v3658 = vpop.f32.mrb[0].mxu0
        %v3659 = vpop.f32.mrb[0].mxu0
        %v3660 = vadd.f32 %v3499, %v3659
        %v3661 = vpop.f32.mrb[0].mxu0
        %3662 = vdwg.mxu0
        %v3711 = vunpack.c.l.b16 %v3052
        %v3712 = vunpack.c.l.b16 %v3053
        %v3713 = vunpack.c.l.b16 %v3054
        %v3714 = vunpack.c.l.b16 %v3055
        %v3715 = vunpack.c.l.b16 %v3056
        %v3716 = vunpack.c.l.b16 %v3057
        %v3717 = vunpack.c.l.b16 %v3058
        %v3718 = vunpack.c.l.b16 %v3059
        %v3719 = vunpack.c.l.b16 %v3060
        %v3720 = vunpack.c.l.b16 %v3061
        %v3721 = vunpack.c.l.b16 %v3062
        %v3722 = vunpack.c.l.b16 %v3063
        %v3723 = vunpack.c.l.b16 %v3064
        %v3724 = vunpack.c.l.b16 %v3065
        %v3725 = vunpack.c.l.b16 %v3066
        %v3726 = vunpack.c.l.b16 %v3067
        %v3727 = vunpack.c.l.b16 %v3068
        %v3728 = vunpack.c.l.b16 %v3069
        %v3729 = vunpack.c.l.b16 %v3070
        %v3730 = vunpack.c.l.b16 %v3071
        %v3731 = vunpack.c.l.b16 %v3072
        %v3732 = vunpack.c.l.b16 %v3073
        %v3733 = vunpack.c.l.b16 %v3074
        %v3734 = vunpack.c.l.b16 %v3075
        %v3735 = vunpack.c.l.b16 %v3076
        %v3736 = vunpack.c.l.b16 %v3077
        %v3737 = vunpack.c.l.b16 %v3078
        %v3738 = vunpack.c.l.b16 %v3079
        %v3739 = vunpack.c.l.b16 %v3080
        %v3740 = vunpack.c.l.b16 %v3081
        %v3741 = vunpack.c.l.b16 %v3082
        %v3742 = vunpack.c.l.b16 %v3083
        %v3743 = vunpack.c.l.b16 %v3084
        %v3744 = vunpack.c.l.b16 %v3085
        %v3745 = vunpack.c.l.b16 %v3086
        %v3746 = vunpack.c.l.b16 %v3087
        %v3747 = vunpack.c.l.b16 %v3088
        %v3748 = vunpack.c.l.b16 %v3089
        %v3749 = vunpack.c.l.b16 %v3090
        %v3750 = vunpack.c.l.b16 %v3091
        %v3751 = vunpack.c.l.b16 %v3092
        %v3752 = vunpack.c.l.b16 %v3093
        %v3753 = vunpack.c.l.b16 %v3094
        %v3754 = vunpack.c.l.b16 %v3095
        %v3755 = vunpack.c.l.b16 %v3096
        %v3756 = vunpack.c.l.b16 %v3097
        %v3757 = vunpack.c.l.b16 %v3098
        %v3758 = vunpack.c.l.b16 %v3099
        %v3759 = vpack.c.b16 %v3712, %v3711
        %v3760 = vpack.c.b16 %v3714, %v3713
        %v3761 = vpack.c.b16 %v3716, %v3715
        %v3762 = vpack.c.b16 %v3718, %v3717
        %v3763 = vpack.c.b16 %v3720, %v3719
        %v3764 = vpack.c.b16 %v3722, %v3721
        %v3765 = vpack.c.b16 %v3724, %v3723
        %v3766 = vpack.c.b16 %v3726, %v3725
        %v3767 = vpack.c.b16 %v3728, %v3727
        %v3768 = vpack.c.b16 %v3730, %v3729
        %v3769 = vpack.c.b16 %v3732, %v3731
        %v3770 = vpack.c.b16 %v3734, %v3733
        %v3771 = vpack.c.b16 %v3736, %v3735
        %v3772 = vpack.c.b16 %v3738, %v3737
        %v3773 = vpack.c.b16 %v3740, %v3739
        %v3774 = vpack.c.b16 %v3742, %v3741
        %v3775 = vpack.c.b16 %v3744, %v3743
        %v3776 = vpack.c.b16 %v3746, %v3745
        %v3777 = vpack.c.b16 %v3748, %v3747
        %v3778 = vpack.c.b16 %v3750, %v3749
        %v3779 = vpack.c.b16 %v3752, %v3751
        %v3780 = vpack.c.b16 %v3754, %v3753
        %v3781 = vpack.c.b16 %v3756, %v3755
        %v3782 = vpack.c.b16 %v3758, %v3757
        %3807 = vmatprep.subr.bf16.mxu0 0
        %3808 = vmatpush1.bf16.msra.mxu0 %v3759
        %3809 = vmatprep.subr.bf16.mxu0 0
        %3810 = vmatpush1.bf16.msra.mxu0 %v3760
        %3811 = vmatprep.subr.bf16.mxu0 0
        %3812 = vmatpush1.bf16.msra.mxu0 %v3761
        %3813 = vmatprep.subr.bf16.mxu0 0
        %3814 = vmatpush1.bf16.msra.mxu0 %v3762
        %3815 = vmatprep.subr.bf16.mxu0 0
        %3816 = vmatpush1.bf16.msra.mxu0 %v3763
        %3817 = vmatprep.subr.bf16.mxu0 0
        %3818 = vmatpush1.bf16.msra.mxu0 %v3764
        %3819 = vmatprep.subr.bf16.mxu0 0
        %3820 = vmatpush1.bf16.msra.mxu0 %v3765
        %3821 = vmatprep.subr.bf16.mxu0 0
        %3822 = vmatpush1.bf16.msra.mxu0 %v3766
        %3823 = vmatprep.subr.bf16.mxu0 0
        %3824 = vmatpush1.bf16.msra.mxu0 %v3767
        %3825 = vmatprep.subr.bf16.mxu0 0
        %3826 = vmatpush1.bf16.msra.mxu0 %v3768
        %3827 = vmatprep.subr.bf16.mxu0 0
        %3828 = vmatpush1.bf16.msra.mxu0 %v3769
        %3829 = vmatprep.subr.bf16.mxu0 0
        %3830 = vmatpush1.bf16.msra.mxu0 %v3770
        %3831 = vmatprep.subr.bf16.mxu0 0
        %3832 = vmatpush1.bf16.msra.mxu0 %v3771
        %3833 = vmatprep.subr.bf16.mxu0 0
        %3834 = vmatpush1.bf16.msra.mxu0 %v3772
        %3835 = vmatprep.subr.bf16.mxu0 0
        %3836 = vmatpush1.bf16.msra.mxu0 %v3773
        %3837 = vmatprep.subr.bf16.mxu0 0
        %3838 = vmatpush1.bf16.msra.mxu0 %v3774
        %3839 = vmatprep.mubr.bf16.mxu0 %v3005
        %3840 = vmatmul.mubr.bf16.gmra.mrb[0].mxu0 %v3004
        %v3841 = vpop.f32.mrb[0].mxu0
        %v3842 = vadd.f32 %v3537, %v3841
        %v3843 = vpop.f32.mrb[0].mxu0
        %v3844 = vpop.f32.mrb[0].mxu0
        %v3845 = vadd.f32 %v3540, %v3844
        %v3846 = vpop.f32.mrb[0].mxu0
        %3847 = vmatprep.mubr.bf16.mxu0 %v3008
        %3848 = vmatmul.mubr.bf16.gmra.mrb[0].mxu0 %v3007
        %v3849 = vpop.f32.mrb[0].mxu0
        %v3850 = vadd.f32 %v3545, %v3849
        %v3851 = vpop.f32.mrb[0].mxu0
        %v3852 = vpop.f32.mrb[0].mxu0
        %v3853 = vadd.f32 %v3548, %v3852
        %v3854 = vpop.f32.mrb[0].mxu0
        %3855 = vmatprep.mubr.bf16.mxu0 %v3011
        %3856 = vmatmul.mubr.bf16.gmra.mrb[0].mxu0 %v3010
        %v3857 = vpop.f32.mrb[0].mxu0
        %v3858 = vadd.f32 %v3553, %v3857
        %v3859 = vpop.f32.mrb[0].mxu0
        %v3860 = vpop.f32.mrb[0].mxu0
        %v3861 = vadd.f32 %v3556, %v3860
        %v3862 = vpop.f32.mrb[0].mxu0
        %3863 = vmatprep.mubr.bf16.mxu0 %v3014
        %3864 = vmatmul.mubr.bf16.gmra.mrb[0].mxu0 %v3013
        %v3865 = vpop.f32.mrb[0].mxu0
        %v3866 = vadd.f32 %v3561, %v3865
        %v3867 = vpop.f32.mrb[0].mxu0
        %v3868 = vpop.f32.mrb[0].mxu0
        %v3869 = vadd.f32 %v3564, %v3868
        %v3870 = vpop.f32.mrb[0].mxu0
        %3871 = vmatprep.mubr.bf16.mxu0 %v3017
        %3872 = vmatmul.mubr.bf16.gmra.mrb[0].mxu0 %v3016
        %v3873 = vpop.f32.mrb[0].mxu0
        %v3874 = vadd.f32 %v3569, %v3873
        %v3875 = vpop.f32.mrb[0].mxu0
        %v3876 = vpop.f32.mrb[0].mxu0
        %v3877 = vadd.f32 %v3572, %v3876
        %v3878 = vpop.f32.mrb[0].mxu0
        %3879 = vmatprep.mubr.bf16.mxu0 %v3020
        %3880 = vmatmul.mubr.bf16.gmra.mrb[0].mxu0 %v3019
        %v3881 = vpop.f32.mrb[0].mxu0
        %v3882 = vadd.f32 %v3577, %v3881
        %v3883 = vpop.f32.mrb[0].mxu0
        %v3884 = vpop.f32.mrb[0].mxu0
        %v3885 = vadd.f32 %v3580, %v3884
        %v3886 = vpop.f32.mrb[0].mxu0
        %3887 = vmatprep.mubr.bf16.mxu0 %v3023
        %3888 = vmatmul.mubr.bf16.gmra.mrb[0].mxu0 %v3022
        %v3889 = vpop.f32.mrb[0].mxu0
        %v3890 = vadd.f32 %v3585, %v3889
        %v3891 = vpop.f32.mrb[0].mxu0
        %v3892 = vpop.f32.mrb[0].mxu0
        %v3893 = vadd.f32 %v3588, %v3892
        %v3894 = vpop.f32.mrb[0].mxu0
        %3895 = vmatprep.mubr.bf16.mxu0 %v3026
        %3896 = vmatmul.mubr.bf16.gmra.mrb[0].mxu0 %v3025
        %v3897 = vpop.f32.mrb[0].mxu0
        %v3898 = vadd.f32 %v3593, %v3897
        %v3899 = vpop.f32.mrb[0].mxu0
        %v3900 = vpop.f32.mrb[0].mxu0
        %v3901 = vadd.f32 %v3596, %v3900
        %v3902 = vpop.f32.mrb[0].mxu0
        %3903 = vmatprep.mubr.bf16.mxu0 %v3029
        %3904 = vmatmul.mubr.bf16.gmra.mrb[0].mxu0 %v3028
        %v3905 = vpop.f32.mrb[0].mxu0
        %v3906 = vadd.f32 %v3601, %v3905
        %v3907 = vpop.f32.mrb[0].mxu0
        %v3908 = vpop.f32.mrb[0].mxu0
        %v3909 = vadd.f32 %v3604, %v3908
        %v3910 = vpop.f32.mrb[0].mxu0
        %3911 = vmatprep.mubr.bf16.mxu0 %v3032
        %3912 = vmatmul.mubr.bf16.gmra.mrb[0].mxu0 %v3031
        %v3913 = vpop.f32.mrb[0].mxu0
        %v3914 = vadd.f32 %v3609, %v3913
        %v3915 = vpop.f32.mrb[0].mxu0
        %v3916 = vpop.f32.mrb[0].mxu0
        %v3917 = vadd.f32 %v3612, %v3916
        %v3918 = vpop.f32.mrb[0].mxu0
        %3919 = vmatprep.mubr.bf16.mxu0 %v3035
        %3920 = vmatmul.mubr.bf16.gmra.mrb[0].mxu0 %v3034
        %v3921 = vpop.f32.mrb[0].mxu0
        %v3922 = vadd.f32 %v3617, %v3921
        %v3923 = vpop.f32.mrb[0].mxu0
        %v3924 = vpop.f32.mrb[0].mxu0
        %v3925 = vadd.f32 %v3620, %v3924
        %v3926 = vpop.f32.mrb[0].mxu0
        %3927 = vmatprep.mubr.bf16.mxu0 %v3038
        %3928 = vmatmul.mubr.bf16.gmra.mrb[0].mxu0 %v3037
        %v3929 = vpop.f32.mrb[0].mxu0
        %v3930 = vadd.f32 %v3625, %v3929
        %v3931 = vpop.f32.mrb[0].mxu0
        %v3932 = vpop.f32.mrb[0].mxu0
        %v3933 = vadd.f32 %v3628, %v3932
        %v3934 = vpop.f32.mrb[0].mxu0
        %3935 = vmatprep.mubr.bf16.mxu0 %v3041
        %3936 = vmatmul.mubr.bf16.gmra.mrb[0].mxu0 %v3040
        %v3937 = vpop.f32.mrb[0].mxu0
        %v3938 = vadd.f32 %v3633, %v3937
        %v3939 = vpop.f32.mrb[0].mxu0
        %v3940 = vpop.f32.mrb[0].mxu0
        %v3941 = vadd.f32 %v3636, %v3940
        %v3942 = vpop.f32.mrb[0].mxu0
        %3943 = vmatprep.mubr.bf16.mxu0 %v3044
        %3944 = vmatmul.mubr.bf16.gmra.mrb[0].mxu0 %v3043
        %v3945 = vpop.f32.mrb[0].mxu0
        %v3946 = vadd.f32 %v3641, %v3945
        %v3947 = vpop.f32.mrb[0].mxu0
        %v3948 = vpop.f32.mrb[0].mxu0
        %v3949 = vadd.f32 %v3644, %v3948
        %v3950 = vpop.f32.mrb[0].mxu0
        %3951 = vmatprep.mubr.bf16.mxu0 %v3047
        %3952 = vmatmul.mubr.bf16.gmra.mrb[0].mxu0 %v3046
        %v3953 = vpop.f32.mrb[0].mxu0
        %v3954 = vadd.f32 %v3649, %v3953
        %v3955 = vpop.f32.mrb[0].mxu0
        %v3956 = vpop.f32.mrb[0].mxu0
        %v3957 = vadd.f32 %v3652, %v3956
        %v3958 = vpop.f32.mrb[0].mxu0
        %3959 = vmatprep.mubr.bf16.mxu0 %v3050
        %3960 = vmatmul.mubr.bf16.gmra.mrb[0].mxu0 %v3049
        %v3961 = vpop.f32.mrb[0].mxu0
        %v3962 = vadd.f32 %v3657, %v3961
        %v3963 = vpop.f32.mrb[0].mxu0
        %v3964 = vpop.f32.mrb[0].mxu0
        %v3965 = vadd.f32 %v3660, %v3964
        %v3966 = vpop.f32.mrb[0].mxu0
        %3967 = vdwg.mxu0
        %3968 = vmatprep.subr.bf16.mxu0 0
        %3969 = vmatpush1.bf16.msra.mxu0 %v3775
        %3970 = vmatprep.subr.bf16.mxu0 0
        %3971 = vmatpush1.bf16.msra.mxu0 %v3776
        %3972 = vmatprep.subr.bf16.mxu0 0
        %3973 = vmatpush1.bf16.msra.mxu0 %v3777
        %3974 = vmatprep.subr.bf16.mxu0 0
        %3975 = vmatpush1.bf16.msra.mxu0 %v3778
        %3976 = vmatprep.subr.bf16.mxu0 0
        %3977 = vmatpush1.bf16.msra.mxu0 %v3779
        %3978 = vmatprep.subr.bf16.mxu0 0
        %3979 = vmatpush1.bf16.msra.mxu0 %v3780
        %3980 = vmatprep.subr.bf16.mxu0 0
        %3981 = vmatpush1.bf16.msra.mxu0 %v3781
        %3982 = vmatprep.subr.bf16.mxu0 0
        %3983 = vmatpush1.bf16.msra.mxu0 %v3782
        %3984 = vmatprep.subr.bf16.mxu0 0
        %3985 = vmatpush1.bf16.msra.mxu0 0
        %3986 = vmatprep.subr.bf16.mxu0 0
        %3987 = vmatpush1.bf16.msra.mxu0 0
        %3988 = vmatprep.subr.bf16.mxu0 0
        %3989 = vmatpush1.bf16.msra.mxu0 0
        %3990 = vmatprep.subr.bf16.mxu0 0
        %3991 = vmatpush1.bf16.msra.mxu0 0
        %3992 = vmatprep.subr.bf16.mxu0 0
        %3993 = vmatpush1.bf16.msra.mxu0 0
        %3994 = vmatprep.subr.bf16.mxu0 0
        %3995 = vmatpush1.bf16.msra.mxu0 0
        %3996 = vmatprep.subr.bf16.mxu0 0
        %3997 = vmatpush1.bf16.msra.mxu0 0
        %3998 = vmatprep.subr.bf16.mxu0 0
        %3999 = vmatpush1.bf16.msra.mxu0 0
        %4000 = vmatprep.mubr.bf16.mxu0 0
        %4001 = vmatmul.mubr.bf16.gmra.mrb[0].mxu0 %v3006
        %v4002 = vpop.f32.mrb[0].mxu0
        %v4003 = vadd.f32 %v3842, %v4002
        %v4004 = vpop.f32.mrb[0].mxu0
        %v4005 = vpop.f32.mrb[0].mxu0
        %v4006 = vadd.f32 %v3845, %v4005
        %v4007 = vpop.f32.mrb[0].mxu0
        %4008 = vmatprep.mubr.bf16.mxu0 0
        %4009 = vmatmul.mubr.bf16.gmra.mrb[0].mxu0 %v3009
        %v4010 = vpop.f32.mrb[0].mxu0
        %v4011 = vadd.f32 %v3850, %v4010
        %v4012 = vpop.f32.mrb[0].mxu0
        %v4013 = vpop.f32.mrb[0].mxu0
        %v4014 = vadd.f32 %v3853, %v4013
        %v4015 = vpop.f32.mrb[0].mxu0
        %4016 = vmatprep.mubr.bf16.mxu0 0
        %4017 = vmatmul.mubr.bf16.gmra.mrb[0].mxu0 %v3012
        %v4018 = vpop.f32.mrb[0].mxu0
        %v4019 = vadd.f32 %v3858, %v4018
        %v4020 = vpop.f32.mrb[0].mxu0
        %v4021 = vpop.f32.mrb[0].mxu0
        %v4022 = vadd.f32 %v3861, %v4021
        %v4023 = vpop.f32.mrb[0].mxu0
        %4024 = vmatprep.mubr.bf16.mxu0 0
        %4025 = vmatmul.mubr.bf16.gmra.mrb[0].mxu0 %v3015
        %v4026 = vpop.f32.mrb[0].mxu0
        %v4027 = vadd.f32 %v3866, %v4026
        %v4028 = vpop.f32.mrb[0].mxu0
        %v4029 = vpop.f32.mrb[0].mxu0
        %v4030 = vadd.f32 %v3869, %v4029
        %v4031 = vpop.f32.mrb[0].mxu0
        %4032 = vmatprep.mubr.bf16.mxu0 0
        %4033 = vmatmul.mubr.bf16.gmra.mrb[0].mxu0 %v3018
        %v4034 = vpop.f32.mrb[0].mxu0
        %v4035 = vadd.f32 %v3874, %v4034
        %v4036 = vpop.f32.mrb[0].mxu0
        %v4037 = vpop.f32.mrb[0].mxu0
        %v4038 = vadd.f32 %v3877, %v4037
        %v4039 = vpop.f32.mrb[0].mxu0
        %4040 = vmatprep.mubr.bf16.mxu0 0
        %4041 = vmatmul.mubr.bf16.gmra.mrb[0].mxu0 %v3021
        %v4042 = vpop.f32.mrb[0].mxu0
        %v4043 = vadd.f32 %v3882, %v4042
        %v4044 = vpop.f32.mrb[0].mxu0
        %v4045 = vpop.f32.mrb[0].mxu0
        %v4046 = vadd.f32 %v3885, %v4045
        %v4047 = vpop.f32.mrb[0].mxu0
        %4048 = vmatprep.mubr.bf16.mxu0 0
        %4049 = vmatmul.mubr.bf16.gmra.mrb[0].mxu0 %v3024
        %v4050 = vpop.f32.mrb[0].mxu0
        %v4051 = vadd.f32 %v3890, %v4050
        %v4052 = vpop.f32.mrb[0].mxu0
        %v4053 = vpop.f32.mrb[0].mxu0
        %v4054 = vadd.f32 %v3893, %v4053
        %v4055 = vpop.f32.mrb[0].mxu0
        %4056 = vmatprep.mubr.bf16.mxu0 0
        %4057 = vmatmul.mubr.bf16.gmra.mrb[0].mxu0 %v3027
        %v4058 = vpop.f32.mrb[0].mxu0
        %v4059 = vadd.f32 %v3898, %v4058
        %v4060 = vpop.f32.mrb[0].mxu0
        %v4061 = vpop.f32.mrb[0].mxu0
        %v4062 = vadd.f32 %v3901, %v4061
        %v4063 = vpop.f32.mrb[0].mxu0
        %4064 = vmatprep.mubr.bf16.mxu0 0
        %4065 = vmatmul.mubr.bf16.gmra.mrb[0].mxu0 %v3030
        %v4066 = vpop.f32.mrb[0].mxu0
        %v4067 = vadd.f32 %v3906, %v4066
        %v4068 = vpop.f32.mrb[0].mxu0
        %v4069 = vpop.f32.mrb[0].mxu0
        %v4070 = vadd.f32 %v3909, %v4069
        %v4071 = vpop.f32.mrb[0].mxu0
        %4072 = vmatprep.mubr.bf16.mxu0 0
        %4073 = vmatmul.mubr.bf16.gmra.mrb[0].mxu0 %v3033
        %v4074 = vpop.f32.mrb[0].mxu0
        %v4075 = vadd.f32 %v3914, %v4074
        %v4076 = vpop.f32.mrb[0].mxu0
        %v4077 = vpop.f32.mrb[0].mxu0
        %v4078 = vadd.f32 %v3917, %v4077
        %v4079 = vpop.f32.mrb[0].mxu0
        %4080 = vmatprep.mubr.bf16.mxu0 0
        %4081 = vmatmul.mubr.bf16.gmra.mrb[0].mxu0 %v3036
        %v4082 = vpop.f32.mrb[0].mxu0
        %v4083 = vadd.f32 %v3922, %v4082
        %v4084 = vpop.f32.mrb[0].mxu0
        %v4085 = vpop.f32.mrb[0].mxu0
        %v4086 = vadd.f32 %v3925, %v4085
        %v4087 = vpop.f32.mrb[0].mxu0
        %4088 = vmatprep.mubr.bf16.mxu0 0
        %4089 = vmatmul.mubr.bf16.gmra.mrb[0].mxu0 %v3039
        %v4090 = vpop.f32.mrb[0].mxu0
        %v4091 = vadd.f32 %v3930, %v4090
        %v4092 = vpop.f32.mrb[0].mxu0
        %v4093 = vpop.f32.mrb[0].mxu0
        %v4094 = vadd.f32 %v3933, %v4093
        %v4095 = vpop.f32.mrb[0].mxu0
        %4096 = vmatprep.mubr.bf16.mxu0 0
        %4097 = vmatmul.mubr.bf16.gmra.mrb[0].mxu0 %v3042
        %v4098 = vpop.f32.mrb[0].mxu0
        %v4099 = vadd.f32 %v3938, %v4098
        %v4100 = vpop.f32.mrb[0].mxu0
        %v4101 = vpop.f32.mrb[0].mxu0
        %v4102 = vadd.f32 %v3941, %v4101
        %v4103 = vpop.f32.mrb[0].mxu0
        %4104 = vmatprep.mubr.bf16.mxu0 0
        %4105 = vmatmul.mubr.bf16.gmra.mrb[0].mxu0 %v3045
        %v4106 = vpop.f32.mrb[0].mxu0
        %v4107 = vadd.f32 %v3946, %v4106
        %v4108 = vpop.f32.mrb[0].mxu0
        %v4109 = vpop.f32.mrb[0].mxu0
        %v4110 = vadd.f32 %v3949, %v4109
        %v4111 = vpop.f32.mrb[0].mxu0
        %4112 = vmatprep.mubr.bf16.mxu0 0
        %4113 = vmatmul.mubr.bf16.gmra.mrb[0].mxu0 %v3048
        %v4114 = vpop.f32.mrb[0].mxu0
        %v4115 = vadd.f32 %v3954, %v4114
        %v4116 = vpop.f32.mrb[0].mxu0
        %v4117 = vpop.f32.mrb[0].mxu0
        %v4118 = vadd.f32 %v3957, %v4117
        %v4119 = vpop.f32.mrb[0].mxu0
        %4120 = vmatprep.mubr.bf16.mxu0 0
        %4121 = vmatmul.mubr.bf16.gmra.mrb[0].mxu0 %v3051
        %v4122 = vpop.f32.mrb[0].mxu0
        %v4123 = vadd.f32 %v3962, %v4122
        %v4124 = vpop.f32.mrb[0].mxu0
        %v4125 = vpop.f32.mrb[0].mxu0
        %v4126 = vadd.f32 %v3965, %v4125
        %v4127 = vpop.f32.mrb[0].mxu0
        %4128 = vdwg.mxu0
        %v4129 = vld [vmem:[%s1902] sm:$0xff]
        %v4130 = vld [vmem:[%s1902 + $0x8] sm:$0xff]
        %v4131 = vld [vmem:[%s1902 + $0x10] sm:$0xff]
        %v4132 = vld [vmem:[%s1902 + $0x18] sm:$0xff]
        %v4133 = vld [vmem:[%s1902 + $0x20] sm:$0xff]
        %v4134 = vld [vmem:[%s1902 + $0x28] sm:$0xff]
        %v4135 = vld [vmem:[%s1902 + $0x30] sm:$0xff]
        %v4136 = vld [vmem:[%s1902 + $0x38] sm:$0xff]
        %v4137 = vld [vmem:[%s1902 + $0x40] sm:$0xff]
        %v4138 = vld [vmem:[%s1902 + $0x48] sm:$0xff]
        %v4139 = vld [vmem:[%s1902 + $0x50] sm:$0xff]
        %v4140 = vld [vmem:[%s1902 + $0x58] sm:$0xff]
        %v4141 = vld [vmem:[%s1902 + $0x60] sm:$0xff]
        %v4142 = vld [vmem:[%s1902 + $0x68] sm:$0xff]
        %v4143 = vld [vmem:[%s1902 + $0x70] sm:$0xff]
        %v4144 = vld [vmem:[%s1902 + $0x78] sm:$0xff]
        %v4145 = vld [vmem:[%s1902 + $0x80] sm:$0xff]
        %v4146 = vld [vmem:[%s1902 + $0x88] sm:$0xff]
        %v4147 = vld [vmem:[%s1902 + $0x90] sm:$0xff]
        %v4148 = vld [vmem:[%s1902 + $0x98] sm:$0xff]
        %v4149 = vld [vmem:[%s1902 + $0xa0] sm:$0xff]
        %v4150 = vld [vmem:[%s1902 + $0xa8] sm:$0xff]
        %v4151 = vld [vmem:[%s1902 + $0xb0] sm:$0xff]
        %v4152 = vld [vmem:[%s1902 + $0xb8] sm:$0xff]
        %v4153 = vld [vmem:[%s1902 + $0xc0] sm:$0xff]
        %v4154 = vld [vmem:[%s1902 + $0xc8] sm:$0xff]
        %v4155 = vld [vmem:[%s1902 + $0xd0] sm:$0xff]
        %v4156 = vld [vmem:[%s1902 + $0xd8] sm:$0xff]
        %v4157 = vld [vmem:[%s1902 + $0xe0] sm:$0xff]
        %v4158 = vld [vmem:[%s1902 + $0xe8] sm:$0xff]
        %v4159 = vld [vmem:[%s1902 + $0xf0] sm:$0xff]
        %v4160 = vld [vmem:[%s1902 + $0xf8] sm:$0xff]
        %v4161 = vld [vmem:[%s1902 + $0x100] sm:$0xff]
        %v4162 = vld [vmem:[%s1902 + $0x108] sm:$0xff]
        %v4163 = vld [vmem:[%s1902 + $0x110] sm:$0xff]
        %v4164 = vld [vmem:[%s1902 + $0x118] sm:$0xff]
        %v4165 = vld [vmem:[%s1902 + $0x120] sm:$0xff]
        %v4166 = vld [vmem:[%s1902 + $0x128] sm:$0xff]
        %v4167 = vld [vmem:[%s1902 + $0x130] sm:$0xff]
        %v4168 = vld [vmem:[%s1902 + $0x138] sm:$0xff]
        %v4169 = vld [vmem:[%s1902 + $0x140] sm:$0xff]
        %v4170 = vld [vmem:[%s1902 + $0x148] sm:$0xff]
        %v4171 = vld [vmem:[%s1902 + $0x150] sm:$0xff]
        %v4172 = vld [vmem:[%s1902 + $0x158] sm:$0xff]
        %v4173 = vld [vmem:[%s1902 + $0x160] sm:$0xff]
        %v4174 = vld [vmem:[%s1902 + $0x168] sm:$0xff]
        %v4175 = vld [vmem:[%s1902 + $0x170] sm:$0xff]
        %v4176 = vld [vmem:[%s1902 + $0x178] sm:$0xff]
        %s4177 = scalar_lea.vmem [#allocation8], 384
        %v4178 = vld [vmem:[%s4177] sm:$0xf]
        %v4179 = vld [vmem:[%s4177 + $0x4] sm:$0xf]
        %v4180 = vld [vmem:[%s4177 + $0x8] sm:$0xf]
        %v4181 = vld [vmem:[%s4177 + $0xc] sm:$0xf]
        %v4182 = vld [vmem:[%s4177 + $0x10] sm:$0xf]
        %v4183 = vld [vmem:[%s4177 + $0x14] sm:$0xf]
        %v4184 = vld [vmem:[%s4177 + $0x18] sm:$0xf]
        %v4185 = vld [vmem:[%s4177 + $0x1c] sm:$0xf]
        %v4186 = vld [vmem:[%s4177 + $0x20] sm:$0xf]
        %v4187 = vld [vmem:[%s4177 + $0x24] sm:$0xf]
        %v4188 = vld [vmem:[%s4177 + $0x28] sm:$0xf]
        %v4189 = vld [vmem:[%s4177 + $0x2c] sm:$0xf]
        %v4190 = vld [vmem:[%s4177 + $0x30] sm:$0xf]
        %v4191 = vld [vmem:[%s4177 + $0x34] sm:$0xf]
        %v4192 = vld [vmem:[%s4177 + $0x38] sm:$0xf]
        %v4193 = vld [vmem:[%s4177 + $0x3c] sm:$0xf]
        %v4194 = vld [vmem:[%s4177 + $0x40] sm:$0xf]
        %v4195 = vld [vmem:[%s4177 + $0x44] sm:$0xf]
        %v4196 = vld [vmem:[%s4177 + $0x48] sm:$0xf]
        %v4197 = vld [vmem:[%s4177 + $0x4c] sm:$0xf]
        %v4198 = vld [vmem:[%s4177 + $0x50] sm:$0xf]
        %v4199 = vld [vmem:[%s4177 + $0x54] sm:$0xf]
        %v4200 = vld [vmem:[%s4177 + $0x58] sm:$0xf]
        %v4201 = vld [vmem:[%s4177 + $0x5c] sm:$0xf]
        %v4202 = vld [vmem:[%s4177 + $0x60] sm:$0xf]
        %v4203 = vld [vmem:[%s4177 + $0x64] sm:$0xf]
        %v4204 = vld [vmem:[%s4177 + $0x68] sm:$0xf]
        %v4205 = vld [vmem:[%s4177 + $0x6c] sm:$0xf]
        %v4206 = vld [vmem:[%s4177 + $0x70] sm:$0xf]
        %v4207 = vld [vmem:[%s4177 + $0x74] sm:$0xf]
        %v4208 = vld [vmem:[%s4177 + $0x78] sm:$0xf]
        %v4209 = vld [vmem:[%s4177 + $0x7c] sm:$0xf]
        %v4210 = vld [vmem:[%s4177 + $0x80] sm:$0xf]
        %v4211 = vld [vmem:[%s4177 + $0x84] sm:$0xf]
        %v4212 = vld [vmem:[%s4177 + $0x88] sm:$0xf]
        %v4213 = vld [vmem:[%s4177 + $0x8c] sm:$0xf]
        %v4214 = vld [vmem:[%s4177 + $0x90] sm:$0xf]
        %v4215 = vld [vmem:[%s4177 + $0x94] sm:$0xf]
        %v4216 = vld [vmem:[%s4177 + $0x98] sm:$0xf]
        %v4217 = vld [vmem:[%s4177 + $0x9c] sm:$0xf]
        %v4218 = vld [vmem:[%s4177 + $0xa0] sm:$0xf]
        %v4219 = vld [vmem:[%s4177 + $0xa4] sm:$0xf]
        %v4220 = vld [vmem:[%s4177 + $0xa8] sm:$0xf]
        %v4221 = vld [vmem:[%s4177 + $0xac] sm:$0xf]
        %v4222 = vld [vmem:[%s4177 + $0xb0] sm:$0xf]
        %v4223 = vld [vmem:[%s4177 + $0xb4] sm:$0xf]
        %v4224 = vld [vmem:[%s4177 + $0xb8] sm:$0xf]
        %v4225 = vld [vmem:[%s4177 + $0xbc] sm:$0xf]
        %v4274 = vunpack.c.l.b16 %v4178
        %v4275 = vunpack.c.l.b16 %v4179
        %v4276 = vunpack.c.l.b16 %v4180
        %v4277 = vunpack.c.l.b16 %v4181
        %v4278 = vunpack.c.l.b16 %v4182
        %v4279 = vunpack.c.l.b16 %v4183
        %v4280 = vunpack.c.l.b16 %v4184
        %v4281 = vunpack.c.l.b16 %v4185
        %v4282 = vunpack.c.l.b16 %v4186
        %v4283 = vunpack.c.l.b16 %v4187
        %v4284 = vunpack.c.l.b16 %v4188
        %v4285 = vunpack.c.l.b16 %v4189
        %v4286 = vunpack.c.l.b16 %v4190
        %v4287 = vunpack.c.l.b16 %v4191
        %v4288 = vunpack.c.l.b16 %v4192
        %v4289 = vunpack.c.l.b16 %v4193
        %v4290 = vunpack.c.l.b16 %v4194
        %v4291 = vunpack.c.l.b16 %v4195
        %v4292 = vunpack.c.l.b16 %v4196
        %v4293 = vunpack.c.l.b16 %v4197
        %v4294 = vunpack.c.l.b16 %v4198
        %v4295 = vunpack.c.l.b16 %v4199
        %v4296 = vunpack.c.l.b16 %v4200
        %v4297 = vunpack.c.l.b16 %v4201
        %v4298 = vunpack.c.l.b16 %v4202
        %v4299 = vunpack.c.l.b16 %v4203
        %v4300 = vunpack.c.l.b16 %v4204
        %v4301 = vunpack.c.l.b16 %v4205
        %v4302 = vunpack.c.l.b16 %v4206
        %v4303 = vunpack.c.l.b16 %v4207
        %v4304 = vunpack.c.l.b16 %v4208
        %v4305 = vunpack.c.l.b16 %v4209
        %v4306 = vunpack.c.l.b16 %v4210
        %v4307 = vunpack.c.l.b16 %v4211
        %v4308 = vunpack.c.l.b16 %v4212
        %v4309 = vunpack.c.l.b16 %v4213
        %v4310 = vunpack.c.l.b16 %v4214
        %v4311 = vunpack.c.l.b16 %v4215
        %v4312 = vunpack.c.l.b16 %v4216
        %v4313 = vunpack.c.l.b16 %v4217
        %v4314 = vunpack.c.l.b16 %v4218
        %v4315 = vunpack.c.l.b16 %v4219
        %v4316 = vunpack.c.l.b16 %v4220
        %v4317 = vunpack.c.l.b16 %v4221
        %v4318 = vunpack.c.l.b16 %v4222
        %v4319 = vunpack.c.l.b16 %v4223
        %v4320 = vunpack.c.l.b16 %v4224
        %v4321 = vunpack.c.l.b16 %v4225
        %v4322 = vpack.c.b16 %v4275, %v4274
        %v4323 = vpack.c.b16 %v4277, %v4276
        %v4324 = vpack.c.b16 %v4279, %v4278
        %v4325 = vpack.c.b16 %v4281, %v4280
        %v4326 = vpack.c.b16 %v4283, %v4282
        %v4327 = vpack.c.b16 %v4285, %v4284
        %v4328 = vpack.c.b16 %v4287, %v4286
        %v4329 = vpack.c.b16 %v4289, %v4288
        %v4330 = vpack.c.b16 %v4291, %v4290
        %v4331 = vpack.c.b16 %v4293, %v4292
        %v4332 = vpack.c.b16 %v4295, %v4294
        %v4333 = vpack.c.b16 %v4297, %v4296
        %v4334 = vpack.c.b16 %v4299, %v4298
        %v4335 = vpack.c.b16 %v4301, %v4300
        %v4336 = vpack.c.b16 %v4303, %v4302
        %v4337 = vpack.c.b16 %v4305, %v4304
        %v4338 = vpack.c.b16 %v4307, %v4306
        %v4339 = vpack.c.b16 %v4309, %v4308
        %v4340 = vpack.c.b16 %v4311, %v4310
        %v4341 = vpack.c.b16 %v4313, %v4312
        %v4342 = vpack.c.b16 %v4315, %v4314
        %v4343 = vpack.c.b16 %v4317, %v4316
        %v4344 = vpack.c.b16 %v4319, %v4318
        %v4345 = vpack.c.b16 %v4321, %v4320
        %4370 = vmatprep.subr.bf16.mxu0 0
        %4371 = vmatpush1.bf16.msra.mxu0 %v4322
        %4372 = vmatprep.subr.bf16.mxu0 0
        %4373 = vmatpush1.bf16.msra.mxu0 %v4323
        %4374 = vmatprep.subr.bf16.mxu0 0
        %4375 = vmatpush1.bf16.msra.mxu0 %v4324
        %4376 = vmatprep.subr.bf16.mxu0 0
        %4377 = vmatpush1.bf16.msra.mxu0 %v4325
        %4378 = vmatprep.subr.bf16.mxu0 0
        %4379 = vmatpush1.bf16.msra.mxu0 %v4326
        %4380 = vmatprep.subr.bf16.mxu0 0
        %4381 = vmatpush1.bf16.msra.mxu0 %v4327
        %4382 = vmatprep.subr.bf16.mxu0 0
        %4383 = vmatpush1.bf16.msra.mxu0 %v4328
        %4384 = vmatprep.subr.bf16.mxu0 0
        %4385 = vmatpush1.bf16.msra.mxu0 %v4329
        %4386 = vmatprep.subr.bf16.mxu0 0
        %4387 = vmatpush1.bf16.msra.mxu0 %v4330
        %4388 = vmatprep.subr.bf16.mxu0 0
        %4389 = vmatpush1.bf16.msra.mxu0 %v4331
        %4390 = vmatprep.subr.bf16.mxu0 0
        %4391 = vmatpush1.bf16.msra.mxu0 %v4332
        %4392 = vmatprep.subr.bf16.mxu0 0
        %4393 = vmatpush1.bf16.msra.mxu0 %v4333
        %4394 = vmatprep.subr.bf16.mxu0 0
        %4395 = vmatpush1.bf16.msra.mxu0 %v4334
        %4396 = vmatprep.subr.bf16.mxu0 0
        %4397 = vmatpush1.bf16.msra.mxu0 %v4335
        %4398 = vmatprep.subr.bf16.mxu0 0
        %4399 = vmatpush1.bf16.msra.mxu0 %v4336
        %4400 = vmatprep.subr.bf16.mxu0 0
        %4401 = vmatpush1.bf16.msra.mxu0 %v4337
        %4402 = vmatprep.mubr.bf16.mxu0 %v4130
        %4403 = vmatmul.mubr.bf16.gmra.mrb[0].mxu0 %v4129
        %v4404 = vpop.f32.mrb[0].mxu0
        %v4405 = vadd.f32 0.0, %v4404
        %v4406 = vpop.f32.mrb[0].mxu0
        %v4407 = vpop.f32.mrb[0].mxu0
        %v4408 = vadd.f32 0.0, %v4407
        %v4409 = vpop.f32.mrb[0].mxu0
        %4410 = vmatprep.mubr.bf16.mxu0 %v4133
        %4411 = vmatmul.mubr.bf16.gmra.mrb[0].mxu0 %v4132
        %v4412 = vpop.f32.mrb[0].mxu0
        %v4413 = vadd.f32 0.0, %v4412
        %v4414 = vpop.f32.mrb[0].mxu0
        %v4415 = vpop.f32.mrb[0].mxu0
        %v4416 = vadd.f32 0.0, %v4415
        %v4417 = vpop.f32.mrb[0].mxu0
        %4418 = vmatprep.mubr.bf16.mxu0 %v4136
        %4419 = vmatmul.mubr.bf16.gmra.mrb[0].mxu0 %v4135
        %v4420 = vpop.f32.mrb[0].mxu0
        %v4421 = vadd.f32 0.0, %v4420
        %v4422 = vpop.f32.mrb[0].mxu0
        %v4423 = vpop.f32.mrb[0].mxu0
        %v4424 = vadd.f32 0.0, %v4423
        %v4425 = vpop.f32.mrb[0].mxu0
        %4426 = vmatprep.mubr.bf16.mxu0 %v4139
        %4427 = vmatmul.mubr.bf16.gmra.mrb[0].mxu0 %v4138
        %v4428 = vpop.f32.mrb[0].mxu0
        %v4429 = vadd.f32 0.0, %v4428
        %v4430 = vpop.f32.mrb[0].mxu0
        %v4431 = vpop.f32.mrb[0].mxu0
        %v4432 = vadd.f32 0.0, %v4431
        %v4433 = vpop.f32.mrb[0].mxu0
        %4434 = vmatprep.mubr.bf16.mxu0 %v4142
        %4435 = vmatmul.mubr.bf16.gmra.mrb[0].mxu0 %v4141
        %v4436 = vpop.f32.mrb[0].mxu0
        %v4437 = vadd.f32 0.0, %v4436
        %v4438 = vpop.f32.mrb[0].mxu0
        %v4439 = vpop.f32.mrb[0].mxu0
        %v4440 = vadd.f32 0.0, %v4439
        %v4441 = vpop.f32.mrb[0].mxu0
        %4442 = vmatprep.mubr.bf16.mxu0 %v4145
        %4443 = vmatmul.mubr.bf16.gmra.mrb[0].mxu0 %v4144
        %v4444 = vpop.f32.mrb[0].mxu0
        %v4445 = vadd.f32 0.0, %v4444
        %v4446 = vpop.f32.mrb[0].mxu0
        %v4447 = vpop.f32.mrb[0].mxu0
        %v4448 = vadd.f32 0.0, %v4447
        %v4449 = vpop.f32.mrb[0].mxu0
        %4450 = vmatprep.mubr.bf16.mxu0 %v4148
        %4451 = vmatmul.mubr.bf16.gmra.mrb[0].mxu0 %v4147
        %v4452 = vpop.f32.mrb[0].mxu0
        %v4453 = vadd.f32 0.0, %v4452
        %v4454 = vpop.f32.mrb[0].mxu0
        %v4455 = vpop.f32.mrb[0].mxu0
        %v4456 = vadd.f32 0.0, %v4455
        %v4457 = vpop.f32.mrb[0].mxu0
        %4458 = vmatprep.mubr.bf16.mxu0 %v4151
        %4459 = vmatmul.mubr.bf16.gmra.mrb[0].mxu0 %v4150
        %v4460 = vpop.f32.mrb[0].mxu0
        %v4461 = vadd.f32 0.0, %v4460
        %v4462 = vpop.f32.mrb[0].mxu0
        %v4463 = vpop.f32.mrb[0].mxu0
        %v4464 = vadd.f32 0.0, %v4463
        %v4465 = vpop.f32.mrb[0].mxu0
        %4466 = vmatprep.mubr.bf16.mxu0 %v4154
        %4467 = vmatmul.mubr.bf16.gmra.mrb[0].mxu0 %v4153
        %v4468 = vpop.f32.mrb[0].mxu0
        %v4469 = vadd.f32 0.0, %v4468
        %v4470 = vpop.f32.mrb[0].mxu0
        %v4471 = vpop.f32.mrb[0].mxu0
        %v4472 = vadd.f32 0.0, %v4471
        %v4473 = vpop.f32.mrb[0].mxu0
        %4474 = vmatprep.mubr.bf16.mxu0 %v4157
        %4475 = vmatmul.mubr.bf16.gmra.mrb[0].mxu0 %v4156
        %v4476 = vpop.f32.mrb[0].mxu0
        %v4477 = vadd.f32 0.0, %v4476
        %v4478 = vpop.f32.mrb[0].mxu0
        %v4479 = vpop.f32.mrb[0].mxu0
        %v4480 = vadd.f32 0.0, %v4479
        %v4481 = vpop.f32.mrb[0].mxu0
        %4482 = vmatprep.mubr.bf16.mxu0 %v4160
        %4483 = vmatmul.mubr.bf16.gmra.mrb[0].mxu0 %v4159
        %v4484 = vpop.f32.mrb[0].mxu0
        %v4485 = vadd.f32 0.0, %v4484
        %v4486 = vpop.f32.mrb[0].mxu0
        %v4487 = vpop.f32.mrb[0].mxu0
        %v4488 = vadd.f32 0.0, %v4487
        %v4489 = vpop.f32.mrb[0].mxu0
        %4490 = vmatprep.mubr.bf16.mxu0 %v4163
        %4491 = vmatmul.mubr.bf16.gmra.mrb[0].mxu0 %v4162
        %v4492 = vpop.f32.mrb[0].mxu0
        %v4493 = vadd.f32 0.0, %v4492
        %v4494 = vpop.f32.mrb[0].mxu0
        %v4495 = vpop.f32.mrb[0].mxu0
        %v4496 = vadd.f32 0.0, %v4495
        %v4497 = vpop.f32.mrb[0].mxu0
        %4498 = vmatprep.mubr.bf16.mxu0 %v4166
        %4499 = vmatmul.mubr.bf16.gmra.mrb[0].mxu0 %v4165
        %v4500 = vpop.f32.mrb[0].mxu0
        %v4501 = vadd.f32 0.0, %v4500
        %v4502 = vpop.f32.mrb[0].mxu0
        %v4503 = vpop.f32.mrb[0].mxu0
        %v4504 = vadd.f32 0.0, %v4503
        %v4505 = vpop.f32.mrb[0].mxu0
        %4506 = vmatprep.mubr.bf16.mxu0 %v4169
        %4507 = vmatmul.mubr.bf16.gmra.mrb[0].mxu0 %v4168
        %v4508 = vpop.f32.mrb[0].mxu0
        %v4509 = vadd.f32 0.0, %v4508
        %v4510 = vpop.f32.mrb[0].mxu0
        %v4511 = vpop.f32.mrb[0].mxu0
        %v4512 = vadd.f32 0.0, %v4511
        %v4513 = vpop.f32.mrb[0].mxu0
        %4514 = vmatprep.mubr.bf16.mxu0 %v4172
        %4515 = vmatmul.mubr.bf16.gmra.mrb[0].mxu0 %v4171
        %v4516 = vpop.f32.mrb[0].mxu0
        %v4517 = vadd.f32 0.0, %v4516
        %v4518 = vpop.f32.mrb[0].mxu0
        %v4519 = vpop.f32.mrb[0].mxu0
        %v4520 = vadd.f32 0.0, %v4519
        %v4521 = vpop.f32.mrb[0].mxu0
        %4522 = vmatprep.mubr.bf16.mxu0 %v4175
        %4523 = vmatmul.mubr.bf16.gmra.mrb[0].mxu0 %v4174
        %v4524 = vpop.f32.mrb[0].mxu0
        %v4525 = vadd.f32 0.0, %v4524
        %v4526 = vpop.f32.mrb[0].mxu0
        %v4527 = vpop.f32.mrb[0].mxu0
        %v4528 = vadd.f32 0.0, %v4527
        %v4529 = vpop.f32.mrb[0].mxu0
        %4530 = vdwg.mxu0
        %4531 = vmatprep.subr.bf16.mxu0 0
        %4532 = vmatpush1.bf16.msra.mxu0 %v4338
        %4533 = vmatprep.subr.bf16.mxu0 0
        %4534 = vmatpush1.bf16.msra.mxu0 %v4339
        %4535 = vmatprep.subr.bf16.mxu0 0
        %4536 = vmatpush1.bf16.msra.mxu0 %v4340
        %4537 = vmatprep.subr.bf16.mxu0 0
        %4538 = vmatpush1.bf16.msra.mxu0 %v4341
        %4539 = vmatprep.subr.bf16.mxu0 0
        %4540 = vmatpush1.bf16.msra.mxu0 %v4342
        %4541 = vmatprep.subr.bf16.mxu0 0
        %4542 = vmatpush1.bf16.msra.mxu0 %v4343
        %4543 = vmatprep.subr.bf16.mxu0 0
        %4544 = vmatpush1.bf16.msra.mxu0 %v4344
        %4545 = vmatprep.subr.bf16.mxu0 0
        %4546 = vmatpush1.bf16.msra.mxu0 %v4345
        %4547 = vmatprep.subr.bf16.mxu0 0
        %4548 = vmatpush1.bf16.msra.mxu0 0
        %4549 = vmatprep.subr.bf16.mxu0 0
        %4550 = vmatpush1.bf16.msra.mxu0 0
        %4551 = vmatprep.subr.bf16.mxu0 0
        %4552 = vmatpush1.bf16.msra.mxu0 0
        %4553 = vmatprep.subr.bf16.mxu0 0
        %4554 = vmatpush1.bf16.msra.mxu0 0
        %4555 = vmatprep.subr.bf16.mxu0 0
        %4556 = vmatpush1.bf16.msra.mxu0 0
        %4557 = vmatprep.subr.bf16.mxu0 0
        %4558 = vmatpush1.bf16.msra.mxu0 0
        %4559 = vmatprep.subr.bf16.mxu0 0
        %4560 = vmatpush1.bf16.msra.mxu0 0
        %4561 = vmatprep.subr.bf16.mxu0 0
        %4562 = vmatpush1.bf16.msra.mxu0 0
        %4563 = vmatprep.mubr.bf16.mxu0 0
        %4564 = vmatmul.mubr.bf16.gmra.mrb[0].mxu0 %v4131
        %v4565 = vpop.f32.mrb[0].mxu0
        %v4566 = vadd.f32 %v4405, %v4565
        %v4567 = vpop.f32.mrb[0].mxu0
        %v4568 = vpop.f32.mrb[0].mxu0
        %v4569 = vadd.f32 %v4408, %v4568
        %v4570 = vpop.f32.mrb[0].mxu0
        %4571 = vmatprep.mubr.bf16.mxu0 0
        %4572 = vmatmul.mubr.bf16.gmra.mrb[0].mxu0 %v4134
        %v4573 = vpop.f32.mrb[0].mxu0
        %v4574 = vadd.f32 %v4413, %v4573
        %v4575 = vpop.f32.mrb[0].mxu0
        %v4576 = vpop.f32.mrb[0].mxu0
        %v4577 = vadd.f32 %v4416, %v4576
        %v4578 = vpop.f32.mrb[0].mxu0
        %4579 = vmatprep.mubr.bf16.mxu0 0
        %4580 = vmatmul.mubr.bf16.gmra.mrb[0].mxu0 %v4137
        %v4581 = vpop.f32.mrb[0].mxu0
        %v4582 = vadd.f32 %v4421, %v4581
        %v4583 = vpop.f32.mrb[0].mxu0
        %v4584 = vpop.f32.mrb[0].mxu0
        %v4585 = vadd.f32 %v4424, %v4584
        %v4586 = vpop.f32.mrb[0].mxu0
        %4587 = vmatprep.mubr.bf16.mxu0 0
        %4588 = vmatmul.mubr.bf16.gmra.mrb[0].mxu0 %v4140
        %v4589 = vpop.f32.mrb[0].mxu0
        %v4590 = vadd.f32 %v4429, %v4589
        %v4591 = vpop.f32.mrb[0].mxu0
        %v4592 = vpop.f32.mrb[0].mxu0
        %v4593 = vadd.f32 %v4432, %v4592
        %v4594 = vpop.f32.mrb[0].mxu0
        %4595 = vmatprep.mubr.bf16.mxu0 0
        %4596 = vmatmul.mubr.bf16.gmra.mrb[0].mxu0 %v4143
        %v4597 = vpop.f32.mrb[0].mxu0
        %v4598 = vadd.f32 %v4437, %v4597
        %v4599 = vpop.f32.mrb[0].mxu0
        %v4600 = vpop.f32.mrb[0].mxu0
        %v4601 = vadd.f32 %v4440, %v4600
        %v4602 = vpop.f32.mrb[0].mxu0
        %4603 = vmatprep.mubr.bf16.mxu0 0
        %4604 = vmatmul.mubr.bf16.gmra.mrb[0].mxu0 %v4146
        %v4605 = vpop.f32.mrb[0].mxu0
        %v4606 = vadd.f32 %v4445, %v4605
        %v4607 = vpop.f32.mrb[0].mxu0
        %v4608 = vpop.f32.mrb[0].mxu0
        %v4609 = vadd.f32 %v4448, %v4608
        %v4610 = vpop.f32.mrb[0].mxu0
        %4611 = vmatprep.mubr.bf16.mxu0 0
        %4612 = vmatmul.mubr.bf16.gmra.mrb[0].mxu0 %v4149
        %v4613 = vpop.f32.mrb[0].mxu0
        %v4614 = vadd.f32 %v4453, %v4613
        %v4615 = vpop.f32.mrb[0].mxu0
        %v4616 = vpop.f32.mrb[0].mxu0
        %v4617 = vadd.f32 %v4456, %v4616
        %v4618 = vpop.f32.mrb[0].mxu0
        %4619 = vmatprep.mubr.bf16.mxu0 0
        %4620 = vmatmul.mubr.bf16.gmra.mrb[0].mxu0 %v4152
        %v4621 = vpop.f32.mrb[0].mxu0
        %v4622 = vadd.f32 %v4461, %v4621
        %v4623 = vpop.f32.mrb[0].mxu0
        %v4624 = vpop.f32.mrb[0].mxu0
        %v4625 = vadd.f32 %v4464, %v4624
        %v4626 = vpop.f32.mrb[0].mxu0
        %4627 = vmatprep.mubr.bf16.mxu0 0
        %4628 = vmatmul.mubr.bf16.gmra.mrb[0].mxu0 %v4155
        %v4629 = vpop.f32.mrb[0].mxu0
        %v4630 = vadd.f32 %v4469, %v4629
        %v4631 = vpop.f32.mrb[0].mxu0
        %v4632 = vpop.f32.mrb[0].mxu0
        %v4633 = vadd.f32 %v4472, %v4632
        %v4634 = vpop.f32.mrb[0].mxu0
        %4635 = vmatprep.mubr.bf16.mxu0 0
        %4636 = vmatmul.mubr.bf16.gmra.mrb[0].mxu0 %v4158
        %v4637 = vpop.f32.mrb[0].mxu0
        %v4638 = vadd.f32 %v4477, %v4637
        %v4639 = vpop.f32.mrb[0].mxu0
        %v4640 = vpop.f32.mrb[0].mxu0
        %v4641 = vadd.f32 %v4480, %v4640
        %v4642 = vpop.f32.mrb[0].mxu0
        %4643 = vmatprep.mubr.bf16.mxu0 0
        %4644 = vmatmul.mubr.bf16.gmra.mrb[0].mxu0 %v4161
        %v4645 = vpop.f32.mrb[0].mxu0
        %v4646 = vadd.f32 %v4485, %v4645
        %v4647 = vpop.f32.mrb[0].mxu0
        %v4648 = vpop.f32.mrb[0].mxu0
        %v4649 = vadd.f32 %v4488, %v4648
        %v4650 = vpop.f32.mrb[0].mxu0
        %4651 = vmatprep.mubr.bf16.mxu0 0
        %4652 = vmatmul.mubr.bf16.gmra.mrb[0].mxu0 %v4164
        %v4653 = vpop.f32.mrb[0].mxu0
        %v4654 = vadd.f32 %v4493, %v4653
        %v4655 = vpop.f32.mrb[0].mxu0
        %v4656 = vpop.f32.mrb[0].mxu0
        %v4657 = vadd.f32 %v4496, %v4656
        %v4658 = vpop.f32.mrb[0].mxu0
        %4659 = vmatprep.mubr.bf16.mxu0 0
        %4660 = vmatmul.mubr.bf16.gmra.mrb[0].mxu0 %v4167
        %v4661 = vpop.f32.mrb[0].mxu0
        %v4662 = vadd.f32 %v4501, %v4661
        %v4663 = vpop.f32.mrb[0].mxu0
        %v4664 = vpop.f32.mrb[0].mxu0
        %v4665 = vadd.f32 %v4504, %v4664
        %v4666 = vpop.f32.mrb[0].mxu0
        %4667 = vmatprep.mubr.bf16.mxu0 0
        %4668 = vmatmul.mubr.bf16.gmra.mrb[0].mxu0 %v4170
        %v4669 = vpop.f32.mrb[0].mxu0
        %v4670 = vadd.f32 %v4509, %v4669
        %v4671 = vpop.f32.mrb[0].mxu0
        %v4672 = vpop.f32.mrb[0].mxu0
        %v4673 = vadd.f32 %v4512, %v4672
        %v4674 = vpop.f32.mrb[0].mxu0
        %4675 = vmatprep.mubr.bf16.mxu0 0
        %4676 = vmatmul.mubr.bf16.gmra.mrb[0].mxu0 %v4173
        %v4677 = vpop.f32.mrb[0].mxu0
        %v4678 = vadd.f32 %v4517, %v4677
        %v4679 = vpop.f32.mrb[0].mxu0
        %v4680 = vpop.f32.mrb[0].mxu0
        %v4681 = vadd.f32 %v4520, %v4680
        %v4682 = vpop.f32.mrb[0].mxu0
        %4683 = vmatprep.mubr.bf16.mxu0 0
        %4684 = vmatmul.mubr.bf16.gmra.mrb[0].mxu0 %v4176
        %v4685 = vpop.f32.mrb[0].mxu0
        %v4686 = vadd.f32 %v4525, %v4685
        %v4687 = vpop.f32.mrb[0].mxu0
        %v4688 = vpop.f32.mrb[0].mxu0
        %v4689 = vadd.f32 %v4528, %v4688
        %v4690 = vpop.f32.mrb[0].mxu0
        %4691 = vdwg.mxu0
        %v4692 = vadd.f32 %v4003, %v4566
        %v4693 = vadd.f32 %v4006, %v4569
        %v4694 = vadd.f32 %v4011, %v4574
        %v4695 = vadd.f32 %v4014, %v4577
        %v4696 = vadd.f32 %v4019, %v4582
        %v4697 = vadd.f32 %v4022, %v4585
        %v4698 = vadd.f32 %v4027, %v4590
        %v4699 = vadd.f32 %v4030, %v4593
        %v4700 = vadd.f32 %v4035, %v4598
        %v4701 = vadd.f32 %v4038, %v4601
        %v4702 = vadd.f32 %v4043, %v4606
        %v4703 = vadd.f32 %v4046, %v4609
        %v4704 = vadd.f32 %v4051, %v4614
        %v4705 = vadd.f32 %v4054, %v4617
        %v4706 = vadd.f32 %v4059, %v4622
        %v4707 = vadd.f32 %v4062, %v4625
        %v4708 = vadd.f32 %v4067, %v4630
        %v4709 = vadd.f32 %v4070, %v4633
        %v4710 = vadd.f32 %v4075, %v4638
        %v4711 = vadd.f32 %v4078, %v4641
        %v4712 = vadd.f32 %v4083, %v4646
        %v4713 = vadd.f32 %v4086, %v4649
        %v4714 = vadd.f32 %v4091, %v4654
        %v4715 = vadd.f32 %v4094, %v4657
        %v4716 = vadd.f32 %v4099, %v4662
        %v4717 = vadd.f32 %v4102, %v4665
        %v4718 = vadd.f32 %v4107, %v4670
        %v4719 = vadd.f32 %v4110, %v4673
        %v4720 = vadd.f32 %v4115, %v4678
        %v4721 = vadd.f32 %v4118, %v4681
        %v4722 = vadd.f32 %v4123, %v4686
        %v4723 = vadd.f32 %v4126, %v4689
        %v4724 = vld [vmem:[%s3 + $0x2] sm:$0x1]
        %v4725 = vlaneseq
        %v4726 = vshrl.u32 %v4725, 7
        %v4727 = vsub.s32 0, %v4726
        %v4728 = vrot.slane %v4724, %v4727
        %v4729 = vmul.f32 %v4692, %v4728
        %v4730 = vmul.f32 %v4693, %v4728
        %v4731 = vmul.f32 %v4694, %v4728
        %v4732 = vmul.f32 %v4695, %v4728
        %v4733 = vmul.f32 %v4696, %v4728
        %v4734 = vmul.f32 %v4697, %v4728
        %v4735 = vmul.f32 %v4698, %v4728
        %v4736 = vmul.f32 %v4699, %v4728
        %v4737 = vmul.f32 %v4700, %v4728
        %v4738 = vmul.f32 %v4701, %v4728
        %v4739 = vmul.f32 %v4702, %v4728
        %v4740 = vmul.f32 %v4703, %v4728
        %v4741 = vmul.f32 %v4704, %v4728
        %v4742 = vmul.f32 %v4705, %v4728
        %v4743 = vmul.f32 %v4706, %v4728
        %v4744 = vmul.f32 %v4707, %v4728
        %v4745 = vmul.f32 %v4708, %v4728
        %v4746 = vmul.f32 %v4709, %v4728
        %v4747 = vmul.f32 %v4710, %v4728
        %v4748 = vmul.f32 %v4711, %v4728
        %v4749 = vmul.f32 %v4712, %v4728
        %v4750 = vmul.f32 %v4713, %v4728
        %v4751 = vmul.f32 %v4714, %v4728
        %v4752 = vmul.f32 %v4715, %v4728
        %v4753 = vmul.f32 %v4716, %v4728
        %v4754 = vmul.f32 %v4717, %v4728
        %v4755 = vmul.f32 %v4718, %v4728
        %v4756 = vmul.f32 %v4719, %v4728
        %v4757 = vmul.f32 %v4720, %v4728
        %v4758 = vmul.f32 %v4721, %v4728
        %v4759 = vmul.f32 %v4722, %v4728
        %v4760 = vmul.f32 %v4723, %v4728
        %v4761 = vld [vmem:[%s3 + $0x3] sm:$0x1]
        %v4762 = vlaneseq
        %v4763 = vshrl.u32 %v4762, 7
        %v4764 = vsub.s32 0, %v4763
        %v4765 = vrot.slane %v4761, %v4764
        %v4766 = vadd.f32 %v4729, %v4765
        %v4767 = vadd.f32 %v4730, %v4765
        %v4768 = vadd.f32 %v4731, %v4765
        %v4769 = vadd.f32 %v4732, %v4765
        %v4770 = vadd.f32 %v4733, %v4765
        %v4771 = vadd.f32 %v4734, %v4765
        %v4772 = vadd.f32 %v4735, %v4765
        %v4773 = vadd.f32 %v4736, %v4765
        %v4774 = vadd.f32 %v4737, %v4765
        %v4775 = vadd.f32 %v4738, %v4765
        %v4776 = vadd.f32 %v4739, %v4765
        %v4777 = vadd.f32 %v4740, %v4765
        %v4778 = vadd.f32 %v4741, %v4765
        %v4779 = vadd.f32 %v4742, %v4765
        %v4780 = vadd.f32 %v4743, %v4765
        %v4781 = vadd.f32 %v4744, %v4765
        %v4782 = vadd.f32 %v4745, %v4765
        %v4783 = vadd.f32 %v4746, %v4765
        %v4784 = vadd.f32 %v4747, %v4765
        %v4785 = vadd.f32 %v4748, %v4765
        %v4786 = vadd.f32 %v4749, %v4765
        %v4787 = vadd.f32 %v4750, %v4765
        %v4788 = vadd.f32 %v4751, %v4765
        %v4789 = vadd.f32 %v4752, %v4765
        %v4790 = vadd.f32 %v4753, %v4765
        %v4791 = vadd.f32 %v4754, %v4765
        %v4792 = vadd.f32 %v4755, %v4765
        %v4793 = vadd.f32 %v4756, %v4765
        %v4794 = vadd.f32 %v4757, %v4765
        %v4795 = vadd.f32 %v4758, %v4765
        %v4796 = vadd.f32 %v4759, %v4765
        %v4797 = vadd.f32 %v4760, %v4765
        %v4798 = vunpack.c.l.bf16 %v253
        %v4799 = vunpack.c.l.bf16 %v254
        %v4800 = vunpack.c.l.bf16 %v255
        %v4801 = vunpack.c.l.bf16 %v256
        %v4802 = vunpack.c.l.bf16 %v257
        %v4803 = vunpack.c.l.bf16 %v258
        %v4804 = vunpack.c.l.bf16 %v259
        %v4805 = vunpack.c.l.bf16 %v260
        %v4806 = vunpack.c.l.bf16 %v261
        %v4807 = vunpack.c.l.bf16 %v262
        %v4808 = vunpack.c.l.bf16 %v263
        %v4809 = vunpack.c.l.bf16 %v264
        %v4810 = vunpack.c.l.bf16 %v265
        %v4811 = vunpack.c.l.bf16 %v266
        %v4812 = vunpack.c.l.bf16 %v267
        %v4813 = vunpack.c.l.bf16 %v268
        %v4814 = vunpack.c.l.bf16 %v269
        %v4815 = vunpack.c.l.bf16 %v270
        %v4816 = vunpack.c.l.bf16 %v271
        %v4817 = vunpack.c.l.bf16 %v272
        %v4818 = vunpack.c.l.bf16 %v273
        %v4819 = vunpack.c.l.bf16 %v274
        %v4820 = vunpack.c.l.bf16 %v275
        %v4821 = vunpack.c.l.bf16 %v276
        %v4822 = vunpack.c.l.bf16 %v277
        %v4823 = vunpack.c.l.bf16 %v278
        %v4824 = vunpack.c.l.bf16 %v279
        %v4825 = vunpack.c.l.bf16 %v280
        %v4826 = vunpack.c.l.bf16 %v281
        %v4827 = vunpack.c.l.bf16 %v282
        %v4828 = vunpack.c.l.bf16 %v283
        %v4829 = vunpack.c.l.bf16 %v284
        %v4830 = vadd.f32 %v4766, %v4798
        %v4831 = vadd.f32 %v4767, %v4799
        %v4832 = vadd.f32 %v4768, %v4800
        %v4833 = vadd.f32 %v4769, %v4801
        %v4834 = vadd.f32 %v4770, %v4802
        %v4835 = vadd.f32 %v4771, %v4803
        %v4836 = vadd.f32 %v4772, %v4804
        %v4837 = vadd.f32 %v4773, %v4805
        %v4838 = vadd.f32 %v4774, %v4806
        %v4839 = vadd.f32 %v4775, %v4807
        %v4840 = vadd.f32 %v4776, %v4808
        %v4841 = vadd.f32 %v4777, %v4809
        %v4842 = vadd.f32 %v4778, %v4810
        %v4843 = vadd.f32 %v4779, %v4811
        %v4844 = vadd.f32 %v4780, %v4812
        %v4845 = vadd.f32 %v4781, %v4813
        %v4846 = vadd.f32 %v4782, %v4814
        %v4847 = vadd.f32 %v4783, %v4815
        %v4848 = vadd.f32 %v4784, %v4816
        %v4849 = vadd.f32 %v4785, %v4817
        %v4850 = vadd.f32 %v4786, %v4818
        %v4851 = vadd.f32 %v4787, %v4819
        %v4852 = vadd.f32 %v4788, %v4820
        %v4853 = vadd.f32 %v4789, %v4821
        %v4854 = vadd.f32 %v4790, %v4822
        %v4855 = vadd.f32 %v4791, %v4823
        %v4856 = vadd.f32 %v4792, %v4824
        %v4857 = vadd.f32 %v4793, %v4825
        %v4858 = vadd.f32 %v4794, %v4826
        %v4859 = vadd.f32 %v4795, %v4827
        %v4860 = vadd.f32 %v4796, %v4828
        %v4861 = vadd.f32 %v4797, %v4829
        %v4862 = vmax.f32 %v4830, 0.0
        %v4863 = vmax.f32 %v4831, 0.0
        %v4864 = vmax.f32 %v4832, 0.0
        %v4865 = vmax.f32 %v4833, 0.0
        %v4866 = vmax.f32 %v4834, 0.0
        %v4867 = vmax.f32 %v4835, 0.0
        %v4868 = vmax.f32 %v4836, 0.0
        %v4869 = vmax.f32 %v4837, 0.0
        %v4870 = vmax.f32 %v4838, 0.0
        %v4871 = vmax.f32 %v4839, 0.0
        %v4872 = vmax.f32 %v4840, 0.0
        %v4873 = vmax.f32 %v4841, 0.0
        %v4874 = vmax.f32 %v4842, 0.0
        %v4875 = vmax.f32 %v4843, 0.0
        %v4876 = vmax.f32 %v4844, 0.0
        %v4877 = vmax.f32 %v4845, 0.0
        %v4878 = vmax.f32 %v4846, 0.0
        %v4879 = vmax.f32 %v4847, 0.0
        %v4880 = vmax.f32 %v4848, 0.0
        %v4881 = vmax.f32 %v4849, 0.0
        %v4882 = vmax.f32 %v4850, 0.0
        %v4883 = vmax.f32 %v4851, 0.0
        %v4884 = vmax.f32 %v4852, 0.0
        %v4885 = vmax.f32 %v4853, 0.0
        %v4886 = vmax.f32 %v4854, 0.0
        %v4887 = vmax.f32 %v4855, 0.0
        %v4888 = vmax.f32 %v4856, 0.0
        %v4889 = vmax.f32 %v4857, 0.0
        %v4890 = vmax.f32 %v4858, 0.0
        %v4891 = vmax.f32 %v4859, 0.0
        %v4892 = vmax.f32 %v4860, 0.0
        %v4893 = vmax.f32 %v4861, 0.0
        %v4894 = vpack.c.bf16 %v4863, %v4862
        %v4895 = vpack.c.bf16 %v4865, %v4864
        %v4896 = vpack.c.bf16 %v4867, %v4866
        %v4897 = vpack.c.bf16 %v4869, %v4868
        %v4898 = vpack.c.bf16 %v4871, %v4870
        %v4899 = vpack.c.bf16 %v4873, %v4872
        %v4900 = vpack.c.bf16 %v4875, %v4874
        %v4901 = vpack.c.bf16 %v4877, %v4876
        %v4902 = vpack.c.bf16 %v4879, %v4878
        %v4903 = vpack.c.bf16 %v4881, %v4880
        %v4904 = vpack.c.bf16 %v4883, %v4882
        %v4905 = vpack.c.bf16 %v4885, %v4884
        %v4906 = vpack.c.bf16 %v4887, %v4886
        %v4907 = vpack.c.bf16 %v4889, %v4888
        %v4908 = vpack.c.bf16 %v4891, %v4890
        %v4909 = vpack.c.bf16 %v4893, %v4892
        %v4926 = vunpack.c.l.b16 %v4894
        %v4927 = vunpack.c.h.b16 %v4894
        %v4928 = vunpack.c.l.b16 %v4895
        %v4929 = vunpack.c.h.b16 %v4895
        %v4930 = vunpack.c.l.b16 %v4896
        %v4931 = vunpack.c.h.b16 %v4896
        %v4932 = vunpack.c.l.b16 %v4897
        %v4933 = vunpack.c.h.b16 %v4897
        %v4934 = vunpack.c.l.b16 %v4898
        %v4935 = vunpack.c.h.b16 %v4898
        %v4936 = vunpack.c.l.b16 %v4899
        %v4937 = vunpack.c.h.b16 %v4899
        %v4938 = vunpack.c.l.b16 %v4900
        %v4939 = vunpack.c.h.b16 %v4900
        %v4940 = vunpack.c.l.b16 %v4901
        %v4941 = vunpack.c.h.b16 %v4901
        %v4942 = vunpack.c.l.b16 %v4902
        %v4943 = vunpack.c.h.b16 %v4902
        %v4944 = vunpack.c.l.b16 %v4903
        %v4945 = vunpack.c.h.b16 %v4903
        %v4946 = vunpack.c.l.b16 %v4904
        %v4947 = vunpack.c.h.b16 %v4904
        %v4948 = vunpack.c.l.b16 %v4905
        %v4949 = vunpack.c.h.b16 %v4905
        %v4950 = vunpack.c.l.b16 %v4906
        %v4951 = vunpack.c.h.b16 %v4906
        %v4952 = vunpack.c.l.b16 %v4907
        %v4953 = vunpack.c.h.b16 %v4907
        %v4954 = vunpack.c.l.b16 %v4908
        %v4955 = vunpack.c.h.b16 %v4908
        %v4956 = vunpack.c.l.b16 %v4909
        %v4957 = vunpack.c.h.b16 %v4909
        %v4958 = vpack.c.b16 %v4926, %v4926
        %v4959 = vpack.c.b16 %v4927, %v4927
        %v4960 = vpack.c.b16 %v4928, %v4928
        %v4961 = vpack.c.b16 %v4929, %v4929
        %v4962 = vpack.c.b16 %v4930, %v4930
        %v4963 = vpack.c.b16 %v4931, %v4931
        %v4964 = vpack.c.b16 %v4932, %v4932
        %v4965 = vpack.c.b16 %v4933, %v4933
        %v4966 = vpack.c.b16 %v4934, %v4934
        %v4967 = vpack.c.b16 %v4935, %v4935
        %v4968 = vpack.c.b16 %v4936, %v4936
        %v4969 = vpack.c.b16 %v4937, %v4937
        %v4970 = vpack.c.b16 %v4938, %v4938
        %v4971 = vpack.c.b16 %v4939, %v4939
        %v4972 = vpack.c.b16 %v4940, %v4940
        %v4973 = vpack.c.b16 %v4941, %v4941
        %v4974 = vpack.c.b16 %v4942, %v4942
        %v4975 = vpack.c.b16 %v4943, %v4943
        %v4976 = vpack.c.b16 %v4944, %v4944
        %v4977 = vpack.c.b16 %v4945, %v4945
        %v4978 = vpack.c.b16 %v4946, %v4946
        %v4979 = vpack.c.b16 %v4947, %v4947
        %v4980 = vpack.c.b16 %v4948, %v4948
        %v4981 = vpack.c.b16 %v4949, %v4949
        %v4982 = vpack.c.b16 %v4950, %v4950
        %v4983 = vpack.c.b16 %v4951, %v4951
        %v4984 = vpack.c.b16 %v4952, %v4952
        %v4985 = vpack.c.b16 %v4953, %v4953
        %v4986 = vpack.c.b16 %v4954, %v4954
        %v4987 = vpack.c.b16 %v4955, %v4955
        %v4988 = vpack.c.b16 %v4956, %v4956
        %v4989 = vpack.c.b16 %v4957, %v4957
        %5022 = vst [vmem:[%s244] sm:$0xf] %v4958
        %5023 = vst [vmem:[%s244 + $0x4] sm:$0xf] %v4959
        %5024 = vst [vmem:[%s244 + $0x8] sm:$0xf] %v4960
        %5025 = vst [vmem:[%s244 + $0xc] sm:$0xf] %v4961
        %5026 = vst [vmem:[%s244 + $0x10] sm:$0xf] %v4962
        %5027 = vst [vmem:[%s244 + $0x14] sm:$0xf] %v4963
        %5028 = vst [vmem:[%s244 + $0x18] sm:$0xf] %v4964
        %5029 = vst [vmem:[%s244 + $0x1c] sm:$0xf] %v4965
        %5030 = vst [vmem:[%s244 + $0x20] sm:$0xf] %v4966
        %5031 = vst [vmem:[%s244 + $0x24] sm:$0xf] %v4967
        %5032 = vst [vmem:[%s244 + $0x28] sm:$0xf] %v4968
        %5033 = vst [vmem:[%s244 + $0x2c] sm:$0xf] %v4969
        %5034 = vst [vmem:[%s244 + $0x30] sm:$0xf] %v4970
        %5035 = vst [vmem:[%s244 + $0x34] sm:$0xf] %v4971
        %5036 = vst [vmem:[%s244 + $0x38] sm:$0xf] %v4972
        %5037 = vst [vmem:[%s244 + $0x3c] sm:$0xf] %v4973
        %5038 = vst [vmem:[%s244 + $0x40] sm:$0xf] %v4974
        %5039 = vst [vmem:[%s244 + $0x44] sm:$0xf] %v4975
        %5040 = vst [vmem:[%s244 + $0x48] sm:$0xf] %v4976
        %5041 = vst [vmem:[%s244 + $0x4c] sm:$0xf] %v4977
        %5042 = vst [vmem:[%s244 + $0x50] sm:$0xf] %v4978
        %5043 = vst [vmem:[%s244 + $0x54] sm:$0xf] %v4979
        %5044 = vst [vmem:[%s244 + $0x58] sm:$0xf] %v4980
        %5045 = vst [vmem:[%s244 + $0x5c] sm:$0xf] %v4981
        %5046 = vst [vmem:[%s244 + $0x60] sm:$0xf] %v4982
        %5047 = vst [vmem:[%s244 + $0x64] sm:$0xf] %v4983
        %5048 = vst [vmem:[%s244 + $0x68] sm:$0xf] %v4984
        %5049 = vst [vmem:[%s244 + $0x6c] sm:$0xf] %v4985
        %5050 = vst [vmem:[%s244 + $0x70] sm:$0xf] %v4986
        %5051 = vst [vmem:[%s244 + $0x74] sm:$0xf] %v4987
        %5052 = vst [vmem:[%s244 + $0x78] sm:$0xf] %v4988
        %5053 = vst [vmem:[%s244 + $0x7c] sm:$0xf] %v4989
        %s5054 = sand.u32 %s119, 1
        %s5055 = scalar_lea.sflag [#allocation5], %s5054
        %s5056 = sand.u32 %s119, 1
        %s5057 = smul.addr %s5056, 128
        %s5058 = scalar_lea.vmem [#allocation9], %s5057
        // Predicated region
        $region49: #{tpu_custom_call.1} parent=35 // pred_check
          %p5059 = pneg %p129
        $region50: #{tpu_custom_call.1} parent=35 // pred_check_branch
          %5061 = sbr.rel (%p5059) target = $region52
        $region51: #{tpu_custom_call.1} parent=35 // pred_region
          %s5063 = ssub.s32 2048, 2048
          %5064 = vsyncadd %s5055, %s5063
          %s5065 = smul.addr %s22, 32
          %s5066 = smul.addr %s5065, 64
          %s5067 = scalar_lea.hbm %s4, %s5066
          %s5068 = sshll.u32 %s5058, 4
          %s5069 = int_to_ptr.vmem [resolvable:$true] %s5068
          %5074 = dma.vmem_to_hbm [thread:$0]  %s5069, 2048, %s5067, %s5055, 64, 64, 4
        $region52: #{tpu_custom_call.1} parent=35 // pred_fallthru
          _
      $region36: #{tpu_custom_call.1} parent=5 // pred_fallthru
        _
      %p5075 = scmp.le.s32.totalorder 2, %s17
      // Predicated region
      $region53: #{tpu_custom_call.1} parent=5 // pred_check
        %p5076 = pneg %p5075
      $region54: #{tpu_custom_call.1} parent=5 // pred_check_branch
        %5078 = sbr.rel (%p5076) target = $region56
      $region55: #{tpu_custom_call.1} parent=5 // pred_region
        %s5079 = ssub.s32 %s17, 2
        // Predicated region
        $region57: #{tpu_custom_call.1} parent=55 // pred_check
          %p5080 = pneg %p135
        $region58: #{tpu_custom_call.1} parent=55 // pred_check_branch
          %5082 = sbr.rel (%p5080) target = $region60
        $region59: #{tpu_custom_call.1} parent=55 // pred_region
          %s5083 = sand.u32 %s120, 1
          %s5084 = scalar_lea.sflag [#allocation5], %s5083
          %s5085 = sand.u32 %s120, 1
          %s5086 = smul.addr %s5085, 128
          %s5087 = scalar_lea.vmem [#allocation9], %s5086
          %5088 = dma.done %s5084, 2048
        $region60: #{tpu_custom_call.1} parent=55 // pred_fallthru
          _
      $region56: #{tpu_custom_call.1} parent=5 // pred_fallthru
        _
    $region6: #{tpu_custom_call.1} parent=1 // loop_footer
      %s21 = sadd.s32 1, %s17
    $region7: #{tpu_custom_call.1} parent=1 // loop_footer_branch
      %16 = sbr.rel target = $region3
    $region8: #{tpu_custom_call.1} parent=1 // loop_exit
      _
    %5089 = vsyncpa [#allocation4], 1
    %s5090 = scalar_lea.sflag [#allocation4], 1
    %5091 = vsyncpa %s5090, 1
    %5092 = vsyncpa [#allocation7], 1
    %5093 = vsyncpa [#allocation5], 1
    %s5094 = scalar_lea.sflag [#allocation5], 1
    %5095 = vsyncpa %s5094, 1

// kernel: tpu_custom_call.1
$region0: #{tpu_custom_call.1}
  #allocation0 [shape = 'u32[]', space=smem, size = 0x4, offset = 0x4, fixed_abs, tag = 'smem constant byte address 0x4 - core index']
  #allocation1 [shape = 'u32[144,128]{1,0:T(1,128)}', space=vmem, size = 0x12000, scoped, tag = 'internal scratch']
  #allocation2 [shape = 'bf16[18,16,384]{2,1,0:T(16,128)(2,1)}', space=vmem, size = 0x36000, scoped, tag = 'scratch operand']
  %s0 = inlined_call_operand.hbm [shape: bf16[2,16,16,128], index: 0, kind: input, shape index: {}]
  %s1 = inlined_call_operand.hbm [shape: bf16[3,384,128], index: 1, kind: input, shape index: {}]
  %s2 = inlined_call_operand.hbm [shape: bf16[3,384,128], index: 2, kind: input, shape index: {}]
  %s3 = inlined_call_operand.vmem [shape: f32[4,128], index: 3, kind: input, shape index: {}]
  %s4 = inlined_call_operand.hbm [shape: bf16[2,16,16,128], index: 4, kind: output, shape index: {}]
  %s5 = sld [smem:[#allocation0]]
  $region61: #{tpu_custom_call.1} parent=0
    _
  %s7 = ssub.s32 1, %s5
  %s8 = scalar_select 0, %s7, %s5
  $region1: #{tpu_custom_call.1} parent=0
    #allocation3 [shape = 'u8[131072]{0}', space=vmem, size = 0x20000, scoped, tag = 'input window, operand 0']
    #allocation4 [shape = 's32[2]{0}', space=sflag, size = 0x8, scoped, tag = 'scoped memory for tpu_custom_call.1']
    #allocation5 [shape = 's32[2]{0}', space=sflag, size = 0x8, scoped, tag = 'scoped memory for tpu_custom_call.1']
    #allocation6 [shape = 'u8[294912]{0}', space=vmem, size = 0x48000, scoped, tag = 'input window, operand 1, single buffered']
    #allocation7 [shape = 's32[1]{0}', space=sflag, size = 0x4, scoped, tag = 'scoped memory for tpu_custom_call.1']
    #allocation8 [shape = 'u8[294912]{0}', space=vmem, size = 0x48000, scoped, tag = 'input window, operand 2, single buffered']
    #allocation9 [shape = 'u8[131072]{0}', space=vmem, size = 0x20000, scoped, tag = 'output window, operand 0']
    %9 = vsyncpa [#allocation4], 0
    %s10 = scalar_lea.sflag [#allocation4], 1
    %11 = vsyncpa %s10, 0
    %12 = vsyncpa [#allocation7], 0
    %13 = vsyncpa [#allocation5], 0
    %s14 = scalar_lea.sflag [#allocation5], 1
    %15 = vsyncpa %s14, 0
    loop: start=0, step=1, limit=4
    $region2: #{tpu_custom_call.1} parent=1 // loop_pre_header
      _
    $region3: #{tpu_custom_call.1} parent=1 // loop_header
      %s17 = sphi 0, %s21
      %p18 = scmp.ge.s32.totalorder %s17, 4
      %s27 = sphi 0, %s29
      %s30 = sphi 0, %s27
      %s31 = sphi 0, %s30
      %s47 = sphi 0, %s31
      %s51 = sphi 0, %s51
      %s53 = sphi 0, %s51
      %s54 = sphi 0, %s53
      %s68 = sphi 0, %s54
      %s72 = sphi 0, %s72
      %s74 = sphi 0, %s72
      %s75 = sphi 0, %s74
      %s89 = sphi 0, %s75
      %s93 = sphi 0, %s93
      %s95 = sphi 0, %s93
      %s96 = sphi 0, %s95
      %s110 = sphi 0, %s96
      %s116 = sphi 0, %s118
      %s119 = sphi 0, %s116
      %s120 = sphi 0, %s119
      %s136 = sphi 0, %s120
    $region4: #{tpu_custom_call.1} parent=1 // loop_header_branch
      %20 = sbr.rel (%p18) target = $region8
    $region5: #{tpu_custom_call.1} parent=1 // loop_body
      %s22 = ssub.s32 %s17, 1
      %s23 = ssub.s32 %s17, 2
      %s24 = sadd.s32 %s17, 1
      %s25 = ssub.s32 %s17, %s24
      %p26 = scmp.eq.s32.totalorder %s25, 0
      %s28 = sadd.s32 %s27, 1
      %s29 = scalar_select %p26, %s27, %s28
      %p32 = pneg %p26
      %p33 = scmp.eq.s32.totalorder %s17, 1
      %p34 = por %p32, %p33
      %p35 = scmp.ne.s32.totalorder %s27, %s30
      %p36 = scmp.eq.s32.totalorder %s17, 0
      %p37 = por %p35, %p36
      %p38 = scmp.ne.s32.totalorder %s27, %s30
      %p39 = scmp.eq.s32.totalorder %s22, 1
      %p40 = por %p38, %p39
      %p41 = scmp.ne.s32.totalorder %s30, %s31
      %p42 = scmp.eq.s32.totalorder %s22, 0
      %p43 = por %p41, %p42
      %p44 = scmp.ne.s32.totalorder %s30, %s31
      %p45 = scmp.eq.s32.totalorder %s23, 1
      %p46 = por %p44, %p45
      %p48 = scmp.ne.s32.totalorder %s31, %s47
      %p49 = scmp.eq.s32.totalorder %s23, 0
      %p50 = por %p48, %p49
      %s52 = sadd.s32 %s51, 1
      %p55 = scmp.eq.s32.totalorder %s17, 1
      %p56 = scmp.ne.s32.totalorder %s51, %s53
      %p57 = scmp.eq.s32.totalorder %s17, 0
      %p58 = por %p56, %p57
      %p59 = scmp.ne.s32.totalorder %s51, %s53
      %p60 = scmp.eq.s32.totalorder %s22, 1
      %p61 = por %p59, %p60
      %p62 = scmp.ne.s32.totalorder %s53, %s54
      %p63 = scmp.eq.s32.totalorder %s22, 0
      %p64 = por %p62, %p63
      %p65 = scmp.ne.s32.totalorder %s53, %s54
      %p66 = scmp.eq.s32.totalorder %s23, 1
      %p67 = por %p65, %p66
      %p69 = scmp.ne.s32.totalorder %s54, %s68
      %p70 = scmp.eq.s32.totalorder %s23, 0
      %p71 = por %p69, %p70
      %s73 = sadd.s32 %s72, 1
      %p76 = scmp.eq.s32.totalorder %s17, 1
      %p77 = scmp.ne.s32.totalorder %s72, %s74
      %p78 = scmp.eq.s32.totalorder %s17, 0
      %p79 = por %p77, %p78
      %p80 = scmp.ne.s32.totalorder %s72, %s74
      %p81 = scmp.eq.s32.totalorder %s22, 1
      %p82 = por %p80, %p81
      %p83 = scmp.ne.s32.totalorder %s74, %s75
      %p84 = scmp.eq.s32.totalorder %s22, 0
      %p85 = por %p83, %p84
      %p86 = scmp.ne.s32.totalorder %s74, %s75
      %p87 = scmp.eq.s32.totalorder %s23, 1
      %p88 = por %p86, %p87
      %p90 = scmp.ne.s32.totalorder %s75, %s89
      %p91 = scmp.eq.s32.totalorder %s23, 0
      %p92 = por %p90, %p91
      %s94 = sadd.s32 %s93, 1
      %p97 = scmp.eq.s32.totalorder %s17, 1
      %p98 = scmp.ne.s32.totalorder %s93, %s95
      %p99 = scmp.eq.s32.totalorder %s17, 0
      %p100 = por %p98, %p99
      %p101 = scmp.ne.s32.totalorder %s93, %s95
      %p102 = scmp.eq.s32.totalorder %s22, 1
      %p103 = por %p101, %p102
      %p104 = scmp.ne.s32.totalorder %s95, %s96
      %p105 = scmp.eq.s32.totalorder %s22, 0
      %p106 = por %p104, %p105
      %p107 = scmp.ne.s32.totalorder %s95, %s96
      %p108 = scmp.eq.s32.totalorder %s23, 1
      %p109 = por %p107, %p108
      %p111 = scmp.ne.s32.totalorder %s96, %s110
      %p112 = scmp.eq.s32.totalorder %s23, 0
      %p113 = por %p111, %p112
      %s114 = ssub.s32 %s17, %s24
      %p115 = scmp.eq.s32.totalorder %s114, 0
      %s117 = sadd.s32 %s116, 1
      %s118 = scalar_select %p115, %s116, %s117
      %p121 = pneg %p115
      %p122 = scmp.eq.s32.totalorder %s17, 1
      %p123 = por %p121, %p122
      %p124 = scmp.ne.s32.totalorder %s116, %s119
      %p125 = scmp.eq.s32.totalorder %s17, 0
      %p126 = por %p124, %p125
      %p127 = scmp.ne.s32.totalorder %s116, %s119
      %p128 = scmp.eq.s32.totalorder %s22, 1
      %p129 = por %p127, %p128
      %p130 = scmp.ne.s32.totalorder %s119, %s120
      %p131 = scmp.eq.s32.totalorder %s22, 0
      %p132 = por %p130, %p131
      %p133 = scmp.ne.s32.totalorder %s119, %s120
      %p134 = scmp.eq.s32.totalorder %s23, 1
      %p135 = por %p133, %p134
      %p137 = scmp.ne.s32.totalorder %s120, %s136
      %p138 = scmp.eq.s32.totalorder %s23, 0
      %p139 = por %p137, %p138
      %p140 = scmp.le.s32.totalorder 1, %s17
      %p141 = scmp.lt.s32.totalorder %s17, 3
      %p142 = pnand %p140, %p141
      %p143 = pneg %p142
      // Predicated region
      $region9: #{tpu_custom_call.1} parent=5 // pred_check
        _
      $region10: #{tpu_custom_call.1} parent=5 // pred_check_branch
        %145 = sbr.rel (%p142) target = $region12
      $region11: #{tpu_custom_call.1} parent=5 // pred_region
        %s146 = ssub.s32 %s17, 1
        // Predicated region
        $region13: #{tpu_custom_call.1} parent=11 // pred_check
          %p147 = pneg %p64
        $region14: #{tpu_custom_call.1} parent=11 // pred_check_branch
          %149 = sbr.rel (%p147) target = $region16
        $region15: #{tpu_custom_call.1} parent=11 // pred_region
          %s151 = ssub.s32 9216, 9216
          %152 = vsyncadd [#allocation7], %s151
          %s153 = sshll.u32 [#allocation6], 4
          %s154 = int_to_ptr.vmem [resolvable:$true] %s153
          %159 = dma.hbm_to_vmem [thread:$0]  %s1, 9216, %s154, [#allocation7], 64, 64, 4
        $region16: #{tpu_custom_call.1} parent=11 // pred_fallthru
          _
        // Predicated region
        $region17: #{tpu_custom_call.1} parent=11 // pred_check
          %p160 = pneg %p85
        $region18: #{tpu_custom_call.1} parent=11 // pred_check_branch
          %162 = sbr.rel (%p160) target = $region20
        $region19: #{tpu_custom_call.1} parent=11 // pred_region
          %s164 = ssub.s32 9216, 9216
          %165 = vsyncadd [#allocation7], %s164
          %s166 = sshll.u32 [#allocation8], 4
          %s167 = int_to_ptr.vmem [resolvable:$true] %s166
          %172 = dma.hbm_to_vmem [thread:$0]  %s2, 9216, %s167, [#allocation7], 64, 64, 4
        $region20: #{tpu_custom_call.1} parent=11 // pred_fallthru
          _
        // Predicated region
        $region21: #{tpu_custom_call.1} parent=11 // pred_check
          %p173 = pneg %p106
        $region22: #{tpu_custom_call.1} parent=11 // pred_check_branch
          %175 = sbr.rel (%p173) target = $region24
        $region23: #{tpu_custom_call.1} parent=11 // pred_region
          _
        $region24: #{tpu_custom_call.1} parent=11 // pred_fallthru
          _
      $region12: #{tpu_custom_call.1} parent=5 // pred_fallthru
        _
      %p176 = scmp.lt.s32.totalorder %s17, 2
      // Predicated region
      $region25: #{tpu_custom_call.1} parent=5 // pred_check
        %p177 = pneg %p176
      $region26: #{tpu_custom_call.1} parent=5 // pred_check_branch
        %179 = sbr.rel (%p177) target = $region28
      $region27: #{tpu_custom_call.1} parent=5 // pred_region
        // Predicated region
        $region29: #{tpu_custom_call.1} parent=27 // pred_check
          %p180 = pneg %p37
        $region30: #{tpu_custom_call.1} parent=27 // pred_check_branch
          %182 = sbr.rel (%p180) target = $region32
        $region31: #{tpu_custom_call.1} parent=27 // pred_region
          %s183 = sand.u32 %s27, 1
          %s184 = scalar_lea.sflag [#allocation4], %s183
          %s185 = sand.u32 %s27, 1
          %s186 = smul.addr %s185, 128
          %s187 = scalar_lea.vmem [#allocation3], %s186
          %s189 = ssub.s32 2048, 2048
          %190 = vsyncadd %s184, %s189
          %s191 = smul.addr %s17, 32
          %s192 = smul.addr %s191, 64
          %s193 = scalar_lea.hbm %s0, %s192
          %s194 = sshll.u32 %s187, 4
          %s195 = int_to_ptr.vmem [resolvable:$true] %s194
          %200 = dma.hbm_to_vmem [thread:$0]  %s193, 2048, %s195, %s184, 64, 64, 4
        $region32: #{tpu_custom_call.1} parent=27 // pred_fallthru
          _
      $region28: #{tpu_custom_call.1} parent=5 // pred_fallthru
        _
      %p201 = scmp.le.s32.totalorder 1, %s17
      %p202 = scmp.lt.s32.totalorder %s17, 3
      %p203 = pnand %p201, %p202
      %p204 = pneg %p203
      // Predicated region
      $region33: #{tpu_custom_call.1} parent=5 // pred_check
        _
      $region34: #{tpu_custom_call.1} parent=5 // pred_check_branch
        %206 = sbr.rel (%p203) target = $region36
      $region35: #{tpu_custom_call.1} parent=5 // pred_region
        %s207 = ssub.s32 %s17, 1
        %s208 = sand.u32 %s30, 1
        %s209 = scalar_lea.sflag [#allocation4], %s208
        %s210 = sand.u32 %s30, 1
        %s211 = smul.addr %s210, 128
        %s212 = scalar_lea.vmem [#allocation3], %s211
        // Predicated region
        $region37: #{tpu_custom_call.1} parent=35 // pred_check
          %p213 = pneg %p43
        $region38: #{tpu_custom_call.1} parent=35 // pred_check_branch
          %215 = sbr.rel (%p213) target = $region40
        $region39: #{tpu_custom_call.1} parent=35 // pred_region
          %216 = dma.done %s209, 2048
        $region40: #{tpu_custom_call.1} parent=35 // pred_fallthru
          _
        // Predicated region
        $region41: #{tpu_custom_call.1} parent=35 // pred_check
          %p217 = pneg %p64
        $region42: #{tpu_custom_call.1} parent=35 // pred_check_branch
          %219 = sbr.rel (%p217) target = $region44
        $region43: #{tpu_custom_call.1} parent=35 // pred_region
          %220 = dma.done [#allocation7], 9216
        $region44: #{tpu_custom_call.1} parent=35 // pred_fallthru
          _
        // Predicated region
        $region45: #{tpu_custom_call.1} parent=35 // pred_check
          %p221 = pneg %p85
        $region46: #{tpu_custom_call.1} parent=35 // pred_check_branch
          %223 = sbr.rel (%p221) target = $region48
        $region47: #{tpu_custom_call.1} parent=35 // pred_region
          %224 = dma.done [#allocation7], 9216
        $region48: #{tpu_custom_call.1} parent=35 // pred_fallthru
          _
        %s225 = sand.u32 %s30, 1
        %s226 = scalar_lea.sflag [#allocation4], %s225
        %s227 = sand.u32 %s30, 1
        %s228 = smul.addr %s227, 128
        %s229 = scalar_lea.vmem [#allocation3], %s228
        %p230 = pneg %p43
        %p231 = pneg %p40
        %p232 = pneg %p64
        %p233 = pneg %p61
        %p234 = pneg %p85
        %p235 = pneg %p82
        %p236 = pneg %p106
        %p237 = pneg %p103
        %p238 = pneg %p132
        %p239 = pneg %p129
        %s240 = sand.u32 %s119, 1
        %s241 = scalar_lea.sflag [#allocation5], %s240
        %s242 = sand.u32 %s119, 1
        %s243 = smul.addr %s242, 128
        %s244 = scalar_lea.vmem [#allocation9], %s243
        %246 = vst [vmem:[#allocation2] sm:$0xff] 0
        %247 = vst [vmem:[#allocation2 + $0x8] sm:$0xff] 0
        %248 = vst [vmem:[#allocation2 + $0x10] sm:$0xff] 0
        %s249 = scalar_lea.vmem [#allocation2], 408
        %250 = vst [vmem:[%s249] sm:$0xff] 0
        %251 = vst [vmem:[%s249 + $0x8] sm:$0xff] 0
        %252 = vst [vmem:[%s249 + $0x10] sm:$0xff] 0
        %v253 = vld [vmem:[%s212] sm:$0xf]
        %v254 = vld [vmem:[%s212 + $0x4] sm:$0xf]
        %v255 = vld [vmem:[%s212 + $0x8] sm:$0xf]
        %v256 = vld [vmem:[%s212 + $0xc] sm:$0xf]
        %v257 = vld [vmem:[%s212 + $0x10] sm:$0xf]
        %v258 = vld [vmem:[%s212 + $0x14] sm:$0xf]
        %v259 = vld [vmem:[%s212 + $0x18] sm:$0xf]
        %v260 = vld [vmem:[%s212 + $0x1c] sm:$0xf]
        %v261 = vld [vmem:[%s212 + $0x20] sm:$0xf]
        %v262 = vld [vmem:[%s212 + $0x24] sm:$0xf]
        %v263 = vld [vmem:[%s212 + $0x28] sm:$0xf]
        %v264 = vld [vmem:[%s212 + $0x2c] sm:$0xf]
        %v265 = vld [vmem:[%s212 + $0x30] sm:$0xf]
        %v266 = vld [vmem:[%s212 + $0x34] sm:$0xf]
        %v267 = vld [vmem:[%s212 + $0x38] sm:$0xf]
        %v268 = vld [vmem:[%s212 + $0x3c] sm:$0xf]
        %v269 = vld [vmem:[%s212 + $0x40] sm:$0xf]
        %v270 = vld [vmem:[%s212 + $0x44] sm:$0xf]
        %v271 = vld [vmem:[%s212 + $0x48] sm:$0xf]
        %v272 = vld [vmem:[%s212 + $0x4c] sm:$0xf]
        %v273 = vld [vmem:[%s212 + $0x50] sm:$0xf]
        %v274 = vld [vmem:[%s212 + $0x54] sm:$0xf]
        %v275 = vld [vmem:[%s212 + $0x58] sm:$0xf]
        %v276 = vld [vmem:[%s212 + $0x5c] sm:$0xf]
        %v277 = vld [vmem:[%s212 + $0x60] sm:$0xf]
        %v278 = vld [vmem:[%s212 + $0x64] sm:$0xf]
        %v279 = vld [vmem:[%s212 + $0x68] sm:$0xf]
        %v280 = vld [vmem:[%s212 + $0x6c] sm:$0xf]
        %v281 = vld [vmem:[%s212 + $0x70] sm:$0xf]
        %v282 = vld [vmem:[%s212 + $0x74] sm:$0xf]
        %v283 = vld [vmem:[%s212 + $0x78] sm:$0xf]
        %v284 = vld [vmem:[%s212 + $0x7c] sm:$0xf]
        %v317 = vunpack.c.l.b16 %v253
        %v318 = vunpack.c.l.b16 %v254
        %v319 = vunpack.c.l.b16 %v255
        %v320 = vunpack.c.l.b16 %v256
        %v321 = vunpack.c.l.b16 %v257
        %v322 = vunpack.c.l.b16 %v258
        %v323 = vunpack.c.l.b16 %v259
        %v324 = vunpack.c.l.b16 %v260
        %v325 = vunpack.c.l.b16 %v261
        %v326 = vunpack.c.l.b16 %v262
        %v327 = vunpack.c.l.b16 %v263
        %v328 = vunpack.c.l.b16 %v264
        %v329 = vunpack.c.l.b16 %v265
        %v330 = vunpack.c.l.b16 %v266
        %v331 = vunpack.c.l.b16 %v267
        %v332 = vunpack.c.l.b16 %v268
        %v333 = vunpack.c.l.b16 %v269
        %v334 = vunpack.c.l.b16 %v270
        %v335 = vunpack.c.l.b16 %v271
        %v336 = vunpack.c.l.b16 %v272
        %v337 = vunpack.c.l.b16 %v273
        %v338 = vunpack.c.l.b16 %v274
        %v339 = vunpack.c.l.b16 %v275
        %v340 = vunpack.c.l.b16 %v276
        %v341 = vunpack.c.l.b16 %v277
        %v342 = vunpack.c.l.b16 %v278
        %v343 = vunpack.c.l.b16 %v279
        %v344 = vunpack.c.l.b16 %v280
        %v345 = vunpack.c.l.b16 %v281
        %v346 = vunpack.c.l.b16 %v282
        %v347 = vunpack.c.l.b16 %v283
        %v348 = vunpack.c.l.b16 %v284
        %v349 = vpack.c.b16 %v318, %v317
        %v350 = vpack.c.b16 %v320, %v319
        %v351 = vpack.c.b16 %v322, %v321
        %v352 = vpack.c.b16 %v324, %v323
        %v353 = vpack.c.b16 %v326, %v325
        %v354 = vpack.c.b16 %v328, %v327
        %v355 = vpack.c.b16 %v330, %v329
        %v356 = vpack.c.b16 %v332, %v331
        %v357 = vpack.c.b16 %v334, %v333
        %v358 = vpack.c.b16 %v336, %v335
        %v359 = vpack.c.b16 %v338, %v337
        %v360 = vpack.c.b16 %v340, %v339
        %v361 = vpack.c.b16 %v342, %v341
        %v362 = vpack.c.b16 %v344, %v343
        %v363 = vpack.c.b16 %v346, %v345
        %v364 = vpack.c.b16 %v348, %v347
        %v366 = vshrl.u32 %v349, 16
        %v368 = vrot.slane %v366, 7
        %v369 = vshll.u32 %v349, 16
        %v371 = vor.u32 %v368, %v369
        %v373 = vshrl.u32 %v350, 16
        %v375 = vrot.slane %v373, 7
        %v376 = vshll.u32 %v350, 16
        %v378 = vor.u32 %v375, %v376
        %v380 = vshrl.u32 %v351, 16
        %v382 = vrot.slane %v380, 7
        %v383 = vshll.u32 %v351, 16
        %v385 = vor.u32 %v382, %v383
        %v387 = vshrl.u32 %v352, 16
        %v389 = vrot.slane %v387, 7
        %v390 = vshll.u32 %v352, 16
        %v392 = vor.u32 %v389, %v390
        %v394 = vshrl.u32 %v353, 16
        %v396 = vrot.slane %v394, 7
        %v397 = vshll.u32 %v353, 16
        %v399 = vor.u32 %v396, %v397
        %v401 = vshrl.u32 %v354, 16
        %v403 = vrot.slane %v401, 7
        %v404 = vshll.u32 %v354, 16
        %v406 = vor.u32 %v403, %v404
        %v408 = vshrl.u32 %v355, 16
        %v410 = vrot.slane %v408, 7
        %v411 = vshll.u32 %v355, 16
        %v413 = vor.u32 %v410, %v411
        %v415 = vshrl.u32 %v356, 16
        %v417 = vrot.slane %v415, 7
        %v418 = vshll.u32 %v356, 16
        %v420 = vor.u32 %v417, %v418
        %v422 = vshrl.u32 %v357, 16
        %v424 = vrot.slane %v422, 7
        %v425 = vshll.u32 %v357, 16
        %v427 = vor.u32 %v424, %v425
        %v429 = vshrl.u32 %v358, 16
        %v431 = vrot.slane %v429, 7
        %v432 = vshll.u32 %v358, 16
        %v434 = vor.u32 %v431, %v432
        %v436 = vshrl.u32 %v359, 16
        %v438 = vrot.slane %v436, 7
        %v439 = vshll.u32 %v359, 16
        %v441 = vor.u32 %v438, %v439
        %v443 = vshrl.u32 %v360, 16
        %v445 = vrot.slane %v443, 7
        %v446 = vshll.u32 %v360, 16
        %v448 = vor.u32 %v445, %v446
        %v450 = vshrl.u32 %v361, 16
        %v452 = vrot.slane %v450, 7
        %v453 = vshll.u32 %v361, 16
        %v455 = vor.u32 %v452, %v453
        %v457 = vshrl.u32 %v362, 16
        %v459 = vrot.slane %v457, 7
        %v460 = vshll.u32 %v362, 16
        %v462 = vor.u32 %v459, %v460
        %v464 = vshrl.u32 %v363, 16
        %v466 = vrot.slane %v464, 7
        %v467 = vshll.u32 %v363, 16
        %v469 = vor.u32 %v466, %v467
        %v471 = vshrl.u32 %v364, 16
        %v473 = vrot.slane %v471, 7
        %v474 = vshll.u32 %v364, 16
        %v476 = vor.u32 %v473, %v474
        %s493 = scalar_lea.vmem [#allocation2], 24
        %vm494 = vcmask 1047552
        %vm495 = vsmask.f32 7938
        %vm496 = vmand %vm494, %vm495
        %v497 = vld [vmem:[%s493] sm:$0xff]
        %v498 = vsel %vm496, %v371, %v497
        %499 = vst [vmem:[%s493] sm:$0xff] %v498
        %v500 = vld [vmem:[%s493 + $0x18] sm:$0xff]
        %v501 = vsel %vm496, %v378, %v500
        %502 = vst [vmem:[%s493 + $0x18] sm:$0xff] %v501
        %v503 = vld [vmem:[%s493 + $0x30] sm:$0xff]
        %v504 = vsel %vm496, %v385, %v503
        %505 = vst [vmem:[%s493 + $0x30] sm:$0xff] %v504
        %v506 = vld [vmem:[%s493 + $0x48] sm:$0xff]
        %v507 = vsel %vm496, %v392, %v506
        %508 = vst [vmem:[%s493 + $0x48] sm:$0xff] %v507
        %v509 = vld [vmem:[%s493 + $0x60] sm:$0xff]
        %v510 = vsel %vm496, %v399, %v509
        %511 = vst [vmem:[%s493 + $0x60] sm:$0xff] %v510
        %v512 = vld [vmem:[%s493 + $0x78] sm:$0xff]
        %v513 = vsel %vm496, %v406, %v512
        %514 = vst [vmem:[%s493 + $0x78] sm:$0xff] %v513
        %v515 = vld [vmem:[%s493 + $0x90] sm:$0xff]
        %v516 = vsel %vm496, %v413, %v515
        %517 = vst [vmem:[%s493 + $0x90] sm:$0xff] %v516
        %v518 = vld [vmem:[%s493 + $0xa8] sm:$0xff]
        %v519 = vsel %vm496, %v420, %v518
        %520 = vst [vmem:[%s493 + $0xa8] sm:$0xff] %v519
        %v521 = vld [vmem:[%s493 + $0xc0] sm:$0xff]
        %v522 = vsel %vm496, %v427, %v521
        %523 = vst [vmem:[%s493 + $0xc0] sm:$0xff] %v522
        %v524 = vld [vmem:[%s493 + $0xd8] sm:$0xff]
        %v525 = vsel %vm496, %v434, %v524
        %526 = vst [vmem:[%s493 + $0xd8] sm:$0xff] %v525
        %v527 = vld [vmem:[%s493 + $0xf0] sm:$0xff]
        %v528 = vsel %vm496, %v441, %v527
        %529 = vst [vmem:[%s493 + $0xf0] sm:$0xff] %v528
        %v530 = vld [vmem:[%s493 + $0x108] sm:$0xff]
        %v531 = vsel %vm496, %v448, %v530
        %532 = vst [vmem:[%s493 + $0x108] sm:$0xff] %v531
        %v533 = vld [vmem:[%s493 + $0x120] sm:$0xff]
        %v534 = vsel %vm496, %v455, %v533
        %535 = vst [vmem:[%s493 + $0x120] sm:$0xff] %v534
        %v536 = vld [vmem:[%s493 + $0x138] sm:$0xff]
        %v537 = vsel %vm496, %v462, %v536
        %538 = vst [vmem:[%s493 + $0x138] sm:$0xff] %v537
        %v539 = vld [vmem:[%s493 + $0x150] sm:$0xff]
        %v540 = vsel %vm496, %v469, %v539
        %541 = vst [vmem:[%s493 + $0x150] sm:$0xff] %v540
        %v542 = vld [vmem:[%s493 + $0x168] sm:$0xff]
        %v543 = vsel %vm496, %v476, %v542
        %544 = vst [vmem:[%s493 + $0x168] sm:$0xff] %v543
        %vm545 = vcmask 1040384
        %vm546 = vsmask.f32 256
        %vm547 = vmand %vm545, %vm546
        %v548 = vld [vmem:[%s493] sm:$0x1]
        %v549 = vsel %vm547, 0, %v548
        %550 = vst [vmem:[%s493] sm:$0x1] %v549
        %v551 = vld [vmem:[%s493 + $0x18] sm:$0x1]
        %v552 = vsel %vm547, 0, %v551
        %553 = vst [vmem:[%s493 + $0x18] sm:$0x1] %v552
        %v554 = vld [vmem:[%s493 + $0x30] sm:$0x1]
        %v555 = vsel %vm547, 0, %v554
        %556 = vst [vmem:[%s493 + $0x30] sm:$0x1] %v555
        %v557 = vld [vmem:[%s493 + $0x48] sm:$0x1]
        %v558 = vsel %vm547, 0, %v557
        %559 = vst [vmem:[%s493 + $0x48] sm:$0x1] %v558
        %v560 = vld [vmem:[%s493 + $0x60] sm:$0x1]
        %v561 = vsel %vm547, 0, %v560
        %562 = vst [vmem:[%s493 + $0x60] sm:$0x1] %v561
        %v563 = vld [vmem:[%s493 + $0x78] sm:$0x1]
        %v564 = vsel %vm547, 0, %v563
        %565 = vst [vmem:[%s493 + $0x78] sm:$0x1] %v564
        %v566 = vld [vmem:[%s493 + $0x90] sm:$0x1]
        %v567 = vsel %vm547, 0, %v566
        %568 = vst [vmem:[%s493 + $0x90] sm:$0x1] %v567
        %v569 = vld [vmem:[%s493 + $0xa8] sm:$0x1]
        %v570 = vsel %vm547, 0, %v569
        %571 = vst [vmem:[%s493 + $0xa8] sm:$0x1] %v570
        %v572 = vld [vmem:[%s493 + $0xc0] sm:$0x1]
        %v573 = vsel %vm547, 0, %v572
        %574 = vst [vmem:[%s493 + $0xc0] sm:$0x1] %v573
        %v575 = vld [vmem:[%s493 + $0xd8] sm:$0x1]
        %v576 = vsel %vm547, 0, %v575
        %577 = vst [vmem:[%s493 + $0xd8] sm:$0x1] %v576
        %v578 = vld [vmem:[%s493 + $0xf0] sm:$0x1]
        %v579 = vsel %vm547, 0, %v578
        %580 = vst [vmem:[%s493 + $0xf0] sm:$0x1] %v579
        %v581 = vld [vmem:[%s493 + $0x108] sm:$0x1]
        %v582 = vsel %vm547, 0, %v581
        %583 = vst [vmem:[%s493 + $0x108] sm:$0x1] %v582
        %v584 = vld [vmem:[%s493 + $0x120] sm:$0x1]
        %v585 = vsel %vm547, 0, %v584
        %586 = vst [vmem:[%s493 + $0x120] sm:$0x1] %v585
        %v587 = vld [vmem:[%s493 + $0x138] sm:$0x1]
        %v588 = vsel %vm547, 0, %v587
        %589 = vst [vmem:[%s493 + $0x138] sm:$0x1] %v588
        %v590 = vld [vmem:[%s493 + $0x150] sm:$0x1]
        %v591 = vsel %vm547, 0, %v590
        %592 = vst [vmem:[%s493 + $0x150] sm:$0x1] %v591
        %v593 = vld [vmem:[%s493 + $0x168] sm:$0x1]
        %v594 = vsel %vm547, 0, %v593
        %595 = vst [vmem:[%s493 + $0x168] sm:$0x1] %v594
        %612 = vst [vmem:[%s493 + $0x8] sm:$0xff] %v349
        %613 = vst [vmem:[%s493 + $0x20] sm:$0xff] %v350
        %614 = vst [vmem:[%s493 + $0x38] sm:$0xff] %v351
        %615 = vst [vmem:[%s493 + $0x50] sm:$0xff] %v352
        %616 = vst [vmem:[%s493 + $0x68] sm:$0xff] %v353
        %617 = vst [vmem:[%s493 + $0x80] sm:$0xff] %v354
        %618 = vst [vmem:[%s493 + $0x98] sm:$0xff] %v355
        %619 = vst [vmem:[%s493 + $0xb0] sm:$0xff] %v356
        %620 = vst [vmem:[%s493 + $0xc8] sm:$0xff] %v357
        %621 = vst [vmem:[%s493 + $0xe0] sm:$0xff] %v358
        %622 = vst [vmem:[%s493 + $0xf8] sm:$0xff] %v359
        %623 = vst [vmem:[%s493 + $0x110] sm:$0xff] %v360
        %624 = vst [vmem:[%s493 + $0x128] sm:$0xff] %v361
        %625 = vst [vmem:[%s493 + $0x140] sm:$0xff] %v362
        %626 = vst [vmem:[%s493 + $0x158] sm:$0xff] %v363
        %627 = vst [vmem:[%s493 + $0x170] sm:$0xff] %v364
        %v628 = vrot.slane %v369, 1
        %v629 = vor.u32 %v366, %v628
        %v630 = vrot.slane %v376, 1
        %v631 = vor.u32 %v373, %v630
        %v632 = vrot.slane %v383, 1
        %v633 = vor.u32 %v380, %v632
        %v634 = vrot.slane %v390, 1
        %v635 = vor.u32 %v387, %v634
        %v636 = vrot.slane %v397, 1
        %v637 = vor.u32 %v394, %v636
        %v638 = vrot.slane %v404, 1
        %v639 = vor.u32 %v401, %v638
        %v640 = vrot.slane %v411, 1
        %v641 = vor.u32 %v408, %v640
        %v642 = vrot.slane %v418, 1
        %v643 = vor.u32 %v415, %v642
        %v644 = vrot.slane %v425, 1
        %v645 = vor.u32 %v422, %v644
        %v646 = vrot.slane %v432, 1
        %v647 = vor.u32 %v429, %v646
        %v648 = vrot.slane %v439, 1
        %v649 = vor.u32 %v436, %v648
        %v650 = vrot.slane %v446, 1
        %v651 = vor.u32 %v443, %v650
        %v652 = vrot.slane %v453, 1
        %v653 = vor.u32 %v450, %v652
        %v654 = vrot.slane %v460, 1
        %v655 = vor.u32 %v457, %v654
        %v656 = vrot.slane %v467, 1
        %v657 = vor.u32 %v464, %v656
        %v658 = vrot.slane %v474, 1
        %v659 = vor.u32 %v471, %v658
        %vm676 = vsmask.f32 7424
        %vm677 = vmand %vm494, %vm676
        %v678 = vld [vmem:[%s493 + $0x10] sm:$0xff]
        %v679 = vsel %vm677, %v629, %v678
        %680 = vst [vmem:[%s493 + $0x10] sm:$0xff] %v679
        %v681 = vld [vmem:[%s493 + $0x28] sm:$0xff]
        %v682 = vsel %vm677, %v631, %v681
        %683 = vst [vmem:[%s493 + $0x28] sm:$0xff] %v682
        %v684 = vld [vmem:[%s493 + $0x40] sm:$0xff]
        %v685 = vsel %vm677, %v633, %v684
        %686 = vst [vmem:[%s493 + $0x40] sm:$0xff] %v685
        %v687 = vld [vmem:[%s493 + $0x58] sm:$0xff]
        %v688 = vsel %vm677, %v635, %v687
        %689 = vst [vmem:[%s493 + $0x58] sm:$0xff] %v688
        %v690 = vld [vmem:[%s493 + $0x70] sm:$0xff]
        %v691 = vsel %vm677, %v637, %v690
        %692 = vst [vmem:[%s493 + $0x70] sm:$0xff] %v691
        %v693 = vld [vmem:[%s493 + $0x88] sm:$0xff]
        %v694 = vsel %vm677, %v639, %v693
        %695 = vst [vmem:[%s493 + $0x88] sm:$0xff] %v694
        %v696 = vld [vmem:[%s493 + $0xa0] sm:$0xff]
        %v697 = vsel %vm677, %v641, %v696
        %698 = vst [vmem:[%s493 + $0xa0] sm:$0xff] %v697
        %v699 = vld [vmem:[%s493 + $0xb8] sm:$0xff]
        %v700 = vsel %vm677, %v643, %v699
        %701 = vst [vmem:[%s493 + $0xb8] sm:$0xff] %v700
        %v702 = vld [vmem:[%s493 + $0xd0] sm:$0xff]
        %v703 = vsel %vm677, %v645, %v702
        %704 = vst [vmem:[%s493 + $0xd0] sm:$0xff] %v703
        %v705 = vld [vmem:[%s493 + $0xe8] sm:$0xff]
        %v706 = vsel %vm677, %v647, %v705
        %707 = vst [vmem:[%s493 + $0xe8] sm:$0xff] %v706
        %v708 = vld [vmem:[%s493 + $0x100] sm:$0xff]
        %v709 = vsel %vm677, %v649, %v708
        %710 = vst [vmem:[%s493 + $0x100] sm:$0xff] %v709
        %v711 = vld [vmem:[%s493 + $0x118] sm:$0xff]
        %v712 = vsel %vm677, %v651, %v711
        %713 = vst [vmem:[%s493 + $0x118] sm:$0xff] %v712
        %v714 = vld [vmem:[%s493 + $0x130] sm:$0xff]
        %v715 = vsel %vm677, %v653, %v714
        %716 = vst [vmem:[%s493 + $0x130] sm:$0xff] %v715
        %v717 = vld [vmem:[%s493 + $0x148] sm:$0xff]
        %v718 = vsel %vm677, %v655, %v717
        %719 = vst [vmem:[%s493 + $0x148] sm:$0xff] %v718
        %v720 = vld [vmem:[%s493 + $0x160] sm:$0xff]
        %v721 = vsel %vm677, %v657, %v720
        %722 = vst [vmem:[%s493 + $0x160] sm:$0xff] %v721
        %v723 = vld [vmem:[%s493 + $0x178] sm:$0xff]
        %v724 = vsel %vm677, %v659, %v723
        %725 = vst [vmem:[%s493 + $0x178] sm:$0xff] %v724
        %vm726 = vcmask 1047559
        %vm727 = vsmask.f32 7966
        %vm728 = vmand %vm726, %vm727
        %v729 = vld [vmem:[%s493 + $0x10] sm:$0x80]
        %v730 = vsel %vm728, 0, %v729
        %731 = vst [vmem:[%s493 + $0x10] sm:$0x80] %v730
        %v732 = vld [vmem:[%s493 + $0x28] sm:$0x80]
        %v733 = vsel %vm728, 0, %v732
        %734 = vst [vmem:[%s493 + $0x28] sm:$0x80] %v733
        %v735 = vld [vmem:[%s493 + $0x40] sm:$0x80]
        %v736 = vsel %vm728, 0, %v735
        %737 = vst [vmem:[%s493 + $0x40] sm:$0x80] %v736
        %v738 = vld [vmem:[%s493 + $0x58] sm:$0x80]
        %v739 = vsel %vm728, 0, %v738
        %740 = vst [vmem:[%s493 + $0x58] sm:$0x80] %v739
        %v741 = vld [vmem:[%s493 + $0x70] sm:$0x80]
        %v742 = vsel %vm728, 0, %v741
        %743 = vst [vmem:[%s493 + $0x70] sm:$0x80] %v742
        %v744 = vld [vmem:[%s493 + $0x88] sm:$0x80]
        %v745 = vsel %vm728, 0, %v744
        %746 = vst [vmem:[%s493 + $0x88] sm:$0x80] %v745
        %v747 = vld [vmem:[%s493 + $0xa0] sm:$0x80]
        %v748 = vsel %vm728, 0, %v747
        %749 = vst [vmem:[%s493 + $0xa0] sm:$0x80] %v748
        %v750 = vld [vmem:[%s493 + $0xb8] sm:$0x80]
        %v751 = vsel %vm728, 0, %v750
        %752 = vst [vmem:[%s493 + $0xb8] sm:$0x80] %v751
        %v753 = vld [vmem:[%s493 + $0xd0] sm:$0x80]
        %v754 = vsel %vm728, 0, %v753
        %755 = vst [vmem:[%s493 + $0xd0] sm:$0x80] %v754
        %v756 = vld [vmem:[%s493 + $0xe8] sm:$0x80]
        %v757 = vsel %vm728, 0, %v756
        %758 = vst [vmem:[%s493 + $0xe8] sm:$0x80] %v757
        %v759 = vld [vmem:[%s493 + $0x100] sm:$0x80]
        %v760 = vsel %vm728, 0, %v759
        %761 = vst [vmem:[%s493 + $0x100] sm:$0x80] %v760
        %v762 = vld [vmem:[%s493 + $0x118] sm:$0x80]
        %v763 = vsel %vm728, 0, %v762
        %764 = vst [vmem:[%s493 + $0x118] sm:$0x80] %v763
        %v765 = vld [vmem:[%s493 + $0x130] sm:$0x80]
        %v766 = vsel %vm728, 0, %v765
        %767 = vst [vmem:[%s493 + $0x130] sm:$0x80] %v766
        %v768 = vld [vmem:[%s493 + $0x148] sm:$0x80]
        %v769 = vsel %vm728, 0, %v768
        %770 = vst [vmem:[%s493 + $0x148] sm:$0x80] %v769
        %v771 = vld [vmem:[%s493 + $0x160] sm:$0x80]
        %v772 = vsel %vm728, 0, %v771
        %773 = vst [vmem:[%s493 + $0x160] sm:$0x80] %v772
        %v774 = vld [vmem:[%s493 + $0x178] sm:$0x80]
        %v775 = vsel %vm728, 0, %v774
        %776 = vst [vmem:[%s493 + $0x178] sm:$0x80] %v775
        %v777 = vld [vmem:[#allocation2] sm:$0xff]
        %v778 = vld [vmem:[#allocation2 + $0x8] sm:$0xff]
        %v779 = vld [vmem:[#allocation2 + $0x10] sm:$0xff]
        %v780 = vld [vmem:[#allocation2 + $0x18] sm:$0xff]
        %v781 = vld [vmem:[#allocation2 + $0x20] sm:$0xff]
        %v782 = vld [vmem:[#allocation2 + $0x28] sm:$0xff]
        %v783 = vld [vmem:[#allocation2 + $0x30] sm:$0xff]
        %v784 = vld [vmem:[#allocation2 + $0x38] sm:$0xff]
        %v785 = vld [vmem:[#allocation2 + $0x40] sm:$0xff]
        %v786 = vld [vmem:[#allocation2 + $0x48] sm:$0xff]
        %v787 = vld [vmem:[#allocation2 + $0x50] sm:$0xff]
        %v788 = vld [vmem:[#allocation2 + $0x58] sm:$0xff]
        %v789 = vld [vmem:[#allocation2 + $0x60] sm:$0xff]
        %v790 = vld [vmem:[#allocation2 + $0x68] sm:$0xff]
        %v791 = vld [vmem:[#allocation2 + $0x70] sm:$0xff]
        %v792 = vld [vmem:[#allocation2 + $0x78] sm:$0xff]
        %v793 = vld [vmem:[#allocation2 + $0x80] sm:$0xff]
        %v794 = vld [vmem:[#allocation2 + $0x88] sm:$0xff]
        %v795 = vld [vmem:[#allocation2 + $0x90] sm:$0xff]
        %v796 = vld [vmem:[#allocation2 + $0x98] sm:$0xff]
        %v797 = vld [vmem:[#allocation2 + $0xa0] sm:$0xff]
        %v798 = vld [vmem:[#allocation2 + $0xa8] sm:$0xff]
        %v799 = vld [vmem:[#allocation2 + $0xb0] sm:$0xff]
        %v800 = vld [vmem:[#allocation2 + $0xb8] sm:$0xff]
        %v801 = vld [vmem:[#allocation2 + $0xc0] sm:$0xff]
        %v802 = vld [vmem:[#allocation2 + $0xc8] sm:$0xff]
        %v803 = vld [vmem:[#allocation2 + $0xd0] sm:$0xff]
        %v804 = vld [vmem:[#allocation2 + $0xd8] sm:$0xff]
        %v805 = vld [vmem:[#allocation2 + $0xe0] sm:$0xff]
        %v806 = vld [vmem:[#allocation2 + $0xe8] sm:$0xff]
        %v807 = vld [vmem:[#allocation2 + $0xf0] sm:$0xff]
        %v808 = vld [vmem:[#allocation2 + $0xf8] sm:$0xff]
        %v809 = vld [vmem:[#allocation2 + $0x100] sm:$0xff]
        %v810 = vld [vmem:[#allocation2 + $0x108] sm:$0xff]
        %v811 = vld [vmem:[#allocation2 + $0x110] sm:$0xff]
        %v812 = vld [vmem:[#allocation2 + $0x118] sm:$0xff]
        %v813 = vld [vmem:[#allocation2 + $0x120] sm:$0xff]
        %v814 = vld [vmem:[#allocation2 + $0x128] sm:$0xff]
        %v815 = vld [vmem:[#allocation2 + $0x130] sm:$0xff]
        %v816 = vld [vmem:[#allocation2 + $0x138] sm:$0xff]
        %v817 = vld [vmem:[#allocation2 + $0x140] sm:$0xff]
        %v818 = vld [vmem:[#allocation2 + $0x148] sm:$0xff]
        %v819 = vld [vmem:[#allocation2 + $0x150] sm:$0xff]
        %v820 = vld [vmem:[#allocation2 + $0x158] sm:$0xff]
        %v821 = vld [vmem:[#allocation2 + $0x160] sm:$0xff]
        %v822 = vld [vmem:[#allocation2 + $0x168] sm:$0xff]
        %v823 = vld [vmem:[#allocation2 + $0x170] sm:$0xff]
        %v824 = vld [vmem:[#allocation2 + $0x178] sm:$0xff]
        %v825 = vld [vmem:[#allocation6] sm:$0xf]
        %v826 = vld [vmem:[#allocation6 + $0x4] sm:$0xf]
        %v827 = vld [vmem:[#allocation6 + $0x8] sm:$0xf]
        %v828 = vld [vmem:[#allocation6 + $0xc] sm:$0xf]
        %v829 = vld [vmem:[#allocation6 + $0x10] sm:$0xf]
        %v830 = vld [vmem:[#allocation6 + $0x14] sm:$0xf]
        %v831 = vld [vmem:[#allocation6 + $0x18] sm:$0xf]
        %v832 = vld [vmem:[#allocation6 + $0x1c] sm:$0xf]
        %v833 = vld [vmem:[#allocation6 + $0x20] sm:$0xf]
        %v834 = vld [vmem:[#allocation6 + $0x24] sm:$0xf]
        %v835 = vld [vmem:[#allocation6 + $0x28] sm:$0xf]
        %v836 = vld [vmem:[#allocation6 + $0x2c] sm:$0xf]
        %v837 = vld [vmem:[#allocation6 + $0x30] sm:$0xf]
        %v838 = vld [vmem:[#allocation6 + $0x34] sm:$0xf]
        %v839 = vld [vmem:[#allocation6 + $0x38] sm:$0xf]
        %v840 = vld [vmem:[#allocation6 + $0x3c] sm:$0xf]
        %v841 = vld [vmem:[#allocation6 + $0x40] sm:$0xf]
        %v842 = vld [vmem:[#allocation6 + $0x44] sm:$0xf]
        %v843 = vld [vmem:[#allocation6 + $0x48] sm:$0xf]
        %v844 = vld [vmem:[#allocation6 + $0x4c] sm:$0xf]
        %v845 = vld [vmem:[#allocation6 + $0x50] sm:$0xf]
        %v846 = vld [vmem:[#allocation6 + $0x54] sm:$0xf]
        %v847 = vld [vmem:[#allocation6 + $0x58] sm:$0xf]
        %v848 = vld [vmem:[#allocation6 + $0x5c] sm:$0xf]
        %v849 = vld [vmem:[#allocation6 + $0x60] sm:$0xf]
        %v850 = vld [vmem:[#allocation6 + $0x64] sm:$0xf]
        %v851 = vld [vmem:[#allocation6 + $0x68] sm:$0xf]
        %v852 = vld [vmem:[#allocation6 + $0x6c] sm:$0xf]
        %v853 = vld [vmem:[#allocation6 + $0x70] sm:$0xf]
        %v854 = vld [vmem:[#allocation6 + $0x74] sm:$0xf]
        %v855 = vld [vmem:[#allocation6 + $0x78] sm:$0xf]
        %v856 = vld [vmem:[#allocation6 + $0x7c] sm:$0xf]
        %v857 = vld [vmem:[#allocation6 + $0x80] sm:$0xf]
        %v858 = vld [vmem:[#allocation6 + $0x84] sm:$0xf]
        %v859 = vld [vmem:[#allocation6 + $0x88] sm:$0xf]
        %v860 = vld [vmem:[#allocation6 + $0x8c] sm:$0xf]
        %v861 = vld [vmem:[#allocation6 + $0x90] sm:$0xf]
        %v862 = vld [vmem:[#allocation6 + $0x94] sm:$0xf]
        %v863 = vld [vmem:[#allocation6 + $0x98] sm:$0xf]
        %v864 = vld [vmem:[#allocation6 + $0x9c] sm:$0xf]
        %v865 = vld [vmem:[#allocation6 + $0xa0] sm:$0xf]
        %v866 = vld [vmem:[#allocation6 + $0xa4] sm:$0xf]
        %v867 = vld [vmem:[#allocation6 + $0xa8] sm:$0xf]
        %v868 = vld [vmem:[#allocation6 + $0xac] sm:$0xf]
        %v869 = vld [vmem:[#allocation6 + $0xb0] sm:$0xf]
        %v870 = vld [vmem:[#allocation6 + $0xb4] sm:$0xf]
        %v871 = vld [vmem:[#allocation6 + $0xb8] sm:$0xf]
        %v872 = vld [vmem:[#allocation6 + $0xbc] sm:$0xf]
        %v873 = vld [vmem:[%s493] sm:$0xff]
        %v874 = vld [vmem:[%s493 + $0x8] sm:$0xff]
        %v875 = vld [vmem:[%s493 + $0x10] sm:$0xff]
        %v876 = vld [vmem:[%s493 + $0x18] sm:$0xff]
        %v877 = vld [vmem:[%s493 + $0x20] sm:$0xff]
        %v878 = vld [vmem:[%s493 + $0x28] sm:$0xff]
        %v879 = vld [vmem:[%s493 + $0x30] sm:$0xff]
        %v880 = vld [vmem:[%s493 + $0x38] sm:$0xff]
        %v881 = vld [vmem:[%s493 + $0x40] sm:$0xff]
        %v882 = vld [vmem:[%s493 + $0x48] sm:$0xff]
        %v883 = vld [vmem:[%s493 + $0x50] sm:$0xff]
        %v884 = vld [vmem:[%s493 + $0x58] sm:$0xff]
        %v885 = vld [vmem:[%s493 + $0x60] sm:$0xff]
        %v886 = vld [vmem:[%s493 + $0x68] sm:$0xff]
        %v887 = vld [vmem:[%s493 + $0x70] sm:$0xff]
        %v888 = vld [vmem:[%s493 + $0x78] sm:$0xff]
        %v889 = vld [vmem:[%s493 + $0x80] sm:$0xff]
        %v890 = vld [vmem:[%s493 + $0x88] sm:$0xff]
        %v891 = vld [vmem:[%s493 + $0x90] sm:$0xff]
        %v892 = vld [vmem:[%s493 + $0x98] sm:$0xff]
        %v893 = vld [vmem:[%s493 + $0xa0] sm:$0xff]
        %v894 = vld [vmem:[%s493 + $0xa8] sm:$0xff]
        %v895 = vld [vmem:[%s493 + $0xb0] sm:$0xff]
        %v896 = vld [vmem:[%s493 + $0xb8] sm:$0xff]
        %v897 = vld [vmem:[%s493 + $0xc0] sm:$0xff]
        %v898 = vld [vmem:[%s493 + $0xc8] sm:$0xff]
        %v899 = vld [vmem:[%s493 + $0xd0] sm:$0xff]
        %v900 = vld [vmem:[%s493 + $0xd8] sm:$0xff]
        %v901 = vld [vmem:[%s493 + $0xe0] sm:$0xff]
        %v902 = vld [vmem:[%s493 + $0xe8] sm:$0xff]
        %v903 = vld [vmem:[%s493 + $0xf0] sm:$0xff]
        %v904 = vld [vmem:[%s493 + $0xf8] sm:$0xff]
        %v905 = vld [vmem:[%s493 + $0x100] sm:$0xff]
        %v906 = vld [vmem:[%s493 + $0x108] sm:$0xff]
        %v907 = vld [vmem:[%s493 + $0x110] sm:$0xff]
        %v908 = vld [vmem:[%s493 + $0x118] sm:$0xff]
        %v909 = vld [vmem:[%s493 + $0x120] sm:$0xff]
        %v910 = vld [vmem:[%s493 + $0x128] sm:$0xff]
        %v911 = vld [vmem:[%s493 + $0x130] sm:$0xff]
        %v912 = vld [vmem:[%s493 + $0x138] sm:$0xff]
        %v913 = vld [vmem:[%s493 + $0x140] sm:$0xff]
        %v914 = vld [vmem:[%s493 + $0x148] sm:$0xff]
        %v915 = vld [vmem:[%s493 + $0x150] sm:$0xff]
        %v916 = vld [vmem:[%s493 + $0x158] sm:$0xff]
        %v917 = vld [vmem:[%s493 + $0x160] sm:$0xff]
        %v918 = vld [vmem:[%s493 + $0x168] sm:$0xff]
        %v919 = vld [vmem:[%s493 + $0x170] sm:$0xff]
        %v920 = vld [vmem:[%s493 + $0x178] sm:$0xff]
        %s921 = scalar_lea.vmem [#allocation6], 192
        %v922 = vld [vmem:[%s921] sm:$0xf]
        %v923 = vld [vmem:[%s921 + $0x4] sm:$0xf]
        %v924 = vld [vmem:[%s921 + $0x8] sm:$0xf]
        %v925 = vld [vmem:[%s921 + $0xc] sm:$0xf]
        %v926 = vld [vmem:[%s921 + $0x10] sm:$0xf]
        %v927 = vld [vmem:[%s921 + $0x14] sm:$0xf]
        %v928 = vld [vmem:[%s921 + $0x18] sm:$0xf]
        %v929 = vld [vmem:[%s921 + $0x1c] sm:$0xf]
        %v930 = vld [vmem:[%s921 + $0x20] sm:$0xf]
        %v931 = vld [vmem:[%s921 + $0x24] sm:$0xf]
        %v932 = vld [vmem:[%s921 + $0x28] sm:$0xf]
        %v933 = vld [vmem:[%s921 + $0x2c] sm:$0xf]
        %v934 = vld [vmem:[%s921 + $0x30] sm:$0xf]
        %v935 = vld [vmem:[%s921 + $0x34] sm:$0xf]
        %v936 = vld [vmem:[%s921 + $0x38] sm:$0xf]
        %v937 = vld [vmem:[%s921 + $0x3c] sm:$0xf]
        %v938 = vld [vmem:[%s921 + $0x40] sm:$0xf]
        %v939 = vld [vmem:[%s921 + $0x44] sm:$0xf]
        %v940 = vld [vmem:[%s921 + $0x48] sm:$0xf]
        %v941 = vld [vmem:[%s921 + $0x4c] sm:$0xf]
        %v942 = vld [vmem:[%s921 + $0x50] sm:$0xf]
        %v943 = vld [vmem:[%s921 + $0x54] sm:$0xf]
        %v944 = vld [vmem:[%s921 + $0x58] sm:$0xf]
        %v945 = vld [vmem:[%s921 + $0x5c] sm:$0xf]
        %v946 = vld [vmem:[%s921 + $0x60] sm:$0xf]
        %v947 = vld [vmem:[%s921 + $0x64] sm:$0xf]
        %v948 = vld [vmem:[%s921 + $0x68] sm:$0xf]
        %v949 = vld [vmem:[%s921 + $0x6c] sm:$0xf]
        %v950 = vld [vmem:[%s921 + $0x70] sm:$0xf]
        %v951 = vld [vmem:[%s921 + $0x74] sm:$0xf]
        %v952 = vld [vmem:[%s921 + $0x78] sm:$0xf]
        %v953 = vld [vmem:[%s921 + $0x7c] sm:$0xf]
        %v954 = vld [vmem:[%s921 + $0x80] sm:$0xf]
        %v955 = vld [vmem:[%s921 + $0x84] sm:$0xf]
        %v956 = vld [vmem:[%s921 + $0x88] sm:$0xf]
        %v957 = vld [vmem:[%s921 + $0x8c] sm:$0xf]
        %v958 = vld [vmem:[%s921 + $0x90] sm:$0xf]
        %v959 = vld [vmem:[%s921 + $0x94] sm:$0xf]
        %v960 = vld [vmem:[%s921 + $0x98] sm:$0xf]
        %v961 = vld [vmem:[%s921 + $0x9c] sm:$0xf]
        %v962 = vld [vmem:[%s921 + $0xa0] sm:$0xf]
        %v963 = vld [vmem:[%s921 + $0xa4] sm:$0xf]
        %v964 = vld [vmem:[%s921 + $0xa8] sm:$0xf]
        %v965 = vld [vmem:[%s921 + $0xac] sm:$0xf]
        %v966 = vld [vmem:[%s921 + $0xb0] sm:$0xf]
        %v967 = vld [vmem:[%s921 + $0xb4] sm:$0xf]
        %v968 = vld [vmem:[%s921 + $0xb8] sm:$0xf]
        %v969 = vld [vmem:[%s921 + $0xbc] sm:$0xf]
        %v1018 = vunpack.c.l.b16 %v922
        %v1019 = vunpack.c.l.b16 %v923
        %v1020 = vunpack.c.l.b16 %v924
        %v1021 = vunpack.c.l.b16 %v925
        %v1022 = vunpack.c.l.b16 %v926
        %v1023 = vunpack.c.l.b16 %v927
        %v1024 = vunpack.c.l.b16 %v928
        %v1025 = vunpack.c.l.b16 %v929
        %v1026 = vunpack.c.l.b16 %v930
        %v1027 = vunpack.c.l.b16 %v931
        %v1028 = vunpack.c.l.b16 %v932
        %v1029 = vunpack.c.l.b16 %v933
        %v1030 = vunpack.c.l.b16 %v934
        %v1031 = vunpack.c.l.b16 %v935
        %v1032 = vunpack.c.l.b16 %v936
        %v1033 = vunpack.c.l.b16 %v937
        %v1034 = vunpack.c.l.b16 %v938
        %v1035 = vunpack.c.l.b16 %v939
        %v1036 = vunpack.c.l.b16 %v940
        %v1037 = vunpack.c.l.b16 %v941
        %v1038 = vunpack.c.l.b16 %v942
        %v1039 = vunpack.c.l.b16 %v943
        %v1040 = vunpack.c.l.b16 %v944
        %v1041 = vunpack.c.l.b16 %v945
        %v1042 = vunpack.c.l.b16 %v946
        %v1043 = vunpack.c.l.b16 %v947
        %v1044 = vunpack.c.l.b16 %v948
        %v1045 = vunpack.c.l.b16 %v949
        %v1046 = vunpack.c.l.b16 %v950
        %v1047 = vunpack.c.l.b16 %v951
        %v1048 = vunpack.c.l.b16 %v952
        %v1049 = vunpack.c.l.b16 %v953
        %v1050 = vunpack.c.l.b16 %v954
        %v1051 = vunpack.c.l.b16 %v955
        %v1052 = vunpack.c.l.b16 %v956
        %v1053 = vunpack.c.l.b16 %v957
        %v1054 = vunpack.c.l.b16 %v958
        %v1055 = vunpack.c.l.b16 %v959
        %v1056 = vunpack.c.l.b16 %v960
        %v1057 = vunpack.c.l.b16 %v961
        %v1058 = vunpack.c.l.b16 %v962
        %v1059 = vunpack.c.l.b16 %v963
        %v1060 = vunpack.c.l.b16 %v964
        %v1061 = vunpack.c.l.b16 %v965
        %v1062 = vunpack.c.l.b16 %v966
        %v1063 = vunpack.c.l.b16 %v967
        %v1064 = vunpack.c.l.b16 %v968
        %v1065 = vunpack.c.l.b16 %v969
        %v1066 = vpack.c.b16 %v1019, %v1018
        %v1067 = vpack.c.b16 %v1021, %v1020
        %v1068 = vpack.c.b16 %v1023, %v1022
        %v1069 = vpack.c.b16 %v1025, %v1024
        %v1070 = vpack.c.b16 %v1027, %v1026
        %v1071 = vpack.c.b16 %v1029, %v1028
        %v1072 = vpack.c.b16 %v1031, %v1030
        %v1073 = vpack.c.b16 %v1033, %v1032
        %v1074 = vpack.c.b16 %v1035, %v1034
        %v1075 = vpack.c.b16 %v1037, %v1036
        %v1076 = vpack.c.b16 %v1039, %v1038
        %v1077 = vpack.c.b16 %v1041, %v1040
        %v1078 = vpack.c.b16 %v1043, %v1042
        %v1079 = vpack.c.b16 %v1045, %v1044
        %v1080 = vpack.c.b16 %v1047, %v1046
        %v1081 = vpack.c.b16 %v1049, %v1048
        %v1082 = vpack.c.b16 %v1051, %v1050
        %v1083 = vpack.c.b16 %v1053, %v1052
        %v1084 = vpack.c.b16 %v1055, %v1054
        %v1085 = vpack.c.b16 %v1057, %v1056
        %v1086 = vpack.c.b16 %v1059, %v1058
        %v1087 = vpack.c.b16 %v1061, %v1060
        %v1088 = vpack.c.b16 %v1063, %v1062
        %v1089 = vpack.c.b16 %v1065, %v1064
        %1114 = vmatprep.subr.bf16.mxu0 0
        %1115 = vmatpush1.bf16.msra.mxu0 %v1066
        %1116 = vmatprep.subr.bf16.mxu0 0
        %1117 = vmatpush1.bf16.msra.mxu0 %v1067
        %1118 = vmatprep.subr.bf16.mxu0 0
        %1119 = vmatpush1.bf16.msra.mxu0 %v1068
        %1120 = vmatprep.subr.bf16.mxu0 0
        %1121 = vmatpush1.bf16.msra.mxu0 %v1069
        %1122 = vmatprep.subr.bf16.mxu0 0
        %1123 = vmatpush1.bf16.msra.mxu0 %v1070
        %1124 = vmatprep.subr.bf16.mxu0 0
        %1125 = vmatpush1.bf16.msra.mxu0 %v1071
        %1126 = vmatprep.subr.bf16.mxu0 0
        %1127 = vmatpush1.bf16.msra.mxu0 %v1072
        %1128 = vmatprep.subr.bf16.mxu0 0
        %1129 = vmatpush1.bf16.msra.mxu0 %v1073
        %1130 = vmatprep.subr.bf16.mxu0 0
        %1131 = vmatpush1.bf16.msra.mxu0 %v1074
        %1132 = vmatprep.subr.bf16.mxu0 0
        %1133 = vmatpush1.bf16.msra.mxu0 %v1075
        %1134 = vmatprep.subr.bf16.mxu0 0
        %1135 = vmatpush1.bf16.msra.mxu0 %v1076
        %1136 = vmatprep.subr.bf16.mxu0 0
        %1137 = vmatpush1.bf16.msra.mxu0 %v1077
        %1138 = vmatprep.subr.bf16.mxu0 0
        %1139 = vmatpush1.bf16.msra.mxu0 %v1078
        %1140 = vmatprep.subr.bf16.mxu0 0
        %1141 = vmatpush1.bf16.msra.mxu0 %v1079
        %1142 = vmatprep.subr.bf16.mxu0 0
        %1143 = vmatpush1.bf16.msra.mxu0 %v1080
        %1144 = vmatprep.subr.bf16.mxu0 0
        %1145 = vmatpush1.bf16.msra.mxu0 %v1081
        %1146 = vmatprep.mubr.bf16.mxu0 %v874
        %1147 = vmatmul.mubr.bf16.gmra.mrb[0].mxu0 %v873
        %v1148 = vpop.f32.mrb[0].mxu0
        %v1149 = vadd.f32 0.0, %v1148
        %v1150 = vpop.f32.mrb[0].mxu0
        %v1151 = vpop.f32.mrb[0].mxu0
        %v1152 = vadd.f32 0.0, %v1151
        %v1153 = vpop.f32.mrb[0].mxu0
        %1154 = vmatprep.mubr.bf16.mxu0 %v877
        %1155 = vmatmul.mubr.bf16.gmra.mrb[0].mxu0 %v876
        %v1156 = vpop.f32.mrb[0].mxu0
        %v1157 = vadd.f32 0.0, %v1156
        %v1158 = vpop.f32.mrb[0].mxu0
        %v1159 = vpop.f32.mrb[0].mxu0
        %v1160 = vadd.f32 0.0, %v1159
        %v1161 = vpop.f32.mrb[0].mxu0
        %1162 = vmatprep.mubr.bf16.mxu0 %v880
        %1163 = vmatmul.mubr.bf16.gmra.mrb[0].mxu0 %v879
        %v1164 = vpop.f32.mrb[0].mxu0
        %v1165 = vadd.f32 0.0, %v1164
        %v1166 = vpop.f32.mrb[0].mxu0
        %v1167 = vpop.f32.mrb[0].mxu0
        %v1168 = vadd.f32 0.0, %v1167
        %v1169 = vpop.f32.mrb[0].mxu0
        %1170 = vmatprep.mubr.bf16.mxu0 %v883
        %1171 = vmatmul.mubr.bf16.gmra.mrb[0].mxu0 %v882
        %v1172 = vpop.f32.mrb[0].mxu0
        %v1173 = vadd.f32 0.0, %v1172
        %v1174 = vpop.f32.mrb[0].mxu0
        %v1175 = vpop.f32.mrb[0].mxu0
        %v1176 = vadd.f32 0.0, %v1175
        %v1177 = vpop.f32.mrb[0].mxu0
        %1178 = vmatprep.mubr.bf16.mxu0 %v886
        %1179 = vmatmul.mubr.bf16.gmra.mrb[0].mxu0 %v885
        %v1180 = vpop.f32.mrb[0].mxu0
        %v1181 = vadd.f32 0.0, %v1180
        %v1182 = vpop.f32.mrb[0].mxu0
        %v1183 = vpop.f32.mrb[0].mxu0
        %v1184 = vadd.f32 0.0, %v1183
        %v1185 = vpop.f32.mrb[0].mxu0
        %1186 = vmatprep.mubr.bf16.mxu0 %v889
        %1187 = vmatmul.mubr.bf16.gmra.mrb[0].mxu0 %v888
        %v1188 = vpop.f32.mrb[0].mxu0
        %v1189 = vadd.f32 0.0, %v1188
        %v1190 = vpop.f32.mrb[0].mxu0
        %v1191 = vpop.f32.mrb[0].mxu0
        %v1192 = vadd.f32 0.0, %v1191
        %v1193 = vpop.f32.mrb[0].mxu0
        %1194 = vmatprep.mubr.bf16.mxu0 %v892
        %1195 = vmatmul.mubr.bf16.gmra.mrb[0].mxu0 %v891
        %v1196 = vpop.f32.mrb[0].mxu0
        %v1197 = vadd.f32 0.0, %v1196
        %v1198 = vpop.f32.mrb[0].mxu0
        %v1199 = vpop.f32.mrb[0].mxu0
        %v1200 = vadd.f32 0.0, %v1199
        %v1201 = vpop.f32.mrb[0].mxu0
        %1202 = vmatprep.mubr.bf16.mxu0 %v895
        %1203 = vmatmul.mubr.bf16.gmra.mrb[0].mxu0 %v894
        %v1204 = vpop.f32.mrb[0].mxu0
        %v1205 = vadd.f32 0.0, %v1204
        %v1206 = vpop.f32.mrb[0].mxu0
        %v1207 = vpop.f32.mrb[0].mxu0
        %v1208 = vadd.f32 0.0, %v1207
        %v1209 = vpop.f32.mrb[0].mxu0
        %1210 = vmatprep.mubr.bf16.mxu0 %v898
        %1211 = vmatmul.mubr.bf16.gmra.mrb[0].mxu0 %v897
        %v1212 = vpop.f32.mrb[0].mxu0
        %v1213 = vadd.f32 0.0, %v1212
        %v1214 = vpop.f32.mrb[0].mxu0
        %v1215 = vpop.f32.mrb[0].mxu0
        %v1216 = vadd.f32 0.0, %v1215
        %v1217 = vpop.f32.mrb[0].mxu0
        %1218 = vmatprep.mubr.bf16.mxu0 %v901
        %1219 = vmatmul.mubr.bf16.gmra.mrb[0].mxu0 %v900
        %v1220 = vpop.f32.mrb[0].mxu0
        %v1221 = vadd.f32 0.0, %v1220
        %v1222 = vpop.f32.mrb[0].mxu0
        %v1223 = vpop.f32.mrb[0].mxu0
        %v1224 = vadd.f32 0.0, %v1223
        %v1225 = vpop.f32.mrb[0].mxu0
        %1226 = vmatprep.mubr.bf16.mxu0 %v904
        %1227 = vmatmul.mubr.bf16.gmra.mrb[0].mxu0 %v903
        %v1228 = vpop.f32.mrb[0].mxu0
        %v1229 = vadd.f32 0.0, %v1228
        %v1230 = vpop.f32.mrb[0].mxu0
        %v1231 = vpop.f32.mrb[0].mxu0
        %v1232 = vadd.f32 0.0, %v1231
        %v1233 = vpop.f32.mrb[0].mxu0
        %1234 = vmatprep.mubr.bf16.mxu0 %v907
        %1235 = vmatmul.mubr.bf16.gmra.mrb[0].mxu0 %v906
        %v1236 = vpop.f32.mrb[0].mxu0
        %v1237 = vadd.f32 0.0, %v1236
        %v1238 = vpop.f32.mrb[0].mxu0
        %v1239 = vpop.f32.mrb[0].mxu0
        %v1240 = vadd.f32 0.0, %v1239
        %v1241 = vpop.f32.mrb[0].mxu0
        %1242 = vmatprep.mubr.bf16.mxu0 %v910
        %1243 = vmatmul.mubr.bf16.gmra.mrb[0].mxu0 %v909
        %v1244 = vpop.f32.mrb[0].mxu0
        %v1245 = vadd.f32 0.0, %v1244
        %v1246 = vpop.f32.mrb[0].mxu0
        %v1247 = vpop.f32.mrb[0].mxu0
        %v1248 = vadd.f32 0.0, %v1247
        %v1249 = vpop.f32.mrb[0].mxu0
        %1250 = vmatprep.mubr.bf16.mxu0 %v913
        %1251 = vmatmul.mubr.bf16.gmra.mrb[0].mxu0 %v912
        %v1252 = vpop.f32.mrb[0].mxu0
        %v1253 = vadd.f32 0.0, %v1252
        %v1254 = vpop.f32.mrb[0].mxu0
        %v1255 = vpop.f32.mrb[0].mxu0
        %v1256 = vadd.f32 0.0, %v1255
        %v1257 = vpop.f32.mrb[0].mxu0
        %1258 = vmatprep.mubr.bf16.mxu0 %v916
        %1259 = vmatmul.mubr.bf16.gmra.mrb[0].mxu0 %v915
        %v1260 = vpop.f32.mrb[0].mxu0
        %v1261 = vadd.f32 0.0, %v1260
        %v1262 = vpop.f32.mrb[0].mxu0
        %v1263 = vpop.f32.mrb[0].mxu0
        %v1264 = vadd.f32 0.0, %v1263
        %v1265 = vpop.f32.mrb[0].mxu0
        %1266 = vmatprep.mubr.bf16.mxu0 %v919
        %1267 = vmatmul.mubr.bf16.gmra.mrb[0].mxu0 %v918
        %v1268 = vpop.f32.mrb[0].mxu0
        %v1269 = vadd.f32 0.0, %v1268
        %v1270 = vpop.f32.mrb[0].mxu0
        %v1271 = vpop.f32.mrb[0].mxu0
        %v1272 = vadd.f32 0.0, %v1271
        %v1273 = vpop.f32.mrb[0].mxu0
        %1274 = vdwg.mxu0
        %1275 = vmatprep.subr.bf16.mxu0 0
        %1276 = vmatpush1.bf16.msra.mxu0 %v1082
        %1277 = vmatprep.subr.bf16.mxu0 0
        %1278 = vmatpush1.bf16.msra.mxu0 %v1083
        %1279 = vmatprep.subr.bf16.mxu0 0
        %1280 = vmatpush1.bf16.msra.mxu0 %v1084
        %1281 = vmatprep.subr.bf16.mxu0 0
        %1282 = vmatpush1.bf16.msra.mxu0 %v1085
        %1283 = vmatprep.subr.bf16.mxu0 0
        %1284 = vmatpush1.bf16.msra.mxu0 %v1086
        %1285 = vmatprep.subr.bf16.mxu0 0
        %1286 = vmatpush1.bf16.msra.mxu0 %v1087
        %1287 = vmatprep.subr.bf16.mxu0 0
        %1288 = vmatpush1.bf16.msra.mxu0 %v1088
        %1289 = vmatprep.subr.bf16.mxu0 0
        %1290 = vmatpush1.bf16.msra.mxu0 %v1089
        %1291 = vmatprep.subr.bf16.mxu0 0
        %1292 = vmatpush1.bf16.msra.mxu0 0
        %1293 = vmatprep.subr.bf16.mxu0 0
        %1294 = vmatpush1.bf16.msra.mxu0 0
        %1295 = vmatprep.subr.bf16.mxu0 0
        %1296 = vmatpush1.bf16.msra.mxu0 0
        %1297 = vmatprep.subr.bf16.mxu0 0
        %1298 = vmatpush1.bf16.msra.mxu0 0
        %1299 = vmatprep.subr.bf16.mxu0 0
        %1300 = vmatpush1.bf16.msra.mxu0 0
        %1301 = vmatprep.subr.bf16.mxu0 0
        %1302 = vmatpush1.bf16.msra.mxu0 0
        %1303 = vmatprep.subr.bf16.mxu0 0
        %1304 = vmatpush1.bf16.msra.mxu0 0
        %1305 = vmatprep.subr.bf16.mxu0 0
        %1306 = vmatpush1.bf16.msra.mxu0 0
        %1307 = vmatprep.mubr.bf16.mxu0 0
        %1308 = vmatmul.mubr.bf16.gmra.mrb[0].mxu0 %v875
        %v1309 = vpop.f32.mrb[0].mxu0
        %v1310 = vadd.f32 %v1149, %v1309
        %v1311 = vpop.f32.mrb[0].mxu0
        %v1312 = vpop.f32.mrb[0].mxu0
        %v1313 = vadd.f32 %v1152, %v1312
        %v1314 = vpop.f32.mrb[0].mxu0
        %1315 = vmatprep.mubr.bf16.mxu0 0
        %1316 = vmatmul.mubr.bf16.gmra.mrb[0].mxu0 %v878
        %v1317 = vpop.f32.mrb[0].mxu0
        %v1318 = vadd.f32 %v1157, %v1317
        %v1319 = vpop.f32.mrb[0].mxu0
        %v1320 = vpop.f32.mrb[0].mxu0
        %v1321 = vadd.f32 %v1160, %v1320
        %v1322 = vpop.f32.mrb[0].mxu0
        %1323 = vmatprep.mubr.bf16.mxu0 0
        %1324 = vmatmul.mubr.bf16.gmra.mrb[0].mxu0 %v881
        %v1325 = vpop.f32.mrb[0].mxu0
        %v1326 = vadd.f32 %v1165, %v1325
        %v1327 = vpop.f32.mrb[0].mxu0
        %v1328 = vpop.f32.mrb[0].mxu0
        %v1329 = vadd.f32 %v1168, %v1328
        %v1330 = vpop.f32.mrb[0].mxu0
        %1331 = vmatprep.mubr.bf16.mxu0 0
        %1332 = vmatmul.mubr.bf16.gmra.mrb[0].mxu0 %v884
        %v1333 = vpop.f32.mrb[0].mxu0
        %v1334 = vadd.f32 %v1173, %v1333
        %v1335 = vpop.f32.mrb[0].mxu0
        %v1336 = vpop.f32.mrb[0].mxu0
        %v1337 = vadd.f32 %v1176, %v1336
        %v1338 = vpop.f32.mrb[0].mxu0
        %1339 = vmatprep.mubr.bf16.mxu0 0
        %1340 = vmatmul.mubr.bf16.gmra.mrb[0].mxu0 %v887
        %v1341 = vpop.f32.mrb[0].mxu0
        %v1342 = vadd.f32 %v1181, %v1341
        %v1343 = vpop.f32.mrb[0].mxu0
        %v1344 = vpop.f32.mrb[0].mxu0
        %v1345 = vadd.f32 %v1184, %v1344
        %v1346 = vpop.f32.mrb[0].mxu0
        %1347 = vmatprep.mubr.bf16.mxu0 0
        %1348 = vmatmul.mubr.bf16.gmra.mrb[0].mxu0 %v890
        %v1349 = vpop.f32.mrb[0].mxu0
        %v1350 = vadd.f32 %v1189, %v1349
        %v1351 = vpop.f32.mrb[0].mxu0
        %v1352 = vpop.f32.mrb[0].mxu0
        %v1353 = vadd.f32 %v1192, %v1352
        %v1354 = vpop.f32.mrb[0].mxu0
        %1355 = vmatprep.mubr.bf16.mxu0 0
        %1356 = vmatmul.mubr.bf16.gmra.mrb[0].mxu0 %v893
        %v1357 = vpop.f32.mrb[0].mxu0
        %v1358 = vadd.f32 %v1197, %v1357
        %v1359 = vpop.f32.mrb[0].mxu0
        %v1360 = vpop.f32.mrb[0].mxu0
        %v1361 = vadd.f32 %v1200, %v1360
        %v1362 = vpop.f32.mrb[0].mxu0
        %1363 = vmatprep.mubr.bf16.mxu0 0
        %1364 = vmatmul.mubr.bf16.gmra.mrb[0].mxu0 %v896
        %v1365 = vpop.f32.mrb[0].mxu0
        %v1366 = vadd.f32 %v1205, %v1365
        %v1367 = vpop.f32.mrb[0].mxu0
        %v1368 = vpop.f32.mrb[0].mxu0
        %v1369 = vadd.f32 %v1208, %v1368
        %v1370 = vpop.f32.mrb[0].mxu0
        %1371 = vmatprep.mubr.bf16.mxu0 0
        %1372 = vmatmul.mubr.bf16.gmra.mrb[0].mxu0 %v899
        %v1373 = vpop.f32.mrb[0].mxu0
        %v1374 = vadd.f32 %v1213, %v1373
        %v1375 = vpop.f32.mrb[0].mxu0
        %v1376 = vpop.f32.mrb[0].mxu0
        %v1377 = vadd.f32 %v1216, %v1376
        %v1378 = vpop.f32.mrb[0].mxu0
        %1379 = vmatprep.mubr.bf16.mxu0 0
        %1380 = vmatmul.mubr.bf16.gmra.mrb[0].mxu0 %v902
        %v1381 = vpop.f32.mrb[0].mxu0
        %v1382 = vadd.f32 %v1221, %v1381
        %v1383 = vpop.f32.mrb[0].mxu0
        %v1384 = vpop.f32.mrb[0].mxu0
        %v1385 = vadd.f32 %v1224, %v1384
        %v1386 = vpop.f32.mrb[0].mxu0
        %1387 = vmatprep.mubr.bf16.mxu0 0
        %1388 = vmatmul.mubr.bf16.gmra.mrb[0].mxu0 %v905
        %v1389 = vpop.f32.mrb[0].mxu0
        %v1390 = vadd.f32 %v1229, %v1389
        %v1391 = vpop.f32.mrb[0].mxu0
        %v1392 = vpop.f32.mrb[0].mxu0
        %v1393 = vadd.f32 %v1232, %v1392
        %v1394 = vpop.f32.mrb[0].mxu0
        %1395 = vmatprep.mubr.bf16.mxu0 0
        %1396 = vmatmul.mubr.bf16.gmra.mrb[0].mxu0 %v908
        %v1397 = vpop.f32.mrb[0].mxu0
        %v1398 = vadd.f32 %v1237, %v1397
        %v1399 = vpop.f32.mrb[0].mxu0
        %v1400 = vpop.f32.mrb[0].mxu0
        %v1401 = vadd.f32 %v1240, %v1400
        %v1402 = vpop.f32.mrb[0].mxu0
        %1403 = vmatprep.mubr.bf16.mxu0 0
        %1404 = vmatmul.mubr.bf16.gmra.mrb[0].mxu0 %v911
        %v1405 = vpop.f32.mrb[0].mxu0
        %v1406 = vadd.f32 %v1245, %v1405
        %v1407 = vpop.f32.mrb[0].mxu0
        %v1408 = vpop.f32.mrb[0].mxu0
        %v1409 = vadd.f32 %v1248, %v1408
        %v1410 = vpop.f32.mrb[0].mxu0
        %1411 = vmatprep.mubr.bf16.mxu0 0
        %1412 = vmatmul.mubr.bf16.gmra.mrb[0].mxu0 %v914
        %v1413 = vpop.f32.mrb[0].mxu0
        %v1414 = vadd.f32 %v1253, %v1413
        %v1415 = vpop.f32.mrb[0].mxu0
        %v1416 = vpop.f32.mrb[0].mxu0
        %v1417 = vadd.f32 %v1256, %v1416
        %v1418 = vpop.f32.mrb[0].mxu0
        %1419 = vmatprep.mubr.bf16.mxu0 0
        %1420 = vmatmul.mubr.bf16.gmra.mrb[0].mxu0 %v917
        %v1421 = vpop.f32.mrb[0].mxu0
        %v1422 = vadd.f32 %v1261, %v1421
        %v1423 = vpop.f32.mrb[0].mxu0
        %v1424 = vpop.f32.mrb[0].mxu0
        %v1425 = vadd.f32 %v1264, %v1424
        %v1426 = vpop.f32.mrb[0].mxu0
        %1427 = vmatprep.mubr.bf16.mxu0 0
        %1428 = vmatmul.mubr.bf16.gmra.mrb[0].mxu0 %v920
        %v1429 = vpop.f32.mrb[0].mxu0
        %v1430 = vadd.f32 %v1269, %v1429
        %v1431 = vpop.f32.mrb[0].mxu0
        %v1432 = vpop.f32.mrb[0].mxu0
        %v1433 = vadd.f32 %v1272, %v1432
        %v1434 = vpop.f32.mrb[0].mxu0
        %1435 = vdwg.mxu0
        %v1484 = vunpack.c.l.b16 %v825
        %v1485 = vunpack.c.l.b16 %v826
        %v1486 = vunpack.c.l.b16 %v827
        %v1487 = vunpack.c.l.b16 %v828
        %v1488 = vunpack.c.l.b16 %v829
        %v1489 = vunpack.c.l.b16 %v830
        %v1490 = vunpack.c.l.b16 %v831
        %v1491 = vunpack.c.l.b16 %v832
        %v1492 = vunpack.c.l.b16 %v833
        %v1493 = vunpack.c.l.b16 %v834
        %v1494 = vunpack.c.l.b16 %v835
        %v1495 = vunpack.c.l.b16 %v836
        %v1496 = vunpack.c.l.b16 %v837
        %v1497 = vunpack.c.l.b16 %v838
        %v1498 = vunpack.c.l.b16 %v839
        %v1499 = vunpack.c.l.b16 %v840
        %v1500 = vunpack.c.l.b16 %v841
        %v1501 = vunpack.c.l.b16 %v842
        %v1502 = vunpack.c.l.b16 %v843
        %v1503 = vunpack.c.l.b16 %v844
        %v1504 = vunpack.c.l.b16 %v845
        %v1505 = vunpack.c.l.b16 %v846
        %v1506 = vunpack.c.l.b16 %v847
        %v1507 = vunpack.c.l.b16 %v848
        %v1508 = vunpack.c.l.b16 %v849
        %v1509 = vunpack.c.l.b16 %v850
        %v1510 = vunpack.c.l.b16 %v851
        %v1511 = vunpack.c.l.b16 %v852
        %v1512 = vunpack.c.l.b16 %v853
        %v1513 = vunpack.c.l.b16 %v854
        %v1514 = vunpack.c.l.b16 %v855
        %v1515 = vunpack.c.l.b16 %v856
        %v1516 = vunpack.c.l.b16 %v857
        %v1517 = vunpack.c.l.b16 %v858
        %v1518 = vunpack.c.l.b16 %v859
        %v1519 = vunpack.c.l.b16 %v860
        %v1520 = vunpack.c.l.b16 %v861
        %v1521 = vunpack.c.l.b16 %v862
        %v1522 = vunpack.c.l.b16 %v863
        %v1523 = vunpack.c.l.b16 %v864
        %v1524 = vunpack.c.l.b16 %v865
        %v1525 = vunpack.c.l.b16 %v866
        %v1526 = vunpack.c.l.b16 %v867
        %v1527 = vunpack.c.l.b16 %v868
        %v1528 = vunpack.c.l.b16 %v869
        %v1529 = vunpack.c.l.b16 %v870
        %v1530 = vunpack.c.l.b16 %v871
        %v1531 = vunpack.c.l.b16 %v872
        %v1532 = vpack.c.b16 %v1485, %v1484
        %v1533 = vpack.c.b16 %v1487, %v1486
        %v1534 = vpack.c.b16 %v1489, %v1488
        %v1535 = vpack.c.b16 %v1491, %v1490
        %v1536 = vpack.c.b16 %v1493, %v1492
        %v1537 = vpack.c.b16 %v1495, %v1494
        %v1538 = vpack.c.b16 %v1497, %v1496
        %v1539 = vpack.c.b16 %v1499, %v1498
        %v1540 = vpack.c.b16 %v1501, %v1500
        %v1541 = vpack.c.b16 %v1503, %v1502
        %v1542 = vpack.c.b16 %v1505, %v1504
        %v1543 = vpack.c.b16 %v1507, %v1506
        %v1544 = vpack.c.b16 %v1509, %v1508
        %v1545 = vpack.c.b16 %v1511, %v1510
        %v1546 = vpack.c.b16 %v1513, %v1512
        %v1547 = vpack.c.b16 %v1515, %v1514
        %v1548 = vpack.c.b16 %v1517, %v1516
        %v1549 = vpack.c.b16 %v1519, %v1518
        %v1550 = vpack.c.b16 %v1521, %v1520
        %v1551 = vpack.c.b16 %v1523, %v1522
        %v1552 = vpack.c.b16 %v1525, %v1524
        %v1553 = vpack.c.b16 %v1527, %v1526
        %v1554 = vpack.c.b16 %v1529, %v1528
        %v1555 = vpack.c.b16 %v1531, %v1530
        %1580 = vmatprep.subr.bf16.mxu0 0
        %1581 = vmatpush1.bf16.msra.mxu0 %v1532
        %1582 = vmatprep.subr.bf16.mxu0 0
        %1583 = vmatpush1.bf16.msra.mxu0 %v1533
        %1584 = vmatprep.subr.bf16.mxu0 0
        %1585 = vmatpush1.bf16.msra.mxu0 %v1534
        %1586 = vmatprep.subr.bf16.mxu0 0
        %1587 = vmatpush1.bf16.msra.mxu0 %v1535
        %1588 = vmatprep.subr.bf16.mxu0 0
        %1589 = vmatpush1.bf16.msra.mxu0 %v1536
        %1590 = vmatprep.subr.bf16.mxu0 0
        %1591 = vmatpush1.bf16.msra.mxu0 %v1537
        %1592 = vmatprep.subr.bf16.mxu0 0
        %1593 = vmatpush1.bf16.msra.mxu0 %v1538
        %1594 = vmatprep.subr.bf16.mxu0 0
        %1595 = vmatpush1.bf16.msra.mxu0 %v1539
        %1596 = vmatprep.subr.bf16.mxu0 0
        %1597 = vmatpush1.bf16.msra.mxu0 %v1540
        %1598 = vmatprep.subr.bf16.mxu0 0
        %1599 = vmatpush1.bf16.msra.mxu0 %v1541
        %1600 = vmatprep.subr.bf16.mxu0 0
        %1601 = vmatpush1.bf16.msra.mxu0 %v1542
        %1602 = vmatprep.subr.bf16.mxu0 0
        %1603 = vmatpush1.bf16.msra.mxu0 %v1543
        %1604 = vmatprep.subr.bf16.mxu0 0
        %1605 = vmatpush1.bf16.msra.mxu0 %v1544
        %1606 = vmatprep.subr.bf16.mxu0 0
        %1607 = vmatpush1.bf16.msra.mxu0 %v1545
        %1608 = vmatprep.subr.bf16.mxu0 0
        %1609 = vmatpush1.bf16.msra.mxu0 %v1546
        %1610 = vmatprep.subr.bf16.mxu0 0
        %1611 = vmatpush1.bf16.msra.mxu0 %v1547
        %1612 = vmatprep.mubr.bf16.mxu0 %v778
        %1613 = vmatmul.mubr.bf16.gmra.mrb[0].mxu0 %v777
        %v1614 = vpop.f32.mrb[0].mxu0
        %v1615 = vadd.f32 %v1310, %v1614
        %v1616 = vpop.f32.mrb[0].mxu0
        %v1617 = vpop.f32.mrb[0].mxu0
        %v1618 = vadd.f32 %v1313, %v1617
        %v1619 = vpop.f32.mrb[0].mxu0
        %1620 = vmatprep.mubr.bf16.mxu0 %v781
        %1621 = vmatmul.mubr.bf16.gmra.mrb[0].mxu0 %v780
        %v1622 = vpop.f32.mrb[0].mxu0
        %v1623 = vadd.f32 %v1318, %v1622
        %v1624 = vpop.f32.mrb[0].mxu0
        %v1625 = vpop.f32.mrb[0].mxu0
        %v1626 = vadd.f32 %v1321, %v1625
        %v1627 = vpop.f32.mrb[0].mxu0
        %1628 = vmatprep.mubr.bf16.mxu0 %v784
        %1629 = vmatmul.mubr.bf16.gmra.mrb[0].mxu0 %v783
        %v1630 = vpop.f32.mrb[0].mxu0
        %v1631 = vadd.f32 %v1326, %v1630
        %v1632 = vpop.f32.mrb[0].mxu0
        %v1633 = vpop.f32.mrb[0].mxu0
        %v1634 = vadd.f32 %v1329, %v1633
        %v1635 = vpop.f32.mrb[0].mxu0
        %1636 = vmatprep.mubr.bf16.mxu0 %v787
        %1637 = vmatmul.mubr.bf16.gmra.mrb[0].mxu0 %v786
        %v1638 = vpop.f32.mrb[0].mxu0
        %v1639 = vadd.f32 %v1334, %v1638
        %v1640 = vpop.f32.mrb[0].mxu0
        %v1641 = vpop.f32.mrb[0].mxu0
        %v1642 = vadd.f32 %v1337, %v1641
        %v1643 = vpop.f32.mrb[0].mxu0
        %1644 = vmatprep.mubr.bf16.mxu0 %v790
        %1645 = vmatmul.mubr.bf16.gmra.mrb[0].mxu0 %v789
        %v1646 = vpop.f32.mrb[0].mxu0
        %v1647 = vadd.f32 %v1342, %v1646
        %v1648 = vpop.f32.mrb[0].mxu0
        %v1649 = vpop.f32.mrb[0].mxu0
        %v1650 = vadd.f32 %v1345, %v1649
        %v1651 = vpop.f32.mrb[0].mxu0
        %1652 = vmatprep.mubr.bf16.mxu0 %v793
        %1653 = vmatmul.mubr.bf16.gmra.mrb[0].mxu0 %v792
        %v1654 = vpop.f32.mrb[0].mxu0
        %v1655 = vadd.f32 %v1350, %v1654
        %v1656 = vpop.f32.mrb[0].mxu0
        %v1657 = vpop.f32.mrb[0].mxu0
        %v1658 = vadd.f32 %v1353, %v1657
        %v1659 = vpop.f32.mrb[0].mxu0
        %1660 = vmatprep.mubr.bf16.mxu0 %v796
        %1661 = vmatmul.mubr.bf16.gmra.mrb[0].mxu0 %v795
        %v1662 = vpop.f32.mrb[0].mxu0
        %v1663 = vadd.f32 %v1358, %v1662
        %v1664 = vpop.f32.mrb[0].mxu0
        %v1665 = vpop.f32.mrb[0].mxu0
        %v1666 = vadd.f32 %v1361, %v1665
        %v1667 = vpop.f32.mrb[0].mxu0
        %1668 = vmatprep.mubr.bf16.mxu0 %v799
        %1669 = vmatmul.mubr.bf16.gmra.mrb[0].mxu0 %v798
        %v1670 = vpop.f32.mrb[0].mxu0
        %v1671 = vadd.f32 %v1366, %v1670
        %v1672 = vpop.f32.mrb[0].mxu0
        %v1673 = vpop.f32.mrb[0].mxu0
        %v1674 = vadd.f32 %v1369, %v1673
        %v1675 = vpop.f32.mrb[0].mxu0
        %1676 = vmatprep.mubr.bf16.mxu0 %v802
        %1677 = vmatmul.mubr.bf16.gmra.mrb[0].mxu0 %v801
        %v1678 = vpop.f32.mrb[0].mxu0
        %v1679 = vadd.f32 %v1374, %v1678
        %v1680 = vpop.f32.mrb[0].mxu0
        %v1681 = vpop.f32.mrb[0].mxu0
        %v1682 = vadd.f32 %v1377, %v1681
        %v1683 = vpop.f32.mrb[0].mxu0
        %1684 = vmatprep.mubr.bf16.mxu0 %v805
        %1685 = vmatmul.mubr.bf16.gmra.mrb[0].mxu0 %v804
        %v1686 = vpop.f32.mrb[0].mxu0
        %v1687 = vadd.f32 %v1382, %v1686
        %v1688 = vpop.f32.mrb[0].mxu0
        %v1689 = vpop.f32.mrb[0].mxu0
        %v1690 = vadd.f32 %v1385, %v1689
        %v1691 = vpop.f32.mrb[0].mxu0
        %1692 = vmatprep.mubr.bf16.mxu0 %v808
        %1693 = vmatmul.mubr.bf16.gmra.mrb[0].mxu0 %v807
        %v1694 = vpop.f32.mrb[0].mxu0
        %v1695 = vadd.f32 %v1390, %v1694
        %v1696 = vpop.f32.mrb[0].mxu0
        %v1697 = vpop.f32.mrb[0].mxu0
        %v1698 = vadd.f32 %v1393, %v1697
        %v1699 = vpop.f32.mrb[0].mxu0
        %1700 = vmatprep.mubr.bf16.mxu0 %v811
        %1701 = vmatmul.mubr.bf16.gmra.mrb[0].mxu0 %v810
        %v1702 = vpop.f32.mrb[0].mxu0
        %v1703 = vadd.f32 %v1398, %v1702
        %v1704 = vpop.f32.mrb[0].mxu0
        %v1705 = vpop.f32.mrb[0].mxu0
        %v1706 = vadd.f32 %v1401, %v1705
        %v1707 = vpop.f32.mrb[0].mxu0
        %1708 = vmatprep.mubr.bf16.mxu0 %v814
        %1709 = vmatmul.mubr.bf16.gmra.mrb[0].mxu0 %v813
        %v1710 = vpop.f32.mrb[0].mxu0
        %v1711 = vadd.f32 %v1406, %v1710
        %v1712 = vpop.f32.mrb[0].mxu0
        %v1713 = vpop.f32.mrb[0].mxu0
        %v1714 = vadd.f32 %v1409, %v1713
        %v1715 = vpop.f32.mrb[0].mxu0
        %1716 = vmatprep.mubr.bf16.mxu0 %v817
        %1717 = vmatmul.mubr.bf16.gmra.mrb[0].mxu0 %v816
        %v1718 = vpop.f32.mrb[0].mxu0
        %v1719 = vadd.f32 %v1414, %v1718
        %v1720 = vpop.f32.mrb[0].mxu0
        %v1721 = vpop.f32.mrb[0].mxu0
        %v1722 = vadd.f32 %v1417, %v1721
        %v1723 = vpop.f32.mrb[0].mxu0
        %1724 = vmatprep.mubr.bf16.mxu0 %v820
        %1725 = vmatmul.mubr.bf16.gmra.mrb[0].mxu0 %v819
        %v1726 = vpop.f32.mrb[0].mxu0
        %v1727 = vadd.f32 %v1422, %v1726
        %v1728 = vpop.f32.mrb[0].mxu0
        %v1729 = vpop.f32.mrb[0].mxu0
        %v1730 = vadd.f32 %v1425, %v1729
        %v1731 = vpop.f32.mrb[0].mxu0
        %1732 = vmatprep.mubr.bf16.mxu0 %v823
        %1733 = vmatmul.mubr.bf16.gmra.mrb[0].mxu0 %v822
        %v1734 = vpop.f32.mrb[0].mxu0
        %v1735 = vadd.f32 %v1430, %v1734
        %v1736 = vpop.f32.mrb[0].mxu0
        %v1737 = vpop.f32.mrb[0].mxu0
        %v1738 = vadd.f32 %v1433, %v1737
        %v1739 = vpop.f32.mrb[0].mxu0
        %1740 = vdwg.mxu0
        %1741 = vmatprep.subr.bf16.mxu0 0
        %1742 = vmatpush1.bf16.msra.mxu0 %v1548
        %1743 = vmatprep.subr.bf16.mxu0 0
        %1744 = vmatpush1.bf16.msra.mxu0 %v1549
        %1745 = vmatprep.subr.bf16.mxu0 0
        %1746 = vmatpush1.bf16.msra.mxu0 %v1550
        %1747 = vmatprep.subr.bf16.mxu0 0
        %1748 = vmatpush1.bf16.msra.mxu0 %v1551
        %1749 = vmatprep.subr.bf16.mxu0 0
        %1750 = vmatpush1.bf16.msra.mxu0 %v1552
        %1751 = vmatprep.subr.bf16.mxu0 0
        %1752 = vmatpush1.bf16.msra.mxu0 %v1553
        %1753 = vmatprep.subr.bf16.mxu0 0
        %1754 = vmatpush1.bf16.msra.mxu0 %v1554
        %1755 = vmatprep.subr.bf16.mxu0 0
        %1756 = vmatpush1.bf16.msra.mxu0 %v1555
        %1757 = vmatprep.subr.bf16.mxu0 0
        %1758 = vmatpush1.bf16.msra.mxu0 0
        %1759 = vmatprep.subr.bf16.mxu0 0
        %1760 = vmatpush1.bf16.msra.mxu0 0
        %1761 = vmatprep.subr.bf16.mxu0 0
        %1762 = vmatpush1.bf16.msra.mxu0 0
        %1763 = vmatprep.subr.bf16.mxu0 0
        %1764 = vmatpush1.bf16.msra.mxu0 0
        %1765 = vmatprep.subr.bf16.mxu0 0
        %1766 = vmatpush1.bf16.msra.mxu0 0
        %1767 = vmatprep.subr.bf16.mxu0 0
        %1768 = vmatpush1.bf16.msra.mxu0 0
        %1769 = vmatprep.subr.bf16.mxu0 0
        %1770 = vmatpush1.bf16.msra.mxu0 0
        %1771 = vmatprep.subr.bf16.mxu0 0
        %1772 = vmatpush1.bf16.msra.mxu0 0
        %1773 = vmatprep.mubr.bf16.mxu0 0
        %1774 = vmatmul.mubr.bf16.gmra.mrb[0].mxu0 %v779
        %v1775 = vpop.f32.mrb[0].mxu0
        %v1776 = vadd.f32 %v1615, %v1775
        %v1777 = vpop.f32.mrb[0].mxu0
        %v1778 = vpop.f32.mrb[0].mxu0
        %v1779 = vadd.f32 %v1618, %v1778
        %v1780 = vpop.f32.mrb[0].mxu0
        %1781 = vmatprep.mubr.bf16.mxu0 0
        %1782 = vmatmul.mubr.bf16.gmra.mrb[0].mxu0 %v782
        %v1783 = vpop.f32.mrb[0].mxu0
        %v1784 = vadd.f32 %v1623, %v1783
        %v1785 = vpop.f32.mrb[0].mxu0
        %v1786 = vpop.f32.mrb[0].mxu0
        %v1787 = vadd.f32 %v1626, %v1786
        %v1788 = vpop.f32.mrb[0].mxu0
        %1789 = vmatprep.mubr.bf16.mxu0 0
        %1790 = vmatmul.mubr.bf16.gmra.mrb[0].mxu0 %v785
        %v1791 = vpop.f32.mrb[0].mxu0
        %v1792 = vadd.f32 %v1631, %v1791
        %v1793 = vpop.f32.mrb[0].mxu0
        %v1794 = vpop.f32.mrb[0].mxu0
        %v1795 = vadd.f32 %v1634, %v1794
        %v1796 = vpop.f32.mrb[0].mxu0
        %1797 = vmatprep.mubr.bf16.mxu0 0
        %1798 = vmatmul.mubr.bf16.gmra.mrb[0].mxu0 %v788
        %v1799 = vpop.f32.mrb[0].mxu0
        %v1800 = vadd.f32 %v1639, %v1799
        %v1801 = vpop.f32.mrb[0].mxu0
        %v1802 = vpop.f32.mrb[0].mxu0
        %v1803 = vadd.f32 %v1642, %v1802
        %v1804 = vpop.f32.mrb[0].mxu0
        %1805 = vmatprep.mubr.bf16.mxu0 0
        %1806 = vmatmul.mubr.bf16.gmra.mrb[0].mxu0 %v791
        %v1807 = vpop.f32.mrb[0].mxu0
        %v1808 = vadd.f32 %v1647, %v1807
        %v1809 = vpop.f32.mrb[0].mxu0
        %v1810 = vpop.f32.mrb[0].mxu0
        %v1811 = vadd.f32 %v1650, %v1810
        %v1812 = vpop.f32.mrb[0].mxu0
        %1813 = vmatprep.mubr.bf16.mxu0 0
        %1814 = vmatmul.mubr.bf16.gmra.mrb[0].mxu0 %v794
        %v1815 = vpop.f32.mrb[0].mxu0
        %v1816 = vadd.f32 %v1655, %v1815
        %v1817 = vpop.f32.mrb[0].mxu0
        %v1818 = vpop.f32.mrb[0].mxu0
        %v1819 = vadd.f32 %v1658, %v1818
        %v1820 = vpop.f32.mrb[0].mxu0
        %1821 = vmatprep.mubr.bf16.mxu0 0
        %1822 = vmatmul.mubr.bf16.gmra.mrb[0].mxu0 %v797
        %v1823 = vpop.f32.mrb[0].mxu0
        %v1824 = vadd.f32 %v1663, %v1823
        %v1825 = vpop.f32.mrb[0].mxu0
        %v1826 = vpop.f32.mrb[0].mxu0
        %v1827 = vadd.f32 %v1666, %v1826
        %v1828 = vpop.f32.mrb[0].mxu0
        %1829 = vmatprep.mubr.bf16.mxu0 0
        %1830 = vmatmul.mubr.bf16.gmra.mrb[0].mxu0 %v800
        %v1831 = vpop.f32.mrb[0].mxu0
        %v1832 = vadd.f32 %v1671, %v1831
        %v1833 = vpop.f32.mrb[0].mxu0
        %v1834 = vpop.f32.mrb[0].mxu0
        %v1835 = vadd.f32 %v1674, %v1834
        %v1836 = vpop.f32.mrb[0].mxu0
        %1837 = vmatprep.mubr.bf16.mxu0 0
        %1838 = vmatmul.mubr.bf16.gmra.mrb[0].mxu0 %v803
        %v1839 = vpop.f32.mrb[0].mxu0
        %v1840 = vadd.f32 %v1679, %v1839
        %v1841 = vpop.f32.mrb[0].mxu0
        %v1842 = vpop.f32.mrb[0].mxu0
        %v1843 = vadd.f32 %v1682, %v1842
        %v1844 = vpop.f32.mrb[0].mxu0
        %1845 = vmatprep.mubr.bf16.mxu0 0
        %1846 = vmatmul.mubr.bf16.gmra.mrb[0].mxu0 %v806
        %v1847 = vpop.f32.mrb[0].mxu0
        %v1848 = vadd.f32 %v1687, %v1847
        %v1849 = vpop.f32.mrb[0].mxu0
        %v1850 = vpop.f32.mrb[0].mxu0
        %v1851 = vadd.f32 %v1690, %v1850
        %v1852 = vpop.f32.mrb[0].mxu0
        %1853 = vmatprep.mubr.bf16.mxu0 0
        %1854 = vmatmul.mubr.bf16.gmra.mrb[0].mxu0 %v809
        %v1855 = vpop.f32.mrb[0].mxu0
        %v1856 = vadd.f32 %v1695, %v1855
        %v1857 = vpop.f32.mrb[0].mxu0
        %v1858 = vpop.f32.mrb[0].mxu0
        %v1859 = vadd.f32 %v1698, %v1858
        %v1860 = vpop.f32.mrb[0].mxu0
        %1861 = vmatprep.mubr.bf16.mxu0 0
        %1862 = vmatmul.mubr.bf16.gmra.mrb[0].mxu0 %v812
        %v1863 = vpop.f32.mrb[0].mxu0
        %v1864 = vadd.f32 %v1703, %v1863
        %v1865 = vpop.f32.mrb[0].mxu0
        %v1866 = vpop.f32.mrb[0].mxu0
        %v1867 = vadd.f32 %v1706, %v1866
        %v1868 = vpop.f32.mrb[0].mxu0
        %1869 = vmatprep.mubr.bf16.mxu0 0
        %1870 = vmatmul.mubr.bf16.gmra.mrb[0].mxu0 %v815
        %v1871 = vpop.f32.mrb[0].mxu0
        %v1872 = vadd.f32 %v1711, %v1871
        %v1873 = vpop.f32.mrb[0].mxu0
        %v1874 = vpop.f32.mrb[0].mxu0
        %v1875 = vadd.f32 %v1714, %v1874
        %v1876 = vpop.f32.mrb[0].mxu0
        %1877 = vmatprep.mubr.bf16.mxu0 0
        %1878 = vmatmul.mubr.bf16.gmra.mrb[0].mxu0 %v818
        %v1879 = vpop.f32.mrb[0].mxu0
        %v1880 = vadd.f32 %v1719, %v1879
        %v1881 = vpop.f32.mrb[0].mxu0
        %v1882 = vpop.f32.mrb[0].mxu0
        %v1883 = vadd.f32 %v1722, %v1882
        %v1884 = vpop.f32.mrb[0].mxu0
        %1885 = vmatprep.mubr.bf16.mxu0 0
        %1886 = vmatmul.mubr.bf16.gmra.mrb[0].mxu0 %v821
        %v1887 = vpop.f32.mrb[0].mxu0
        %v1888 = vadd.f32 %v1727, %v1887
        %v1889 = vpop.f32.mrb[0].mxu0
        %v1890 = vpop.f32.mrb[0].mxu0
        %v1891 = vadd.f32 %v1730, %v1890
        %v1892 = vpop.f32.mrb[0].mxu0
        %1893 = vmatprep.mubr.bf16.mxu0 0
        %1894 = vmatmul.mubr.bf16.gmra.mrb[0].mxu0 %v824
        %v1895 = vpop.f32.mrb[0].mxu0
        %v1896 = vadd.f32 %v1735, %v1895
        %v1897 = vpop.f32.mrb[0].mxu0
        %v1898 = vpop.f32.mrb[0].mxu0
        %v1899 = vadd.f32 %v1738, %v1898
        %v1900 = vpop.f32.mrb[0].mxu0
        %1901 = vdwg.mxu0
        %s1902 = scalar_lea.vmem [#allocation2], 48
        %v1903 = vld [vmem:[%s1902] sm:$0xff]
        %v1904 = vld [vmem:[%s1902 + $0x8] sm:$0xff]
        %v1905 = vld [vmem:[%s1902 + $0x10] sm:$0xff]
        %v1906 = vld [vmem:[%s1902 + $0x18] sm:$0xff]
        %v1907 = vld [vmem:[%s1902 + $0x20] sm:$0xff]
        %v1908 = vld [vmem:[%s1902 + $0x28] sm:$0xff]
        %v1909 = vld [vmem:[%s1902 + $0x30] sm:$0xff]
        %v1910 = vld [vmem:[%s1902 + $0x38] sm:$0xff]
        %v1911 = vld [vmem:[%s1902 + $0x40] sm:$0xff]
        %v1912 = vld [vmem:[%s1902 + $0x48] sm:$0xff]
        %v1913 = vld [vmem:[%s1902 + $0x50] sm:$0xff]
        %v1914 = vld [vmem:[%s1902 + $0x58] sm:$0xff]
        %v1915 = vld [vmem:[%s1902 + $0x60] sm:$0xff]
        %v1916 = vld [vmem:[%s1902 + $0x68] sm:$0xff]
        %v1917 = vld [vmem:[%s1902 + $0x70] sm:$0xff]
        %v1918 = vld [vmem:[%s1902 + $0x78] sm:$0xff]
        %v1919 = vld [vmem:[%s1902 + $0x80] sm:$0xff]
        %v1920 = vld [vmem:[%s1902 + $0x88] sm:$0xff]
        %v1921 = vld [vmem:[%s1902 + $0x90] sm:$0xff]
        %v1922 = vld [vmem:[%s1902 + $0x98] sm:$0xff]
        %v1923 = vld [vmem:[%s1902 + $0xa0] sm:$0xff]
        %v1924 = vld [vmem:[%s1902 + $0xa8] sm:$0xff]
        %v1925 = vld [vmem:[%s1902 + $0xb0] sm:$0xff]
        %v1926 = vld [vmem:[%s1902 + $0xb8] sm:$0xff]
        %v1927 = vld [vmem:[%s1902 + $0xc0] sm:$0xff]
        %v1928 = vld [vmem:[%s1902 + $0xc8] sm:$0xff]
        %v1929 = vld [vmem:[%s1902 + $0xd0] sm:$0xff]
        %v1930 = vld [vmem:[%s1902 + $0xd8] sm:$0xff]
        %v1931 = vld [vmem:[%s1902 + $0xe0] sm:$0xff]
        %v1932 = vld [vmem:[%s1902 + $0xe8] sm:$0xff]
        %v1933 = vld [vmem:[%s1902 + $0xf0] sm:$0xff]
        %v1934 = vld [vmem:[%s1902 + $0xf8] sm:$0xff]
        %v1935 = vld [vmem:[%s1902 + $0x100] sm:$0xff]
        %v1936 = vld [vmem:[%s1902 + $0x108] sm:$0xff]
        %v1937 = vld [vmem:[%s1902 + $0x110] sm:$0xff]
        %v1938 = vld [vmem:[%s1902 + $0x118] sm:$0xff]
        %v1939 = vld [vmem:[%s1902 + $0x120] sm:$0xff]
        %v1940 = vld [vmem:[%s1902 + $0x128] sm:$0xff]
        %v1941 = vld [vmem:[%s1902 + $0x130] sm:$0xff]
        %v1942 = vld [vmem:[%s1902 + $0x138] sm:$0xff]
        %v1943 = vld [vmem:[%s1902 + $0x140] sm:$0xff]
        %v1944 = vld [vmem:[%s1902 + $0x148] sm:$0xff]
        %v1945 = vld [vmem:[%s1902 + $0x150] sm:$0xff]
        %v1946 = vld [vmem:[%s1902 + $0x158] sm:$0xff]
        %v1947 = vld [vmem:[%s1902 + $0x160] sm:$0xff]
        %v1948 = vld [vmem:[%s1902 + $0x168] sm:$0xff]
        %v1949 = vld [vmem:[%s1902 + $0x170] sm:$0xff]
        %v1950 = vld [vmem:[%s1902 + $0x178] sm:$0xff]
        %s1951 = scalar_lea.vmem [#allocation6], 384
        %v1952 = vld [vmem:[%s1951] sm:$0xf]
        %v1953 = vld [vmem:[%s1951 + $0x4] sm:$0xf]
        %v1954 = vld [vmem:[%s1951 + $0x8] sm:$0xf]
        %v1955 = vld [vmem:[%s1951 + $0xc] sm:$0xf]
        %v1956 = vld [vmem:[%s1951 + $0x10] sm:$0xf]
        %v1957 = vld [vmem:[%s1951 + $0x14] sm:$0xf]
        %v1958 = vld [vmem:[%s1951 + $0x18] sm:$0xf]
        %v1959 = vld [vmem:[%s1951 + $0x1c] sm:$0xf]
        %v1960 = vld [vmem:[%s1951 + $0x20] sm:$0xf]
        %v1961 = vld [vmem:[%s1951 + $0x24] sm:$0xf]
        %v1962 = vld [vmem:[%s1951 + $0x28] sm:$0xf]
        %v1963 = vld [vmem:[%s1951 + $0x2c] sm:$0xf]
        %v1964 = vld [vmem:[%s1951 + $0x30] sm:$0xf]
        %v1965 = vld [vmem:[%s1951 + $0x34] sm:$0xf]
        %v1966 = vld [vmem:[%s1951 + $0x38] sm:$0xf]
        %v1967 = vld [vmem:[%s1951 + $0x3c] sm:$0xf]
        %v1968 = vld [vmem:[%s1951 + $0x40] sm:$0xf]
        %v1969 = vld [vmem:[%s1951 + $0x44] sm:$0xf]
        %v1970 = vld [vmem:[%s1951 + $0x48] sm:$0xf]
        %v1971 = vld [vmem:[%s1951 + $0x4c] sm:$0xf]
        %v1972 = vld [vmem:[%s1951 + $0x50] sm:$0xf]
        %v1973 = vld [vmem:[%s1951 + $0x54] sm:$0xf]
        %v1974 = vld [vmem:[%s1951 + $0x58] sm:$0xf]
        %v1975 = vld [vmem:[%s1951 + $0x5c] sm:$0xf]
        %v1976 = vld [vmem:[%s1951 + $0x60] sm:$0xf]
        %v1977 = vld [vmem:[%s1951 + $0x64] sm:$0xf]
        %v1978 = vld [vmem:[%s1951 + $0x68] sm:$0xf]
        %v1979 = vld [vmem:[%s1951 + $0x6c] sm:$0xf]
        %v1980 = vld [vmem:[%s1951 + $0x70] sm:$0xf]
        %v1981 = vld [vmem:[%s1951 + $0x74] sm:$0xf]
        %v1982 = vld [vmem:[%s1951 + $0x78] sm:$0xf]
        %v1983 = vld [vmem:[%s1951 + $0x7c] sm:$0xf]
        %v1984 = vld [vmem:[%s1951 + $0x80] sm:$0xf]
        %v1985 = vld [vmem:[%s1951 + $0x84] sm:$0xf]
        %v1986 = vld [vmem:[%s1951 + $0x88] sm:$0xf]
        %v1987 = vld [vmem:[%s1951 + $0x8c] sm:$0xf]
        %v1988 = vld [vmem:[%s1951 + $0x90] sm:$0xf]
        %v1989 = vld [vmem:[%s1951 + $0x94] sm:$0xf]
        %v1990 = vld [vmem:[%s1951 + $0x98] sm:$0xf]
        %v1991 = vld [vmem:[%s1951 + $0x9c] sm:$0xf]
        %v1992 = vld [vmem:[%s1951 + $0xa0] sm:$0xf]
        %v1993 = vld [vmem:[%s1951 + $0xa4] sm:$0xf]
        %v1994 = vld [vmem:[%s1951 + $0xa8] sm:$0xf]
        %v1995 = vld [vmem:[%s1951 + $0xac] sm:$0xf]
        %v1996 = vld [vmem:[%s1951 + $0xb0] sm:$0xf]
        %v1997 = vld [vmem:[%s1951 + $0xb4] sm:$0xf]
        %v1998 = vld [vmem:[%s1951 + $0xb8] sm:$0xf]
        %v1999 = vld [vmem:[%s1951 + $0xbc] sm:$0xf]
        %v2048 = vunpack.c.l.b16 %v1952
        %v2049 = vunpack.c.l.b16 %v1953
        %v2050 = vunpack.c.l.b16 %v1954
        %v2051 = vunpack.c.l.b16 %v1955
        %v2052 = vunpack.c.l.b16 %v1956
        %v2053 = vunpack.c.l.b16 %v1957
        %v2054 = vunpack.c.l.b16 %v1958
        %v2055 = vunpack.c.l.b16 %v1959
        %v2056 = vunpack.c.l.b16 %v1960
        %v2057 = vunpack.c.l.b16 %v1961
        %v2058 = vunpack.c.l.b16 %v1962
        %v2059 = vunpack.c.l.b16 %v1963
        %v2060 = vunpack.c.l.b16 %v1964
        %v2061 = vunpack.c.l.b16 %v1965
        %v2062 = vunpack.c.l.b16 %v1966
        %v2063 = vunpack.c.l.b16 %v1967
        %v2064 = vunpack.c.l.b16 %v1968
        %v2065 = vunpack.c.l.b16 %v1969
        %v2066 = vunpack.c.l.b16 %v1970
        %v2067 = vunpack.c.l.b16 %v1971
        %v2068 = vunpack.c.l.b16 %v1972
        %v2069 = vunpack.c.l.b16 %v1973
        %v2070 = vunpack.c.l.b16 %v1974
        %v2071 = vunpack.c.l.b16 %v1975
        %v2072 = vunpack.c.l.b16 %v1976
        %v2073 = vunpack.c.l.b16 %v1977
        %v2074 = vunpack.c.l.b16 %v1978
        %v2075 = vunpack.c.l.b16 %v1979
        %v2076 = vunpack.c.l.b16 %v1980
        %v2077 = vunpack.c.l.b16 %v1981
        %v2078 = vunpack.c.l.b16 %v1982
        %v2079 = vunpack.c.l.b16 %v1983
        %v2080 = vunpack.c.l.b16 %v1984
        %v2081 = vunpack.c.l.b16 %v1985
        %v2082 = vunpack.c.l.b16 %v1986
        %v2083 = vunpack.c.l.b16 %v1987
        %v2084 = vunpack.c.l.b16 %v1988
        %v2085 = vunpack.c.l.b16 %v1989
        %v2086 = vunpack.c.l.b16 %v1990
        %v2087 = vunpack.c.l.b16 %v1991
        %v2088 = vunpack.c.l.b16 %v1992
        %v2089 = vunpack.c.l.b16 %v1993
        %v2090 = vunpack.c.l.b16 %v1994
        %v2091 = vunpack.c.l.b16 %v1995
        %v2092 = vunpack.c.l.b16 %v1996
        %v2093 = vunpack.c.l.b16 %v1997
        %v2094 = vunpack.c.l.b16 %v1998
        %v2095 = vunpack.c.l.b16 %v1999
        %v2096 = vpack.c.b16 %v2049, %v2048
        %v2097 = vpack.c.b16 %v2051, %v2050
        %v2098 = vpack.c.b16 %v2053, %v2052
        %v2099 = vpack.c.b16 %v2055, %v2054
        %v2100 = vpack.c.b16 %v2057, %v2056
        %v2101 = vpack.c.b16 %v2059, %v2058
        %v2102 = vpack.c.b16 %v2061, %v2060
        %v2103 = vpack.c.b16 %v2063, %v2062
        %v2104 = vpack.c.b16 %v2065, %v2064
        %v2105 = vpack.c.b16 %v2067, %v2066
        %v2106 = vpack.c.b16 %v2069, %v2068
        %v2107 = vpack.c.b16 %v2071, %v2070
        %v2108 = vpack.c.b16 %v2073, %v2072
        %v2109 = vpack.c.b16 %v2075, %v2074
        %v2110 = vpack.c.b16 %v2077, %v2076
        %v2111 = vpack.c.b16 %v2079, %v2078
        %v2112 = vpack.c.b16 %v2081, %v2080
        %v2113 = vpack.c.b16 %v2083, %v2082
        %v2114 = vpack.c.b16 %v2085, %v2084
        %v2115 = vpack.c.b16 %v2087, %v2086
        %v2116 = vpack.c.b16 %v2089, %v2088
        %v2117 = vpack.c.b16 %v2091, %v2090
        %v2118 = vpack.c.b16 %v2093, %v2092
        %v2119 = vpack.c.b16 %v2095, %v2094
        %2144 = vmatprep.subr.bf16.mxu0 0
        %2145 = vmatpush1.bf16.msra.mxu0 %v2096
        %2146 = vmatprep.subr.bf16.mxu0 0
        %2147 = vmatpush1.bf16.msra.mxu0 %v2097
        %2148 = vmatprep.subr.bf16.mxu0 0
        %2149 = vmatpush1.bf16.msra.mxu0 %v2098
        %2150 = vmatprep.subr.bf16.mxu0 0
        %2151 = vmatpush1.bf16.msra.mxu0 %v2099
        %2152 = vmatprep.subr.bf16.mxu0 0
        %2153 = vmatpush1.bf16.msra.mxu0 %v2100
        %2154 = vmatprep.subr.bf16.mxu0 0
        %2155 = vmatpush1.bf16.msra.mxu0 %v2101
        %2156 = vmatprep.subr.bf16.mxu0 0
        %2157 = vmatpush1.bf16.msra.mxu0 %v2102
        %2158 = vmatprep.subr.bf16.mxu0 0
        %2159 = vmatpush1.bf16.msra.mxu0 %v2103
        %2160 = vmatprep.subr.bf16.mxu0 0
        %2161 = vmatpush1.bf16.msra.mxu0 %v2104
        %2162 = vmatprep.subr.bf16.mxu0 0
        %2163 = vmatpush1.bf16.msra.mxu0 %v2105
        %2164 = vmatprep.subr.bf16.mxu0 0
        %2165 = vmatpush1.bf16.msra.mxu0 %v2106
        %2166 = vmatprep.subr.bf16.mxu0 0
        %2167 = vmatpush1.bf16.msra.mxu0 %v2107
        %2168 = vmatprep.subr.bf16.mxu0 0
        %2169 = vmatpush1.bf16.msra.mxu0 %v2108
        %2170 = vmatprep.subr.bf16.mxu0 0
        %2171 = vmatpush1.bf16.msra.mxu0 %v2109
        %2172 = vmatprep.subr.bf16.mxu0 0
        %2173 = vmatpush1.bf16.msra.mxu0 %v2110
        %2174 = vmatprep.subr.bf16.mxu0 0
        %2175 = vmatpush1.bf16.msra.mxu0 %v2111
        %2176 = vmatprep.mubr.bf16.mxu0 %v1904
        %2177 = vmatmul.mubr.bf16.gmra.mrb[0].mxu0 %v1903
        %v2178 = vpop.f32.mrb[0].mxu0
        %v2179 = vadd.f32 0.0, %v2178
        %v2180 = vpop.f32.mrb[0].mxu0
        %v2181 = vpop.f32.mrb[0].mxu0
        %v2182 = vadd.f32 0.0, %v2181
        %v2183 = vpop.f32.mrb[0].mxu0
        %2184 = vmatprep.mubr.bf16.mxu0 %v1907
        %2185 = vmatmul.mubr.bf16.gmra.mrb[0].mxu0 %v1906
        %v2186 = vpop.f32.mrb[0].mxu0
        %v2187 = vadd.f32 0.0, %v2186
        %v2188 = vpop.f32.mrb[0].mxu0
        %v2189 = vpop.f32.mrb[0].mxu0
        %v2190 = vadd.f32 0.0, %v2189
        %v2191 = vpop.f32.mrb[0].mxu0
        %2192 = vmatprep.mubr.bf16.mxu0 %v1910
        %2193 = vmatmul.mubr.bf16.gmra.mrb[0].mxu0 %v1909
        %v2194 = vpop.f32.mrb[0].mxu0
        %v2195 = vadd.f32 0.0, %v2194
        %v2196 = vpop.f32.mrb[0].mxu0
        %v2197 = vpop.f32.mrb[0].mxu0
        %v2198 = vadd.f32 0.0, %v2197
        %v2199 = vpop.f32.mrb[0].mxu0
        %2200 = vmatprep.mubr.bf16.mxu0 %v1913
        %2201 = vmatmul.mubr.bf16.gmra.mrb[0].mxu0 %v1912
        %v2202 = vpop.f32.mrb[0].mxu0
        %v2203 = vadd.f32 0.0, %v2202
        %v2204 = vpop.f32.mrb[0].mxu0
        %v2205 = vpop.f32.mrb[0].mxu0
        %v2206 = vadd.f32 0.0, %v2205
        %v2207 = vpop.f32.mrb[0].mxu0
        %2208 = vmatprep.mubr.bf16.mxu0 %v1916
        %2209 = vmatmul.mubr.bf16.gmra.mrb[0].mxu0 %v1915
        %v2210 = vpop.f32.mrb[0].mxu0
        %v2211 = vadd.f32 0.0, %v2210
        %v2212 = vpop.f32.mrb[0].mxu0
        %v2213 = vpop.f32.mrb[0].mxu0
        %v2214 = vadd.f32 0.0, %v2213
        %v2215 = vpop.f32.mrb[0].mxu0
        %2216 = vmatprep.mubr.bf16.mxu0 %v1919
        %2217 = vmatmul.mubr.bf16.gmra.mrb[0].mxu0 %v1918
        %v2218 = vpop.f32.mrb[0].mxu0
        %v2219 = vadd.f32 0.0, %v2218
        %v2220 = vpop.f32.mrb[0].mxu0
        %v2221 = vpop.f32.mrb[0].mxu0
        %v2222 = vadd.f32 0.0, %v2221
        %v2223 = vpop.f32.mrb[0].mxu0
        %2224 = vmatprep.mubr.bf16.mxu0 %v1922
        %2225 = vmatmul.mubr.bf16.gmra.mrb[0].mxu0 %v1921
        %v2226 = vpop.f32.mrb[0].mxu0
        %v2227 = vadd.f32 0.0, %v2226
        %v2228 = vpop.f32.mrb[0].mxu0
        %v2229 = vpop.f32.mrb[0].mxu0
        %v2230 = vadd.f32 0.0, %v2229
        %v2231 = vpop.f32.mrb[0].mxu0
        %2232 = vmatprep.mubr.bf16.mxu0 %v1925
        %2233 = vmatmul.mubr.bf16.gmra.mrb[0].mxu0 %v1924
        %v2234 = vpop.f32.mrb[0].mxu0
        %v2235 = vadd.f32 0.0, %v2234
        %v2236 = vpop.f32.mrb[0].mxu0
        %v2237 = vpop.f32.mrb[0].mxu0
        %v2238 = vadd.f32 0.0, %v2237
        %v2239 = vpop.f32.mrb[0].mxu0
        %2240 = vmatprep.mubr.bf16.mxu0 %v1928
        %2241 = vmatmul.mubr.bf16.gmra.mrb[0].mxu0 %v1927
        %v2242 = vpop.f32.mrb[0].mxu0
        %v2243 = vadd.f32 0.0, %v2242
        %v2244 = vpop.f32.mrb[0].mxu0
        %v2245 = vpop.f32.mrb[0].mxu0
        %v2246 = vadd.f32 0.0, %v2245
        %v2247 = vpop.f32.mrb[0].mxu0
        %2248 = vmatprep.mubr.bf16.mxu0 %v1931
        %2249 = vmatmul.mubr.bf16.gmra.mrb[0].mxu0 %v1930
        %v2250 = vpop.f32.mrb[0].mxu0
        %v2251 = vadd.f32 0.0, %v2250
        %v2252 = vpop.f32.mrb[0].mxu0
        %v2253 = vpop.f32.mrb[0].mxu0
        %v2254 = vadd.f32 0.0, %v2253
        %v2255 = vpop.f32.mrb[0].mxu0
        %2256 = vmatprep.mubr.bf16.mxu0 %v1934
        %2257 = vmatmul.mubr.bf16.gmra.mrb[0].mxu0 %v1933
        %v2258 = vpop.f32.mrb[0].mxu0
        %v2259 = vadd.f32 0.0, %v2258
        %v2260 = vpop.f32.mrb[0].mxu0
        %v2261 = vpop.f32.mrb[0].mxu0
        %v2262 = vadd.f32 0.0, %v2261
        %v2263 = vpop.f32.mrb[0].mxu0
        %2264 = vmatprep.mubr.bf16.mxu0 %v1937
        %2265 = vmatmul.mubr.bf16.gmra.mrb[0].mxu0 %v1936
        %v2266 = vpop.f32.mrb[0].mxu0
        %v2267 = vadd.f32 0.0, %v2266
        %v2268 = vpop.f32.mrb[0].mxu0
        %v2269 = vpop.f32.mrb[0].mxu0
        %v2270 = vadd.f32 0.0, %v2269
        %v2271 = vpop.f32.mrb[0].mxu0
        %2272 = vmatprep.mubr.bf16.mxu0 %v1940
        %2273 = vmatmul.mubr.bf16.gmra.mrb[0].mxu0 %v1939
        %v2274 = vpop.f32.mrb[0].mxu0
        %v2275 = vadd.f32 0.0, %v2274
        %v2276 = vpop.f32.mrb[0].mxu0
        %v2277 = vpop.f32.mrb[0].mxu0
        %v2278 = vadd.f32 0.0, %v2277
        %v2279 = vpop.f32.mrb[0].mxu0
        %2280 = vmatprep.mubr.bf16.mxu0 %v1943
        %2281 = vmatmul.mubr.bf16.gmra.mrb[0].mxu0 %v1942
        %v2282 = vpop.f32.mrb[0].mxu0
        %v2283 = vadd.f32 0.0, %v2282
        %v2284 = vpop.f32.mrb[0].mxu0
        %v2285 = vpop.f32.mrb[0].mxu0
        %v2286 = vadd.f32 0.0, %v2285
        %v2287 = vpop.f32.mrb[0].mxu0
        %2288 = vmatprep.mubr.bf16.mxu0 %v1946
        %2289 = vmatmul.mubr.bf16.gmra.mrb[0].mxu0 %v1945
        %v2290 = vpop.f32.mrb[0].mxu0
        %v2291 = vadd.f32 0.0, %v2290
        %v2292 = vpop.f32.mrb[0].mxu0
        %v2293 = vpop.f32.mrb[0].mxu0
        %v2294 = vadd.f32 0.0, %v2293
        %v2295 = vpop.f32.mrb[0].mxu0
        %2296 = vmatprep.mubr.bf16.mxu0 %v1949
        %2297 = vmatmul.mubr.bf16.gmra.mrb[0].mxu0 %v1948
        %v2298 = vpop.f32.mrb[0].mxu0
        %v2299 = vadd.f32 0.0, %v2298
        %v2300 = vpop.f32.mrb[0].mxu0
        %v2301 = vpop.f32.mrb[0].mxu0
        %v2302 = vadd.f32 0.0, %v2301
        %v2303 = vpop.f32.mrb[0].mxu0
        %2304 = vdwg.mxu0
        %2305 = vmatprep.subr.bf16.mxu0 0
        %2306 = vmatpush1.bf16.msra.mxu0 %v2112
        %2307 = vmatprep.subr.bf16.mxu0 0
        %2308 = vmatpush1.bf16.msra.mxu0 %v2113
        %2309 = vmatprep.subr.bf16.mxu0 0
        %2310 = vmatpush1.bf16.msra.mxu0 %v2114
        %2311 = vmatprep.subr.bf16.mxu0 0
        %2312 = vmatpush1.bf16.msra.mxu0 %v2115
        %2313 = vmatprep.subr.bf16.mxu0 0
        %2314 = vmatpush1.bf16.msra.mxu0 %v2116
        %2315 = vmatprep.subr.bf16.mxu0 0
        %2316 = vmatpush1.bf16.msra.mxu0 %v2117
        %2317 = vmatprep.subr.bf16.mxu0 0
        %2318 = vmatpush1.bf16.msra.mxu0 %v2118
        %2319 = vmatprep.subr.bf16.mxu0 0
        %2320 = vmatpush1.bf16.msra.mxu0 %v2119
        %2321 = vmatprep.subr.bf16.mxu0 0
        %2322 = vmatpush1.bf16.msra.mxu0 0
        %2323 = vmatprep.subr.bf16.mxu0 0
        %2324 = vmatpush1.bf16.msra.mxu0 0
        %2325 = vmatprep.subr.bf16.mxu0 0
        %2326 = vmatpush1.bf16.msra.mxu0 0
        %2327 = vmatprep.subr.bf16.mxu0 0
        %2328 = vmatpush1.bf16.msra.mxu0 0
        %2329 = vmatprep.subr.bf16.mxu0 0
        %2330 = vmatpush1.bf16.msra.mxu0 0
        %2331 = vmatprep.subr.bf16.mxu0 0
        %2332 = vmatpush1.bf16.msra.mxu0 0
        %2333 = vmatprep.subr.bf16.mxu0 0
        %2334 = vmatpush1.bf16.msra.mxu0 0
        %2335 = vmatprep.subr.bf16.mxu0 0
        %2336 = vmatpush1.bf16.msra.mxu0 0
        %2337 = vmatprep.mubr.bf16.mxu0 0
        %2338 = vmatmul.mubr.bf16.gmra.mrb[0].mxu0 %v1905
        %v2339 = vpop.f32.mrb[0].mxu0
        %v2340 = vadd.f32 %v2179, %v2339
        %v2341 = vpop.f32.mrb[0].mxu0
        %v2342 = vpop.f32.mrb[0].mxu0
        %v2343 = vadd.f32 %v2182, %v2342
        %v2344 = vpop.f32.mrb[0].mxu0
        %2345 = vmatprep.mubr.bf16.mxu0 0
        %2346 = vmatmul.mubr.bf16.gmra.mrb[0].mxu0 %v1908
        %v2347 = vpop.f32.mrb[0].mxu0
        %v2348 = vadd.f32 %v2187, %v2347
        %v2349 = vpop.f32.mrb[0].mxu0
        %v2350 = vpop.f32.mrb[0].mxu0
        %v2351 = vadd.f32 %v2190, %v2350
        %v2352 = vpop.f32.mrb[0].mxu0
        %2353 = vmatprep.mubr.bf16.mxu0 0
        %2354 = vmatmul.mubr.bf16.gmra.mrb[0].mxu0 %v1911
        %v2355 = vpop.f32.mrb[0].mxu0
        %v2356 = vadd.f32 %v2195, %v2355
        %v2357 = vpop.f32.mrb[0].mxu0
        %v2358 = vpop.f32.mrb[0].mxu0
        %v2359 = vadd.f32 %v2198, %v2358
        %v2360 = vpop.f32.mrb[0].mxu0
        %2361 = vmatprep.mubr.bf16.mxu0 0
        %2362 = vmatmul.mubr.bf16.gmra.mrb[0].mxu0 %v1914
        %v2363 = vpop.f32.mrb[0].mxu0
        %v2364 = vadd.f32 %v2203, %v2363
        %v2365 = vpop.f32.mrb[0].mxu0
        %v2366 = vpop.f32.mrb[0].mxu0
        %v2367 = vadd.f32 %v2206, %v2366
        %v2368 = vpop.f32.mrb[0].mxu0
        %2369 = vmatprep.mubr.bf16.mxu0 0
        %2370 = vmatmul.mubr.bf16.gmra.mrb[0].mxu0 %v1917
        %v2371 = vpop.f32.mrb[0].mxu0
        %v2372 = vadd.f32 %v2211, %v2371
        %v2373 = vpop.f32.mrb[0].mxu0
        %v2374 = vpop.f32.mrb[0].mxu0
        %v2375 = vadd.f32 %v2214, %v2374
        %v2376 = vpop.f32.mrb[0].mxu0
        %2377 = vmatprep.mubr.bf16.mxu0 0
        %2378 = vmatmul.mubr.bf16.gmra.mrb[0].mxu0 %v1920
        %v2379 = vpop.f32.mrb[0].mxu0
        %v2380 = vadd.f32 %v2219, %v2379
        %v2381 = vpop.f32.mrb[0].mxu0
        %v2382 = vpop.f32.mrb[0].mxu0
        %v2383 = vadd.f32 %v2222, %v2382
        %v2384 = vpop.f32.mrb[0].mxu0
        %2385 = vmatprep.mubr.bf16.mxu0 0
        %2386 = vmatmul.mubr.bf16.gmra.mrb[0].mxu0 %v1923
        %v2387 = vpop.f32.mrb[0].mxu0
        %v2388 = vadd.f32 %v2227, %v2387
        %v2389 = vpop.f32.mrb[0].mxu0
        %v2390 = vpop.f32.mrb[0].mxu0
        %v2391 = vadd.f32 %v2230, %v2390
        %v2392 = vpop.f32.mrb[0].mxu0
        %2393 = vmatprep.mubr.bf16.mxu0 0
        %2394 = vmatmul.mubr.bf16.gmra.mrb[0].mxu0 %v1926
        %v2395 = vpop.f32.mrb[0].mxu0
        %v2396 = vadd.f32 %v2235, %v2395
        %v2397 = vpop.f32.mrb[0].mxu0
        %v2398 = vpop.f32.mrb[0].mxu0
        %v2399 = vadd.f32 %v2238, %v2398
        %v2400 = vpop.f32.mrb[0].mxu0
        %2401 = vmatprep.mubr.bf16.mxu0 0
        %2402 = vmatmul.mubr.bf16.gmra.mrb[0].mxu0 %v1929
        %v2403 = vpop.f32.mrb[0].mxu0
        %v2404 = vadd.f32 %v2243, %v2403
        %v2405 = vpop.f32.mrb[0].mxu0
        %v2406 = vpop.f32.mrb[0].mxu0
        %v2407 = vadd.f32 %v2246, %v2406
        %v2408 = vpop.f32.mrb[0].mxu0
        %2409 = vmatprep.mubr.bf16.mxu0 0
        %2410 = vmatmul.mubr.bf16.gmra.mrb[0].mxu0 %v1932
        %v2411 = vpop.f32.mrb[0].mxu0
        %v2412 = vadd.f32 %v2251, %v2411
        %v2413 = vpop.f32.mrb[0].mxu0
        %v2414 = vpop.f32.mrb[0].mxu0
        %v2415 = vadd.f32 %v2254, %v2414
        %v2416 = vpop.f32.mrb[0].mxu0
        %2417 = vmatprep.mubr.bf16.mxu0 0
        %2418 = vmatmul.mubr.bf16.gmra.mrb[0].mxu0 %v1935
        %v2419 = vpop.f32.mrb[0].mxu0
        %v2420 = vadd.f32 %v2259, %v2419
        %v2421 = vpop.f32.mrb[0].mxu0
        %v2422 = vpop.f32.mrb[0].mxu0
        %v2423 = vadd.f32 %v2262, %v2422
        %v2424 = vpop.f32.mrb[0].mxu0
        %2425 = vmatprep.mubr.bf16.mxu0 0
        %2426 = vmatmul.mubr.bf16.gmra.mrb[0].mxu0 %v1938
        %v2427 = vpop.f32.mrb[0].mxu0
        %v2428 = vadd.f32 %v2267, %v2427
        %v2429 = vpop.f32.mrb[0].mxu0
        %v2430 = vpop.f32.mrb[0].mxu0
        %v2431 = vadd.f32 %v2270, %v2430
        %v2432 = vpop.f32.mrb[0].mxu0
        %2433 = vmatprep.mubr.bf16.mxu0 0
        %2434 = vmatmul.mubr.bf16.gmra.mrb[0].mxu0 %v1941
        %v2435 = vpop.f32.mrb[0].mxu0
        %v2436 = vadd.f32 %v2275, %v2435
        %v2437 = vpop.f32.mrb[0].mxu0
        %v2438 = vpop.f32.mrb[0].mxu0
        %v2439 = vadd.f32 %v2278, %v2438
        %v2440 = vpop.f32.mrb[0].mxu0
        %2441 = vmatprep.mubr.bf16.mxu0 0
        %2442 = vmatmul.mubr.bf16.gmra.mrb[0].mxu0 %v1944
        %v2443 = vpop.f32.mrb[0].mxu0
        %v2444 = vadd.f32 %v2283, %v2443
        %v2445 = vpop.f32.mrb[0].mxu0
        %v2446 = vpop.f32.mrb[0].mxu0
        %v2447 = vadd.f32 %v2286, %v2446
        %v2448 = vpop.f32.mrb[0].mxu0
        %2449 = vmatprep.mubr.bf16.mxu0 0
        %2450 = vmatmul.mubr.bf16.gmra.mrb[0].mxu0 %v1947
        %v2451 = vpop.f32.mrb[0].mxu0
        %v2452 = vadd.f32 %v2291, %v2451
        %v2453 = vpop.f32.mrb[0].mxu0
        %v2454 = vpop.f32.mrb[0].mxu0
        %v2455 = vadd.f32 %v2294, %v2454
        %v2456 = vpop.f32.mrb[0].mxu0
        %2457 = vmatprep.mubr.bf16.mxu0 0
        %2458 = vmatmul.mubr.bf16.gmra.mrb[0].mxu0 %v1950
        %v2459 = vpop.f32.mrb[0].mxu0
        %v2460 = vadd.f32 %v2299, %v2459
        %v2461 = vpop.f32.mrb[0].mxu0
        %v2462 = vpop.f32.mrb[0].mxu0
        %v2463 = vadd.f32 %v2302, %v2462
        %v2464 = vpop.f32.mrb[0].mxu0
        %2465 = vdwg.mxu0
        %v2466 = vadd.f32 %v1776, %v2340
        %v2467 = vadd.f32 %v1779, %v2343
        %v2468 = vadd.f32 %v1784, %v2348
        %v2469 = vadd.f32 %v1787, %v2351
        %v2470 = vadd.f32 %v1792, %v2356
        %v2471 = vadd.f32 %v1795, %v2359
        %v2472 = vadd.f32 %v1800, %v2364
        %v2473 = vadd.f32 %v1803, %v2367
        %v2474 = vadd.f32 %v1808, %v2372
        %v2475 = vadd.f32 %v1811, %v2375
        %v2476 = vadd.f32 %v1816, %v2380
        %v2477 = vadd.f32 %v1819, %v2383
        %v2478 = vadd.f32 %v1824, %v2388
        %v2479 = vadd.f32 %v1827, %v2391
        %v2480 = vadd.f32 %v1832, %v2396
        %v2481 = vadd.f32 %v1835, %v2399
        %v2482 = vadd.f32 %v1840, %v2404
        %v2483 = vadd.f32 %v1843, %v2407
        %v2484 = vadd.f32 %v1848, %v2412
        %v2485 = vadd.f32 %v1851, %v2415
        %v2486 = vadd.f32 %v1856, %v2420
        %v2487 = vadd.f32 %v1859, %v2423
        %v2488 = vadd.f32 %v1864, %v2428
        %v2489 = vadd.f32 %v1867, %v2431
        %v2490 = vadd.f32 %v1872, %v2436
        %v2491 = vadd.f32 %v1875, %v2439
        %v2492 = vadd.f32 %v1880, %v2444
        %v2493 = vadd.f32 %v1883, %v2447
        %v2494 = vadd.f32 %v1888, %v2452
        %v2495 = vadd.f32 %v1891, %v2455
        %v2496 = vadd.f32 %v1896, %v2460
        %v2497 = vadd.f32 %v1899, %v2463
        %v2498 = vld [vmem:[%s3] sm:$0x1]
        %v2499 = vlaneseq
        %v2500 = vshrl.u32 %v2499, 7
        %v2501 = vsub.s32 0, %v2500
        %v2502 = vrot.slane %v2498, %v2501
        %v2503 = vmul.f32 %v2466, %v2502
        %v2504 = vmul.f32 %v2467, %v2502
        %v2505 = vmul.f32 %v2468, %v2502
        %v2506 = vmul.f32 %v2469, %v2502
        %v2507 = vmul.f32 %v2470, %v2502
        %v2508 = vmul.f32 %v2471, %v2502
        %v2509 = vmul.f32 %v2472, %v2502
        %v2510 = vmul.f32 %v2473, %v2502
        %v2511 = vmul.f32 %v2474, %v2502
        %v2512 = vmul.f32 %v2475, %v2502
        %v2513 = vmul.f32 %v2476, %v2502
        %v2514 = vmul.f32 %v2477, %v2502
        %v2515 = vmul.f32 %v2478, %v2502
        %v2516 = vmul.f32 %v2479, %v2502
        %v2517 = vmul.f32 %v2480, %v2502
        %v2518 = vmul.f32 %v2481, %v2502
        %v2519 = vmul.f32 %v2482, %v2502
        %v2520 = vmul.f32 %v2483, %v2502
        %v2521 = vmul.f32 %v2484, %v2502
        %v2522 = vmul.f32 %v2485, %v2502
        %v2523 = vmul.f32 %v2486, %v2502
        %v2524 = vmul.f32 %v2487, %v2502
        %v2525 = vmul.f32 %v2488, %v2502
        %v2526 = vmul.f32 %v2489, %v2502
        %v2527 = vmul.f32 %v2490, %v2502
        %v2528 = vmul.f32 %v2491, %v2502
        %v2529 = vmul.f32 %v2492, %v2502
        %v2530 = vmul.f32 %v2493, %v2502
        %v2531 = vmul.f32 %v2494, %v2502
        %v2532 = vmul.f32 %v2495, %v2502
        %v2533 = vmul.f32 %v2496, %v2502
        %v2534 = vmul.f32 %v2497, %v2502
        %v2535 = vld [vmem:[%s3 + $0x1] sm:$0x1]
        %v2536 = vlaneseq
        %v2537 = vshrl.u32 %v2536, 7
        %v2538 = vsub.s32 0, %v2537
        %v2539 = vrot.slane %v2535, %v2538
        %v2540 = vadd.f32 %v2503, %v2539
        %v2541 = vadd.f32 %v2504, %v2539
        %v2542 = vadd.f32 %v2505, %v2539
        %v2543 = vadd.f32 %v2506, %v2539
        %v2544 = vadd.f32 %v2507, %v2539
        %v2545 = vadd.f32 %v2508, %v2539
        %v2546 = vadd.f32 %v2509, %v2539
        %v2547 = vadd.f32 %v2510, %v2539
        %v2548 = vadd.f32 %v2511, %v2539
        %v2549 = vadd.f32 %v2512, %v2539
        %v2550 = vadd.f32 %v2513, %v2539
        %v2551 = vadd.f32 %v2514, %v2539
        %v2552 = vadd.f32 %v2515, %v2539
        %v2553 = vadd.f32 %v2516, %v2539
        %v2554 = vadd.f32 %v2517, %v2539
        %v2555 = vadd.f32 %v2518, %v2539
        %v2556 = vadd.f32 %v2519, %v2539
        %v2557 = vadd.f32 %v2520, %v2539
        %v2558 = vadd.f32 %v2521, %v2539
        %v2559 = vadd.f32 %v2522, %v2539
        %v2560 = vadd.f32 %v2523, %v2539
        %v2561 = vadd.f32 %v2524, %v2539
        %v2562 = vadd.f32 %v2525, %v2539
        %v2563 = vadd.f32 %v2526, %v2539
        %v2564 = vadd.f32 %v2527, %v2539
        %v2565 = vadd.f32 %v2528, %v2539
        %v2566 = vadd.f32 %v2529, %v2539
        %v2567 = vadd.f32 %v2530, %v2539
        %v2568 = vadd.f32 %v2531, %v2539
        %v2569 = vadd.f32 %v2532, %v2539
        %v2570 = vadd.f32 %v2533, %v2539
        %v2571 = vadd.f32 %v2534, %v2539
        %v2572 = vmax.f32 %v2540, 0.0
        %v2573 = vmax.f32 %v2541, 0.0
        %v2574 = vmax.f32 %v2542, 0.0
        %v2575 = vmax.f32 %v2543, 0.0
        %v2576 = vmax.f32 %v2544, 0.0
        %v2577 = vmax.f32 %v2545, 0.0
        %v2578 = vmax.f32 %v2546, 0.0
        %v2579 = vmax.f32 %v2547, 0.0
        %v2580 = vmax.f32 %v2548, 0.0
        %v2581 = vmax.f32 %v2549, 0.0
        %v2582 = vmax.f32 %v2550, 0.0
        %v2583 = vmax.f32 %v2551, 0.0
        %v2584 = vmax.f32 %v2552, 0.0
        %v2585 = vmax.f32 %v2553, 0.0
        %v2586 = vmax.f32 %v2554, 0.0
        %v2587 = vmax.f32 %v2555, 0.0
        %v2588 = vmax.f32 %v2556, 0.0
        %v2589 = vmax.f32 %v2557, 0.0
        %v2590 = vmax.f32 %v2558, 0.0
        %v2591 = vmax.f32 %v2559, 0.0
        %v2592 = vmax.f32 %v2560, 0.0
        %v2593 = vmax.f32 %v2561, 0.0
        %v2594 = vmax.f32 %v2562, 0.0
        %v2595 = vmax.f32 %v2563, 0.0
        %v2596 = vmax.f32 %v2564, 0.0
        %v2597 = vmax.f32 %v2565, 0.0
        %v2598 = vmax.f32 %v2566, 0.0
        %v2599 = vmax.f32 %v2567, 0.0
        %v2600 = vmax.f32 %v2568, 0.0
        %v2601 = vmax.f32 %v2569, 0.0
        %v2602 = vmax.f32 %v2570, 0.0
        %v2603 = vmax.f32 %v2571, 0.0
        %v2604 = vpack.c.bf16 %v2573, %v2572
        %v2605 = vpack.c.bf16 %v2575, %v2574
        %v2606 = vpack.c.bf16 %v2577, %v2576
        %v2607 = vpack.c.bf16 %v2579, %v2578
        %v2608 = vpack.c.bf16 %v2581, %v2580
        %v2609 = vpack.c.bf16 %v2583, %v2582
        %v2610 = vpack.c.bf16 %v2585, %v2584
        %v2611 = vpack.c.bf16 %v2587, %v2586
        %v2612 = vpack.c.bf16 %v2589, %v2588
        %v2613 = vpack.c.bf16 %v2591, %v2590
        %v2614 = vpack.c.bf16 %v2593, %v2592
        %v2615 = vpack.c.bf16 %v2595, %v2594
        %v2616 = vpack.c.bf16 %v2597, %v2596
        %v2617 = vpack.c.bf16 %v2599, %v2598
        %v2618 = vpack.c.bf16 %v2601, %v2600
        %v2619 = vpack.c.bf16 %v2603, %v2602
        %v2621 = vshrl.u32 %v2604, 16
        %v2623 = vrot.slane %v2621, 7
        %v2624 = vshll.u32 %v2604, 16
        %v2626 = vor.u32 %v2623, %v2624
        %v2628 = vshrl.u32 %v2605, 16
        %v2630 = vrot.slane %v2628, 7
        %v2631 = vshll.u32 %v2605, 16
        %v2633 = vor.u32 %v2630, %v2631
        %v2635 = vshrl.u32 %v2606, 16
        %v2637 = vrot.slane %v2635, 7
        %v2638 = vshll.u32 %v2606, 16
        %v2640 = vor.u32 %v2637, %v2638
        %v2642 = vshrl.u32 %v2607, 16
        %v2644 = vrot.slane %v2642, 7
        %v2645 = vshll.u32 %v2607, 16
        %v2647 = vor.u32 %v2644, %v2645
        %v2649 = vshrl.u32 %v2608, 16
        %v2651 = vrot.slane %v2649, 7
        %v2652 = vshll.u32 %v2608, 16
        %v2654 = vor.u32 %v2651, %v2652
        %v2656 = vshrl.u32 %v2609, 16
        %v2658 = vrot.slane %v2656, 7
        %v2659 = vshll.u32 %v2609, 16
        %v2661 = vor.u32 %v2658, %v2659
        %v2663 = vshrl.u32 %v2610, 16
        %v2665 = vrot.slane %v2663, 7
        %v2666 = vshll.u32 %v2610, 16
        %v2668 = vor.u32 %v2665, %v2666
        %v2670 = vshrl.u32 %v2611, 16
        %v2672 = vrot.slane %v2670, 7
        %v2673 = vshll.u32 %v2611, 16
        %v2675 = vor.u32 %v2672, %v2673
        %v2677 = vshrl.u32 %v2612, 16
        %v2679 = vrot.slane %v2677, 7
        %v2680 = vshll.u32 %v2612, 16
        %v2682 = vor.u32 %v2679, %v2680
        %v2684 = vshrl.u32 %v2613, 16
        %v2686 = vrot.slane %v2684, 7
        %v2687 = vshll.u32 %v2613, 16
        %v2689 = vor.u32 %v2686, %v2687
        %v2691 = vshrl.u32 %v2614, 16
        %v2693 = vrot.slane %v2691, 7
        %v2694 = vshll.u32 %v2614, 16
        %v2696 = vor.u32 %v2693, %v2694
        %v2698 = vshrl.u32 %v2615, 16
        %v2700 = vrot.slane %v2698, 7
        %v2701 = vshll.u32 %v2615, 16
        %v2703 = vor.u32 %v2700, %v2701
        %v2705 = vshrl.u32 %v2616, 16
        %v2707 = vrot.slane %v2705, 7
        %v2708 = vshll.u32 %v2616, 16
        %v2710 = vor.u32 %v2707, %v2708
        %v2712 = vshrl.u32 %v2617, 16
        %v2714 = vrot.slane %v2712, 7
        %v2715 = vshll.u32 %v2617, 16
        %v2717 = vor.u32 %v2714, %v2715
        %v2719 = vshrl.u32 %v2618, 16
        %v2721 = vrot.slane %v2719, 7
        %v2722 = vshll.u32 %v2618, 16
        %v2724 = vor.u32 %v2721, %v2722
        %v2726 = vshrl.u32 %v2619, 16
        %v2728 = vrot.slane %v2726, 7
        %v2729 = vshll.u32 %v2619, 16
        %v2731 = vor.u32 %v2728, %v2729
        %v2748 = vld [vmem:[%s493] sm:$0xff]
        %v2749 = vsel %vm496, %v2626, %v2748
        %2750 = vst [vmem:[%s493] sm:$0xff] %v2749
        %v2751 = vld [vmem:[%s493 + $0x18] sm:$0xff]
        %v2752 = vsel %vm496, %v2633, %v2751
        %2753 = vst [vmem:[%s493 + $0x18] sm:$0xff] %v2752
        %v2754 = vld [vmem:[%s493 + $0x30] sm:$0xff]
        %v2755 = vsel %vm496, %v2640, %v2754
        %2756 = vst [vmem:[%s493 + $0x30] sm:$0xff] %v2755
        %v2757 = vld [vmem:[%s493 + $0x48] sm:$0xff]
        %v2758 = vsel %vm496, %v2647, %v2757
        %2759 = vst [vmem:[%s493 + $0x48] sm:$0xff] %v2758
        %v2760 = vld [vmem:[%s493 + $0x60] sm:$0xff]
        %v2761 = vsel %vm496, %v2654, %v2760
        %2762 = vst [vmem:[%s493 + $0x60] sm:$0xff] %v2761
        %v2763 = vld [vmem:[%s493 + $0x78] sm:$0xff]
        %v2764 = vsel %vm496, %v2661, %v2763
        %2765 = vst [vmem:[%s493 + $0x78] sm:$0xff] %v2764
        %v2766 = vld [vmem:[%s493 + $0x90] sm:$0xff]
        %v2767 = vsel %vm496, %v2668, %v2766
        %2768 = vst [vmem:[%s493 + $0x90] sm:$0xff] %v2767
        %v2769 = vld [vmem:[%s493 + $0xa8] sm:$0xff]
        %v2770 = vsel %vm496, %v2675, %v2769
        %2771 = vst [vmem:[%s493 + $0xa8] sm:$0xff] %v2770
        %v2772 = vld [vmem:[%s493 + $0xc0] sm:$0xff]
        %v2773 = vsel %vm496, %v2682, %v2772
        %2774 = vst [vmem:[%s493 + $0xc0] sm:$0xff] %v2773
        %v2775 = vld [vmem:[%s493 + $0xd8] sm:$0xff]
        %v2776 = vsel %vm496, %v2689, %v2775
        %2777 = vst [vmem:[%s493 + $0xd8] sm:$0xff] %v2776
        %v2778 = vld [vmem:[%s493 + $0xf0] sm:$0xff]
        %v2779 = vsel %vm496, %v2696, %v2778
        %2780 = vst [vmem:[%s493 + $0xf0] sm:$0xff] %v2779
        %v2781 = vld [vmem:[%s493 + $0x108] sm:$0xff]
        %v2782 = vsel %vm496, %v2703, %v2781
        %2783 = vst [vmem:[%s493 + $0x108] sm:$0xff] %v2782
        %v2784 = vld [vmem:[%s493 + $0x120] sm:$0xff]
        %v2785 = vsel %vm496, %v2710, %v2784
        %2786 = vst [vmem:[%s493 + $0x120] sm:$0xff] %v2785
        %v2787 = vld [vmem:[%s493 + $0x138] sm:$0xff]
        %v2788 = vsel %vm496, %v2717, %v2787
        %2789 = vst [vmem:[%s493 + $0x138] sm:$0xff] %v2788
        %v2790 = vld [vmem:[%s493 + $0x150] sm:$0xff]
        %v2791 = vsel %vm496, %v2724, %v2790
        %2792 = vst [vmem:[%s493 + $0x150] sm:$0xff] %v2791
        %v2793 = vld [vmem:[%s493 + $0x168] sm:$0xff]
        %v2794 = vsel %vm496, %v2731, %v2793
        %2795 = vst [vmem:[%s493 + $0x168] sm:$0xff] %v2794
        %v2796 = vld [vmem:[%s493] sm:$0x1]
        %v2797 = vsel %vm547, 0, %v2796
        %2798 = vst [vmem:[%s493] sm:$0x1] %v2797
        %v2799 = vld [vmem:[%s493 + $0x18] sm:$0x1]
        %v2800 = vsel %vm547, 0, %v2799
        %2801 = vst [vmem:[%s493 + $0x18] sm:$0x1] %v2800
        %v2802 = vld [vmem:[%s493 + $0x30] sm:$0x1]
        %v2803 = vsel %vm547, 0, %v2802
        %2804 = vst [vmem:[%s493 + $0x30] sm:$0x1] %v2803
        %v2805 = vld [vmem:[%s493 + $0x48] sm:$0x1]
        %v2806 = vsel %vm547, 0, %v2805
        %2807 = vst [vmem:[%s493 + $0x48] sm:$0x1] %v2806
        %v2808 = vld [vmem:[%s493 + $0x60] sm:$0x1]
        %v2809 = vsel %vm547, 0, %v2808
        %2810 = vst [vmem:[%s493 + $0x60] sm:$0x1] %v2809
        %v2811 = vld [vmem:[%s493 + $0x78] sm:$0x1]
        %v2812 = vsel %vm547, 0, %v2811
        %2813 = vst [vmem:[%s493 + $0x78] sm:$0x1] %v2812
        %v2814 = vld [vmem:[%s493 + $0x90] sm:$0x1]
        %v2815 = vsel %vm547, 0, %v2814
        %2816 = vst [vmem:[%s493 + $0x90] sm:$0x1] %v2815
        %v2817 = vld [vmem:[%s493 + $0xa8] sm:$0x1]
        %v2818 = vsel %vm547, 0, %v2817
        %2819 = vst [vmem:[%s493 + $0xa8] sm:$0x1] %v2818
        %v2820 = vld [vmem:[%s493 + $0xc0] sm:$0x1]
        %v2821 = vsel %vm547, 0, %v2820
        %2822 = vst [vmem:[%s493 + $0xc0] sm:$0x1] %v2821
        %v2823 = vld [vmem:[%s493 + $0xd8] sm:$0x1]
        %v2824 = vsel %vm547, 0, %v2823
        %2825 = vst [vmem:[%s493 + $0xd8] sm:$0x1] %v2824
        %v2826 = vld [vmem:[%s493 + $0xf0] sm:$0x1]
        %v2827 = vsel %vm547, 0, %v2826
        %2828 = vst [vmem:[%s493 + $0xf0] sm:$0x1] %v2827
        %v2829 = vld [vmem:[%s493 + $0x108] sm:$0x1]
        %v2830 = vsel %vm547, 0, %v2829
        %2831 = vst [vmem:[%s493 + $0x108] sm:$0x1] %v2830
        %v2832 = vld [vmem:[%s493 + $0x120] sm:$0x1]
        %v2833 = vsel %vm547, 0, %v2832
        %2834 = vst [vmem:[%s493 + $0x120] sm:$0x1] %v2833
        %v2835 = vld [vmem:[%s493 + $0x138] sm:$0x1]
        %v2836 = vsel %vm547, 0, %v2835
        %2837 = vst [vmem:[%s493 + $0x138] sm:$0x1] %v2836
        %v2838 = vld [vmem:[%s493 + $0x150] sm:$0x1]
        %v2839 = vsel %vm547, 0, %v2838
        %2840 = vst [vmem:[%s493 + $0x150] sm:$0x1] %v2839
        %v2841 = vld [vmem:[%s493 + $0x168] sm:$0x1]
        %v2842 = vsel %vm547, 0, %v2841
        %2843 = vst [vmem:[%s493 + $0x168] sm:$0x1] %v2842
        %2844 = vst [vmem:[%s493 + $0x8] sm:$0xff] %v2604
        %2845 = vst [vmem:[%s493 + $0x20] sm:$0xff] %v2605
        %2846 = vst [vmem:[%s493 + $0x38] sm:$0xff] %v2606
        %2847 = vst [vmem:[%s493 + $0x50] sm:$0xff] %v2607
        %2848 = vst [vmem:[%s493 + $0x68] sm:$0xff] %v2608
        %2849 = vst [vmem:[%s493 + $0x80] sm:$0xff] %v2609
        %2850 = vst [vmem:[%s493 + $0x98] sm:$0xff] %v2610
        %2851 = vst [vmem:[%s493 + $0xb0] sm:$0xff] %v2611
        %2852 = vst [vmem:[%s493 + $0xc8] sm:$0xff] %v2612
        %2853 = vst [vmem:[%s493 + $0xe0] sm:$0xff] %v2613
        %2854 = vst [vmem:[%s493 + $0xf8] sm:$0xff] %v2614
        %2855 = vst [vmem:[%s493 + $0x110] sm:$0xff] %v2615
        %2856 = vst [vmem:[%s493 + $0x128] sm:$0xff] %v2616
        %2857 = vst [vmem:[%s493 + $0x140] sm:$0xff] %v2617
        %2858 = vst [vmem:[%s493 + $0x158] sm:$0xff] %v2618
        %2859 = vst [vmem:[%s493 + $0x170] sm:$0xff] %v2619
        %v2860 = vrot.slane %v2624, 1
        %v2861 = vor.u32 %v2621, %v2860
        %v2862 = vrot.slane %v2631, 1
        %v2863 = vor.u32 %v2628, %v2862
        %v2864 = vrot.slane %v2638, 1
        %v2865 = vor.u32 %v2635, %v2864
        %v2866 = vrot.slane %v2645, 1
        %v2867 = vor.u32 %v2642, %v2866
        %v2868 = vrot.slane %v2652, 1
        %v2869 = vor.u32 %v2649, %v2868
        %v2870 = vrot.slane %v2659, 1
        %v2871 = vor.u32 %v2656, %v2870
        %v2872 = vrot.slane %v2666, 1
        %v2873 = vor.u32 %v2663, %v2872
        %v2874 = vrot.slane %v2673, 1
        %v2875 = vor.u32 %v2670, %v2874
        %v2876 = vrot.slane %v2680, 1
        %v2877 = vor.u32 %v2677, %v2876
        %v2878 = vrot.slane %v2687, 1
        %v2879 = vor.u32 %v2684, %v2878
        %v2880 = vrot.slane %v2694, 1
        %v2881 = vor.u32 %v2691, %v2880
        %v2882 = vrot.slane %v2701, 1
        %v2883 = vor.u32 %v2698, %v2882
        %v2884 = vrot.slane %v2708, 1
        %v2885 = vor.u32 %v2705, %v2884
        %v2886 = vrot.slane %v2715, 1
        %v2887 = vor.u32 %v2712, %v2886
        %v2888 = vrot.slane %v2722, 1
        %v2889 = vor.u32 %v2719, %v2888
        %v2890 = vrot.slane %v2729, 1
        %v2891 = vor.u32 %v2726, %v2890
        %v2908 = vld [vmem:[%s493 + $0x10] sm:$0xff]
        %v2909 = vsel %vm677, %v2861, %v2908
        %2910 = vst [vmem:[%s493 + $0x10] sm:$0xff] %v2909
        %v2911 = vld [vmem:[%s493 + $0x28] sm:$0xff]
        %v2912 = vsel %vm677, %v2863, %v2911
        %2913 = vst [vmem:[%s493 + $0x28] sm:$0xff] %v2912
        %v2914 = vld [vmem:[%s493 + $0x40] sm:$0xff]
        %v2915 = vsel %vm677, %v2865, %v2914
        %2916 = vst [vmem:[%s493 + $0x40] sm:$0xff] %v2915
        %v2917 = vld [vmem:[%s493 + $0x58] sm:$0xff]
        %v2918 = vsel %vm677, %v2867, %v2917
        %2919 = vst [vmem:[%s493 + $0x58] sm:$0xff] %v2918
        %v2920 = vld [vmem:[%s493 + $0x70] sm:$0xff]
        %v2921 = vsel %vm677, %v2869, %v2920
        %2922 = vst [vmem:[%s493 + $0x70] sm:$0xff] %v2921
        %v2923 = vld [vmem:[%s493 + $0x88] sm:$0xff]
        %v2924 = vsel %vm677, %v2871, %v2923
        %2925 = vst [vmem:[%s493 + $0x88] sm:$0xff] %v2924
        %v2926 = vld [vmem:[%s493 + $0xa0] sm:$0xff]
        %v2927 = vsel %vm677, %v2873, %v2926
        %2928 = vst [vmem:[%s493 + $0xa0] sm:$0xff] %v2927
        %v2929 = vld [vmem:[%s493 + $0xb8] sm:$0xff]
        %v2930 = vsel %vm677, %v2875, %v2929
        %2931 = vst [vmem:[%s493 + $0xb8] sm:$0xff] %v2930
        %v2932 = vld [vmem:[%s493 + $0xd0] sm:$0xff]
        %v2933 = vsel %vm677, %v2877, %v2932
        %2934 = vst [vmem:[%s493 + $0xd0] sm:$0xff] %v2933
        %v2935 = vld [vmem:[%s493 + $0xe8] sm:$0xff]
        %v2936 = vsel %vm677, %v2879, %v2935
        %2937 = vst [vmem:[%s493 + $0xe8] sm:$0xff] %v2936
        %v2938 = vld [vmem:[%s493 + $0x100] sm:$0xff]
        %v2939 = vsel %vm677, %v2881, %v2938
        %2940 = vst [vmem:[%s493 + $0x100] sm:$0xff] %v2939
        %v2941 = vld [vmem:[%s493 + $0x118] sm:$0xff]
        %v2942 = vsel %vm677, %v2883, %v2941
        %2943 = vst [vmem:[%s493 + $0x118] sm:$0xff] %v2942
        %v2944 = vld [vmem:[%s493 + $0x130] sm:$0xff]
        %v2945 = vsel %vm677, %v2885, %v2944
        %2946 = vst [vmem:[%s493 + $0x130] sm:$0xff] %v2945
        %v2947 = vld [vmem:[%s493 + $0x148] sm:$0xff]
        %v2948 = vsel %vm677, %v2887, %v2947
        %2949 = vst [vmem:[%s493 + $0x148] sm:$0xff] %v2948
        %v2950 = vld [vmem:[%s493 + $0x160] sm:$0xff]
        %v2951 = vsel %vm677, %v2889, %v2950
        %2952 = vst [vmem:[%s493 + $0x160] sm:$0xff] %v2951
        %v2953 = vld [vmem:[%s493 + $0x178] sm:$0xff]
        %v2954 = vsel %vm677, %v2891, %v2953
        %2955 = vst [vmem:[%s493 + $0x178] sm:$0xff] %v2954
        %v2956 = vld [vmem:[%s493 + $0x10] sm:$0x80]
        %v2957 = vsel %vm728, 0, %v2956
        %2958 = vst [vmem:[%s493 + $0x10] sm:$0x80] %v2957
        %v2959 = vld [vmem:[%s493 + $0x28] sm:$0x80]
        %v2960 = vsel %vm728, 0, %v2959
        %2961 = vst [vmem:[%s493 + $0x28] sm:$0x80] %v2960
        %v2962 = vld [vmem:[%s493 + $0x40] sm:$0x80]
        %v2963 = vsel %vm728, 0, %v2962
        %2964 = vst [vmem:[%s493 + $0x40] sm:$0x80] %v2963
        %v2965 = vld [vmem:[%s493 + $0x58] sm:$0x80]
        %v2966 = vsel %vm728, 0, %v2965
        %2967 = vst [vmem:[%s493 + $0x58] sm:$0x80] %v2966
        %v2968 = vld [vmem:[%s493 + $0x70] sm:$0x80]
        %v2969 = vsel %vm728, 0, %v2968
        %2970 = vst [vmem:[%s493 + $0x70] sm:$0x80] %v2969
        %v2971 = vld [vmem:[%s493 + $0x88] sm:$0x80]
        %v2972 = vsel %vm728, 0, %v2971
        %2973 = vst [vmem:[%s493 + $0x88] sm:$0x80] %v2972
        %v2974 = vld [vmem:[%s493 + $0xa0] sm:$0x80]
        %v2975 = vsel %vm728, 0, %v2974
        %2976 = vst [vmem:[%s493 + $0xa0] sm:$0x80] %v2975
        %v2977 = vld [vmem:[%s493 + $0xb8] sm:$0x80]
        %v2978 = vsel %vm728, 0, %v2977
        %2979 = vst [vmem:[%s493 + $0xb8] sm:$0x80] %v2978
        %v2980 = vld [vmem:[%s493 + $0xd0] sm:$0x80]
        %v2981 = vsel %vm728, 0, %v2980
        %2982 = vst [vmem:[%s493 + $0xd0] sm:$0x80] %v2981
        %v2983 = vld [vmem:[%s493 + $0xe8] sm:$0x80]
        %v2984 = vsel %vm728, 0, %v2983
        %2985 = vst [vmem:[%s493 + $0xe8] sm:$0x80] %v2984
        %v2986 = vld [vmem:[%s493 + $0x100] sm:$0x80]
        %v2987 = vsel %vm728, 0, %v2986
        %2988 = vst [vmem:[%s493 + $0x100] sm:$0x80] %v2987
        %v2989 = vld [vmem:[%s493 + $0x118] sm:$0x80]
        %v2990 = vsel %vm728, 0, %v2989
        %2991 = vst [vmem:[%s493 + $0x118] sm:$0x80] %v2990
        %v2992 = vld [vmem:[%s493 + $0x130] sm:$0x80]
        %v2993 = vsel %vm728, 0, %v2992
        %2994 = vst [vmem:[%s493 + $0x130] sm:$0x80] %v2993
        %v2995 = vld [vmem:[%s493 + $0x148] sm:$0x80]
        %v2996 = vsel %vm728, 0, %v2995
        %2997 = vst [vmem:[%s493 + $0x148] sm:$0x80] %v2996
        %v2998 = vld [vmem:[%s493 + $0x160] sm:$0x80]
        %v2999 = vsel %vm728, 0, %v2998
        %3000 = vst [vmem:[%s493 + $0x160] sm:$0x80] %v2999
        %v3001 = vld [vmem:[%s493 + $0x178] sm:$0x80]
        %v3002 = vsel %vm728, 0, %v3001
        %3003 = vst [vmem:[%s493 + $0x178] sm:$0x80] %v3002
        %v3004 = vld [vmem:[#allocation2] sm:$0xff]
        %v3005 = vld [vmem:[#allocation2 + $0x8] sm:$0xff]
        %v3006 = vld [vmem:[#allocation2 + $0x10] sm:$0xff]
        %v3007 = vld [vmem:[#allocation2 + $0x18] sm:$0xff]
        %v3008 = vld [vmem:[#allocation2 + $0x20] sm:$0xff]
        %v3009 = vld [vmem:[#allocation2 + $0x28] sm:$0xff]
        %v3010 = vld [vmem:[#allocation2 + $0x30] sm:$0xff]
        %v3011 = vld [vmem:[#allocation2 + $0x38] sm:$0xff]
        %v3012 = vld [vmem:[#allocation2 + $0x40] sm:$0xff]
        %v3013 = vld [vmem:[#allocation2 + $0x48] sm:$0xff]
        %v3014 = vld [vmem:[#allocation2 + $0x50] sm:$0xff]
        %v3015 = vld [vmem:[#allocation2 + $0x58] sm:$0xff]
        %v3016 = vld [vmem:[#allocation2 + $0x60] sm:$0xff]
        %v3017 = vld [vmem:[#allocation2 + $0x68] sm:$0xff]
        %v3018 = vld [vmem:[#allocation2 + $0x70] sm:$0xff]
        %v3019 = vld [vmem:[#allocation2 + $0x78] sm:$0xff]
        %v3020 = vld [vmem:[#allocation2 + $0x80] sm:$0xff]
        %v3021 = vld [vmem:[#allocation2 + $0x88] sm:$0xff]
        %v3022 = vld [vmem:[#allocation2 + $0x90] sm:$0xff]
        %v3023 = vld [vmem:[#allocation2 + $0x98] sm:$0xff]
        %v3024 = vld [vmem:[#allocation2 + $0xa0] sm:$0xff]
        %v3025 = vld [vmem:[#allocation2 + $0xa8] sm:$0xff]
        %v3026 = vld [vmem:[#allocation2 + $0xb0] sm:$0xff]
        %v3027 = vld [vmem:[#allocation2 + $0xb8] sm:$0xff]
        %v3028 = vld [vmem:[#allocation2 + $0xc0] sm:$0xff]
        %v3029 = vld [vmem:[#allocation2 + $0xc8] sm:$0xff]
        %v3030 = vld [vmem:[#allocation2 + $0xd0] sm:$0xff]
        %v3031 = vld [vmem:[#allocation2 + $0xd8] sm:$0xff]
        %v3032 = vld [vmem:[#allocation2 + $0xe0] sm:$0xff]
        %v3033 = vld [vmem:[#allocation2 + $0xe8] sm:$0xff]
        %v3034 = vld [vmem:[#allocation2 + $0xf0] sm:$0xff]
        %v3035 = vld [vmem:[#allocation2 + $0xf8] sm:$0xff]
        %v3036 = vld [vmem:[#allocation2 + $0x100] sm:$0xff]
        %v3037 = vld [vmem:[#allocation2 + $0x108] sm:$0xff]
        %v3038 = vld [vmem:[#allocation2 + $0x110] sm:$0xff]
        %v3039 = vld [vmem:[#allocation2 + $0x118] sm:$0xff]
        %v3040 = vld [vmem:[#allocation2 + $0x120] sm:$0xff]
        %v3041 = vld [vmem:[#allocation2 + $0x128] sm:$0xff]
        %v3042 = vld [vmem:[#allocation2 + $0x130] sm:$0xff]
        %v3043 = vld [vmem:[#allocation2 + $0x138] sm:$0xff]
        %v3044 = vld [vmem:[#allocation2 + $0x140] sm:$0xff]
        %v3045 = vld [vmem:[#allocation2 + $0x148] sm:$0xff]
        %v3046 = vld [vmem:[#allocation2 + $0x150] sm:$0xff]
        %v3047 = vld [vmem:[#allocation2 + $0x158] sm:$0xff]
        %v3048 = vld [vmem:[#allocation2 + $0x160] sm:$0xff]
        %v3049 = vld [vmem:[#allocation2 + $0x168] sm:$0xff]
        %v3050 = vld [vmem:[#allocation2 + $0x170] sm:$0xff]
        %v3051 = vld [vmem:[#allocation2 + $0x178] sm:$0xff]
        %v3052 = vld [vmem:[#allocation8] sm:$0xf]
        %v3053 = vld [vmem:[#allocation8 + $0x4] sm:$0xf]
        %v3054 = vld [vmem:[#allocation8 + $0x8] sm:$0xf]
        %v3055 = vld [vmem:[#allocation8 + $0xc] sm:$0xf]
        %v3056 = vld [vmem:[#allocation8 + $0x10] sm:$0xf]
        %v3057 = vld [vmem:[#allocation8 + $0x14] sm:$0xf]
        %v3058 = vld [vmem:[#allocation8 + $0x18] sm:$0xf]
        %v3059 = vld [vmem:[#allocation8 + $0x1c] sm:$0xf]
        %v3060 = vld [vmem:[#allocation8 + $0x20] sm:$0xf]
        %v3061 = vld [vmem:[#allocation8 + $0x24] sm:$0xf]
        %v3062 = vld [vmem:[#allocation8 + $0x28] sm:$0xf]
        %v3063 = vld [vmem:[#allocation8 + $0x2c] sm:$0xf]
        %v3064 = vld [vmem:[#allocation8 + $0x30] sm:$0xf]
        %v3065 = vld [vmem:[#allocation8 + $0x34] sm:$0xf]
        %v3066 = vld [vmem:[#allocation8 + $0x38] sm:$0xf]
        %v3067 = vld [vmem:[#allocation8 + $0x3c] sm:$0xf]
        %v3068 = vld [vmem:[#allocation8 + $0x40] sm:$0xf]
        %v3069 = vld [vmem:[#allocation8 + $0x44] sm:$0xf]
        %v3070 = vld [vmem:[#allocation8 + $0x48] sm:$0xf]
        %v3071 = vld [vmem:[#allocation8 + $0x4c] sm:$0xf]
        %v3072 = vld [vmem:[#allocation8 + $0x50] sm:$0xf]
        %v3073 = vld [vmem:[#allocation8 + $0x54] sm:$0xf]
        %v3074 = vld [vmem:[#allocation8 + $0x58] sm:$0xf]
        %v3075 = vld [vmem:[#allocation8 + $0x5c] sm:$0xf]
        %v3076 = vld [vmem:[#allocation8 + $0x60] sm:$0xf]
        %v3077 = vld [vmem:[#allocation8 + $0x64] sm:$0xf]
        %v3078 = vld [vmem:[#allocation8 + $0x68] sm:$0xf]
        %v3079 = vld [vmem:[#allocation8 + $0x6c] sm:$0xf]
        %v3080 = vld [vmem:[#allocation8 + $0x70] sm:$0xf]
        %v3081 = vld [vmem:[#allocation8 + $0x74] sm:$0xf]
        %v3082 = vld [vmem:[#allocation8 + $0x78] sm:$0xf]
        %v3083 = vld [vmem:[#allocation8 + $0x7c] sm:$0xf]
        %v3084 = vld [vmem:[#allocation8 + $0x80] sm:$0xf]
        %v3085 = vld [vmem:[#allocation8 + $0x84] sm:$0xf]
        %v3086 = vld [vmem:[#allocation8 + $0x88] sm:$0xf]
        %v3087 = vld [vmem:[#allocation8 + $0x8c] sm:$0xf]
        %v3088 = vld [vmem:[#allocation8 + $0x90] sm:$0xf]
        %v3089 = vld [vmem:[#allocation8 + $0x94] sm:$0xf]
        %v3090 = vld [vmem:[#allocation8 + $0x98] sm:$0xf]
        %v3091 = vld [vmem:[#allocation8 + $0x9c] sm:$0xf]
        %v3092 = vld [vmem:[#allocation8 + $0xa0] sm:$0xf]
        %v3093 = vld [vmem:[#allocation8 + $0xa4] sm:$0xf]
        %v3094 = vld [vmem:[#allocation8 + $0xa8] sm:$0xf]
        %v3095 = vld [vmem:[#allocation8 + $0xac] sm:$0xf]
        %v3096 = vld [vmem:[#allocation8 + $0xb0] sm:$0xf]
        %v3097 = vld [vmem:[#allocation8 + $0xb4] sm:$0xf]
        %v3098 = vld [vmem:[#allocation8 + $0xb8] sm:$0xf]
        %v3099 = vld [vmem:[#allocation8 + $0xbc] sm:$0xf]
        %v3100 = vld [vmem:[%s493] sm:$0xff]
        %v3101 = vld [vmem:[%s493 + $0x8] sm:$0xff]
        %v3102 = vld [vmem:[%s493 + $0x10] sm:$0xff]
        %v3103 = vld [vmem:[%s493 + $0x18] sm:$0xff]
        %v3104 = vld [vmem:[%s493 + $0x20] sm:$0xff]
        %v3105 = vld [vmem:[%s493 + $0x28] sm:$0xff]
        %v3106 = vld [vmem:[%s493 + $0x30] sm:$0xff]
        %v3107 = vld [vmem:[%s493 + $0x38] sm:$0xff]
        %v3108 = vld [vmem:[%s493 + $0x40] sm:$0xff]
        %v3109 = vld [vmem:[%s493 + $0x48] sm:$0xff]
        %v3110 = vld [vmem:[%s493 + $0x50] sm:$0xff]
        %v3111 = vld [vmem:[%s493 + $0x58] sm:$0xff]
        %v3112 = vld [vmem:[%s493 + $0x60] sm:$0xff]
        %v3113 = vld [vmem:[%s493 + $0x68] sm:$0xff]
        %v3114 = vld [vmem:[%s493 + $0x70] sm:$0xff]
        %v3115 = vld [vmem:[%s493 + $0x78] sm:$0xff]
        %v3116 = vld [vmem:[%s493 + $0x80] sm:$0xff]
        %v3117 = vld [vmem:[%s493 + $0x88] sm:$0xff]
        %v3118 = vld [vmem:[%s493 + $0x90] sm:$0xff]
        %v3119 = vld [vmem:[%s493 + $0x98] sm:$0xff]
        %v3120 = vld [vmem:[%s493 + $0xa0] sm:$0xff]
        %v3121 = vld [vmem:[%s493 + $0xa8] sm:$0xff]
        %v3122 = vld [vmem:[%s493 + $0xb0] sm:$0xff]
        %v3123 = vld [vmem:[%s493 + $0xb8] sm:$0xff]
        %v3124 = vld [vmem:[%s493 + $0xc0] sm:$0xff]
        %v3125 = vld [vmem:[%s493 + $0xc8] sm:$0xff]
        %v3126 = vld [vmem:[%s493 + $0xd0] sm:$0xff]
        %v3127 = vld [vmem:[%s493 + $0xd8] sm:$0xff]
        %v3128 = vld [vmem:[%s493 + $0xe0] sm:$0xff]
        %v3129 = vld [vmem:[%s493 + $0xe8] sm:$0xff]
        %v3130 = vld [vmem:[%s493 + $0xf0] sm:$0xff]
        %v3131 = vld [vmem:[%s493 + $0xf8] sm:$0xff]
        %v3132 = vld [vmem:[%s493 + $0x100] sm:$0xff]
        %v3133 = vld [vmem:[%s493 + $0x108] sm:$0xff]
        %v3134 = vld [vmem:[%s493 + $0x110] sm:$0xff]
        %v3135 = vld [vmem:[%s493 + $0x118] sm:$0xff]
        %v3136 = vld [vmem:[%s493 + $0x120] sm:$0xff]
        %v3137 = vld [vmem:[%s493 + $0x128] sm:$0xff]
        %v3138 = vld [vmem:[%s493 + $0x130] sm:$0xff]
        %v3139 = vld [vmem:[%s493 + $0x138] sm:$0xff]
        %v3140 = vld [vmem:[%s493 + $0x140] sm:$0xff]
        %v3141 = vld [vmem:[%s493 + $0x148] sm:$0xff]
        %v3142 = vld [vmem:[%s493 + $0x150] sm:$0xff]
        %v3143 = vld [vmem:[%s493 + $0x158] sm:$0xff]
        %v3144 = vld [vmem:[%s493 + $0x160] sm:$0xff]
        %v3145 = vld [vmem:[%s493 + $0x168] sm:$0xff]
        %v3146 = vld [vmem:[%s493 + $0x170] sm:$0xff]
        %v3147 = vld [vmem:[%s493 + $0x178] sm:$0xff]
        %s3148 = scalar_lea.vmem [#allocation8], 192
        %v3149 = vld [vmem:[%s3148] sm:$0xf]
        %v3150 = vld [vmem:[%s3148 + $0x4] sm:$0xf]
        %v3151 = vld [vmem:[%s3148 + $0x8] sm:$0xf]
        %v3152 = vld [vmem:[%s3148 + $0xc] sm:$0xf]
        %v3153 = vld [vmem:[%s3148 + $0x10] sm:$0xf]
        %v3154 = vld [vmem:[%s3148 + $0x14] sm:$0xf]
        %v3155 = vld [vmem:[%s3148 + $0x18] sm:$0xf]
        %v3156 = vld [vmem:[%s3148 + $0x1c] sm:$0xf]
        %v3157 = vld [vmem:[%s3148 + $0x20] sm:$0xf]
        %v3158 = vld [vmem:[%s3148 + $0x24] sm:$0xf]
        %v3159 = vld [vmem:[%s3148 + $0x28] sm:$0xf]
        %v3160 = vld [vmem:[%s3148 + $0x2c] sm:$0xf]
        %v3161 = vld [vmem:[%s3148 + $0x30] sm:$0xf]
        %v3162 = vld [vmem:[%s3148 + $0x34] sm:$0xf]
        %v3163 = vld [vmem:[%s3148 + $0x38] sm:$0xf]
        %v3164 = vld [vmem:[%s3148 + $0x3c] sm:$0xf]
        %v3165 = vld [vmem:[%s3148 + $0x40] sm:$0xf]
        %v3166 = vld [vmem:[%s3148 + $0x44] sm:$0xf]
        %v3167 = vld [vmem:[%s3148 + $0x48] sm:$0xf]
        %v3168 = vld [vmem:[%s3148 + $0x4c] sm:$0xf]
        %v3169 = vld [vmem:[%s3148 + $0x50] sm:$0xf]
        %v3170 = vld [vmem:[%s3148 + $0x54] sm:$0xf]
        %v3171 = vld [vmem:[%s3148 + $0x58] sm:$0xf]
        %v3172 = vld [vmem:[%s3148 + $0x5c] sm:$0xf]
        %v3173 = vld [vmem:[%s3148 + $0x60] sm:$0xf]
        %v3174 = vld [vmem:[%s3148 + $0x64] sm:$0xf]
        %v3175 = vld [vmem:[%s3148 + $0x68] sm:$0xf]
        %v3176 = vld [vmem:[%s3148 + $0x6c] sm:$0xf]
        %v3177 = vld [vmem:[%s3148 + $0x70] sm:$0xf]
        %v3178 = vld [vmem:[%s3148 + $0x74] sm:$0xf]
        %v3179 = vld [vmem:[%s3148 + $0x78] sm:$0xf]
        %v3180 = vld [vmem:[%s3148 + $0x7c] sm:$0xf]
        %v3181 = vld [vmem:[%s3148 + $0x80] sm:$0xf]
        %v3182 = vld [vmem:[%s3148 + $0x84] sm:$0xf]
        %v3183 = vld [vmem:[%s3148 + $0x88] sm:$0xf]
        %v3184 = vld [vmem:[%s3148 + $0x8c] sm:$0xf]
        %v3185 = vld [vmem:[%s3148 + $0x90] sm:$0xf]
        %v3186 = vld [vmem:[%s3148 + $0x94] sm:$0xf]
        %v3187 = vld [vmem:[%s3148 + $0x98] sm:$0xf]
        %v3188 = vld [vmem:[%s3148 + $0x9c] sm:$0xf]
        %v3189 = vld [vmem:[%s3148 + $0xa0] sm:$0xf]
        %v3190 = vld [vmem:[%s3148 + $0xa4] sm:$0xf]
        %v3191 = vld [vmem:[%s3148 + $0xa8] sm:$0xf]
        %v3192 = vld [vmem:[%s3148 + $0xac] sm:$0xf]
        %v3193 = vld [vmem:[%s3148 + $0xb0] sm:$0xf]
        %v3194 = vld [vmem:[%s3148 + $0xb4] sm:$0xf]
        %v3195 = vld [vmem:[%s3148 + $0xb8] sm:$0xf]
        %v3196 = vld [vmem:[%s3148 + $0xbc] sm:$0xf]
        %v3245 = vunpack.c.l.b16 %v3149
        %v3246 = vunpack.c.l.b16 %v3150
        %v3247 = vunpack.c.l.b16 %v3151
        %v3248 = vunpack.c.l.b16 %v3152
        %v3249 = vunpack.c.l.b16 %v3153
        %v3250 = vunpack.c.l.b16 %v3154
        %v3251 = vunpack.c.l.b16 %v3155
        %v3252 = vunpack.c.l.b16 %v3156
        %v3253 = vunpack.c.l.b16 %v3157
        %v3254 = vunpack.c.l.b16 %v3158
        %v3255 = vunpack.c.l.b16 %v3159
        %v3256 = vunpack.c.l.b16 %v3160
        %v3257 = vunpack.c.l.b16 %v3161
        %v3258 = vunpack.c.l.b16 %v3162
        %v3259 = vunpack.c.l.b16 %v3163
        %v3260 = vunpack.c.l.b16 %v3164
        %v3261 = vunpack.c.l.b16 %v3165
        %v3262 = vunpack.c.l.b16 %v3166
        %v3263 = vunpack.c.l.b16 %v3167
        %v3264 = vunpack.c.l.b16 %v3168
        %v3265 = vunpack.c.l.b16 %v3169
        %v3266 = vunpack.c.l.b16 %v3170
        %v3267 = vunpack.c.l.b16 %v3171
        %v3268 = vunpack.c.l.b16 %v3172
        %v3269 = vunpack.c.l.b16 %v3173
        %v3270 = vunpack.c.l.b16 %v3174
        %v3271 = vunpack.c.l.b16 %v3175
        %v3272 = vunpack.c.l.b16 %v3176
        %v3273 = vunpack.c.l.b16 %v3177
        %v3274 = vunpack.c.l.b16 %v3178
        %v3275 = vunpack.c.l.b16 %v3179
        %v3276 = vunpack.c.l.b16 %v3180
        %v3277 = vunpack.c.l.b16 %v3181
        %v3278 = vunpack.c.l.b16 %v3182
        %v3279 = vunpack.c.l.b16 %v3183
        %v3280 = vunpack.c.l.b16 %v3184
        %v3281 = vunpack.c.l.b16 %v3185
        %v3282 = vunpack.c.l.b16 %v3186
        %v3283 = vunpack.c.l.b16 %v3187
        %v3284 = vunpack.c.l.b16 %v3188
        %v3285 = vunpack.c.l.b16 %v3189
        %v3286 = vunpack.c.l.b16 %v3190
        %v3287 = vunpack.c.l.b16 %v3191
        %v3288 = vunpack.c.l.b16 %v3192
        %v3289 = vunpack.c.l.b16 %v3193
        %v3290 = vunpack.c.l.b16 %v3194
        %v3291 = vunpack.c.l.b16 %v3195
        %v3292 = vunpack.c.l.b16 %v3196
        %v3293 = vpack.c.b16 %v3246, %v3245
        %v3294 = vpack.c.b16 %v3248, %v3247
        %v3295 = vpack.c.b16 %v3250, %v3249
        %v3296 = vpack.c.b16 %v3252, %v3251
        %v3297 = vpack.c.b16 %v3254, %v3253
        %v3298 = vpack.c.b16 %v3256, %v3255
        %v3299 = vpack.c.b16 %v3258, %v3257
        %v3300 = vpack.c.b16 %v3260, %v3259
        %v3301 = vpack.c.b16 %v3262, %v3261
        %v3302 = vpack.c.b16 %v3264, %v3263
        %v3303 = vpack.c.b16 %v3266, %v3265
        %v3304 = vpack.c.b16 %v3268, %v3267
        %v3305 = vpack.c.b16 %v3270, %v3269
        %v3306 = vpack.c.b16 %v3272, %v3271
        %v3307 = vpack.c.b16 %v3274, %v3273
        %v3308 = vpack.c.b16 %v3276, %v3275
        %v3309 = vpack.c.b16 %v3278, %v3277
        %v3310 = vpack.c.b16 %v3280, %v3279
        %v3311 = vpack.c.b16 %v3282, %v3281
        %v3312 = vpack.c.b16 %v3284, %v3283
        %v3313 = vpack.c.b16 %v3286, %v3285
        %v3314 = vpack.c.b16 %v3288, %v3287
        %v3315 = vpack.c.b16 %v3290, %v3289
        %v3316 = vpack.c.b16 %v3292, %v3291
        %3341 = vmatprep.subr.bf16.mxu0 0
        %3342 = vmatpush1.bf16.msra.mxu0 %v3293
        %3343 = vmatprep.subr.bf16.mxu0 0
        %3344 = vmatpush1.bf16.msra.mxu0 %v3294
        %3345 = vmatprep.subr.bf16.mxu0 0
        %3346 = vmatpush1.bf16.msra.mxu0 %v3295
        %3347 = vmatprep.subr.bf16.mxu0 0
        %3348 = vmatpush1.bf16.msra.mxu0 %v3296
        %3349 = vmatprep.subr.bf16.mxu0 0
        %3350 = vmatpush1.bf16.msra.mxu0 %v3297
        %3351 = vmatprep.subr.bf16.mxu0 0
        %3352 = vmatpush1.bf16.msra.mxu0 %v3298
        %3353 = vmatprep.subr.bf16.mxu0 0
        %3354 = vmatpush1.bf16.msra.mxu0 %v3299
        %3355 = vmatprep.subr.bf16.mxu0 0
        %3356 = vmatpush1.bf16.msra.mxu0 %v3300
        %3357 = vmatprep.subr.bf16.mxu0 0
        %3358 = vmatpush1.bf16.msra.mxu0 %v3301
        %3359 = vmatprep.subr.bf16.mxu0 0
        %3360 = vmatpush1.bf16.msra.mxu0 %v3302
        %3361 = vmatprep.subr.bf16.mxu0 0
        %3362 = vmatpush1.bf16.msra.mxu0 %v3303
        %3363 = vmatprep.subr.bf16.mxu0 0
        %3364 = vmatpush1.bf16.msra.mxu0 %v3304
        %3365 = vmatprep.subr.bf16.mxu0 0
        %3366 = vmatpush1.bf16.msra.mxu0 %v3305
        %3367 = vmatprep.subr.bf16.mxu0 0
        %3368 = vmatpush1.bf16.msra.mxu0 %v3306
        %3369 = vmatprep.subr.bf16.mxu0 0
        %3370 = vmatpush1.bf16.msra.mxu0 %v3307
        %3371 = vmatprep.subr.bf16.mxu0 0
        %3372 = vmatpush1.bf16.msra.mxu0 %v3308
        %3373 = vmatprep.mubr.bf16.mxu0 %v3101
        %3374 = vmatmul.mubr.bf16.gmra.mrb[0].mxu0 %v3100
        %v3375 = vpop.f32.mrb[0].mxu0
        %v3376 = vadd.f32 0.0, %v3375
        %v3377 = vpop.f32.mrb[0].mxu0
        %v3378 = vpop.f32.mrb[0].mxu0
        %v3379 = vadd.f32 0.0, %v3378
        %v3380 = vpop.f32.mrb[0].mxu0
        %3381 = vmatprep.mubr.bf16.mxu0 %v3104
        %3382 = vmatmul.mubr.bf16.gmra.mrb[0].mxu0 %v3103
        %v3383 = vpop.f32.mrb[0].mxu0
        %v3384 = vadd.f32 0.0, %v3383
        %v3385 = vpop.f32.mrb[0].mxu0
        %v3386 = vpop.f32.mrb[0].mxu0
        %v3387 = vadd.f32 0.0, %v3386
        %v3388 = vpop.f32.mrb[0].mxu0
        %3389 = vmatprep.mubr.bf16.mxu0 %v3107
        %3390 = vmatmul.mubr.bf16.gmra.mrb[0].mxu0 %v3106
        %v3391 = vpop.f32.mrb[0].mxu0
        %v3392 = vadd.f32 0.0, %v3391
        %v3393 = vpop.f32.mrb[0].mxu0
        %v3394 = vpop.f32.mrb[0].mxu0
        %v3395 = vadd.f32 0.0, %v3394
        %v3396 = vpop.f32.mrb[0].mxu0
        %3397 = vmatprep.mubr.bf16.mxu0 %v3110
        %3398 = vmatmul.mubr.bf16.gmra.mrb[0].mxu0 %v3109
        %v3399 = vpop.f32.mrb[0].mxu0
        %v3400 = vadd.f32 0.0, %v3399
        %v3401 = vpop.f32.mrb[0].mxu0
        %v3402 = vpop.f32.mrb[0].mxu0
        %v3403 = vadd.f32 0.0, %v3402
        %v3404 = vpop.f32.mrb[0].mxu0
        %3405 = vmatprep.mubr.bf16.mxu0 %v3113
        %3406 = vmatmul.mubr.bf16.gmra.mrb[0].mxu0 %v3112
        %v3407 = vpop.f32.mrb[0].mxu0
        %v3408 = vadd.f32 0.0, %v3407
        %v3409 = vpop.f32.mrb[0].mxu0
        %v3410 = vpop.f32.mrb[0].mxu0
        %v3411 = vadd.f32 0.0, %v3410
        %v3412 = vpop.f32.mrb[0].mxu0
        %3413 = vmatprep.mubr.bf16.mxu0 %v3116
        %3414 = vmatmul.mubr.bf16.gmra.mrb[0].mxu0 %v3115
        %v3415 = vpop.f32.mrb[0].mxu0
        %v3416 = vadd.f32 0.0, %v3415
        %v3417 = vpop.f32.mrb[0].mxu0
        %v3418 = vpop.f32.mrb[0].mxu0
        %v3419 = vadd.f32 0.0, %v3418
        %v3420 = vpop.f32.mrb[0].mxu0
        %3421 = vmatprep.mubr.bf16.mxu0 %v3119
        %3422 = vmatmul.mubr.bf16.gmra.mrb[0].mxu0 %v3118
        %v3423 = vpop.f32.mrb[0].mxu0
        %v3424 = vadd.f32 0.0, %v3423
        %v3425 = vpop.f32.mrb[0].mxu0
        %v3426 = vpop.f32.mrb[0].mxu0
        %v3427 = vadd.f32 0.0, %v3426
        %v3428 = vpop.f32.mrb[0].mxu0
        %3429 = vmatprep.mubr.bf16.mxu0 %v3122
        %3430 = vmatmul.mubr.bf16.gmra.mrb[0].mxu0 %v3121
        %v3431 = vpop.f32.mrb[0].mxu0
        %v3432 = vadd.f32 0.0, %v3431
        %v3433 = vpop.f32.mrb[0].mxu0
        %v3434 = vpop.f32.mrb[0].mxu0
        %v3435 = vadd.f32 0.0, %v3434
        %v3436 = vpop.f32.mrb[0].mxu0
        %3437 = vmatprep.mubr.bf16.mxu0 %v3125
        %3438 = vmatmul.mubr.bf16.gmra.mrb[0].mxu0 %v3124
        %v3439 = vpop.f32.mrb[0].mxu0
        %v3440 = vadd.f32 0.0, %v3439
        %v3441 = vpop.f32.mrb[0].mxu0
        %v3442 = vpop.f32.mrb[0].mxu0
        %v3443 = vadd.f32 0.0, %v3442
        %v3444 = vpop.f32.mrb[0].mxu0
        %3445 = vmatprep.mubr.bf16.mxu0 %v3128
        %3446 = vmatmul.mubr.bf16.gmra.mrb[0].mxu0 %v3127
        %v3447 = vpop.f32.mrb[0].mxu0
        %v3448 = vadd.f32 0.0, %v3447
        %v3449 = vpop.f32.mrb[0].mxu0
        %v3450 = vpop.f32.mrb[0].mxu0
        %v3451 = vadd.f32 0.0, %v3450
        %v3452 = vpop.f32.mrb[0].mxu0
        %3453 = vmatprep.mubr.bf16.mxu0 %v3131
        %3454 = vmatmul.mubr.bf16.gmra.mrb[0].mxu0 %v3130
        %v3455 = vpop.f32.mrb[0].mxu0
        %v3456 = vadd.f32 0.0, %v3455
        %v3457 = vpop.f32.mrb[0].mxu0
        %v3458 = vpop.f32.mrb[0].mxu0
        %v3459 = vadd.f32 0.0, %v3458
        %v3460 = vpop.f32.mrb[0].mxu0
        %3461 = vmatprep.mubr.bf16.mxu0 %v3134
        %3462 = vmatmul.mubr.bf16.gmra.mrb[0].mxu0 %v3133
        %v3463 = vpop.f32.mrb[0].mxu0
        %v3464 = vadd.f32 0.0, %v3463
        %v3465 = vpop.f32.mrb[0].mxu0
        %v3466 = vpop.f32.mrb[0].mxu0
        %v3467 = vadd.f32 0.0, %v3466
        %v3468 = vpop.f32.mrb[0].mxu0
        %3469 = vmatprep.mubr.bf16.mxu0 %v3137
        %3470 = vmatmul.mubr.bf16.gmra.mrb[0].mxu0 %v3136
        %v3471 = vpop.f32.mrb[0].mxu0
        %v3472 = vadd.f32 0.0, %v3471
        %v3473 = vpop.f32.mrb[0].mxu0
        %v3474 = vpop.f32.mrb[0].mxu0
        %v3475 = vadd.f32 0.0, %v3474
        %v3476 = vpop.f32.mrb[0].mxu0
        %3477 = vmatprep.mubr.bf16.mxu0 %v3140
        %3478 = vmatmul.mubr.bf16.gmra.mrb[0].mxu0 %v3139
        %v3479 = vpop.f32.mrb[0].mxu0
        %v3480 = vadd.f32 0.0, %v3479
        %v3481 = vpop.f32.mrb[0].mxu0
        %v3482 = vpop.f32.mrb[0].mxu0
        %v3483 = vadd.f32 0.0, %v3482
        %v3484 = vpop.f32.mrb[0].mxu0
        %3485 = vmatprep.mubr.bf16.mxu0 %v3143
        %3486 = vmatmul.mubr.bf16.gmra.mrb[0].mxu0 %v3142
        %v3487 = vpop.f32.mrb[0].mxu0
        %v3488 = vadd.f32 0.0, %v3487
        %v3489 = vpop.f32.mrb[0].mxu0
        %v3490 = vpop.f32.mrb[0].mxu0
        %v3491 = vadd.f32 0.0, %v3490
        %v3492 = vpop.f32.mrb[0].mxu0
        %3493 = vmatprep.mubr.bf16.mxu0 %v3146
        %3494 = vmatmul.mubr.bf16.gmra.mrb[0].mxu0 %v3145
        %v3495 = vpop.f32.mrb[0].mxu0
        %v3496 = vadd.f32 0.0, %v3495
        %v3497 = vpop.f32.mrb[0].mxu0
        %v3498 = vpop.f32.mrb[0].mxu0
        %v3499 = vadd.f32 0.0, %v3498
        %v3500 = vpop.f32.mrb[0].mxu0
        %3501 = vdwg.mxu0
        %3502 = vmatprep.subr.bf16.mxu0 0
        %3503 = vmatpush1.bf16.msra.mxu0 %v3309
        %3504 = vmatprep.subr.bf16.mxu0 0
        %3505 = vmatpush1.bf16.msra.mxu0 %v3310
        %3506 = vmatprep.subr.bf16.mxu0 0
        %3507 = vmatpush1.bf16.msra.mxu0 %v3311
        %3508 = vmatprep.subr.bf16.mxu0 0
        %3509 = vmatpush1.bf16.msra.mxu0 %v3312
        %3510 = vmatprep.subr.bf16.mxu0 0
        %3511 = vmatpush1.bf16.msra.mxu0 %v3313
        %3512 = vmatprep.subr.bf16.mxu0 0
        %3513 = vmatpush1.bf16.msra.mxu0 %v3314
        %3514 = vmatprep.subr.bf16.mxu0 0
        %3515 = vmatpush1.bf16.msra.mxu0 %v3315
        %3516 = vmatprep.subr.bf16.mxu0 0
        %3517 = vmatpush1.bf16.msra.mxu0 %v3316
        %3518 = vmatprep.subr.bf16.mxu0 0
        %3519 = vmatpush1.bf16.msra.mxu0 0
        %3520 = vmatprep.subr.bf16.mxu0 0
        %3521 = vmatpush1.bf16.msra.mxu0 0
        %3522 = vmatprep.subr.bf16.mxu0 0
        %3523 = vmatpush1.bf16.msra.mxu0 0
        %3524 = vmatprep.subr.bf16.mxu0 0
        %3525 = vmatpush1.bf16.msra.mxu0 0
        %3526 = vmatprep.subr.bf16.mxu0 0
        %3527 = vmatpush1.bf16.msra.mxu0 0
        %3528 = vmatprep.subr.bf16.mxu0 0
        %3529 = vmatpush1.bf16.msra.mxu0 0
        %3530 = vmatprep.subr.bf16.mxu0 0
        %3531 = vmatpush1.bf16.msra.mxu0 0
        %3532 = vmatprep.subr.bf16.mxu0 0
        %3533 = vmatpush1.bf16.msra.mxu0 0
        %3534 = vmatprep.mubr.bf16.mxu0 0
        %3535 = vmatmul.mubr.bf16.gmra.mrb[0].mxu0 %v3102
        %v3536 = vpop.f32.mrb[0].mxu0
        %v3537 = vadd.f32 %v3376, %v3536
        %v3538 = vpop.f32.mrb[0].mxu0
        %v3539 = vpop.f32.mrb[0].mxu0
        %v3540 = vadd.f32 %v3379, %v3539
        %v3541 = vpop.f32.mrb[0].mxu0
        %3542 = vmatprep.mubr.bf16.mxu0 0
        %3543 = vmatmul.mubr.bf16.gmra.mrb[0].mxu0 %v3105
        %v3544 = vpop.f32.mrb[0].mxu0
        %v3545 = vadd.f32 %v3384, %v3544
        %v3546 = vpop.f32.mrb[0].mxu0
        %v3547 = vpop.f32.mrb[0].mxu0
        %v3548 = vadd.f32 %v3387, %v3547
        %v3549 = vpop.f32.mrb[0].mxu0
        %3550 = vmatprep.mubr.bf16.mxu0 0
        %3551 = vmatmul.mubr.bf16.gmra.mrb[0].mxu0 %v3108
        %v3552 = vpop.f32.mrb[0].mxu0
        %v3553 = vadd.f32 %v3392, %v3552
        %v3554 = vpop.f32.mrb[0].mxu0
        %v3555 = vpop.f32.mrb[0].mxu0
        %v3556 = vadd.f32 %v3395, %v3555
        %v3557 = vpop.f32.mrb[0].mxu0
        %3558 = vmatprep.mubr.bf16.mxu0 0
        %3559 = vmatmul.mubr.bf16.gmra.mrb[0].mxu0 %v3111
        %v3560 = vpop.f32.mrb[0].mxu0
        %v3561 = vadd.f32 %v3400, %v3560
        %v3562 = vpop.f32.mrb[0].mxu0
        %v3563 = vpop.f32.mrb[0].mxu0
        %v3564 = vadd.f32 %v3403, %v3563
        %v3565 = vpop.f32.mrb[0].mxu0
        %3566 = vmatprep.mubr.bf16.mxu0 0
        %3567 = vmatmul.mubr.bf16.gmra.mrb[0].mxu0 %v3114
        %v3568 = vpop.f32.mrb[0].mxu0
        %v3569 = vadd.f32 %v3408, %v3568
        %v3570 = vpop.f32.mrb[0].mxu0
        %v3571 = vpop.f32.mrb[0].mxu0
        %v3572 = vadd.f32 %v3411, %v3571
        %v3573 = vpop.f32.mrb[0].mxu0
        %3574 = vmatprep.mubr.bf16.mxu0 0
        %3575 = vmatmul.mubr.bf16.gmra.mrb[0].mxu0 %v3117
        %v3576 = vpop.f32.mrb[0].mxu0
        %v3577 = vadd.f32 %v3416, %v3576
        %v3578 = vpop.f32.mrb[0].mxu0
        %v3579 = vpop.f32.mrb[0].mxu0
        %v3580 = vadd.f32 %v3419, %v3579
        %v3581 = vpop.f32.mrb[0].mxu0
        %3582 = vmatprep.mubr.bf16.mxu0 0
        %3583 = vmatmul.mubr.bf16.gmra.mrb[0].mxu0 %v3120
        %v3584 = vpop.f32.mrb[0].mxu0
        %v3585 = vadd.f32 %v3424, %v3584
        %v3586 = vpop.f32.mrb[0].mxu0
        %v3587 = vpop.f32.mrb[0].mxu0
        %v3588 = vadd.f32 %v3427, %v3587
        %v3589 = vpop.f32.mrb[0].mxu0
        %3590 = vmatprep.mubr.bf16.mxu0 0
        %3591 = vmatmul.mubr.bf16.gmra.mrb[0].mxu0 %v3123
        %v3592 = vpop.f32.mrb[0].mxu0
        %v3593 = vadd.f32 %v3432, %v3592
        %v3594 = vpop.f32.mrb[0].mxu0
        %v3595 = vpop.f32.mrb[0].mxu0
        %v3596 = vadd.f32 %v3435, %v3595
        %v3597 = vpop.f32.mrb[0].mxu0
        %3598 = vmatprep.mubr.bf16.mxu0 0
        %3599 = vmatmul.mubr.bf16.gmra.mrb[0].mxu0 %v3126
        %v3600 = vpop.f32.mrb[0].mxu0
        %v3601 = vadd.f32 %v3440, %v3600
        %v3602 = vpop.f32.mrb[0].mxu0
        %v3603 = vpop.f32.mrb[0].mxu0
        %v3604 = vadd.f32 %v3443, %v3603
        %v3605 = vpop.f32.mrb[0].mxu0
        %3606 = vmatprep.mubr.bf16.mxu0 0
        %3607 = vmatmul.mubr.bf16.gmra.mrb[0].mxu0 %v3129
        %v3608 = vpop.f32.mrb[0].mxu0
        %v3609 = vadd.f32 %v3448, %v3608
        %v3610 = vpop.f32.mrb[0].mxu0
        %v3611 = vpop.f32.mrb[0].mxu0
        %v3612 = vadd.f32 %v3451, %v3611
        %v3613 = vpop.f32.mrb[0].mxu0
        %3614 = vmatprep.mubr.bf16.mxu0 0
        %3615 = vmatmul.mubr.bf16.gmra.mrb[0].mxu0 %v3132
        %v3616 = vpop.f32.mrb[0].mxu0
        %v3617 = vadd.f32 %v3456, %v3616
        %v3618 = vpop.f32.mrb[0].mxu0
        %v3619 = vpop.f32.mrb[0].mxu0
        %v3620 = vadd.f32 %v3459, %v3619
        %v3621 = vpop.f32.mrb[0].mxu0
        %3622 = vmatprep.mubr.bf16.mxu0 0
        %3623 = vmatmul.mubr.bf16.gmra.mrb[0].mxu0 %v3135
        %v3624 = vpop.f32.mrb[0].mxu0
        %v3625 = vadd.f32 %v3464, %v3624
        %v3626 = vpop.f32.mrb[0].mxu0
        %v3627 = vpop.f32.mrb[0].mxu0
        %v3628 = vadd.f32 %v3467, %v3627
        %v3629 = vpop.f32.mrb[0].mxu0
        %3630 = vmatprep.mubr.bf16.mxu0 0
        %3631 = vmatmul.mubr.bf16.gmra.mrb[0].mxu0 %v3138
        %v3632 = vpop.f32.mrb[0].mxu0
        %v3633 = vadd.f32 %v3472, %v3632
        %v3634 = vpop.f32.mrb[0].mxu0
        %v3635 = vpop.f32.mrb[0].mxu0
        %v3636 = vadd.f32 %v3475, %v3635
        %v3637 = vpop.f32.mrb[0].mxu0
        %3638 = vmatprep.mubr.bf16.mxu0 0
        %3639 = vmatmul.mubr.bf16.gmra.mrb[0].mxu0 %v3141
        %v3640 = vpop.f32.mrb[0].mxu0
        %v3641 = vadd.f32 %v3480, %v3640
        %v3642 = vpop.f32.mrb[0].mxu0
        %v3643 = vpop.f32.mrb[0].mxu0
        %v3644 = vadd.f32 %v3483, %v3643
        %v3645 = vpop.f32.mrb[0].mxu0
        %3646 = vmatprep.mubr.bf16.mxu0 0
        %3647 = vmatmul.mubr.bf16.gmra.mrb[0].mxu0 %v3144
        %v3648 = vpop.f32.mrb[0].mxu0
        %v3649 = vadd.f32 %v3488, %v3648
        %v3650 = vpop.f32.mrb[0].mxu0
        %v3651 = vpop.f32.mrb[0].mxu0
        %v3652 = vadd.f32 %v3491, %v3651
        %v3653 = vpop.f32.mrb[0].mxu0
        %3654 = vmatprep.mubr.bf16.mxu0 0
        %3655 = vmatmul.mubr.bf16.gmra.mrb[0].mxu0 %v3147
        %v3656 = vpop.f32.mrb[0].mxu0
        %v3657 = vadd.f32 %v3496, %v3656
        %v3658 = vpop.f32.mrb[0].mxu0
        %v3659 = vpop.f32.mrb[0].mxu0
        %v3660 = vadd.f32 %v3499, %v3659
        %v3661 = vpop.f32.mrb[0].mxu0
        %3662 = vdwg.mxu0
        %v3711 = vunpack.c.l.b16 %v3052
        %v3712 = vunpack.c.l.b16 %v3053
        %v3713 = vunpack.c.l.b16 %v3054
        %v3714 = vunpack.c.l.b16 %v3055
        %v3715 = vunpack.c.l.b16 %v3056
        %v3716 = vunpack.c.l.b16 %v3057
        %v3717 = vunpack.c.l.b16 %v3058
        %v3718 = vunpack.c.l.b16 %v3059
        %v3719 = vunpack.c.l.b16 %v3060
        %v3720 = vunpack.c.l.b16 %v3061
        %v3721 = vunpack.c.l.b16 %v3062
        %v3722 = vunpack.c.l.b16 %v3063
        %v3723 = vunpack.c.l.b16 %v3064
        %v3724 = vunpack.c.l.b16 %v3065
        %v3725 = vunpack.c.l.b16 %v3066
        %v3726 = vunpack.c.l.b16 %v3067
        %v3727 = vunpack.c.l.b16 %v3068
        %v3728 = vunpack.c.l.b16 %v3069
        %v3729 = vunpack.c.l.b16 %v3070
        %v3730 = vunpack.c.l.b16 %v3071
        %v3731 = vunpack.c.l.b16 %v3072
        %v3732 = vunpack.c.l.b16 %v3073
        %v3733 = vunpack.c.l.b16 %v3074
        %v3734 = vunpack.c.l.b16 %v3075
        %v3735 = vunpack.c.l.b16 %v3076
        %v3736 = vunpack.c.l.b16 %v3077
        %v3737 = vunpack.c.l.b16 %v3078
        %v3738 = vunpack.c.l.b16 %v3079
        %v3739 = vunpack.c.l.b16 %v3080
        %v3740 = vunpack.c.l.b16 %v3081
        %v3741 = vunpack.c.l.b16 %v3082
        %v3742 = vunpack.c.l.b16 %v3083
        %v3743 = vunpack.c.l.b16 %v3084
        %v3744 = vunpack.c.l.b16 %v3085
        %v3745 = vunpack.c.l.b16 %v3086
        %v3746 = vunpack.c.l.b16 %v3087
        %v3747 = vunpack.c.l.b16 %v3088
        %v3748 = vunpack.c.l.b16 %v3089
        %v3749 = vunpack.c.l.b16 %v3090
        %v3750 = vunpack.c.l.b16 %v3091
        %v3751 = vunpack.c.l.b16 %v3092
        %v3752 = vunpack.c.l.b16 %v3093
        %v3753 = vunpack.c.l.b16 %v3094
        %v3754 = vunpack.c.l.b16 %v3095
        %v3755 = vunpack.c.l.b16 %v3096
        %v3756 = vunpack.c.l.b16 %v3097
        %v3757 = vunpack.c.l.b16 %v3098
        %v3758 = vunpack.c.l.b16 %v3099
        %v3759 = vpack.c.b16 %v3712, %v3711
        %v3760 = vpack.c.b16 %v3714, %v3713
        %v3761 = vpack.c.b16 %v3716, %v3715
        %v3762 = vpack.c.b16 %v3718, %v3717
        %v3763 = vpack.c.b16 %v3720, %v3719
        %v3764 = vpack.c.b16 %v3722, %v3721
        %v3765 = vpack.c.b16 %v3724, %v3723
        %v3766 = vpack.c.b16 %v3726, %v3725
        %v3767 = vpack.c.b16 %v3728, %v3727
        %v3768 = vpack.c.b16 %v3730, %v3729
        %v3769 = vpack.c.b16 %v3732, %v3731
        %v3770 = vpack.c.b16 %v3734, %v3733
        %v3771 = vpack.c.b16 %v3736, %v3735
        %v3772 = vpack.c.b16 %v3738, %v3737
        %v3773 = vpack.c.b16 %v3740, %v3739
        %v3774 = vpack.c.b16 %v3742, %v3741
        %v3775 = vpack.c.b16 %v3744, %v3743
        %v3776 = vpack.c.b16 %v3746, %v3745
        %v3777 = vpack.c.b16 %v3748, %v3747
        %v3778 = vpack.c.b16 %v3750, %v3749
        %v3779 = vpack.c.b16 %v3752, %v3751
        %v3780 = vpack.c.b16 %v3754, %v3753
        %v3781 = vpack.c.b16 %v3756, %v3755
        %v3782 = vpack.c.b16 %v3758, %v3757
        %3807 = vmatprep.subr.bf16.mxu0 0
        %3808 = vmatpush1.bf16.msra.mxu0 %v3759
        %3809 = vmatprep.subr.bf16.mxu0 0
        %3810 = vmatpush1.bf16.msra.mxu0 %v3760
        %3811 = vmatprep.subr.bf16.mxu0 0
        %3812 = vmatpush1.bf16.msra.mxu0 %v3761
        %3813 = vmatprep.subr.bf16.mxu0 0
        %3814 = vmatpush1.bf16.msra.mxu0 %v3762
        %3815 = vmatprep.subr.bf16.mxu0 0
        %3816 = vmatpush1.bf16.msra.mxu0 %v3763
        %3817 = vmatprep.subr.bf16.mxu0 0
        %3818 = vmatpush1.bf16.msra.mxu0 %v3764
        %3819 = vmatprep.subr.bf16.mxu0 0
        %3820 = vmatpush1.bf16.msra.mxu0 %v3765
        %3821 = vmatprep.subr.bf16.mxu0 0
        %3822 = vmatpush1.bf16.msra.mxu0 %v3766
        %3823 = vmatprep.subr.bf16.mxu0 0
        %3824 = vmatpush1.bf16.msra.mxu0 %v3767
        %3825 = vmatprep.subr.bf16.mxu0 0
        %3826 = vmatpush1.bf16.msra.mxu0 %v3768
        %3827 = vmatprep.subr.bf16.mxu0 0
        %3828 = vmatpush1.bf16.msra.mxu0 %v3769
        %3829 = vmatprep.subr.bf16.mxu0 0
        %3830 = vmatpush1.bf16.msra.mxu0 %v3770
        %3831 = vmatprep.subr.bf16.mxu0 0
        %3832 = vmatpush1.bf16.msra.mxu0 %v3771
        %3833 = vmatprep.subr.bf16.mxu0 0
        %3834 = vmatpush1.bf16.msra.mxu0 %v3772
        %3835 = vmatprep.subr.bf16.mxu0 0
        %3836 = vmatpush1.bf16.msra.mxu0 %v3773
        %3837 = vmatprep.subr.bf16.mxu0 0
        %3838 = vmatpush1.bf16.msra.mxu0 %v3774
        %3839 = vmatprep.mubr.bf16.mxu0 %v3005
        %3840 = vmatmul.mubr.bf16.gmra.mrb[0].mxu0 %v3004
        %v3841 = vpop.f32.mrb[0].mxu0
        %v3842 = vadd.f32 %v3537, %v3841
        %v3843 = vpop.f32.mrb[0].mxu0
        %v3844 = vpop.f32.mrb[0].mxu0
        %v3845 = vadd.f32 %v3540, %v3844
        %v3846 = vpop.f32.mrb[0].mxu0
        %3847 = vmatprep.mubr.bf16.mxu0 %v3008
        %3848 = vmatmul.mubr.bf16.gmra.mrb[0].mxu0 %v3007
        %v3849 = vpop.f32.mrb[0].mxu0
        %v3850 = vadd.f32 %v3545, %v3849
        %v3851 = vpop.f32.mrb[0].mxu0
        %v3852 = vpop.f32.mrb[0].mxu0
        %v3853 = vadd.f32 %v3548, %v3852
        %v3854 = vpop.f32.mrb[0].mxu0
        %3855 = vmatprep.mubr.bf16.mxu0 %v3011
        %3856 = vmatmul.mubr.bf16.gmra.mrb[0].mxu0 %v3010
        %v3857 = vpop.f32.mrb[0].mxu0
        %v3858 = vadd.f32 %v3553, %v3857
        %v3859 = vpop.f32.mrb[0].mxu0
        %v3860 = vpop.f32.mrb[0].mxu0
        %v3861 = vadd.f32 %v3556, %v3860
        %v3862 = vpop.f32.mrb[0].mxu0
        %3863 = vmatprep.mubr.bf16.mxu0 %v3014
        %3864 = vmatmul.mubr.bf16.gmra.mrb[0].mxu0 %v3013
        %v3865 = vpop.f32.mrb[0].mxu0
        %v3866 = vadd.f32 %v3561, %v3865
        %v3867 = vpop.f32.mrb[0].mxu0
        %v3868 = vpop.f32.mrb[0].mxu0
        %v3869 = vadd.f32 %v3564, %v3868
        %v3870 = vpop.f32.mrb[0].mxu0
        %3871 = vmatprep.mubr.bf16.mxu0 %v3017
        %3872 = vmatmul.mubr.bf16.gmra.mrb[0].mxu0 %v3016
        %v3873 = vpop.f32.mrb[0].mxu0
        %v3874 = vadd.f32 %v3569, %v3873
        %v3875 = vpop.f32.mrb[0].mxu0
        %v3876 = vpop.f32.mrb[0].mxu0
        %v3877 = vadd.f32 %v3572, %v3876
        %v3878 = vpop.f32.mrb[0].mxu0
        %3879 = vmatprep.mubr.bf16.mxu0 %v3020
        %3880 = vmatmul.mubr.bf16.gmra.mrb[0].mxu0 %v3019
        %v3881 = vpop.f32.mrb[0].mxu0
        %v3882 = vadd.f32 %v3577, %v3881
        %v3883 = vpop.f32.mrb[0].mxu0
        %v3884 = vpop.f32.mrb[0].mxu0
        %v3885 = vadd.f32 %v3580, %v3884
        %v3886 = vpop.f32.mrb[0].mxu0
        %3887 = vmatprep.mubr.bf16.mxu0 %v3023
        %3888 = vmatmul.mubr.bf16.gmra.mrb[0].mxu0 %v3022
        %v3889 = vpop.f32.mrb[0].mxu0
        %v3890 = vadd.f32 %v3585, %v3889
        %v3891 = vpop.f32.mrb[0].mxu0
        %v3892 = vpop.f32.mrb[0].mxu0
        %v3893 = vadd.f32 %v3588, %v3892
        %v3894 = vpop.f32.mrb[0].mxu0
        %3895 = vmatprep.mubr.bf16.mxu0 %v3026
        %3896 = vmatmul.mubr.bf16.gmra.mrb[0].mxu0 %v3025
        %v3897 = vpop.f32.mrb[0].mxu0
        %v3898 = vadd.f32 %v3593, %v3897
        %v3899 = vpop.f32.mrb[0].mxu0
        %v3900 = vpop.f32.mrb[0].mxu0
        %v3901 = vadd.f32 %v3596, %v3900
        %v3902 = vpop.f32.mrb[0].mxu0
        %3903 = vmatprep.mubr.bf16.mxu0 %v3029
        %3904 = vmatmul.mubr.bf16.gmra.mrb[0].mxu0 %v3028
        %v3905 = vpop.f32.mrb[0].mxu0
        %v3906 = vadd.f32 %v3601, %v3905
        %v3907 = vpop.f32.mrb[0].mxu0
        %v3908 = vpop.f32.mrb[0].mxu0
        %v3909 = vadd.f32 %v3604, %v3908
        %v3910 = vpop.f32.mrb[0].mxu0
        %3911 = vmatprep.mubr.bf16.mxu0 %v3032
        %3912 = vmatmul.mubr.bf16.gmra.mrb[0].mxu0 %v3031
        %v3913 = vpop.f32.mrb[0].mxu0
        %v3914 = vadd.f32 %v3609, %v3913
        %v3915 = vpop.f32.mrb[0].mxu0
        %v3916 = vpop.f32.mrb[0].mxu0
        %v3917 = vadd.f32 %v3612, %v3916
        %v3918 = vpop.f32.mrb[0].mxu0
        %3919 = vmatprep.mubr.bf16.mxu0 %v3035
        %3920 = vmatmul.mubr.bf16.gmra.mrb[0].mxu0 %v3034
        %v3921 = vpop.f32.mrb[0].mxu0
        %v3922 = vadd.f32 %v3617, %v3921
        %v3923 = vpop.f32.mrb[0].mxu0
        %v3924 = vpop.f32.mrb[0].mxu0
        %v3925 = vadd.f32 %v3620, %v3924
        %v3926 = vpop.f32.mrb[0].mxu0
        %3927 = vmatprep.mubr.bf16.mxu0 %v3038
        %3928 = vmatmul.mubr.bf16.gmra.mrb[0].mxu0 %v3037
        %v3929 = vpop.f32.mrb[0].mxu0
        %v3930 = vadd.f32 %v3625, %v3929
        %v3931 = vpop.f32.mrb[0].mxu0
        %v3932 = vpop.f32.mrb[0].mxu0
        %v3933 = vadd.f32 %v3628, %v3932
        %v3934 = vpop.f32.mrb[0].mxu0
        %3935 = vmatprep.mubr.bf16.mxu0 %v3041
        %3936 = vmatmul.mubr.bf16.gmra.mrb[0].mxu0 %v3040
        %v3937 = vpop.f32.mrb[0].mxu0
        %v3938 = vadd.f32 %v3633, %v3937
        %v3939 = vpop.f32.mrb[0].mxu0
        %v3940 = vpop.f32.mrb[0].mxu0
        %v3941 = vadd.f32 %v3636, %v3940
        %v3942 = vpop.f32.mrb[0].mxu0
        %3943 = vmatprep.mubr.bf16.mxu0 %v3044
        %3944 = vmatmul.mubr.bf16.gmra.mrb[0].mxu0 %v3043
        %v3945 = vpop.f32.mrb[0].mxu0
        %v3946 = vadd.f32 %v3641, %v3945
        %v3947 = vpop.f32.mrb[0].mxu0
        %v3948 = vpop.f32.mrb[0].mxu0
        %v3949 = vadd.f32 %v3644, %v3948
        %v3950 = vpop.f32.mrb[0].mxu0
        %3951 = vmatprep.mubr.bf16.mxu0 %v3047
        %3952 = vmatmul.mubr.bf16.gmra.mrb[0].mxu0 %v3046
        %v3953 = vpop.f32.mrb[0].mxu0
        %v3954 = vadd.f32 %v3649, %v3953
        %v3955 = vpop.f32.mrb[0].mxu0
        %v3956 = vpop.f32.mrb[0].mxu0
        %v3957 = vadd.f32 %v3652, %v3956
        %v3958 = vpop.f32.mrb[0].mxu0
        %3959 = vmatprep.mubr.bf16.mxu0 %v3050
        %3960 = vmatmul.mubr.bf16.gmra.mrb[0].mxu0 %v3049
        %v3961 = vpop.f32.mrb[0].mxu0
        %v3962 = vadd.f32 %v3657, %v3961
        %v3963 = vpop.f32.mrb[0].mxu0
        %v3964 = vpop.f32.mrb[0].mxu0
        %v3965 = vadd.f32 %v3660, %v3964
        %v3966 = vpop.f32.mrb[0].mxu0
        %3967 = vdwg.mxu0
        %3968 = vmatprep.subr.bf16.mxu0 0
        %3969 = vmatpush1.bf16.msra.mxu0 %v3775
        %3970 = vmatprep.subr.bf16.mxu0 0
        %3971 = vmatpush1.bf16.msra.mxu0 %v3776
        %3972 = vmatprep.subr.bf16.mxu0 0
        %3973 = vmatpush1.bf16.msra.mxu0 %v3777
        %3974 = vmatprep.subr.bf16.mxu0 0
        %3975 = vmatpush1.bf16.msra.mxu0 %v3778
        %3976 = vmatprep.subr.bf16.mxu0 0
        %3977 = vmatpush1.bf16.msra.mxu0 %v3779
        %3978 = vmatprep.subr.bf16.mxu0 0
        %3979 = vmatpush1.bf16.msra.mxu0 %v3780
        %3980 = vmatprep.subr.bf16.mxu0 0
        %3981 = vmatpush1.bf16.msra.mxu0 %v3781
        %3982 = vmatprep.subr.bf16.mxu0 0
        %3983 = vmatpush1.bf16.msra.mxu0 %v3782
        %3984 = vmatprep.subr.bf16.mxu0 0
        %3985 = vmatpush1.bf16.msra.mxu0 0
        %3986 = vmatprep.subr.bf16.mxu0 0
        %3987 = vmatpush1.bf16.msra.mxu0 0
        %3988 = vmatprep.subr.bf16.mxu0 0
        %3989 = vmatpush1.bf16.msra.mxu0 0
        %3990 = vmatprep.subr.bf16.mxu0 0
        %3991 = vmatpush1.bf16.msra.mxu0 0
        %3992 = vmatprep.subr.bf16.mxu0 0
        %3993 = vmatpush1.bf16.msra.mxu0 0
        %3994 = vmatprep.subr.bf16.mxu0 0
        %3995 = vmatpush1.bf16.msra.mxu0 0
        %3996 = vmatprep.subr.bf16.mxu0 0
        %3997 = vmatpush1.bf16.msra.mxu0 0
        %3998 = vmatprep.subr.bf16.mxu0 0
        %3999 = vmatpush1.bf16.msra.mxu0 0
        %4000 = vmatprep.mubr.bf16.mxu0 0
        %4001 = vmatmul.mubr.bf16.gmra.mrb[0].mxu0 %v3006
        %v4002 = vpop.f32.mrb[0].mxu0
        %v4003 = vadd.f32 %v3842, %v4002
        %v4004 = vpop.f32.mrb[0].mxu0
        %v4005 = vpop.f32.mrb[0].mxu0
        %v4006 = vadd.f32 %v3845, %v4005
        %v4007 = vpop.f32.mrb[0].mxu0
        %4008 = vmatprep.mubr.bf16.mxu0 0
        %4009 = vmatmul.mubr.bf16.gmra.mrb[0].mxu0 %v3009
        %v4010 = vpop.f32.mrb[0].mxu0
        %v4011 = vadd.f32 %v3850, %v4010
        %v4012 = vpop.f32.mrb[0].mxu0
        %v4013 = vpop.f32.mrb[0].mxu0
        %v4014 = vadd.f32 %v3853, %v4013
        %v4015 = vpop.f32.mrb[0].mxu0
        %4016 = vmatprep.mubr.bf16.mxu0 0
        %4017 = vmatmul.mubr.bf16.gmra.mrb[0].mxu0 %v3012
        %v4018 = vpop.f32.mrb[0].mxu0
        %v4019 = vadd.f32 %v3858, %v4018
        %v4020 = vpop.f32.mrb[0].mxu0
        %v4021 = vpop.f32.mrb[0].mxu0
        %v4022 = vadd.f32 %v3861, %v4021
        %v4023 = vpop.f32.mrb[0].mxu0
        %4024 = vmatprep.mubr.bf16.mxu0 0
        %4025 = vmatmul.mubr.bf16.gmra.mrb[0].mxu0 %v3015
        %v4026 = vpop.f32.mrb[0].mxu0
        %v4027 = vadd.f32 %v3866, %v4026
        %v4028 = vpop.f32.mrb[0].mxu0
        %v4029 = vpop.f32.mrb[0].mxu0
        %v4030 = vadd.f32 %v3869, %v4029
        %v4031 = vpop.f32.mrb[0].mxu0
        %4032 = vmatprep.mubr.bf16.mxu0 0
        %4033 = vmatmul.mubr.bf16.gmra.mrb[0].mxu0 %v3018
        %v4034 = vpop.f32.mrb[0].mxu0
        %v4035 = vadd.f32 %v3874, %v4034
        %v4036 = vpop.f32.mrb[0].mxu0
        %v4037 = vpop.f32.mrb[0].mxu0
        %v4038 = vadd.f32 %v3877, %v4037
        %v4039 = vpop.f32.mrb[0].mxu0
        %4040 = vmatprep.mubr.bf16.mxu0 0
        %4041 = vmatmul.mubr.bf16.gmra.mrb[0].mxu0 %v3021
        %v4042 = vpop.f32.mrb[0].mxu0
        %v4043 = vadd.f32 %v3882, %v4042
        %v4044 = vpop.f32.mrb[0].mxu0
        %v4045 = vpop.f32.mrb[0].mxu0
        %v4046 = vadd.f32 %v3885, %v4045
        %v4047 = vpop.f32.mrb[0].mxu0
        %4048 = vmatprep.mubr.bf16.mxu0 0
        %4049 = vmatmul.mubr.bf16.gmra.mrb[0].mxu0 %v3024
        %v4050 = vpop.f32.mrb[0].mxu0
        %v4051 = vadd.f32 %v3890, %v4050
        %v4052 = vpop.f32.mrb[0].mxu0
        %v4053 = vpop.f32.mrb[0].mxu0
        %v4054 = vadd.f32 %v3893, %v4053
        %v4055 = vpop.f32.mrb[0].mxu0
        %4056 = vmatprep.mubr.bf16.mxu0 0
        %4057 = vmatmul.mubr.bf16.gmra.mrb[0].mxu0 %v3027
        %v4058 = vpop.f32.mrb[0].mxu0
        %v4059 = vadd.f32 %v3898, %v4058
        %v4060 = vpop.f32.mrb[0].mxu0
        %v4061 = vpop.f32.mrb[0].mxu0
        %v4062 = vadd.f32 %v3901, %v4061
        %v4063 = vpop.f32.mrb[0].mxu0
        %4064 = vmatprep.mubr.bf16.mxu0 0
        %4065 = vmatmul.mubr.bf16.gmra.mrb[0].mxu0 %v3030
        %v4066 = vpop.f32.mrb[0].mxu0
        %v4067 = vadd.f32 %v3906, %v4066
        %v4068 = vpop.f32.mrb[0].mxu0
        %v4069 = vpop.f32.mrb[0].mxu0
        %v4070 = vadd.f32 %v3909, %v4069
        %v4071 = vpop.f32.mrb[0].mxu0
        %4072 = vmatprep.mubr.bf16.mxu0 0
        %4073 = vmatmul.mubr.bf16.gmra.mrb[0].mxu0 %v3033
        %v4074 = vpop.f32.mrb[0].mxu0
        %v4075 = vadd.f32 %v3914, %v4074
        %v4076 = vpop.f32.mrb[0].mxu0
        %v4077 = vpop.f32.mrb[0].mxu0
        %v4078 = vadd.f32 %v3917, %v4077
        %v4079 = vpop.f32.mrb[0].mxu0
        %4080 = vmatprep.mubr.bf16.mxu0 0
        %4081 = vmatmul.mubr.bf16.gmra.mrb[0].mxu0 %v3036
        %v4082 = vpop.f32.mrb[0].mxu0
        %v4083 = vadd.f32 %v3922, %v4082
        %v4084 = vpop.f32.mrb[0].mxu0
        %v4085 = vpop.f32.mrb[0].mxu0
        %v4086 = vadd.f32 %v3925, %v4085
        %v4087 = vpop.f32.mrb[0].mxu0
        %4088 = vmatprep.mubr.bf16.mxu0 0
        %4089 = vmatmul.mubr.bf16.gmra.mrb[0].mxu0 %v3039
        %v4090 = vpop.f32.mrb[0].mxu0
        %v4091 = vadd.f32 %v3930, %v4090
        %v4092 = vpop.f32.mrb[0].mxu0
        %v4093 = vpop.f32.mrb[0].mxu0
        %v4094 = vadd.f32 %v3933, %v4093
        %v4095 = vpop.f32.mrb[0].mxu0
        %4096 = vmatprep.mubr.bf16.mxu0 0
        %4097 = vmatmul.mubr.bf16.gmra.mrb[0].mxu0 %v3042
        %v4098 = vpop.f32.mrb[0].mxu0
        %v4099 = vadd.f32 %v3938, %v4098
        %v4100 = vpop.f32.mrb[0].mxu0
        %v4101 = vpop.f32.mrb[0].mxu0
        %v4102 = vadd.f32 %v3941, %v4101
        %v4103 = vpop.f32.mrb[0].mxu0
        %4104 = vmatprep.mubr.bf16.mxu0 0
        %4105 = vmatmul.mubr.bf16.gmra.mrb[0].mxu0 %v3045
        %v4106 = vpop.f32.mrb[0].mxu0
        %v4107 = vadd.f32 %v3946, %v4106
        %v4108 = vpop.f32.mrb[0].mxu0
        %v4109 = vpop.f32.mrb[0].mxu0
        %v4110 = vadd.f32 %v3949, %v4109
        %v4111 = vpop.f32.mrb[0].mxu0
        %4112 = vmatprep.mubr.bf16.mxu0 0
        %4113 = vmatmul.mubr.bf16.gmra.mrb[0].mxu0 %v3048
        %v4114 = vpop.f32.mrb[0].mxu0
        %v4115 = vadd.f32 %v3954, %v4114
        %v4116 = vpop.f32.mrb[0].mxu0
        %v4117 = vpop.f32.mrb[0].mxu0
        %v4118 = vadd.f32 %v3957, %v4117
        %v4119 = vpop.f32.mrb[0].mxu0
        %4120 = vmatprep.mubr.bf16.mxu0 0
        %4121 = vmatmul.mubr.bf16.gmra.mrb[0].mxu0 %v3051
        %v4122 = vpop.f32.mrb[0].mxu0
        %v4123 = vadd.f32 %v3962, %v4122
        %v4124 = vpop.f32.mrb[0].mxu0
        %v4125 = vpop.f32.mrb[0].mxu0
        %v4126 = vadd.f32 %v3965, %v4125
        %v4127 = vpop.f32.mrb[0].mxu0
        %4128 = vdwg.mxu0
        %v4129 = vld [vmem:[%s1902] sm:$0xff]
        %v4130 = vld [vmem:[%s1902 + $0x8] sm:$0xff]
        %v4131 = vld [vmem:[%s1902 + $0x10] sm:$0xff]
        %v4132 = vld [vmem:[%s1902 + $0x18] sm:$0xff]
        %v4133 = vld [vmem:[%s1902 + $0x20] sm:$0xff]
        %v4134 = vld [vmem:[%s1902 + $0x28] sm:$0xff]
        %v4135 = vld [vmem:[%s1902 + $0x30] sm:$0xff]
        %v4136 = vld [vmem:[%s1902 + $0x38] sm:$0xff]
        %v4137 = vld [vmem:[%s1902 + $0x40] sm:$0xff]
        %v4138 = vld [vmem:[%s1902 + $0x48] sm:$0xff]
        %v4139 = vld [vmem:[%s1902 + $0x50] sm:$0xff]
        %v4140 = vld [vmem:[%s1902 + $0x58] sm:$0xff]
        %v4141 = vld [vmem:[%s1902 + $0x60] sm:$0xff]
        %v4142 = vld [vmem:[%s1902 + $0x68] sm:$0xff]
        %v4143 = vld [vmem:[%s1902 + $0x70] sm:$0xff]
        %v4144 = vld [vmem:[%s1902 + $0x78] sm:$0xff]
        %v4145 = vld [vmem:[%s1902 + $0x80] sm:$0xff]
        %v4146 = vld [vmem:[%s1902 + $0x88] sm:$0xff]
        %v4147 = vld [vmem:[%s1902 + $0x90] sm:$0xff]
        %v4148 = vld [vmem:[%s1902 + $0x98] sm:$0xff]
        %v4149 = vld [vmem:[%s1902 + $0xa0] sm:$0xff]
        %v4150 = vld [vmem:[%s1902 + $0xa8] sm:$0xff]
        %v4151 = vld [vmem:[%s1902 + $0xb0] sm:$0xff]
        %v4152 = vld [vmem:[%s1902 + $0xb8] sm:$0xff]
        %v4153 = vld [vmem:[%s1902 + $0xc0] sm:$0xff]
        %v4154 = vld [vmem:[%s1902 + $0xc8] sm:$0xff]
        %v4155 = vld [vmem:[%s1902 + $0xd0] sm:$0xff]
        %v4156 = vld [vmem:[%s1902 + $0xd8] sm:$0xff]
        %v4157 = vld [vmem:[%s1902 + $0xe0] sm:$0xff]
        %v4158 = vld [vmem:[%s1902 + $0xe8] sm:$0xff]
        %v4159 = vld [vmem:[%s1902 + $0xf0] sm:$0xff]
        %v4160 = vld [vmem:[%s1902 + $0xf8] sm:$0xff]
        %v4161 = vld [vmem:[%s1902 + $0x100] sm:$0xff]
        %v4162 = vld [vmem:[%s1902 + $0x108] sm:$0xff]
        %v4163 = vld [vmem:[%s1902 + $0x110] sm:$0xff]
        %v4164 = vld [vmem:[%s1902 + $0x118] sm:$0xff]
        %v4165 = vld [vmem:[%s1902 + $0x120] sm:$0xff]
        %v4166 = vld [vmem:[%s1902 + $0x128] sm:$0xff]
        %v4167 = vld [vmem:[%s1902 + $0x130] sm:$0xff]
        %v4168 = vld [vmem:[%s1902 + $0x138] sm:$0xff]
        %v4169 = vld [vmem:[%s1902 + $0x140] sm:$0xff]
        %v4170 = vld [vmem:[%s1902 + $0x148] sm:$0xff]
        %v4171 = vld [vmem:[%s1902 + $0x150] sm:$0xff]
        %v4172 = vld [vmem:[%s1902 + $0x158] sm:$0xff]
        %v4173 = vld [vmem:[%s1902 + $0x160] sm:$0xff]
        %v4174 = vld [vmem:[%s1902 + $0x168] sm:$0xff]
        %v4175 = vld [vmem:[%s1902 + $0x170] sm:$0xff]
        %v4176 = vld [vmem:[%s1902 + $0x178] sm:$0xff]
        %s4177 = scalar_lea.vmem [#allocation8], 384
        %v4178 = vld [vmem:[%s4177] sm:$0xf]
        %v4179 = vld [vmem:[%s4177 + $0x4] sm:$0xf]
        %v4180 = vld [vmem:[%s4177 + $0x8] sm:$0xf]
        %v4181 = vld [vmem:[%s4177 + $0xc] sm:$0xf]
        %v4182 = vld [vmem:[%s4177 + $0x10] sm:$0xf]
        %v4183 = vld [vmem:[%s4177 + $0x14] sm:$0xf]
        %v4184 = vld [vmem:[%s4177 + $0x18] sm:$0xf]
        %v4185 = vld [vmem:[%s4177 + $0x1c] sm:$0xf]
        %v4186 = vld [vmem:[%s4177 + $0x20] sm:$0xf]
        %v4187 = vld [vmem:[%s4177 + $0x24] sm:$0xf]
        %v4188 = vld [vmem:[%s4177 + $0x28] sm:$0xf]
        %v4189 = vld [vmem:[%s4177 + $0x2c] sm:$0xf]
        %v4190 = vld [vmem:[%s4177 + $0x30] sm:$0xf]
        %v4191 = vld [vmem:[%s4177 + $0x34] sm:$0xf]
        %v4192 = vld [vmem:[%s4177 + $0x38] sm:$0xf]
        %v4193 = vld [vmem:[%s4177 + $0x3c] sm:$0xf]
        %v4194 = vld [vmem:[%s4177 + $0x40] sm:$0xf]
        %v4195 = vld [vmem:[%s4177 + $0x44] sm:$0xf]
        %v4196 = vld [vmem:[%s4177 + $0x48] sm:$0xf]
        %v4197 = vld [vmem:[%s4177 + $0x4c] sm:$0xf]
        %v4198 = vld [vmem:[%s4177 + $0x50] sm:$0xf]
        %v4199 = vld [vmem:[%s4177 + $0x54] sm:$0xf]
        %v4200 = vld [vmem:[%s4177 + $0x58] sm:$0xf]
        %v4201 = vld [vmem:[%s4177 + $0x5c] sm:$0xf]
        %v4202 = vld [vmem:[%s4177 + $0x60] sm:$0xf]
        %v4203 = vld [vmem:[%s4177 + $0x64] sm:$0xf]
        %v4204 = vld [vmem:[%s4177 + $0x68] sm:$0xf]
        %v4205 = vld [vmem:[%s4177 + $0x6c] sm:$0xf]
        %v4206 = vld [vmem:[%s4177 + $0x70] sm:$0xf]
        %v4207 = vld [vmem:[%s4177 + $0x74] sm:$0xf]
        %v4208 = vld [vmem:[%s4177 + $0x78] sm:$0xf]
        %v4209 = vld [vmem:[%s4177 + $0x7c] sm:$0xf]
        %v4210 = vld [vmem:[%s4177 + $0x80] sm:$0xf]
        %v4211 = vld [vmem:[%s4177 + $0x84] sm:$0xf]
        %v4212 = vld [vmem:[%s4177 + $0x88] sm:$0xf]
        %v4213 = vld [vmem:[%s4177 + $0x8c] sm:$0xf]
        %v4214 = vld [vmem:[%s4177 + $0x90] sm:$0xf]
        %v4215 = vld [vmem:[%s4177 + $0x94] sm:$0xf]
        %v4216 = vld [vmem:[%s4177 + $0x98] sm:$0xf]
        %v4217 = vld [vmem:[%s4177 + $0x9c] sm:$0xf]
        %v4218 = vld [vmem:[%s4177 + $0xa0] sm:$0xf]
        %v4219 = vld [vmem:[%s4177 + $0xa4] sm:$0xf]
        %v4220 = vld [vmem:[%s4177 + $0xa8] sm:$0xf]
        %v4221 = vld [vmem:[%s4177 + $0xac] sm:$0xf]
        %v4222 = vld [vmem:[%s4177 + $0xb0] sm:$0xf]
        %v4223 = vld [vmem:[%s4177 + $0xb4] sm:$0xf]
        %v4224 = vld [vmem:[%s4177 + $0xb8] sm:$0xf]
        %v4225 = vld [vmem:[%s4177 + $0xbc] sm:$0xf]
        %v4274 = vunpack.c.l.b16 %v4178
        %v4275 = vunpack.c.l.b16 %v4179
        %v4276 = vunpack.c.l.b16 %v4180
        %v4277 = vunpack.c.l.b16 %v4181
        %v4278 = vunpack.c.l.b16 %v4182
        %v4279 = vunpack.c.l.b16 %v4183
        %v4280 = vunpack.c.l.b16 %v4184
        %v4281 = vunpack.c.l.b16 %v4185
        %v4282 = vunpack.c.l.b16 %v4186
        %v4283 = vunpack.c.l.b16 %v4187
        %v4284 = vunpack.c.l.b16 %v4188
        %v4285 = vunpack.c.l.b16 %v4189
        %v4286 = vunpack.c.l.b16 %v4190
        %v4287 = vunpack.c.l.b16 %v4191
        %v4288 = vunpack.c.l.b16 %v4192
        %v4289 = vunpack.c.l.b16 %v4193
        %v4290 = vunpack.c.l.b16 %v4194
        %v4291 = vunpack.c.l.b16 %v4195
        %v4292 = vunpack.c.l.b16 %v4196
        %v4293 = vunpack.c.l.b16 %v4197
        %v4294 = vunpack.c.l.b16 %v4198
        %v4295 = vunpack.c.l.b16 %v4199
        %v4296 = vunpack.c.l.b16 %v4200
        %v4297 = vunpack.c.l.b16 %v4201
        %v4298 = vunpack.c.l.b16 %v4202
        %v4299 = vunpack.c.l.b16 %v4203
        %v4300 = vunpack.c.l.b16 %v4204
        %v4301 = vunpack.c.l.b16 %v4205
        %v4302 = vunpack.c.l.b16 %v4206
        %v4303 = vunpack.c.l.b16 %v4207
        %v4304 = vunpack.c.l.b16 %v4208
        %v4305 = vunpack.c.l.b16 %v4209
        %v4306 = vunpack.c.l.b16 %v4210
        %v4307 = vunpack.c.l.b16 %v4211
        %v4308 = vunpack.c.l.b16 %v4212
        %v4309 = vunpack.c.l.b16 %v4213
        %v4310 = vunpack.c.l.b16 %v4214
        %v4311 = vunpack.c.l.b16 %v4215
        %v4312 = vunpack.c.l.b16 %v4216
        %v4313 = vunpack.c.l.b16 %v4217
        %v4314 = vunpack.c.l.b16 %v4218
        %v4315 = vunpack.c.l.b16 %v4219
        %v4316 = vunpack.c.l.b16 %v4220
        %v4317 = vunpack.c.l.b16 %v4221
        %v4318 = vunpack.c.l.b16 %v4222
        %v4319 = vunpack.c.l.b16 %v4223
        %v4320 = vunpack.c.l.b16 %v4224
        %v4321 = vunpack.c.l.b16 %v4225
        %v4322 = vpack.c.b16 %v4275, %v4274
        %v4323 = vpack.c.b16 %v4277, %v4276
        %v4324 = vpack.c.b16 %v4279, %v4278
        %v4325 = vpack.c.b16 %v4281, %v4280
        %v4326 = vpack.c.b16 %v4283, %v4282
        %v4327 = vpack.c.b16 %v4285, %v4284
        %v4328 = vpack.c.b16 %v4287, %v4286
        %v4329 = vpack.c.b16 %v4289, %v4288
        %v4330 = vpack.c.b16 %v4291, %v4290
        %v4331 = vpack.c.b16 %v4293, %v4292
        %v4332 = vpack.c.b16 %v4295, %v4294
        %v4333 = vpack.c.b16 %v4297, %v4296
        %v4334 = vpack.c.b16 %v4299, %v4298
        %v4335 = vpack.c.b16 %v4301, %v4300
        %v4336 = vpack.c.b16 %v4303, %v4302
        %v4337 = vpack.c.b16 %v4305, %v4304
        %v4338 = vpack.c.b16 %v4307, %v4306
        %v4339 = vpack.c.b16 %v4309, %v4308
        %v4340 = vpack.c.b16 %v4311, %v4310
        %v4341 = vpack.c.b16 %v4313, %v4312
        %v4342 = vpack.c.b16 %v4315, %v4314
        %v4343 = vpack.c.b16 %v4317, %v4316
        %v4344 = vpack.c.b16 %v4319, %v4318
        %v4345 = vpack.c.b16 %v4321, %v4320
        %4370 = vmatprep.subr.bf16.mxu0 0
        %4371 = vmatpush1.bf16.msra.mxu0 %v4322
        %4372 = vmatprep.subr.bf16.mxu0 0
        %4373 = vmatpush1.bf16.msra.mxu0 %v4323
        %4374 = vmatprep.subr.bf16.mxu0 0
        %4375 = vmatpush1.bf16.msra.mxu0 %v4324
        %4376 = vmatprep.subr.bf16.mxu0 0
        %4377 = vmatpush1.bf16.msra.mxu0 %v4325
        %4378 = vmatprep.subr.bf16.mxu0 0
        %4379 = vmatpush1.bf16.msra.mxu0 %v4326
        %4380 = vmatprep.subr.bf16.mxu0 0
        %4381 = vmatpush1.bf16.msra.mxu0 %v4327
        %4382 = vmatprep.subr.bf16.mxu0 0
        %4383 = vmatpush1.bf16.msra.mxu0 %v4328
        %4384 = vmatprep.subr.bf16.mxu0 0
        %4385 = vmatpush1.bf16.msra.mxu0 %v4329
        %4386 = vmatprep.subr.bf16.mxu0 0
        %4387 = vmatpush1.bf16.msra.mxu0 %v4330
        %4388 = vmatprep.subr.bf16.mxu0 0
        %4389 = vmatpush1.bf16.msra.mxu0 %v4331
        %4390 = vmatprep.subr.bf16.mxu0 0
        %4391 = vmatpush1.bf16.msra.mxu0 %v4332
        %4392 = vmatprep.subr.bf16.mxu0 0
        %4393 = vmatpush1.bf16.msra.mxu0 %v4333
        %4394 = vmatprep.subr.bf16.mxu0 0
        %4395 = vmatpush1.bf16.msra.mxu0 %v4334
        %4396 = vmatprep.subr.bf16.mxu0 0
        %4397 = vmatpush1.bf16.msra.mxu0 %v4335
        %4398 = vmatprep.subr.bf16.mxu0 0
        %4399 = vmatpush1.bf16.msra.mxu0 %v4336
        %4400 = vmatprep.subr.bf16.mxu0 0
        %4401 = vmatpush1.bf16.msra.mxu0 %v4337
        %4402 = vmatprep.mubr.bf16.mxu0 %v4130
        %4403 = vmatmul.mubr.bf16.gmra.mrb[0].mxu0 %v4129
        %v4404 = vpop.f32.mrb[0].mxu0
        %v4405 = vadd.f32 0.0, %v4404
        %v4406 = vpop.f32.mrb[0].mxu0
        %v4407 = vpop.f32.mrb[0].mxu0
        %v4408 = vadd.f32 0.0, %v4407
        %v4409 = vpop.f32.mrb[0].mxu0
        %4410 = vmatprep.mubr.bf16.mxu0 %v4133
        %4411 = vmatmul.mubr.bf16.gmra.mrb[0].mxu0 %v4132
        %v4412 = vpop.f32.mrb[0].mxu0
        %v4413 = vadd.f32 0.0, %v4412
        %v4414 = vpop.f32.mrb[0].mxu0
        %v4415 = vpop.f32.mrb[0].mxu0
        %v4416 = vadd.f32 0.0, %v4415
        %v4417 = vpop.f32.mrb[0].mxu0
        %4418 = vmatprep.mubr.bf16.mxu0 %v4136
        %4419 = vmatmul.mubr.bf16.gmra.mrb[0].mxu0 %v4135
        %v4420 = vpop.f32.mrb[0].mxu0
        %v4421 = vadd.f32 0.0, %v4420
        %v4422 = vpop.f32.mrb[0].mxu0
        %v4423 = vpop.f32.mrb[0].mxu0
        %v4424 = vadd.f32 0.0, %v4423
        %v4425 = vpop.f32.mrb[0].mxu0
        %4426 = vmatprep.mubr.bf16.mxu0 %v4139
        %4427 = vmatmul.mubr.bf16.gmra.mrb[0].mxu0 %v4138
        %v4428 = vpop.f32.mrb[0].mxu0
        %v4429 = vadd.f32 0.0, %v4428
        %v4430 = vpop.f32.mrb[0].mxu0
        %v4431 = vpop.f32.mrb[0].mxu0
        %v4432 = vadd.f32 0.0, %v4431
        %v4433 = vpop.f32.mrb[0].mxu0
        %4434 = vmatprep.mubr.bf16.mxu0 %v4142
        %4435 = vmatmul.mubr.bf16.gmra.mrb[0].mxu0 %v4141
        %v4436 = vpop.f32.mrb[0].mxu0
        %v4437 = vadd.f32 0.0, %v4436
        %v4438 = vpop.f32.mrb[0].mxu0
        %v4439 = vpop.f32.mrb[0].mxu0
        %v4440 = vadd.f32 0.0, %v4439
        %v4441 = vpop.f32.mrb[0].mxu0
        %4442 = vmatprep.mubr.bf16.mxu0 %v4145
        %4443 = vmatmul.mubr.bf16.gmra.mrb[0].mxu0 %v4144
        %v4444 = vpop.f32.mrb[0].mxu0
        %v4445 = vadd.f32 0.0, %v4444
        %v4446 = vpop.f32.mrb[0].mxu0
        %v4447 = vpop.f32.mrb[0].mxu0
        %v4448 = vadd.f32 0.0, %v4447
        %v4449 = vpop.f32.mrb[0].mxu0
        %4450 = vmatprep.mubr.bf16.mxu0 %v4148
        %4451 = vmatmul.mubr.bf16.gmra.mrb[0].mxu0 %v4147
        %v4452 = vpop.f32.mrb[0].mxu0
        %v4453 = vadd.f32 0.0, %v4452
        %v4454 = vpop.f32.mrb[0].mxu0
        %v4455 = vpop.f32.mrb[0].mxu0
        %v4456 = vadd.f32 0.0, %v4455
        %v4457 = vpop.f32.mrb[0].mxu0
        %4458 = vmatprep.mubr.bf16.mxu0 %v4151
        %4459 = vmatmul.mubr.bf16.gmra.mrb[0].mxu0 %v4150
        %v4460 = vpop.f32.mrb[0].mxu0
        %v4461 = vadd.f32 0.0, %v4460
        %v4462 = vpop.f32.mrb[0].mxu0
        %v4463 = vpop.f32.mrb[0].mxu0
        %v4464 = vadd.f32 0.0, %v4463
        %v4465 = vpop.f32.mrb[0].mxu0
        %4466 = vmatprep.mubr.bf16.mxu0 %v4154
        %4467 = vmatmul.mubr.bf16.gmra.mrb[0].mxu0 %v4153
        %v4468 = vpop.f32.mrb[0].mxu0
        %v4469 = vadd.f32 0.0, %v4468
        %v4470 = vpop.f32.mrb[0].mxu0
        %v4471 = vpop.f32.mrb[0].mxu0
        %v4472 = vadd.f32 0.0, %v4471
        %v4473 = vpop.f32.mrb[0].mxu0
        %4474 = vmatprep.mubr.bf16.mxu0 %v4157
        %4475 = vmatmul.mubr.bf16.gmra.mrb[0].mxu0 %v4156
        %v4476 = vpop.f32.mrb[0].mxu0
        %v4477 = vadd.f32 0.0, %v4476
        %v4478 = vpop.f32.mrb[0].mxu0
        %v4479 = vpop.f32.mrb[0].mxu0
        %v4480 = vadd.f32 0.0, %v4479
        %v4481 = vpop.f32.mrb[0].mxu0
        %4482 = vmatprep.mubr.bf16.mxu0 %v4160
        %4483 = vmatmul.mubr.bf16.gmra.mrb[0].mxu0 %v4159
        %v4484 = vpop.f32.mrb[0].mxu0
        %v4485 = vadd.f32 0.0, %v4484
        %v4486 = vpop.f32.mrb[0].mxu0
        %v4487 = vpop.f32.mrb[0].mxu0
        %v4488 = vadd.f32 0.0, %v4487
        %v4489 = vpop.f32.mrb[0].mxu0
        %4490 = vmatprep.mubr.bf16.mxu0 %v4163
        %4491 = vmatmul.mubr.bf16.gmra.mrb[0].mxu0 %v4162
        %v4492 = vpop.f32.mrb[0].mxu0
        %v4493 = vadd.f32 0.0, %v4492
        %v4494 = vpop.f32.mrb[0].mxu0
        %v4495 = vpop.f32.mrb[0].mxu0
        %v4496 = vadd.f32 0.0, %v4495
        %v4497 = vpop.f32.mrb[0].mxu0
        %4498 = vmatprep.mubr.bf16.mxu0 %v4166
        %4499 = vmatmul.mubr.bf16.gmra.mrb[0].mxu0 %v4165
        %v4500 = vpop.f32.mrb[0].mxu0
        %v4501 = vadd.f32 0.0, %v4500
        %v4502 = vpop.f32.mrb[0].mxu0
        %v4503 = vpop.f32.mrb[0].mxu0
        %v4504 = vadd.f32 0.0, %v4503
        %v4505 = vpop.f32.mrb[0].mxu0
        %4506 = vmatprep.mubr.bf16.mxu0 %v4169
        %4507 = vmatmul.mubr.bf16.gmra.mrb[0].mxu0 %v4168
        %v4508 = vpop.f32.mrb[0].mxu0
        %v4509 = vadd.f32 0.0, %v4508
        %v4510 = vpop.f32.mrb[0].mxu0
        %v4511 = vpop.f32.mrb[0].mxu0
        %v4512 = vadd.f32 0.0, %v4511
        %v4513 = vpop.f32.mrb[0].mxu0
        %4514 = vmatprep.mubr.bf16.mxu0 %v4172
        %4515 = vmatmul.mubr.bf16.gmra.mrb[0].mxu0 %v4171
        %v4516 = vpop.f32.mrb[0].mxu0
        %v4517 = vadd.f32 0.0, %v4516
        %v4518 = vpop.f32.mrb[0].mxu0
        %v4519 = vpop.f32.mrb[0].mxu0
        %v4520 = vadd.f32 0.0, %v4519
        %v4521 = vpop.f32.mrb[0].mxu0
        %4522 = vmatprep.mubr.bf16.mxu0 %v4175
        %4523 = vmatmul.mubr.bf16.gmra.mrb[0].mxu0 %v4174
        %v4524 = vpop.f32.mrb[0].mxu0
        %v4525 = vadd.f32 0.0, %v4524
        %v4526 = vpop.f32.mrb[0].mxu0
        %v4527 = vpop.f32.mrb[0].mxu0
        %v4528 = vadd.f32 0.0, %v4527
        %v4529 = vpop.f32.mrb[0].mxu0
        %4530 = vdwg.mxu0
        %4531 = vmatprep.subr.bf16.mxu0 0
        %4532 = vmatpush1.bf16.msra.mxu0 %v4338
        %4533 = vmatprep.subr.bf16.mxu0 0
        %4534 = vmatpush1.bf16.msra.mxu0 %v4339
        %4535 = vmatprep.subr.bf16.mxu0 0
        %4536 = vmatpush1.bf16.msra.mxu0 %v4340
        %4537 = vmatprep.subr.bf16.mxu0 0
        %4538 = vmatpush1.bf16.msra.mxu0 %v4341
        %4539 = vmatprep.subr.bf16.mxu0 0
        %4540 = vmatpush1.bf16.msra.mxu0 %v4342
        %4541 = vmatprep.subr.bf16.mxu0 0
        %4542 = vmatpush1.bf16.msra.mxu0 %v4343
        %4543 = vmatprep.subr.bf16.mxu0 0
        %4544 = vmatpush1.bf16.msra.mxu0 %v4344
        %4545 = vmatprep.subr.bf16.mxu0 0
        %4546 = vmatpush1.bf16.msra.mxu0 %v4345
        %4547 = vmatprep.subr.bf16.mxu0 0
        %4548 = vmatpush1.bf16.msra.mxu0 0
        %4549 = vmatprep.subr.bf16.mxu0 0
        %4550 = vmatpush1.bf16.msra.mxu0 0
        %4551 = vmatprep.subr.bf16.mxu0 0
        %4552 = vmatpush1.bf16.msra.mxu0 0
        %4553 = vmatprep.subr.bf16.mxu0 0
        %4554 = vmatpush1.bf16.msra.mxu0 0
        %4555 = vmatprep.subr.bf16.mxu0 0
        %4556 = vmatpush1.bf16.msra.mxu0 0
        %4557 = vmatprep.subr.bf16.mxu0 0
        %4558 = vmatpush1.bf16.msra.mxu0 0
        %4559 = vmatprep.subr.bf16.mxu0 0
        %4560 = vmatpush1.bf16.msra.mxu0 0
        %4561 = vmatprep.subr.bf16.mxu0 0
        %4562 = vmatpush1.bf16.msra.mxu0 0
        %4563 = vmatprep.mubr.bf16.mxu0 0
        %4564 = vmatmul.mubr.bf16.gmra.mrb[0].mxu0 %v4131
        %v4565 = vpop.f32.mrb[0].mxu0
        %v4566 = vadd.f32 %v4405, %v4565
        %v4567 = vpop.f32.mrb[0].mxu0
        %v4568 = vpop.f32.mrb[0].mxu0
        %v4569 = vadd.f32 %v4408, %v4568
        %v4570 = vpop.f32.mrb[0].mxu0
        %4571 = vmatprep.mubr.bf16.mxu0 0
        %4572 = vmatmul.mubr.bf16.gmra.mrb[0].mxu0 %v4134
        %v4573 = vpop.f32.mrb[0].mxu0
        %v4574 = vadd.f32 %v4413, %v4573
        %v4575 = vpop.f32.mrb[0].mxu0
        %v4576 = vpop.f32.mrb[0].mxu0
        %v4577 = vadd.f32 %v4416, %v4576
        %v4578 = vpop.f32.mrb[0].mxu0
        %4579 = vmatprep.mubr.bf16.mxu0 0
        %4580 = vmatmul.mubr.bf16.gmra.mrb[0].mxu0 %v4137
        %v4581 = vpop.f32.mrb[0].mxu0
        %v4582 = vadd.f32 %v4421, %v4581
        %v4583 = vpop.f32.mrb[0].mxu0
        %v4584 = vpop.f32.mrb[0].mxu0
        %v4585 = vadd.f32 %v4424, %v4584
        %v4586 = vpop.f32.mrb[0].mxu0
        %4587 = vmatprep.mubr.bf16.mxu0 0
        %4588 = vmatmul.mubr.bf16.gmra.mrb[0].mxu0 %v4140
        %v4589 = vpop.f32.mrb[0].mxu0
        %v4590 = vadd.f32 %v4429, %v4589
        %v4591 = vpop.f32.mrb[0].mxu0
        %v4592 = vpop.f32.mrb[0].mxu0
        %v4593 = vadd.f32 %v4432, %v4592
        %v4594 = vpop.f32.mrb[0].mxu0
        %4595 = vmatprep.mubr.bf16.mxu0 0
        %4596 = vmatmul.mubr.bf16.gmra.mrb[0].mxu0 %v4143
        %v4597 = vpop.f32.mrb[0].mxu0
        %v4598 = vadd.f32 %v4437, %v4597
        %v4599 = vpop.f32.mrb[0].mxu0
        %v4600 = vpop.f32.mrb[0].mxu0
        %v4601 = vadd.f32 %v4440, %v4600
        %v4602 = vpop.f32.mrb[0].mxu0
        %4603 = vmatprep.mubr.bf16.mxu0 0
        %4604 = vmatmul.mubr.bf16.gmra.mrb[0].mxu0 %v4146
        %v4605 = vpop.f32.mrb[0].mxu0
        %v4606 = vadd.f32 %v4445, %v4605
        %v4607 = vpop.f32.mrb[0].mxu0
        %v4608 = vpop.f32.mrb[0].mxu0
        %v4609 = vadd.f32 %v4448, %v4608
        %v4610 = vpop.f32.mrb[0].mxu0
        %4611 = vmatprep.mubr.bf16.mxu0 0
        %4612 = vmatmul.mubr.bf16.gmra.mrb[0].mxu0 %v4149
        %v4613 = vpop.f32.mrb[0].mxu0
        %v4614 = vadd.f32 %v4453, %v4613
        %v4615 = vpop.f32.mrb[0].mxu0
        %v4616 = vpop.f32.mrb[0].mxu0
        %v4617 = vadd.f32 %v4456, %v4616
        %v4618 = vpop.f32.mrb[0].mxu0
        %4619 = vmatprep.mubr.bf16.mxu0 0
        %4620 = vmatmul.mubr.bf16.gmra.mrb[0].mxu0 %v4152
        %v4621 = vpop.f32.mrb[0].mxu0
        %v4622 = vadd.f32 %v4461, %v4621
        %v4623 = vpop.f32.mrb[0].mxu0
        %v4624 = vpop.f32.mrb[0].mxu0
        %v4625 = vadd.f32 %v4464, %v4624
        %v4626 = vpop.f32.mrb[0].mxu0
        %4627 = vmatprep.mubr.bf16.mxu0 0
        %4628 = vmatmul.mubr.bf16.gmra.mrb[0].mxu0 %v4155
        %v4629 = vpop.f32.mrb[0].mxu0
        %v4630 = vadd.f32 %v4469, %v4629
        %v4631 = vpop.f32.mrb[0].mxu0
        %v4632 = vpop.f32.mrb[0].mxu0
        %v4633 = vadd.f32 %v4472, %v4632
        %v4634 = vpop.f32.mrb[0].mxu0
        %4635 = vmatprep.mubr.bf16.mxu0 0
        %4636 = vmatmul.mubr.bf16.gmra.mrb[0].mxu0 %v4158
        %v4637 = vpop.f32.mrb[0].mxu0
        %v4638 = vadd.f32 %v4477, %v4637
        %v4639 = vpop.f32.mrb[0].mxu0
        %v4640 = vpop.f32.mrb[0].mxu0
        %v4641 = vadd.f32 %v4480, %v4640
        %v4642 = vpop.f32.mrb[0].mxu0
        %4643 = vmatprep.mubr.bf16.mxu0 0
        %4644 = vmatmul.mubr.bf16.gmra.mrb[0].mxu0 %v4161
        %v4645 = vpop.f32.mrb[0].mxu0
        %v4646 = vadd.f32 %v4485, %v4645
        %v4647 = vpop.f32.mrb[0].mxu0
        %v4648 = vpop.f32.mrb[0].mxu0
        %v4649 = vadd.f32 %v4488, %v4648
        %v4650 = vpop.f32.mrb[0].mxu0
        %4651 = vmatprep.mubr.bf16.mxu0 0
        %4652 = vmatmul.mubr.bf16.gmra.mrb[0].mxu0 %v4164
        %v4653 = vpop.f32.mrb[0].mxu0
        %v4654 = vadd.f32 %v4493, %v4653
        %v4655 = vpop.f32.mrb[0].mxu0
        %v4656 = vpop.f32.mrb[0].mxu0
        %v4657 = vadd.f32 %v4496, %v4656
        %v4658 = vpop.f32.mrb[0].mxu0
        %4659 = vmatprep.mubr.bf16.mxu0 0
        %4660 = vmatmul.mubr.bf16.gmra.mrb[0].mxu0 %v4167
        %v4661 = vpop.f32.mrb[0].mxu0
        %v4662 = vadd.f32 %v4501, %v4661
        %v4663 = vpop.f32.mrb[0].mxu0
        %v4664 = vpop.f32.mrb[0].mxu0
        %v4665 = vadd.f32 %v4504, %v4664
        %v4666 = vpop.f32.mrb[0].mxu0
        %4667 = vmatprep.mubr.bf16.mxu0 0
        %4668 = vmatmul.mubr.bf16.gmra.mrb[0].mxu0 %v4170
        %v4669 = vpop.f32.mrb[0].mxu0
        %v4670 = vadd.f32 %v4509, %v4669
        %v4671 = vpop.f32.mrb[0].mxu0
        %v4672 = vpop.f32.mrb[0].mxu0
        %v4673 = vadd.f32 %v4512, %v4672
        %v4674 = vpop.f32.mrb[0].mxu0
        %4675 = vmatprep.mubr.bf16.mxu0 0
        %4676 = vmatmul.mubr.bf16.gmra.mrb[0].mxu0 %v4173
        %v4677 = vpop.f32.mrb[0].mxu0
        %v4678 = vadd.f32 %v4517, %v4677
        %v4679 = vpop.f32.mrb[0].mxu0
        %v4680 = vpop.f32.mrb[0].mxu0
        %v4681 = vadd.f32 %v4520, %v4680
        %v4682 = vpop.f32.mrb[0].mxu0
        %4683 = vmatprep.mubr.bf16.mxu0 0
        %4684 = vmatmul.mubr.bf16.gmra.mrb[0].mxu0 %v4176
        %v4685 = vpop.f32.mrb[0].mxu0
        %v4686 = vadd.f32 %v4525, %v4685
        %v4687 = vpop.f32.mrb[0].mxu0
        %v4688 = vpop.f32.mrb[0].mxu0
        %v4689 = vadd.f32 %v4528, %v4688
        %v4690 = vpop.f32.mrb[0].mxu0
        %4691 = vdwg.mxu0
        %v4692 = vadd.f32 %v4003, %v4566
        %v4693 = vadd.f32 %v4006, %v4569
        %v4694 = vadd.f32 %v4011, %v4574
        %v4695 = vadd.f32 %v4014, %v4577
        %v4696 = vadd.f32 %v4019, %v4582
        %v4697 = vadd.f32 %v4022, %v4585
        %v4698 = vadd.f32 %v4027, %v4590
        %v4699 = vadd.f32 %v4030, %v4593
        %v4700 = vadd.f32 %v4035, %v4598
        %v4701 = vadd.f32 %v4038, %v4601
        %v4702 = vadd.f32 %v4043, %v4606
        %v4703 = vadd.f32 %v4046, %v4609
        %v4704 = vadd.f32 %v4051, %v4614
        %v4705 = vadd.f32 %v4054, %v4617
        %v4706 = vadd.f32 %v4059, %v4622
        %v4707 = vadd.f32 %v4062, %v4625
        %v4708 = vadd.f32 %v4067, %v4630
        %v4709 = vadd.f32 %v4070, %v4633
        %v4710 = vadd.f32 %v4075, %v4638
        %v4711 = vadd.f32 %v4078, %v4641
        %v4712 = vadd.f32 %v4083, %v4646
        %v4713 = vadd.f32 %v4086, %v4649
        %v4714 = vadd.f32 %v4091, %v4654
        %v4715 = vadd.f32 %v4094, %v4657
        %v4716 = vadd.f32 %v4099, %v4662
        %v4717 = vadd.f32 %v4102, %v4665
        %v4718 = vadd.f32 %v4107, %v4670
        %v4719 = vadd.f32 %v4110, %v4673
        %v4720 = vadd.f32 %v4115, %v4678
        %v4721 = vadd.f32 %v4118, %v4681
        %v4722 = vadd.f32 %v4123, %v4686
        %v4723 = vadd.f32 %v4126, %v4689
        %v4724 = vld [vmem:[%s3 + $0x2] sm:$0x1]
        %v4725 = vlaneseq
        %v4726 = vshrl.u32 %v4725, 7
        %v4727 = vsub.s32 0, %v4726
        %v4728 = vrot.slane %v4724, %v4727
        %v4729 = vmul.f32 %v4692, %v4728
        %v4730 = vmul.f32 %v4693, %v4728
        %v4731 = vmul.f32 %v4694, %v4728
        %v4732 = vmul.f32 %v4695, %v4728
        %v4733 = vmul.f32 %v4696, %v4728
        %v4734 = vmul.f32 %v4697, %v4728
        %v4735 = vmul.f32 %v4698, %v4728
        %v4736 = vmul.f32 %v4699, %v4728
        %v4737 = vmul.f32 %v4700, %v4728
        %v4738 = vmul.f32 %v4701, %v4728
        %v4739 = vmul.f32 %v4702, %v4728
        %v4740 = vmul.f32 %v4703, %v4728
        %v4741 = vmul.f32 %v4704, %v4728
        %v4742 = vmul.f32 %v4705, %v4728
        %v4743 = vmul.f32 %v4706, %v4728
        %v4744 = vmul.f32 %v4707, %v4728
        %v4745 = vmul.f32 %v4708, %v4728
        %v4746 = vmul.f32 %v4709, %v4728
        %v4747 = vmul.f32 %v4710, %v4728
        %v4748 = vmul.f32 %v4711, %v4728
        %v4749 = vmul.f32 %v4712, %v4728
        %v4750 = vmul.f32 %v4713, %v4728
        %v4751 = vmul.f32 %v4714, %v4728
        %v4752 = vmul.f32 %v4715, %v4728
        %v4753 = vmul.f32 %v4716, %v4728
        %v4754 = vmul.f32 %v4717, %v4728
        %v4755 = vmul.f32 %v4718, %v4728
        %v4756 = vmul.f32 %v4719, %v4728
        %v4757 = vmul.f32 %v4720, %v4728
        %v4758 = vmul.f32 %v4721, %v4728
        %v4759 = vmul.f32 %v4722, %v4728
        %v4760 = vmul.f32 %v4723, %v4728
        %v4761 = vld [vmem:[%s3 + $0x3] sm:$0x1]
        %v4762 = vlaneseq
        %v4763 = vshrl.u32 %v4762, 7
        %v4764 = vsub.s32 0, %v4763
        %v4765 = vrot.slane %v4761, %v4764
        %v4766 = vadd.f32 %v4729, %v4765
        %v4767 = vadd.f32 %v4730, %v4765
        %v4768 = vadd.f32 %v4731, %v4765
        %v4769 = vadd.f32 %v4732, %v4765
        %v4770 = vadd.f32 %v4733, %v4765
        %v4771 = vadd.f32 %v4734, %v4765
        %v4772 = vadd.f32 %v4735, %v4765
        %v4773 = vadd.f32 %v4736, %v4765
        %v4774 = vadd.f32 %v4737, %v4765
        %v4775 = vadd.f32 %v4738, %v4765
        %v4776 = vadd.f32 %v4739, %v4765
        %v4777 = vadd.f32 %v4740, %v4765
        %v4778 = vadd.f32 %v4741, %v4765
        %v4779 = vadd.f32 %v4742, %v4765
        %v4780 = vadd.f32 %v4743, %v4765
        %v4781 = vadd.f32 %v4744, %v4765
        %v4782 = vadd.f32 %v4745, %v4765
        %v4783 = vadd.f32 %v4746, %v4765
        %v4784 = vadd.f32 %v4747, %v4765
        %v4785 = vadd.f32 %v4748, %v4765
        %v4786 = vadd.f32 %v4749, %v4765
        %v4787 = vadd.f32 %v4750, %v4765
        %v4788 = vadd.f32 %v4751, %v4765
        %v4789 = vadd.f32 %v4752, %v4765
        %v4790 = vadd.f32 %v4753, %v4765
        %v4791 = vadd.f32 %v4754, %v4765
        %v4792 = vadd.f32 %v4755, %v4765
        %v4793 = vadd.f32 %v4756, %v4765
        %v4794 = vadd.f32 %v4757, %v4765
        %v4795 = vadd.f32 %v4758, %v4765
        %v4796 = vadd.f32 %v4759, %v4765
        %v4797 = vadd.f32 %v4760, %v4765
        %v4798 = vunpack.c.l.bf16 %v253
        %v4799 = vunpack.c.l.bf16 %v254
        %v4800 = vunpack.c.l.bf16 %v255
        %v4801 = vunpack.c.l.bf16 %v256
        %v4802 = vunpack.c.l.bf16 %v257
        %v4803 = vunpack.c.l.bf16 %v258
        %v4804 = vunpack.c.l.bf16 %v259
        %v4805 = vunpack.c.l.bf16 %v260
        %v4806 = vunpack.c.l.bf16 %v261
        %v4807 = vunpack.c.l.bf16 %v262
        %v4808 = vunpack.c.l.bf16 %v263
        %v4809 = vunpack.c.l.bf16 %v264
        %v4810 = vunpack.c.l.bf16 %v265
        %v4811 = vunpack.c.l.bf16 %v266
        %v4812 = vunpack.c.l.bf16 %v267
        %v4813 = vunpack.c.l.bf16 %v268
        %v4814 = vunpack.c.l.bf16 %v269
        %v4815 = vunpack.c.l.bf16 %v270
        %v4816 = vunpack.c.l.bf16 %v271
        %v4817 = vunpack.c.l.bf16 %v272
        %v4818 = vunpack.c.l.bf16 %v273
        %v4819 = vunpack.c.l.bf16 %v274
        %v4820 = vunpack.c.l.bf16 %v275
        %v4821 = vunpack.c.l.bf16 %v276
        %v4822 = vunpack.c.l.bf16 %v277
        %v4823 = vunpack.c.l.bf16 %v278
        %v4824 = vunpack.c.l.bf16 %v279
        %v4825 = vunpack.c.l.bf16 %v280
        %v4826 = vunpack.c.l.bf16 %v281
        %v4827 = vunpack.c.l.bf16 %v282
        %v4828 = vunpack.c.l.bf16 %v283
        %v4829 = vunpack.c.l.bf16 %v284
        %v4830 = vadd.f32 %v4766, %v4798
        %v4831 = vadd.f32 %v4767, %v4799
        %v4832 = vadd.f32 %v4768, %v4800
        %v4833 = vadd.f32 %v4769, %v4801
        %v4834 = vadd.f32 %v4770, %v4802
        %v4835 = vadd.f32 %v4771, %v4803
        %v4836 = vadd.f32 %v4772, %v4804
        %v4837 = vadd.f32 %v4773, %v4805
        %v4838 = vadd.f32 %v4774, %v4806
        %v4839 = vadd.f32 %v4775, %v4807
        %v4840 = vadd.f32 %v4776, %v4808
        %v4841 = vadd.f32 %v4777, %v4809
        %v4842 = vadd.f32 %v4778, %v4810
        %v4843 = vadd.f32 %v4779, %v4811
        %v4844 = vadd.f32 %v4780, %v4812
        %v4845 = vadd.f32 %v4781, %v4813
        %v4846 = vadd.f32 %v4782, %v4814
        %v4847 = vadd.f32 %v4783, %v4815
        %v4848 = vadd.f32 %v4784, %v4816
        %v4849 = vadd.f32 %v4785, %v4817
        %v4850 = vadd.f32 %v4786, %v4818
        %v4851 = vadd.f32 %v4787, %v4819
        %v4852 = vadd.f32 %v4788, %v4820
        %v4853 = vadd.f32 %v4789, %v4821
        %v4854 = vadd.f32 %v4790, %v4822
        %v4855 = vadd.f32 %v4791, %v4823
        %v4856 = vadd.f32 %v4792, %v4824
        %v4857 = vadd.f32 %v4793, %v4825
        %v4858 = vadd.f32 %v4794, %v4826
        %v4859 = vadd.f32 %v4795, %v4827
        %v4860 = vadd.f32 %v4796, %v4828
        %v4861 = vadd.f32 %v4797, %v4829
        %v4862 = vmax.f32 %v4830, 0.0
        %v4863 = vmax.f32 %v4831, 0.0
        %v4864 = vmax.f32 %v4832, 0.0
        %v4865 = vmax.f32 %v4833, 0.0
        %v4866 = vmax.f32 %v4834, 0.0
        %v4867 = vmax.f32 %v4835, 0.0
        %v4868 = vmax.f32 %v4836, 0.0
        %v4869 = vmax.f32 %v4837, 0.0
        %v4870 = vmax.f32 %v4838, 0.0
        %v4871 = vmax.f32 %v4839, 0.0
        %v4872 = vmax.f32 %v4840, 0.0
        %v4873 = vmax.f32 %v4841, 0.0
        %v4874 = vmax.f32 %v4842, 0.0
        %v4875 = vmax.f32 %v4843, 0.0
        %v4876 = vmax.f32 %v4844, 0.0
        %v4877 = vmax.f32 %v4845, 0.0
        %v4878 = vmax.f32 %v4846, 0.0
        %v4879 = vmax.f32 %v4847, 0.0
        %v4880 = vmax.f32 %v4848, 0.0
        %v4881 = vmax.f32 %v4849, 0.0
        %v4882 = vmax.f32 %v4850, 0.0
        %v4883 = vmax.f32 %v4851, 0.0
        %v4884 = vmax.f32 %v4852, 0.0
        %v4885 = vmax.f32 %v4853, 0.0
        %v4886 = vmax.f32 %v4854, 0.0
        %v4887 = vmax.f32 %v4855, 0.0
        %v4888 = vmax.f32 %v4856, 0.0
        %v4889 = vmax.f32 %v4857, 0.0
        %v4890 = vmax.f32 %v4858, 0.0
        %v4891 = vmax.f32 %v4859, 0.0
        %v4892 = vmax.f32 %v4860, 0.0
        %v4893 = vmax.f32 %v4861, 0.0
        %v4894 = vpack.c.bf16 %v4863, %v4862
        %v4895 = vpack.c.bf16 %v4865, %v4864
        %v4896 = vpack.c.bf16 %v4867, %v4866
        %v4897 = vpack.c.bf16 %v4869, %v4868
        %v4898 = vpack.c.bf16 %v4871, %v4870
        %v4899 = vpack.c.bf16 %v4873, %v4872
        %v4900 = vpack.c.bf16 %v4875, %v4874
        %v4901 = vpack.c.bf16 %v4877, %v4876
        %v4902 = vpack.c.bf16 %v4879, %v4878
        %v4903 = vpack.c.bf16 %v4881, %v4880
        %v4904 = vpack.c.bf16 %v4883, %v4882
        %v4905 = vpack.c.bf16 %v4885, %v4884
        %v4906 = vpack.c.bf16 %v4887, %v4886
        %v4907 = vpack.c.bf16 %v4889, %v4888
        %v4908 = vpack.c.bf16 %v4891, %v4890
        %v4909 = vpack.c.bf16 %v4893, %v4892
        %v4926 = vunpack.c.l.b16 %v4894
        %v4927 = vunpack.c.h.b16 %v4894
        %v4928 = vunpack.c.l.b16 %v4895
        %v4929 = vunpack.c.h.b16 %v4895
        %v4930 = vunpack.c.l.b16 %v4896
        %v4931 = vunpack.c.h.b16 %v4896
        %v4932 = vunpack.c.l.b16 %v4897
        %v4933 = vunpack.c.h.b16 %v4897
        %v4934 = vunpack.c.l.b16 %v4898
        %v4935 = vunpack.c.h.b16 %v4898
        %v4936 = vunpack.c.l.b16 %v4899
        %v4937 = vunpack.c.h.b16 %v4899
        %v4938 = vunpack.c.l.b16 %v4900
        %v4939 = vunpack.c.h.b16 %v4900
        %v4940 = vunpack.c.l.b16 %v4901
        %v4941 = vunpack.c.h.b16 %v4901
        %v4942 = vunpack.c.l.b16 %v4902
        %v4943 = vunpack.c.h.b16 %v4902
        %v4944 = vunpack.c.l.b16 %v4903
        %v4945 = vunpack.c.h.b16 %v4903
        %v4946 = vunpack.c.l.b16 %v4904
        %v4947 = vunpack.c.h.b16 %v4904
        %v4948 = vunpack.c.l.b16 %v4905
        %v4949 = vunpack.c.h.b16 %v4905
        %v4950 = vunpack.c.l.b16 %v4906
        %v4951 = vunpack.c.h.b16 %v4906
        %v4952 = vunpack.c.l.b16 %v4907
        %v4953 = vunpack.c.h.b16 %v4907
        %v4954 = vunpack.c.l.b16 %v4908
        %v4955 = vunpack.c.h.b16 %v4908
        %v4956 = vunpack.c.l.b16 %v4909
        %v4957 = vunpack.c.h.b16 %v4909
        %v4958 = vpack.c.b16 %v4926, %v4926
        %v4959 = vpack.c.b16 %v4927, %v4927
        %v4960 = vpack.c.b16 %v4928, %v4928
        %v4961 = vpack.c.b16 %v4929, %v4929
        %v4962 = vpack.c.b16 %v4930, %v4930
        %v4963 = vpack.c.b16 %v4931, %v4931
        %v4964 = vpack.c.b16 %v4932, %v4932
        %v4965 = vpack.c.b16 %v4933, %v4933
        %v4966 = vpack.c.b16 %v4934, %v4934
        %v4967 = vpack.c.b16 %v4935, %v4935
        %v4968 = vpack.c.b16 %v4936, %v4936
        %v4969 = vpack.c.b16 %v4937, %v4937
        %v4970 = vpack.c.b16 %v4938, %v4938
        %v4971 = vpack.c.b16 %v4939, %v4939
        %v4972 = vpack.c.b16 %v4940, %v4940
        %v4973 = vpack.c.b16 %v4941, %v4941
        %v4974 = vpack.c.b16 %v4942, %v4942
        %v4975 = vpack.c.b16 %v4943, %v4943
        %v4976 = vpack.c.b16 %v4944, %v4944
        %v4977 = vpack.c.b16 %v4945, %v4945
        %v4978 = vpack.c.b16 %v4946, %v4946
        %v4979 = vpack.c.b16 %v4947, %v4947
        %v4980 = vpack.c.b16 %v4948, %v4948
        %v4981 = vpack.c.b16 %v4949, %v4949
        %v4982 = vpack.c.b16 %v4950, %v4950
        %v4983 = vpack.c.b16 %v4951, %v4951
        %v4984 = vpack.c.b16 %v4952, %v4952
        %v4985 = vpack.c.b16 %v4953, %v4953
        %v4986 = vpack.c.b16 %v4954, %v4954
        %v4987 = vpack.c.b16 %v4955, %v4955
        %v4988 = vpack.c.b16 %v4956, %v4956
        %v4989 = vpack.c.b16 %v4957, %v4957
        %5022 = vst [vmem:[%s244] sm:$0xf] %v4958
        %5023 = vst [vmem:[%s244 + $0x4] sm:$0xf] %v4959
        %5024 = vst [vmem:[%s244 + $0x8] sm:$0xf] %v4960
        %5025 = vst [vmem:[%s244 + $0xc] sm:$0xf] %v4961
        %5026 = vst [vmem:[%s244 + $0x10] sm:$0xf] %v4962
        %5027 = vst [vmem:[%s244 + $0x14] sm:$0xf] %v4963
        %5028 = vst [vmem:[%s244 + $0x18] sm:$0xf] %v4964
        %5029 = vst [vmem:[%s244 + $0x1c] sm:$0xf] %v4965
        %5030 = vst [vmem:[%s244 + $0x20] sm:$0xf] %v4966
        %5031 = vst [vmem:[%s244 + $0x24] sm:$0xf] %v4967
        %5032 = vst [vmem:[%s244 + $0x28] sm:$0xf] %v4968
        %5033 = vst [vmem:[%s244 + $0x2c] sm:$0xf] %v4969
        %5034 = vst [vmem:[%s244 + $0x30] sm:$0xf] %v4970
        %5035 = vst [vmem:[%s244 + $0x34] sm:$0xf] %v4971
        %5036 = vst [vmem:[%s244 + $0x38] sm:$0xf] %v4972
        %5037 = vst [vmem:[%s244 + $0x3c] sm:$0xf] %v4973
        %5038 = vst [vmem:[%s244 + $0x40] sm:$0xf] %v4974
        %5039 = vst [vmem:[%s244 + $0x44] sm:$0xf] %v4975
        %5040 = vst [vmem:[%s244 + $0x48] sm:$0xf] %v4976
        %5041 = vst [vmem:[%s244 + $0x4c] sm:$0xf] %v4977
        %5042 = vst [vmem:[%s244 + $0x50] sm:$0xf] %v4978
        %5043 = vst [vmem:[%s244 + $0x54] sm:$0xf] %v4979
        %5044 = vst [vmem:[%s244 + $0x58] sm:$0xf] %v4980
        %5045 = vst [vmem:[%s244 + $0x5c] sm:$0xf] %v4981
        %5046 = vst [vmem:[%s244 + $0x60] sm:$0xf] %v4982
        %5047 = vst [vmem:[%s244 + $0x64] sm:$0xf] %v4983
        %5048 = vst [vmem:[%s244 + $0x68] sm:$0xf] %v4984
        %5049 = vst [vmem:[%s244 + $0x6c] sm:$0xf] %v4985
        %5050 = vst [vmem:[%s244 + $0x70] sm:$0xf] %v4986
        %5051 = vst [vmem:[%s244 + $0x74] sm:$0xf] %v4987
        %5052 = vst [vmem:[%s244 + $0x78] sm:$0xf] %v4988
        %5053 = vst [vmem:[%s244 + $0x7c] sm:$0xf] %v4989
        %s5054 = sand.u32 %s119, 1
        %s5055 = scalar_lea.sflag [#allocation5], %s5054
        %s5056 = sand.u32 %s119, 1
        %s5057 = smul.addr %s5056, 128
        %s5058 = scalar_lea.vmem [#allocation9], %s5057
        // Predicated region
        $region49: #{tpu_custom_call.1} parent=35 // pred_check
          %p5059 = pneg %p129
        $region50: #{tpu_custom_call.1} parent=35 // pred_check_branch
          %5061 = sbr.rel (%p5059) target = $region52
        $region51: #{tpu_custom_call.1} parent=35 // pred_region
          %s5063 = ssub.s32 2048, 2048
          %5064 = vsyncadd %s5055, %s5063
          %s5065 = smul.addr %s22, 32
          %s5066 = smul.addr %s5065, 64
          %s5067 = scalar_lea.hbm %s4, %s5066
          %s5068 = sshll.u32 %s5058, 4
          %s5069 = int_to_ptr.vmem [resolvable:$true] %s5068
          %5074 = dma.vmem_to_hbm [thread:$0]  %s5069, 2048, %s5067, %s5055, 64, 64, 4
        $region52: #{tpu_custom_call.1} parent=35 // pred_fallthru
          _
      $region36: #{tpu_custom_call.1} parent=5 // pred_fallthru
        _
      %p5075 = scmp.le.s32.totalorder 2, %s17
      // Predicated region
      $region53: #{tpu_custom_call.1} parent=5 // pred_check
        %p5076 = pneg %p5075
      $region54: #{tpu_custom_call.1} parent=5 // pred_check_branch
        %5078 = sbr.rel (%p5076) target = $region56
      $region55: #{tpu_custom_call.1} parent=5 // pred_region
        %s5079 = ssub.s32 %s17, 2
        // Predicated region
        $region57: #{tpu_custom_call.1} parent=55 // pred_check
          %p5080 = pneg %p135
        $region58: #{tpu_custom_call.1} parent=55 // pred_check_branch
          %5082 = sbr.rel (%p5080) target = $region60
        $region59: #{tpu_custom_call.1} parent=55 // pred_region
          %s5083 = sand.u32 %s120, 1
          %s5084 = scalar_lea.sflag [#allocation5], %s5083
          %s5085 = sand.u32 %s120, 1
          %s5086 = smul.addr %s5085, 128
          %s5087 = scalar_lea.vmem [#allocation9], %s5086
          %5088 = dma.done %s5084, 2048
        $region60: #{tpu_custom_call.1} parent=55 // pred_fallthru
          _
      $region56: #{tpu_custom_call.1} parent=5 // pred_fallthru
        _
    $region6: #{tpu_custom_call.1} parent=1 // loop_footer
      %s21 = sadd.s32 1, %s17
    $region7: #{tpu_custom_call.1} parent=1 // loop_footer_branch
      %16 = sbr.rel target = $region3
    $region8: #{tpu_custom_call.1} parent=1 // loop_exit
      _
    %5089 = vsyncpa [#allocation4], 1
    %s5090 = scalar_lea.sflag [#allocation4], 1
    %5091 = vsyncpa %s5090, 1
    %5092 = vsyncpa [#allocation7], 1
    %5093 = vsyncpa [#allocation5], 1
    %s5094 = scalar_lea.sflag [#allocation5], 1
    %5095 = vsyncpa %s5094, 1

</llo_original>
